<compile_context>
chip_gen: v7x
topology: tpu7x:2x2x1
jax: 0.10.0
libtpu: 0.0.40
codegen_flags: <defaults>
</compile_context>

<pallas_src>
import functools
import math

import jax
import jax.numpy as jnp
from jax.experimental import pallas as pl
from jax.experimental.pallas import tpu as pltpu

NETWORK_CHANNELS = 64
NUM_BANDS = 64          # x.view(-1, 64, 32, P)
NUM_FRAMES = 32
ENC_FEATS = 8           # per-band embedding size (64 * 8 = 512)
NUM_HEADS = 4
FFN_MULT = 4            # TODO(synk): nn.TransformerEncoderLayer default is 2048, not 4*d_model.
NUM_LAYERS = 4
LEAKY_SLOPE = 0.2       # TODO(synk): BandEncoder source absent; nn.LeakyReLU default is 0.01.
LN_EPS = 1e-5

_PARAM_ORDER = ("w_big", "enc_b", "lin_w", "lin_b",
                "wqkv", "bqkv", "wo", "bo",
                "w1", "b1", "w2", "b2",
                "ln1_g", "ln1_b", "ln2_g", "ln2_b")


# ----------------------------- fused Pallas kernel ---------------------------

def _fused_forward_kernel(
    x_ref, wbig_ref, encb_ref, linw_ref, linb_ref,
    wqkv_ref, bqkv_ref, wo_ref, bo_ref, w1_ref, b1_ref, w2_ref, b2_ref,
    ln1g_ref, ln1b_ref, ln2g_ref, ln2b_ref,
    o_ref, *, tb):
    S = NUM_FRAMES
    C = NETWORK_CHANNELS
    H = NUM_HEADS
    D = C // H
    M = tb * S
    bf16 = jnp.bfloat16

    def layer_norm(z, g, b):
        mean = jnp.mean(z, axis=-1, keepdims=True)
        var = jnp.mean(jnp.square(z - mean), axis=-1, keepdims=True)
        return (z - mean) * jax.lax.rsqrt(var + LN_EPS) * g + b

    # ---- BandEncoder (P->8, LeakyReLU) + permute + Linear(512->64), fused ----
    kp = x_ref.shape[-1]
    x = x_ref[...].reshape(M, kp).astype(bf16)                          # (M, 64*P)
    h = jnp.dot(x, wbig_ref[...], preferred_element_type=jnp.float32)   # (M, 512) f32
    h = h + encb_ref[...]
    h = jnp.where(h >= 0.0, h, LEAKY_SLOPE * h)
    h = jnp.dot(h.astype(bf16), linw_ref[...],
                preferred_element_type=jnp.float32) + linb_ref[...]     # (M, C) f32

    # ---- 4 post-LN transformer encoder layers, fully VMEM-resident ----
    for l in range(NUM_LAYERS):
        qkv = jnp.dot(h.astype(bf16), wqkv_ref[l],
                      preferred_element_type=jnp.float32) + bqkv_ref[l]  # (M, 3C) f32
        wo_l = wo_ref[l]                                                 # (C, C) bf16
        attn = jnp.zeros((M, C), jnp.float32)
        for hd in range(H):
            # slice each head once for the whole batch block; reshapes only split
            # the (row) major dim, so they are relayout-free.
            q = qkv[:, hd * D:(hd + 1) * D].reshape(tb, S, D).astype(bf16)
            k = qkv[:, C + hd * D:C + (hd + 1) * D].reshape(tb, S, D).astype(bf16)
            v = qkv[:, 2 * C + hd * D:2 * C + (hd + 1) * D].reshape(tb, S, D).astype(bf16)
            # 1/sqrt(D) is already folded into the Q projection weights/bias.
            s = jnp.einsum('bqd,bkd->bqk', q, k,
                           preferred_element_type=jnp.float32)          # (tb, S, S)
            s = s - jnp.max(s, axis=-1, keepdims=True)
            p = jnp.exp(s)
            p = p * pl.reciprocal(jnp.sum(p, axis=-1, keepdims=True), approx=False)
            o_h = jnp.einsum('bqk,bkd->bqd', p.astype(bf16), v,
                             preferred_element_type=jnp.float32)         # (tb, S, D)
            attn = attn + jnp.dot(o_h.reshape(M, D).astype(bf16),
                                  wo_l[hd * D:(hd + 1) * D, :],
                                  preferred_element_type=jnp.float32)
        attn = attn + bo_ref[l]
        h = layer_norm(h + attn, ln1g_ref[l], ln1b_ref[l])
        ff = jnp.dot(h.astype(bf16), w1_ref[l],
                     preferred_element_type=jnp.float32) + b1_ref[l]     # (M, 4C)
        ff = jnp.maximum(ff, 0.0)
        ff = jnp.dot(ff.astype(bf16), w2_ref[l],
                     preferred_element_type=jnp.float32) + b2_ref[l]     # (M, C)
        h = layer_norm(h + ff, ln2g_ref[l], ln2b_ref[l])

    o_ref[...] = h.reshape(tb, S, C).astype(o_ref.dtype)


def _full_spec(shape):
    rank = len(shape)
    return pl.BlockSpec(shape, lambda g, _r=rank: (0,) * _r)


def _pick_block_batch(batch):
    # M = tb*32 rows per matmul; tb=8 fills a 256x256 MXU.  Keep >= 2 grid steps
    # whenever possible so v7x's two TensorCores both get work.
    for tb in (8, 4, 2):
        if batch % tb == 0 and batch // tb >= 2:
            return tb
    return 1


def fused_encoder_branch(x_r, params):
    """x_r: (B, 32, 64*P) frame-major input. Returns (B, 32, network_channels)."""
    B, S, KP = x_r.shape
    C = NETWORK_CHANNELS
    tb = _pick_block_batch(B)
    steps = B // tb
    p = params

    in_specs = [pl.BlockSpec((tb, S, KP), lambda g: (g, 0, 0))]
    in_specs += [_full_spec(p[name].shape) for name in _PARAM_ORDER]

    kernel = functools.partial(_fused_forward_kernel, tb=tb)
    return pl.pallas_call(
        kernel,
        out_shape=jax.ShapeDtypeStruct((B, S, C), jnp.float32),
        grid=(steps,),
        in_specs=in_specs,
        out_specs=pl.BlockSpec((tb, S, C), lambda g: (g, 0, 0)),
        compiler_params=pltpu.CompilerParams(
            dimension_semantics=("parallel",),
            vmem_limit_bytes=32 * 1024 * 1024,
        ),
    )(x_r, *(p[name] for name in _PARAM_ORDER))


# ----------------------------- parameters ------------------------------------

def _init_linear(key, fan_in, fan_out):
    bound = 1.0 / math.sqrt(fan_in)
    kw, kb = jax.random.split(key)
    w = jax.random.uniform(kw, (fan_in, fan_out), jnp.float32, -bound, bound)
    b = jax.random.uniform(kb, (fan_out,), jnp.float32, -bound, bound)
    return w, b


def init_params(key, periodicity_feature_size):
    C = NETWORK_CHANNELS
    P = periodicity_feature_size
    L = NUM_LAYERS
    D = C // NUM_HEADS
    scale = 1.0 / math.sqrt(D)
    bf16 = jnp.bfloat16
    keys = jax.random.split(key, 2 + L)

    enc_w, enc_b = _init_linear(keys[0], P, ENC_FEATS)                 # BandEncoder P->8
    lin_w, lin_b = _init_linear(keys[1], NUM_BANDS * ENC_FEATS, C)     # Linear 512->64

    # Block-diagonal expansion: column band*8+e of w_big reproduces the reference's
    # per-band encoder output, so encoder + permute + Linear(512->64) is two
    # lane-dense MXU matmuls with the (M,512) intermediate living only in VMEM.
    w_big = jnp.kron(jnp.eye(NUM_BANDS, dtype=jnp.float32), enc_w)     # (64*P, 512)
    enc_b_rep = jnp.tile(enc_b, NUM_BANDS).reshape(1, NUM_BANDS * ENC_FEATS)

    wqkv, bqkv, wo, bo, w1, b1, w2, b2 = ([] for _ in range(8))
    for l in range(L):
        lk = jax.random.split(keys[2 + l], 6)
        wq_, bq_ = _init_linear(lk[0], C, C)
        wk_, bk_ = _init_linear(lk[1], C, C)
        wv_, bv_ = _init_linear(lk[2], C, C)
        wo_, bo_ = _init_linear(lk[3], C, C)
        w1_, b1_ = _init_linear(lk[4], C, C * FFN_MULT)
        w2_, b2_ = _init_linear(lk[5], C * FFN_MULT, C)
        # Fold the 1/sqrt(D) attention scale into the Q projection (weights + bias).
        wq_ = wq_ * scale
        bq_ = bq_ * scale
        wqkv.append(jnp.concatenate([wq_, wk_, wv_], axis=1))          # (C, 3C)
        bqkv.append(jnp.concatenate([bq_, bk_, bv_])[None, :])         # (1, 3C)
        wo.append(wo_)
        bo.append(bo_[None, :])
        w1.append(w1_)
        b1.append(b1_[None, :])
        w2.append(w2_)
        b2.append(b2_[None, :])

    ones = jnp.ones((L, 1, C), jnp.float32)
    zeros = jnp.zeros((L, 1, C), jnp.float32)
    return dict(
        # bf16 MXU operands (f32 accumulation happens in-kernel); biases/LN stay f32.
        w_big=w_big.astype(bf16), enc_b=enc_b_rep,
        lin_w=lin_w.astype(bf16), lin_b=lin_b.reshape(1, C),
        wqkv=jnp.stack(wqkv).astype(bf16), bqkv=jnp.stack(bqkv),
        wo=jnp.stack(wo).astype(bf16), bo=jnp.stack(bo),
        w1=jnp.stack(w1).astype(bf16), b1=jnp.stack(b1),
        w2=jnp.stack(w2).astype(bf16), b2=jnp.stack(b2),
        ln1_g=ones, ln1_b=zeros, ln2_g=ones, ln2_b=zeros,
    )


# ----------------------------- forward pass -----------------------------------

def encoder_branch_forward(x, params, periodicity_feature_size):
    P = periodicity_feature_size
    x = x.reshape(-1, NUM_BANDS, NUM_FRAMES, P)        # x.view(-1, 64, 32, P)
    B = x.shape[0]
    # Single cheap XLA transpose to frame-major rows; replaces the module's
    # HBM-resident permutes (everything downstream stays inside one kernel).
    x_r = jnp.transpose(x, (0, 2, 1, 3)).reshape(B, NUM_FRAMES, NUM_BANDS * P)
    return fused_encoder_branch(x_r, params)


# ----------------------------- main --------------------------------------------

if __name__ == "__main__":
    periodicity_feature_size = 16
    band_size = 512  # stored by the module but unused in forward()

    key = jax.random.PRNGKey(0)
    kx, kp = jax.random.split(key)
    x = jax.random.normal(
        kx, (2, NUM_BANDS, NUM_FRAMES, periodicity_feature_size), dtype=jnp.float32)
    params = init_params(kp, periodicity_feature_size)

    fwd = jax.jit(functools.partial(
        encoder_branch_forward, periodicity_feature_size=periodicity_feature_size))
    out = fwd(x, params)
    jax.block_until_ready(out)
    assert out.shape == (2, NUM_FRAMES, NETWORK_CHANNELS), out.shape
    assert bool(jnp.all(jnp.isfinite(out)))
    print("KERNEL_OK")
</pallas_src>

<mosaic_0001>
module attributes {stable_mosaic.version = 11 : i64} {
  func.func @_fused_forward_kernel(%arg0: i32, %arg1: memref<1x32x1024xf32, #tpu.memory_space<vmem>>, %arg2: memref<1024x512xbf16, #tpu.memory_space<vmem>>, %arg3: memref<1x512xf32, #tpu.memory_space<vmem>>, %arg4: memref<512x64xbf16, #tpu.memory_space<vmem>>, %arg5: memref<1x64xf32, #tpu.memory_space<vmem>>, %arg6: memref<4x64x192xbf16, #tpu.memory_space<vmem>>, %arg7: memref<4x1x192xf32, #tpu.memory_space<vmem>>, %arg8: memref<4x64x64xbf16, #tpu.memory_space<vmem>>, %arg9: memref<4x1x64xf32, #tpu.memory_space<vmem>>, %arg10: memref<4x64x256xbf16, #tpu.memory_space<vmem>>, %arg11: memref<4x1x256xf32, #tpu.memory_space<vmem>>, %arg12: memref<4x256x64xbf16, #tpu.memory_space<vmem>>, %arg13: memref<4x1x64xf32, #tpu.memory_space<vmem>>, %arg14: memref<4x1x64xf32, #tpu.memory_space<vmem>>, %arg15: memref<4x1x64xf32, #tpu.memory_space<vmem>>, %arg16: memref<4x1x64xf32, #tpu.memory_space<vmem>>, %arg17: memref<4x1x64xf32, #tpu.memory_space<vmem>>, %arg18: memref<1x32x64xf32, #tpu.memory_space<vmem>>) attributes {dimension_semantics = [#tpu.dimension_semantics<parallel>], iteration_bounds = array<i64: 2>, scalar_prefetch = 0 : i64, scratch_operands = 0 : i64, tpu.core_type = #tpu.core_type<tc>, window_params = [{transform_indices = @transform_0, window_bounds = array<i64: 1, 32, 1024>}, {pipeline_mode = #tpu.pipeline_mode<synchronous>, transform_indices = @transform_1, window_bounds = array<i64: 1024, 512>}, {pipeline_mode = #tpu.pipeline_mode<synchronous>, transform_indices = @transform_2, window_bounds = array<i64: 1, 512>}, {pipeline_mode = #tpu.pipeline_mode<synchronous>, transform_indices = @transform_3, window_bounds = array<i64: 512, 64>}, {pipeline_mode = #tpu.pipeline_mode<synchronous>, transform_indices = @transform_4, window_bounds = array<i64: 1, 64>}, {pipeline_mode = #tpu.pipeline_mode<synchronous>, transform_indices = @transform_5, window_bounds = array<i64: 4, 64, 192>}, {pipeline_mode = #tpu.pipeline_mode<synchronous>, transform_indices = @transform_6, window_bounds = array<i64: 4, 1, 192>}, {pipeline_mode = #tpu.pipeline_mode<synchronous>, transform_indices = @transform_7, window_bounds = array<i64: 4, 64, 64>}, {pipeline_mode = #tpu.pipeline_mode<synchronous>, transform_indices = @transform_8, window_bounds = array<i64: 4, 1, 64>}, {pipeline_mode = #tpu.pipeline_mode<synchronous>, transform_indices = @transform_9, window_bounds = array<i64: 4, 64, 256>}, {pipeline_mode = #tpu.pipeline_mode<synchronous>, transform_indices = @transform_10, window_bounds = array<i64: 4, 1, 256>}, {pipeline_mode = #tpu.pipeline_mode<synchronous>, transform_indices = @transform_11, window_bounds = array<i64: 4, 256, 64>}, {pipeline_mode = #tpu.pipeline_mode<synchronous>, transform_indices = @transform_12, window_bounds = array<i64: 4, 1, 64>}, {pipeline_mode = #tpu.pipeline_mode<synchronous>, transform_indices = @transform_13, window_bounds = array<i64: 4, 1, 64>}, {pipeline_mode = #tpu.pipeline_mode<synchronous>, transform_indices = @transform_14, window_bounds = array<i64: 4, 1, 64>}, {pipeline_mode = #tpu.pipeline_mode<synchronous>, transform_indices = @transform_15, window_bounds = array<i64: 4, 1, 64>}, {pipeline_mode = #tpu.pipeline_mode<synchronous>, transform_indices = @transform_16, window_bounds = array<i64: 4, 1, 64>}, {transform_indices = @transform_17, window_bounds = array<i64: 1, 32, 64>}]} {
    %c0 = arith.constant 0 : index
    %c0_0 = arith.constant 0 : index
    %c0_1 = arith.constant 0 : index
    %0 = vector.load %arg1[%c0, %c0_0, %c0_1] : memref<1x32x1024xf32, #tpu.memory_space<vmem>>, vector<1x32x1024xf32>
    %1 = vector.shape_cast %0 : vector<1x32x1024xf32> to vector<32x1024xf32>
    %2 = arith.truncf %1 : vector<32x1024xf32> to vector<32x1024xbf16>
    %c0_2 = arith.constant 0 : index
    %c0_3 = arith.constant 0 : index
    %3 = vector.load %arg2[%c0_2, %c0_3] : memref<1024x512xbf16, #tpu.memory_space<vmem>>, vector<1024x512xbf16>
    %cst = arith.constant dense<0.000000e+00> : vector<32x512xf32>
    %4 = tpu.matmul %2, %3, %cst {dimension_numbers = #tpu.dot_dimension_numbers<[1], [0], [0], [1], [0, 0, 1, 1], [], []>} : vector<32x1024xbf16>, vector<1024x512xbf16>, vector<32x512xf32> -> vector<32x512xf32>
    %c0_4 = arith.constant 0 : index
    %c0_5 = arith.constant 0 : index
    %5 = vector.load %arg3[%c0_4, %c0_5] : memref<1x512xf32, #tpu.memory_space<vmem>>, vector<1x512xf32>
    %6 = vector.broadcast %5 : vector<1x512xf32> to vector<32x512xf32>
    %7 = arith.addf %4, %6 : vector<32x512xf32>
    %cst_6 = arith.constant 0.000000e+00 : f32
    %8 = vector.broadcast %cst_6 : f32 to vector<32x512xf32>
    %9 = arith.cmpf oge, %7, %8 : vector<32x512xf32>
    %cst_7 = arith.constant 2.000000e-01 : f32
    %10 = vector.broadcast %cst_7 : f32 to vector<32x512xf32>
    %11 = arith.mulf %10, %7 : vector<32x512xf32>
    %12 = arith.select %9, %7, %11 : vector<32x512xi1>, vector<32x512xf32>
    %13 = arith.truncf %12 : vector<32x512xf32> to vector<32x512xbf16>
    %c0_8 = arith.constant 0 : index
    %c0_9 = arith.constant 0 : index
    %14 = vector.load %arg4[%c0_8, %c0_9] : memref<512x64xbf16, #tpu.memory_space<vmem>>, vector<512x64xbf16>
    %cst_10 = arith.constant dense<0.000000e+00> : vector<32x64xf32>
    %15 = tpu.matmul %13, %14, %cst_10 {dimension_numbers = #tpu.dot_dimension_numbers<[1], [0], [0], [1], [0, 0, 1, 1], [], []>} : vector<32x512xbf16>, vector<512x64xbf16>, vector<32x64xf32> -> vector<32x64xf32>
    %c0_11 = arith.constant 0 : index
    %c0_12 = arith.constant 0 : index
    %16 = vector.load %arg5[%c0_11, %c0_12] : memref<1x64xf32, #tpu.memory_space<vmem>>, vector<1x64xf32>
    %17 = vector.broadcast %16 : vector<1x64xf32> to vector<32x64xf32>
    %18 = arith.addf %15, %17 : vector<32x64xf32>
    %19 = arith.truncf %18 : vector<32x64xf32> to vector<32x64xbf16>
    %c0_13 = arith.constant 0 : index
    %c0_14 = arith.constant 0 : index
    %c0_15 = arith.constant 0 : index
    %20 = vector.load %arg6[%c0_13, %c0_14, %c0_15] : memref<4x64x192xbf16, #tpu.memory_space<vmem>>, vector<1x64x192xbf16>
    %21 = vector.shape_cast %20 : vector<1x64x192xbf16> to vector<64x192xbf16>
    %cst_16 = arith.constant dense<0.000000e+00> : vector<32x192xf32>
    %22 = tpu.matmul %19, %21, %cst_16 {dimension_numbers = #tpu.dot_dimension_numbers<[1], [0], [0], [1], [0, 0, 1, 1], [], []>} : vector<32x64xbf16>, vector<64x192xbf16>, vector<32x192xf32> -> vector<32x192xf32>
    %c0_17 = arith.constant 0 : index
    %c0_18 = arith.constant 0 : index
    %c0_19 = arith.constant 0 : index
    %23 = vector.load %arg7[%c0_17, %c0_18, %c0_19] : memref<4x1x192xf32, #tpu.memory_space<vmem>>, vector<1x1x192xf32>
    %24 = vector.shape_cast %23 : vector<1x1x192xf32> to vector<1x192xf32>
    %25 = vector.broadcast %24 : vector<1x192xf32> to vector<32x192xf32>
    %26 = arith.addf %22, %25 : vector<32x192xf32>
    %c0_20 = arith.constant 0 : index
    %c0_21 = arith.constant 0 : index
    %c0_22 = arith.constant 0 : index
    %27 = vector.load %arg8[%c0_20, %c0_21, %c0_22] : memref<4x64x64xbf16, #tpu.memory_space<vmem>>, vector<1x64x64xbf16>
    %28 = vector.shape_cast %27 : vector<1x64x64xbf16> to vector<64x64xbf16>
    %cst_23 = arith.constant 0.000000e+00 : f32
    %29 = vector.broadcast %cst_23 : f32 to vector<32x64xf32>
    %30 = vector.extract_strided_slice %26 {offsets = [0, 0], sizes = [32, 16], strides = [1, 1]} : vector<32x192xf32> to vector<32x16xf32>
    %31 = vector.shape_cast %30 : vector<32x16xf32> to vector<1x32x16xf32>
    %32 = arith.truncf %31 : vector<1x32x16xf32> to vector<1x32x16xbf16>
    %33 = vector.extract_strided_slice %26 {offsets = [0, 64], sizes = [32, 16], strides = [1, 1]} : vector<32x192xf32> to vector<32x16xf32>
    %34 = vector.shape_cast %33 : vector<32x16xf32> to vector<1x32x16xf32>
    %35 = arith.truncf %34 : vector<1x32x16xf32> to vector<1x32x16xbf16>
    %36 = vector.extract_strided_slice %26 {offsets = [0, 128], sizes = [32, 16], strides = [1, 1]} : vector<32x192xf32> to vector<32x16xf32>
    %37 = vector.shape_cast %36 : vector<32x16xf32> to vector<1x32x16xf32>
    %38 = arith.truncf %37 : vector<1x32x16xf32> to vector<1x32x16xbf16>
    "tpu.trace_start"() <{level = 10 : i32, message = "bqd,bkd->bqk"}> : () -> ()
    %cst_24 = arith.constant dense<0.000000e+00> : vector<1x32x32xf32>
    %39 = tpu.matmul %32, %35, %cst_24 {dimension_numbers = #tpu.dot_dimension_numbers<[2], [2], [1], [1], [0, 0, 0, 1, 1, 1], [0], [0]>} : vector<1x32x16xbf16>, vector<1x32x16xbf16>, vector<1x32x32xf32> -> vector<1x32x32xf32>
    "tpu.trace_stop"() : () -> ()
    %cst_25 = arith.constant dense<0xFF800000> : vector<1x32xf32>
    %40 = vector.multi_reduction <maximumf>, %39, %cst_25 [2] : vector<1x32x32xf32> to vector<1x32xf32>
    %41 = vector.shape_cast %40 : vector<1x32xf32> to vector<1x32x1xf32>
    %42 = vector.broadcast %41 : vector<1x32x1xf32> to vector<1x32x32xf32>
    %43 = arith.subf %39, %42 : vector<1x32x32xf32>
    %44 = math.exp %43 : vector<1x32x32xf32>
    %cst_26 = arith.constant dense<0.000000e+00> : vector<1x32xf32>
    %45 = vector.multi_reduction <add>, %44, %cst_26 [2] : vector<1x32x32xf32> to vector<1x32xf32>
    %46 = vector.shape_cast %45 : vector<1x32xf32> to vector<1x32x1xf32>
    %47 = tpu.reciprocal %46 : vector<1x32x1xf32> -> vector<1x32x1xf32>
    %48 = vector.broadcast %47 : vector<1x32x1xf32> to vector<1x32x32xf32>
    %49 = arith.mulf %44, %48 : vector<1x32x32xf32>
    %50 = arith.truncf %49 : vector<1x32x32xf32> to vector<1x32x32xbf16>
    "tpu.trace_start"() <{level = 10 : i32, message = "bqk,bkd->bqd"}> : () -> ()
    %cst_27 = arith.constant dense<0.000000e+00> : vector<1x32x16xf32>
    %51 = tpu.matmul %50, %38, %cst_27 {dimension_numbers = #tpu.dot_dimension_numbers<[2], [1], [1], [2], [0, 0, 0, 1, 1, 2], [0], [0]>} : vector<1x32x32xbf16>, vector<1x32x16xbf16>, vector<1x32x16xf32> -> vector<1x32x16xf32>
    "tpu.trace_stop"() : () -> ()
    %52 = vector.shape_cast %51 : vector<1x32x16xf32> to vector<32x16xf32>
    %53 = arith.truncf %52 : vector<32x16xf32> to vector<32x16xbf16>
    %54 = vector.extract_strided_slice %28 {offsets = [0, 0], sizes = [16, 64], strides = [1, 1]} : vector<64x64xbf16> to vector<16x64xbf16>
    %cst_28 = arith.constant dense<0.000000e+00> : vector<32x64xf32>
    %55 = tpu.matmul %53, %54, %cst_28 {dimension_numbers = #tpu.dot_dimension_numbers<[1], [0], [0], [1], [0, 0, 1, 1], [], []>} : vector<32x16xbf16>, vector<16x64xbf16>, vector<32x64xf32> -> vector<32x64xf32>
    %56 = arith.addf %29, %55 : vector<32x64xf32>
    %57 = vector.extract_strided_slice %26 {offsets = [0, 16], sizes = [32, 16], strides = [1, 1]} : vector<32x192xf32> to vector<32x16xf32>
    %58 = vector.shape_cast %57 : vector<32x16xf32> to vector<1x32x16xf32>
    %59 = arith.truncf %58 : vector<1x32x16xf32> to vector<1x32x16xbf16>
    %60 = vector.extract_strided_slice %26 {offsets = [0, 80], sizes = [32, 16], strides = [1, 1]} : vector<32x192xf32> to vector<32x16xf32>
    %61 = vector.shape_cast %60 : vector<32x16xf32> to vector<1x32x16xf32>
    %62 = arith.truncf %61 : vector<1x32x16xf32> to vector<1x32x16xbf16>
    %63 = vector.extract_strided_slice %26 {offsets = [0, 144], sizes = [32, 16], strides = [1, 1]} : vector<32x192xf32> to vector<32x16xf32>
    %64 = vector.shape_cast %63 : vector<32x16xf32> to vector<1x32x16xf32>
    %65 = arith.truncf %64 : vector<1x32x16xf32> to vector<1x32x16xbf16>
    "tpu.trace_start"() <{level = 10 : i32, message = "bqd,bkd->bqk"}> : () -> ()
    %cst_29 = arith.constant dense<0.000000e+00> : vector<1x32x32xf32>
    %66 = tpu.matmul %59, %62, %cst_29 {dimension_numbers = #tpu.dot_dimension_numbers<[2], [2], [1], [1], [0, 0, 0, 1, 1, 1], [0], [0]>} : vector<1x32x16xbf16>, vector<1x32x16xbf16>, vector<1x32x32xf32> -> vector<1x32x32xf32>
    "tpu.trace_stop"() : () -> ()
    %cst_30 = arith.constant dense<0xFF800000> : vector<1x32xf32>
    %67 = vector.multi_reduction <maximumf>, %66, %cst_30 [2] : vector<1x32x32xf32> to vector<1x32xf32>
    %68 = vector.shape_cast %67 : vector<1x32xf32> to vector<1x32x1xf32>
    %69 = vector.broadcast %68 : vector<1x32x1xf32> to vector<1x32x32xf32>
    %70 = arith.subf %66, %69 : vector<1x32x32xf32>
    %71 = math.exp %70 : vector<1x32x32xf32>
    %cst_31 = arith.constant dense<0.000000e+00> : vector<1x32xf32>
    %72 = vector.multi_reduction <add>, %71, %cst_31 [2] : vector<1x32x32xf32> to vector<1x32xf32>
    %73 = vector.shape_cast %72 : vector<1x32xf32> to vector<1x32x1xf32>
    %74 = tpu.reciprocal %73 : vector<1x32x1xf32> -> vector<1x32x1xf32>
    %75 = vector.broadcast %74 : vector<1x32x1xf32> to vector<1x32x32xf32>
    %76 = arith.mulf %71, %75 : vector<1x32x32xf32>
    %77 = arith.truncf %76 : vector<1x32x32xf32> to vector<1x32x32xbf16>
    "tpu.trace_start"() <{level = 10 : i32, message = "bqk,bkd->bqd"}> : () -> ()
    %cst_32 = arith.constant dense<0.000000e+00> : vector<1x32x16xf32>
    %78 = tpu.matmul %77, %65, %cst_32 {dimension_numbers = #tpu.dot_dimension_numbers<[2], [1], [1], [2], [0, 0, 0, 1, 1, 2], [0], [0]>} : vector<1x32x32xbf16>, vector<1x32x16xbf16>, vector<1x32x16xf32> -> vector<1x32x16xf32>
    "tpu.trace_stop"() : () -> ()
    %79 = vector.shape_cast %78 : vector<1x32x16xf32> to vector<32x16xf32>
    %80 = arith.truncf %79 : vector<32x16xf32> to vector<32x16xbf16>
    %81 = vector.extract_strided_slice %28 {offsets = [16, 0], sizes = [16, 64], strides = [1, 1]} : vector<64x64xbf16> to vector<16x64xbf16>
    %cst_33 = arith.constant dense<0.000000e+00> : vector<32x64xf32>
    %82 = tpu.matmul %80, %81, %cst_33 {dimension_numbers = #tpu.dot_dimension_numbers<[1], [0], [0], [1], [0, 0, 1, 1], [], []>} : vector<32x16xbf16>, vector<16x64xbf16>, vector<32x64xf32> -> vector<32x64xf32>
    %83 = arith.addf %56, %82 : vector<32x64xf32>
    %84 = vector.extract_strided_slice %26 {offsets = [0, 32], sizes = [32, 16], strides = [1, 1]} : vector<32x192xf32> to vector<32x16xf32>
    %85 = vector.shape_cast %84 : vector<32x16xf32> to vector<1x32x16xf32>
    %86 = arith.truncf %85 : vector<1x32x16xf32> to vector<1x32x16xbf16>
    %87 = vector.extract_strided_slice %26 {offsets = [0, 96], sizes = [32, 16], strides = [1, 1]} : vector<32x192xf32> to vector<32x16xf32>
    %88 = vector.shape_cast %87 : vector<32x16xf32> to vector<1x32x16xf32>
    %89 = arith.truncf %88 : vector<1x32x16xf32> to vector<1x32x16xbf16>
    %90 = vector.extract_strided_slice %26 {offsets = [0, 160], sizes = [32, 16], strides = [1, 1]} : vector<32x192xf32> to vector<32x16xf32>
    %91 = vector.shape_cast %90 : vector<32x16xf32> to vector<1x32x16xf32>
    %92 = arith.truncf %91 : vector<1x32x16xf32> to vector<1x32x16xbf16>
    "tpu.trace_start"() <{level = 10 : i32, message = "bqd,bkd->bqk"}> : () -> ()
    %cst_34 = arith.constant dense<0.000000e+00> : vector<1x32x32xf32>
    %93 = tpu.matmul %86, %89, %cst_34 {dimension_numbers = #tpu.dot_dimension_numbers<[2], [2], [1], [1], [0, 0, 0, 1, 1, 1], [0], [0]>} : vector<1x32x16xbf16>, vector<1x32x16xbf16>, vector<1x32x32xf32> -> vector<1x32x32xf32>
    "tpu.trace_stop"() : () -> ()
    %cst_35 = arith.constant dense<0xFF800000> : vector<1x32xf32>
    %94 = vector.multi_reduction <maximumf>, %93, %cst_35 [2] : vector<1x32x32xf32> to vector<1x32xf32>
    %95 = vector.shape_cast %94 : vector<1x32xf32> to vector<1x32x1xf32>
    %96 = vector.broadcast %95 : vector<1x32x1xf32> to vector<1x32x32xf32>
    %97 = arith.subf %93, %96 : vector<1x32x32xf32>
    %98 = math.exp %97 : vector<1x32x32xf32>
    %cst_36 = arith.constant dense<0.000000e+00> : vector<1x32xf32>
    %99 = vector.multi_reduction <add>, %98, %cst_36 [2] : vector<1x32x32xf32> to vector<1x32xf32>
    %100 = vector.shape_cast %99 : vector<1x32xf32> to vector<1x32x1xf32>
    %101 = tpu.reciprocal %100 : vector<1x32x1xf32> -> vector<1x32x1xf32>
    %102 = vector.broadcast %101 : vector<1x32x1xf32> to vector<1x32x32xf32>
    %103 = arith.mulf %98, %102 : vector<1x32x32xf32>
    %104 = arith.truncf %103 : vector<1x32x32xf32> to vector<1x32x32xbf16>
    "tpu.trace_start"() <{level = 10 : i32, message = "bqk,bkd->bqd"}> : () -> ()
    %cst_37 = arith.constant dense<0.000000e+00> : vector<1x32x16xf32>
    %105 = tpu.matmul %104, %92, %cst_37 {dimension_numbers = #tpu.dot_dimension_numbers<[2], [1], [1], [2], [0, 0, 0, 1, 1, 2], [0], [0]>} : vector<1x32x32xbf16>, vector<1x32x16xbf16>, vector<1x32x16xf32> -> vector<1x32x16xf32>
    "tpu.trace_stop"() : () -> ()
    %106 = vector.shape_cast %105 : vector<1x32x16xf32> to vector<32x16xf32>
    %107 = arith.truncf %106 : vector<32x16xf32> to vector<32x16xbf16>
    %108 = vector.extract_strided_slice %28 {offsets = [32, 0], sizes = [16, 64], strides = [1, 1]} : vector<64x64xbf16> to vector<16x64xbf16>
    %cst_38 = arith.constant dense<0.000000e+00> : vector<32x64xf32>
    %109 = tpu.matmul %107, %108, %cst_38 {dimension_numbers = #tpu.dot_dimension_numbers<[1], [0], [0], [1], [0, 0, 1, 1], [], []>} : vector<32x16xbf16>, vector<16x64xbf16>, vector<32x64xf32> -> vector<32x64xf32>
    %110 = arith.addf %83, %109 : vector<32x64xf32>
    %111 = vector.extract_strided_slice %26 {offsets = [0, 48], sizes = [32, 16], strides = [1, 1]} : vector<32x192xf32> to vector<32x16xf32>
    %112 = vector.shape_cast %111 : vector<32x16xf32> to vector<1x32x16xf32>
    %113 = arith.truncf %112 : vector<1x32x16xf32> to vector<1x32x16xbf16>
    %114 = vector.extract_strided_slice %26 {offsets = [0, 112], sizes = [32, 16], strides = [1, 1]} : vector<32x192xf32> to vector<32x16xf32>
    %115 = vector.shape_cast %114 : vector<32x16xf32> to vector<1x32x16xf32>
    %116 = arith.truncf %115 : vector<1x32x16xf32> to vector<1x32x16xbf16>
    %117 = vector.extract_strided_slice %26 {offsets = [0, 176], sizes = [32, 16], strides = [1, 1]} : vector<32x192xf32> to vector<32x16xf32>
    %118 = vector.shape_cast %117 : vector<32x16xf32> to vector<1x32x16xf32>
    %119 = arith.truncf %118 : vector<1x32x16xf32> to vector<1x32x16xbf16>
    "tpu.trace_start"() <{level = 10 : i32, message = "bqd,bkd->bqk"}> : () -> ()
    %cst_39 = arith.constant dense<0.000000e+00> : vector<1x32x32xf32>
    %120 = tpu.matmul %113, %116, %cst_39 {dimension_numbers = #tpu.dot_dimension_numbers<[2], [2], [1], [1], [0, 0, 0, 1, 1, 1], [0], [0]>} : vector<1x32x16xbf16>, vector<1x32x16xbf16>, vector<1x32x32xf32> -> vector<1x32x32xf32>
    "tpu.trace_stop"() : () -> ()
    %cst_40 = arith.constant dense<0xFF800000> : vector<1x32xf32>
    %121 = vector.multi_reduction <maximumf>, %120, %cst_40 [2] : vector<1x32x32xf32> to vector<1x32xf32>
    %122 = vector.shape_cast %121 : vector<1x32xf32> to vector<1x32x1xf32>
    %123 = vector.broadcast %122 : vector<1x32x1xf32> to vector<1x32x32xf32>
    %124 = arith.subf %120, %123 : vector<1x32x32xf32>
    %125 = math.exp %124 : vector<1x32x32xf32>
    %cst_41 = arith.constant dense<0.000000e+00> : vector<1x32xf32>
    %126 = vector.multi_reduction <add>, %125, %cst_41 [2] : vector<1x32x32xf32> to vector<1x32xf32>
    %127 = vector.shape_cast %126 : vector<1x32xf32> to vector<1x32x1xf32>
    %128 = tpu.reciprocal %127 : vector<1x32x1xf32> -> vector<1x32x1xf32>
    %129 = vector.broadcast %128 : vector<1x32x1xf32> to vector<1x32x32xf32>
    %130 = arith.mulf %125, %129 : vector<1x32x32xf32>
    %131 = arith.truncf %130 : vector<1x32x32xf32> to vector<1x32x32xbf16>
    "tpu.trace_start"() <{level = 10 : i32, message = "bqk,bkd->bqd"}> : () -> ()
    %cst_42 = arith.constant dense<0.000000e+00> : vector<1x32x16xf32>
    %132 = tpu.matmul %131, %119, %cst_42 {dimension_numbers = #tpu.dot_dimension_numbers<[2], [1], [1], [2], [0, 0, 0, 1, 1, 2], [0], [0]>} : vector<1x32x32xbf16>, vector<1x32x16xbf16>, vector<1x32x16xf32> -> vector<1x32x16xf32>
    "tpu.trace_stop"() : () -> ()
    %133 = vector.shape_cast %132 : vector<1x32x16xf32> to vector<32x16xf32>
    %134 = arith.truncf %133 : vector<32x16xf32> to vector<32x16xbf16>
    %135 = vector.extract_strided_slice %28 {offsets = [48, 0], sizes = [16, 64], strides = [1, 1]} : vector<64x64xbf16> to vector<16x64xbf16>
    %cst_43 = arith.constant dense<0.000000e+00> : vector<32x64xf32>
    %136 = tpu.matmul %134, %135, %cst_43 {dimension_numbers = #tpu.dot_dimension_numbers<[1], [0], [0], [1], [0, 0, 1, 1], [], []>} : vector<32x16xbf16>, vector<16x64xbf16>, vector<32x64xf32> -> vector<32x64xf32>
    %137 = arith.addf %110, %136 : vector<32x64xf32>
    %c0_44 = arith.constant 0 : index
    %c0_45 = arith.constant 0 : index
    %c0_46 = arith.constant 0 : index
    %138 = vector.load %arg9[%c0_44, %c0_45, %c0_46] : memref<4x1x64xf32, #tpu.memory_space<vmem>>, vector<1x1x64xf32>
    %139 = vector.shape_cast %138 : vector<1x1x64xf32> to vector<1x64xf32>
    %140 = vector.broadcast %139 : vector<1x64xf32> to vector<32x64xf32>
    %141 = arith.addf %137, %140 : vector<32x64xf32>
    %142 = arith.addf %18, %141 : vector<32x64xf32>
    %c0_47 = arith.constant 0 : index
    %c0_48 = arith.constant 0 : index
    %c0_49 = arith.constant 0 : index
    %143 = vector.load %arg14[%c0_47, %c0_48, %c0_49] : memref<4x1x64xf32, #tpu.memory_space<vmem>>, vector<1x1x64xf32>
    %144 = vector.shape_cast %143 : vector<1x1x64xf32> to vector<1x64xf32>
    %c0_50 = arith.constant 0 : index
    %c0_51 = arith.constant 0 : index
    %c0_52 = arith.constant 0 : index
    %145 = vector.load %arg15[%c0_50, %c0_51, %c0_52] : memref<4x1x64xf32, #tpu.memory_space<vmem>>, vector<1x1x64xf32>
    %146 = vector.shape_cast %145 : vector<1x1x64xf32> to vector<1x64xf32>
    %cst_53 = arith.constant dense<0.000000e+00> : vector<32xf32>
    %147 = vector.multi_reduction <add>, %142, %cst_53 [1] : vector<32x64xf32> to vector<32xf32>
    %148 = vector.shape_cast %147 : vector<32xf32> to vector<32x1xf32>
    %cst_54 = arith.constant 6.400000e+01 : f32
    %149 = vector.broadcast %cst_54 : f32 to vector<32x1xf32>
    %150 = arith.divf %148, %149 : vector<32x1xf32>
    %151 = vector.broadcast %150 : vector<32x1xf32> to vector<32x64xf32>
    %152 = arith.subf %142, %151 : vector<32x64xf32>
    %153 = arith.mulf %152, %152 : vector<32x64xf32>
    %cst_55 = arith.constant dense<0.000000e+00> : vector<32xf32>
    %154 = vector.multi_reduction <add>, %153, %cst_55 [1] : vector<32x64xf32> to vector<32xf32>
    %155 = vector.shape_cast %154 : vector<32xf32> to vector<32x1xf32>
    %cst_56 = arith.constant 6.400000e+01 : f32
    %156 = vector.broadcast %cst_56 : f32 to vector<32x1xf32>
    %157 = arith.divf %155, %156 : vector<32x1xf32>
    %158 = vector.broadcast %150 : vector<32x1xf32> to vector<32x64xf32>
    %159 = arith.subf %142, %158 : vector<32x64xf32>
    %cst_57 = arith.constant 9.99999974E-6 : f32
    %160 = vector.broadcast %cst_57 : f32 to vector<32x1xf32>
    %161 = arith.addf %157, %160 : vector<32x1xf32>
    %162 = math.rsqrt %161 : vector<32x1xf32>
    %163 = vector.broadcast %162 : vector<32x1xf32> to vector<32x64xf32>
    %164 = arith.mulf %159, %163 : vector<32x64xf32>
    %165 = vector.broadcast %144 : vector<1x64xf32> to vector<32x64xf32>
    %166 = arith.mulf %164, %165 : vector<32x64xf32>
    %167 = vector.broadcast %146 : vector<1x64xf32> to vector<32x64xf32>
    %168 = arith.addf %166, %167 : vector<32x64xf32>
    %169 = arith.truncf %168 : vector<32x64xf32> to vector<32x64xbf16>
    %c0_58 = arith.constant 0 : index
    %c0_59 = arith.constant 0 : index
    %c0_60 = arith.constant 0 : index
    %170 = vector.load %arg10[%c0_58, %c0_59, %c0_60] : memref<4x64x256xbf16, #tpu.memory_space<vmem>>, vector<1x64x256xbf16>
    %171 = vector.shape_cast %170 : vector<1x64x256xbf16> to vector<64x256xbf16>
    %cst_61 = arith.constant dense<0.000000e+00> : vector<32x256xf32>
    %172 = tpu.matmul %169, %171, %cst_61 {dimension_numbers = #tpu.dot_dimension_numbers<[1], [0], [0], [1], [0, 0, 1, 1], [], []>} : vector<32x64xbf16>, vector<64x256xbf16>, vector<32x256xf32> -> vector<32x256xf32>
    %c0_62 = arith.constant 0 : index
    %c0_63 = arith.constant 0 : index
    %c0_64 = arith.constant 0 : index
    %173 = vector.load %arg11[%c0_62, %c0_63, %c0_64] : memref<4x1x256xf32, #tpu.memory_space<vmem>>, vector<1x1x256xf32>
    %174 = vector.shape_cast %173 : vector<1x1x256xf32> to vector<1x256xf32>
    %175 = vector.broadcast %174 : vector<1x256xf32> to vector<32x256xf32>
    %176 = arith.addf %172, %175 : vector<32x256xf32>
    %cst_65 = arith.constant 0.000000e+00 : f32
    %177 = vector.broadcast %cst_65 : f32 to vector<32x256xf32>
    %178 = arith.maximumf %176, %177 : vector<32x256xf32>
    %179 = arith.truncf %178 : vector<32x256xf32> to vector<32x256xbf16>
    %c0_66 = arith.constant 0 : index
    %c0_67 = arith.constant 0 : index
    %c0_68 = arith.constant 0 : index
    %180 = vector.load %arg12[%c0_66, %c0_67, %c0_68] : memref<4x256x64xbf16, #tpu.memory_space<vmem>>, vector<1x256x64xbf16>
    %181 = vector.shape_cast %180 : vector<1x256x64xbf16> to vector<256x64xbf16>
    %cst_69 = arith.constant dense<0.000000e+00> : vector<32x64xf32>
    %182 = tpu.matmul %179, %181, %cst_69 {dimension_numbers = #tpu.dot_dimension_numbers<[1], [0], [0], [1], [0, 0, 1, 1], [], []>} : vector<32x256xbf16>, vector<256x64xbf16>, vector<32x64xf32> -> vector<32x64xf32>
    %c0_70 = arith.constant 0 : index
    %c0_71 = arith.constant 0 : index
    %c0_72 = arith.constant 0 : index
    %183 = vector.load %arg13[%c0_70, %c0_71, %c0_72] : memref<4x1x64xf32, #tpu.memory_space<vmem>>, vector<1x1x64xf32>
    %184 = vector.shape_cast %183 : vector<1x1x64xf32> to vector<1x64xf32>
    %185 = vector.broadcast %184 : vector<1x64xf32> to vector<32x64xf32>
    %186 = arith.addf %182, %185 : vector<32x64xf32>
    %187 = arith.addf %168, %186 : vector<32x64xf32>
    %c0_73 = arith.constant 0 : index
    %c0_74 = arith.constant 0 : index
    %c0_75 = arith.constant 0 : index
    %188 = vector.load %arg16[%c0_73, %c0_74, %c0_75] : memref<4x1x64xf32, #tpu.memory_space<vmem>>, vector<1x1x64xf32>
    %189 = vector.shape_cast %188 : vector<1x1x64xf32> to vector<1x64xf32>
    %c0_76 = arith.constant 0 : index
    %c0_77 = arith.constant 0 : index
    %c0_78 = arith.constant 0 : index
    %190 = vector.load %arg17[%c0_76, %c0_77, %c0_78] : memref<4x1x64xf32, #tpu.memory_space<vmem>>, vector<1x1x64xf32>
    %191 = vector.shape_cast %190 : vector<1x1x64xf32> to vector<1x64xf32>
    %cst_79 = arith.constant dense<0.000000e+00> : vector<32xf32>
    %192 = vector.multi_reduction <add>, %187, %cst_79 [1] : vector<32x64xf32> to vector<32xf32>
    %193 = vector.shape_cast %192 : vector<32xf32> to vector<32x1xf32>
    %cst_80 = arith.constant 6.400000e+01 : f32
    %194 = vector.broadcast %cst_80 : f32 to vector<32x1xf32>
    %195 = arith.divf %193, %194 : vector<32x1xf32>
    %196 = vector.broadcast %195 : vector<32x1xf32> to vector<32x64xf32>
    %197 = arith.subf %187, %196 : vector<32x64xf32>
    %198 = arith.mulf %197, %197 : vector<32x64xf32>
    %cst_81 = arith.constant dense<0.000000e+00> : vector<32xf32>
    %199 = vector.multi_reduction <add>, %198, %cst_81 [1] : vector<32x64xf32> to vector<32xf32>
    %200 = vector.shape_cast %199 : vector<32xf32> to vector<32x1xf32>
    %cst_82 = arith.constant 6.400000e+01 : f32
    %201 = vector.broadcast %cst_82 : f32 to vector<32x1xf32>
    %202 = arith.divf %200, %201 : vector<32x1xf32>
    %203 = vector.broadcast %195 : vector<32x1xf32> to vector<32x64xf32>
    %204 = arith.subf %187, %203 : vector<32x64xf32>
    %cst_83 = arith.constant 9.99999974E-6 : f32
    %205 = vector.broadcast %cst_83 : f32 to vector<32x1xf32>
    %206 = arith.addf %202, %205 : vector<32x1xf32>
    %207 = math.rsqrt %206 : vector<32x1xf32>
    %208 = vector.broadcast %207 : vector<32x1xf32> to vector<32x64xf32>
    %209 = arith.mulf %204, %208 : vector<32x64xf32>
    %210 = vector.broadcast %189 : vector<1x64xf32> to vector<32x64xf32>
    %211 = arith.mulf %209, %210 : vector<32x64xf32>
    %212 = vector.broadcast %191 : vector<1x64xf32> to vector<32x64xf32>
    %213 = arith.addf %211, %212 : vector<32x64xf32>
    %214 = arith.truncf %213 : vector<32x64xf32> to vector<32x64xbf16>
    %c1 = arith.constant 1 : index
    %c0_84 = arith.constant 0 : index
    %c0_85 = arith.constant 0 : index
    %215 = vector.load %arg6[%c1, %c0_84, %c0_85] : memref<4x64x192xbf16, #tpu.memory_space<vmem>>, vector<1x64x192xbf16>
    %216 = vector.shape_cast %215 : vector<1x64x192xbf16> to vector<64x192xbf16>
    %cst_86 = arith.constant dense<0.000000e+00> : vector<32x192xf32>
    %217 = tpu.matmul %214, %216, %cst_86 {dimension_numbers = #tpu.dot_dimension_numbers<[1], [0], [0], [1], [0, 0, 1, 1], [], []>} : vector<32x64xbf16>, vector<64x192xbf16>, vector<32x192xf32> -> vector<32x192xf32>
    %c1_87 = arith.constant 1 : index
    %c0_88 = arith.constant 0 : index
    %c0_89 = arith.constant 0 : index
    %218 = vector.load %arg7[%c1_87, %c0_88, %c0_89] : memref<4x1x192xf32, #tpu.memory_space<vmem>>, vector<1x1x192xf32>
    %219 = vector.shape_cast %218 : vector<1x1x192xf32> to vector<1x192xf32>
    %220 = vector.broadcast %219 : vector<1x192xf32> to vector<32x192xf32>
    %221 = arith.addf %217, %220 : vector<32x192xf32>
    %c1_90 = arith.constant 1 : index
    %c0_91 = arith.constant 0 : index
    %c0_92 = arith.constant 0 : index
    %222 = vector.load %arg8[%c1_90, %c0_91, %c0_92] : memref<4x64x64xbf16, #tpu.memory_space<vmem>>, vector<1x64x64xbf16>
    %223 = vector.shape_cast %222 : vector<1x64x64xbf16> to vector<64x64xbf16>
    %cst_93 = arith.constant 0.000000e+00 : f32
    %224 = vector.broadcast %cst_93 : f32 to vector<32x64xf32>
    %225 = vector.extract_strided_slice %221 {offsets = [0, 0], sizes = [32, 16], strides = [1, 1]} : vector<32x192xf32> to vector<32x16xf32>
    %226 = vector.shape_cast %225 : vector<32x16xf32> to vector<1x32x16xf32>
    %227 = arith.truncf %226 : vector<1x32x16xf32> to vector<1x32x16xbf16>
    %228 = vector.extract_strided_slice %221 {offsets = [0, 64], sizes = [32, 16], strides = [1, 1]} : vector<32x192xf32> to vector<32x16xf32>
    %229 = vector.shape_cast %228 : vector<32x16xf32> to vector<1x32x16xf32>
    %230 = arith.truncf %229 : vector<1x32x16xf32> to vector<1x32x16xbf16>
    %231 = vector.extract_strided_slice %221 {offsets = [0, 128], sizes = [32, 16], strides = [1, 1]} : vector<32x192xf32> to vector<32x16xf32>
    %232 = vector.shape_cast %231 : vector<32x16xf32> to vector<1x32x16xf32>
    %233 = arith.truncf %232 : vector<1x32x16xf32> to vector<1x32x16xbf16>
    "tpu.trace_start"() <{level = 10 : i32, message = "bqd,bkd->bqk"}> : () -> ()
    %cst_94 = arith.constant dense<0.000000e+00> : vector<1x32x32xf32>
    %234 = tpu.matmul %227, %230, %cst_94 {dimension_numbers = #tpu.dot_dimension_numbers<[2], [2], [1], [1], [0, 0, 0, 1, 1, 1], [0], [0]>} : vector<1x32x16xbf16>, vector<1x32x16xbf16>, vector<1x32x32xf32> -> vector<1x32x32xf32>
    "tpu.trace_stop"() : () -> ()
    %cst_95 = arith.constant dense<0xFF800000> : vector<1x32xf32>
    %235 = vector.multi_reduction <maximumf>, %234, %cst_95 [2] : vector<1x32x32xf32> to vector<1x32xf32>
    %236 = vector.shape_cast %235 : vector<1x32xf32> to vector<1x32x1xf32>
    %237 = vector.broadcast %236 : vector<1x32x1xf32> to vector<1x32x32xf32>
    %238 = arith.subf %234, %237 : vector<1x32x32xf32>
    %239 = math.exp %238 : vector<1x32x32xf32>
    %cst_96 = arith.constant dense<0.000000e+00> : vector<1x32xf32>
    %240 = vector.multi_reduction <add>, %239, %cst_96 [2] : vector<1x32x32xf32> to vector<1x32xf32>
    %241 = vector.shape_cast %240 : vector<1x32xf32> to vector<1x32x1xf32>
    %242 = tpu.reciprocal %241 : vector<1x32x1xf32> -> vector<1x32x1xf32>
    %243 = vector.broadcast %242 : vector<1x32x1xf32> to vector<1x32x32xf32>
    %244 = arith.mulf %239, %243 : vector<1x32x32xf32>
    %245 = arith.truncf %244 : vector<1x32x32xf32> to vector<1x32x32xbf16>
    "tpu.trace_start"() <{level = 10 : i32, message = "bqk,bkd->bqd"}> : () -> ()
    %cst_97 = arith.constant dense<0.000000e+00> : vector<1x32x16xf32>
    %246 = tpu.matmul %245, %233, %cst_97 {dimension_numbers = #tpu.dot_dimension_numbers<[2], [1], [1], [2], [0, 0, 0, 1, 1, 2], [0], [0]>} : vector<1x32x32xbf16>, vector<1x32x16xbf16>, vector<1x32x16xf32> -> vector<1x32x16xf32>
    "tpu.trace_stop"() : () -> ()
    %247 = vector.shape_cast %246 : vector<1x32x16xf32> to vector<32x16xf32>
    %248 = arith.truncf %247 : vector<32x16xf32> to vector<32x16xbf16>
    %249 = vector.extract_strided_slice %223 {offsets = [0, 0], sizes = [16, 64], strides = [1, 1]} : vector<64x64xbf16> to vector<16x64xbf16>
    %cst_98 = arith.constant dense<0.000000e+00> : vector<32x64xf32>
    %250 = tpu.matmul %248, %249, %cst_98 {dimension_numbers = #tpu.dot_dimension_numbers<[1], [0], [0], [1], [0, 0, 1, 1], [], []>} : vector<32x16xbf16>, vector<16x64xbf16>, vector<32x64xf32> -> vector<32x64xf32>
    %251 = arith.addf %224, %250 : vector<32x64xf32>
    %252 = vector.extract_strided_slice %221 {offsets = [0, 16], sizes = [32, 16], strides = [1, 1]} : vector<32x192xf32> to vector<32x16xf32>
    %253 = vector.shape_cast %252 : vector<32x16xf32> to vector<1x32x16xf32>
    %254 = arith.truncf %253 : vector<1x32x16xf32> to vector<1x32x16xbf16>
    %255 = vector.extract_strided_slice %221 {offsets = [0, 80], sizes = [32, 16], strides = [1, 1]} : vector<32x192xf32> to vector<32x16xf32>
    %256 = vector.shape_cast %255 : vector<32x16xf32> to vector<1x32x16xf32>
    %257 = arith.truncf %256 : vector<1x32x16xf32> to vector<1x32x16xbf16>
    %258 = vector.extract_strided_slice %221 {offsets = [0, 144], sizes = [32, 16], strides = [1, 1]} : vector<32x192xf32> to vector<32x16xf32>
    %259 = vector.shape_cast %258 : vector<32x16xf32> to vector<1x32x16xf32>
    %260 = arith.truncf %259 : vector<1x32x16xf32> to vector<1x32x16xbf16>
    "tpu.trace_start"() <{level = 10 : i32, message = "bqd,bkd->bqk"}> : () -> ()
    %cst_99 = arith.constant dense<0.000000e+00> : vector<1x32x32xf32>
    %261 = tpu.matmul %254, %257, %cst_99 {dimension_numbers = #tpu.dot_dimension_numbers<[2], [2], [1], [1], [0, 0, 0, 1, 1, 1], [0], [0]>} : vector<1x32x16xbf16>, vector<1x32x16xbf16>, vector<1x32x32xf32> -> vector<1x32x32xf32>
    "tpu.trace_stop"() : () -> ()
    %cst_100 = arith.constant dense<0xFF800000> : vector<1x32xf32>
    %262 = vector.multi_reduction <maximumf>, %261, %cst_100 [2] : vector<1x32x32xf32> to vector<1x32xf32>
    %263 = vector.shape_cast %262 : vector<1x32xf32> to vector<1x32x1xf32>
    %264 = vector.broadcast %263 : vector<1x32x1xf32> to vector<1x32x32xf32>
    %265 = arith.subf %261, %264 : vector<1x32x32xf32>
    %266 = math.exp %265 : vector<1x32x32xf32>
    %cst_101 = arith.constant dense<0.000000e+00> : vector<1x32xf32>
    %267 = vector.multi_reduction <add>, %266, %cst_101 [2] : vector<1x32x32xf32> to vector<1x32xf32>
    %268 = vector.shape_cast %267 : vector<1x32xf32> to vector<1x32x1xf32>
    %269 = tpu.reciprocal %268 : vector<1x32x1xf32> -> vector<1x32x1xf32>
    %270 = vector.broadcast %269 : vector<1x32x1xf32> to vector<1x32x32xf32>
    %271 = arith.mulf %266, %270 : vector<1x32x32xf32>
    %272 = arith.truncf %271 : vector<1x32x32xf32> to vector<1x32x32xbf16>
    "tpu.trace_start"() <{level = 10 : i32, message = "bqk,bkd->bqd"}> : () -> ()
    %cst_102 = arith.constant dense<0.000000e+00> : vector<1x32x16xf32>
    %273 = tpu.matmul %272, %260, %cst_102 {dimension_numbers = #tpu.dot_dimension_numbers<[2], [1], [1], [2], [0, 0, 0, 1, 1, 2], [0], [0]>} : vector<1x32x32xbf16>, vector<1x32x16xbf16>, vector<1x32x16xf32> -> vector<1x32x16xf32>
    "tpu.trace_stop"() : () -> ()
    %274 = vector.shape_cast %273 : vector<1x32x16xf32> to vector<32x16xf32>
    %275 = arith.truncf %274 : vector<32x16xf32> to vector<32x16xbf16>
    %276 = vector.extract_strided_slice %223 {offsets = [16, 0], sizes = [16, 64], strides = [1, 1]} : vector<64x64xbf16> to vector<16x64xbf16>
    %cst_103 = arith.constant dense<0.000000e+00> : vector<32x64xf32>
    %277 = tpu.matmul %275, %276, %cst_103 {dimension_numbers = #tpu.dot_dimension_numbers<[1], [0], [0], [1], [0, 0, 1, 1], [], []>} : vector<32x16xbf16>, vector<16x64xbf16>, vector<32x64xf32> -> vector<32x64xf32>
    %278 = arith.addf %251, %277 : vector<32x64xf32>
    %279 = vector.extract_strided_slice %221 {offsets = [0, 32], sizes = [32, 16], strides = [1, 1]} : vector<32x192xf32> to vector<32x16xf32>
    %280 = vector.shape_cast %279 : vector<32x16xf32> to vector<1x32x16xf32>
    %281 = arith.truncf %280 : vector<1x32x16xf32> to vector<1x32x16xbf16>
    %282 = vector.extract_strided_slice %221 {offsets = [0, 96], sizes = [32, 16], strides = [1, 1]} : vector<32x192xf32> to vector<32x16xf32>
    %283 = vector.shape_cast %282 : vector<32x16xf32> to vector<1x32x16xf32>
    %284 = arith.truncf %283 : vector<1x32x16xf32> to vector<1x32x16xbf16>
    %285 = vector.extract_strided_slice %221 {offsets = [0, 160], sizes = [32, 16], strides = [1, 1]} : vector<32x192xf32> to vector<32x16xf32>
    %286 = vector.shape_cast %285 : vector<32x16xf32> to vector<1x32x16xf32>
    %287 = arith.truncf %286 : vector<1x32x16xf32> to vector<1x32x16xbf16>
    "tpu.trace_start"() <{level = 10 : i32, message = "bqd,bkd->bqk"}> : () -> ()
    %cst_104 = arith.constant dense<0.000000e+00> : vector<1x32x32xf32>
    %288 = tpu.matmul %281, %284, %cst_104 {dimension_numbers = #tpu.dot_dimension_numbers<[2], [2], [1], [1], [0, 0, 0, 1, 1, 1], [0], [0]>} : vector<1x32x16xbf16>, vector<1x32x16xbf16>, vector<1x32x32xf32> -> vector<1x32x32xf32>
    "tpu.trace_stop"() : () -> ()
    %cst_105 = arith.constant dense<0xFF800000> : vector<1x32xf32>
    %289 = vector.multi_reduction <maximumf>, %288, %cst_105 [2] : vector<1x32x32xf32> to vector<1x32xf32>
    %290 = vector.shape_cast %289 : vector<1x32xf32> to vector<1x32x1xf32>
    %291 = vector.broadcast %290 : vector<1x32x1xf32> to vector<1x32x32xf32>
    %292 = arith.subf %288, %291 : vector<1x32x32xf32>
    %293 = math.exp %292 : vector<1x32x32xf32>
    %cst_106 = arith.constant dense<0.000000e+00> : vector<1x32xf32>
    %294 = vector.multi_reduction <add>, %293, %cst_106 [2] : vector<1x32x32xf32> to vector<1x32xf32>
    %295 = vector.shape_cast %294 : vector<1x32xf32> to vector<1x32x1xf32>
    %296 = tpu.reciprocal %295 : vector<1x32x1xf32> -> vector<1x32x1xf32>
    %297 = vector.broadcast %296 : vector<1x32x1xf32> to vector<1x32x32xf32>
    %298 = arith.mulf %293, %297 : vector<1x32x32xf32>
    %299 = arith.truncf %298 : vector<1x32x32xf32> to vector<1x32x32xbf16>
    "tpu.trace_start"() <{level = 10 : i32, message = "bqk,bkd->bqd"}> : () -> ()
    %cst_107 = arith.constant dense<0.000000e+00> : vector<1x32x16xf32>
    %300 = tpu.matmul %299, %287, %cst_107 {dimension_numbers = #tpu.dot_dimension_numbers<[2], [1], [1], [2], [0, 0, 0, 1, 1, 2], [0], [0]>} : vector<1x32x32xbf16>, vector<1x32x16xbf16>, vector<1x32x16xf32> -> vector<1x32x16xf32>
    "tpu.trace_stop"() : () -> ()
    %301 = vector.shape_cast %300 : vector<1x32x16xf32> to vector<32x16xf32>
    %302 = arith.truncf %301 : vector<32x16xf32> to vector<32x16xbf16>
    %303 = vector.extract_strided_slice %223 {offsets = [32, 0], sizes = [16, 64], strides = [1, 1]} : vector<64x64xbf16> to vector<16x64xbf16>
    %cst_108 = arith.constant dense<0.000000e+00> : vector<32x64xf32>
    %304 = tpu.matmul %302, %303, %cst_108 {dimension_numbers = #tpu.dot_dimension_numbers<[1], [0], [0], [1], [0, 0, 1, 1], [], []>} : vector<32x16xbf16>, vector<16x64xbf16>, vector<32x64xf32> -> vector<32x64xf32>
    %305 = arith.addf %278, %304 : vector<32x64xf32>
    %306 = vector.extract_strided_slice %221 {offsets = [0, 48], sizes = [32, 16], strides = [1, 1]} : vector<32x192xf32> to vector<32x16xf32>
    %307 = vector.shape_cast %306 : vector<32x16xf32> to vector<1x32x16xf32>
    %308 = arith.truncf %307 : vector<1x32x16xf32> to vector<1x32x16xbf16>
    %309 = vector.extract_strided_slice %221 {offsets = [0, 112], sizes = [32, 16], strides = [1, 1]} : vector<32x192xf32> to vector<32x16xf32>
    %310 = vector.shape_cast %309 : vector<32x16xf32> to vector<1x32x16xf32>
    %311 = arith.truncf %310 : vector<1x32x16xf32> to vector<1x32x16xbf16>
    %312 = vector.extract_strided_slice %221 {offsets = [0, 176], sizes = [32, 16], strides = [1, 1]} : vector<32x192xf32> to vector<32x16xf32>
    %313 = vector.shape_cast %312 : vector<32x16xf32> to vector<1x32x16xf32>
    %314 = arith.truncf %313 : vector<1x32x16xf32> to vector<1x32x16xbf16>
    "tpu.trace_start"() <{level = 10 : i32, message = "bqd,bkd->bqk"}> : () -> ()
    %cst_109 = arith.constant dense<0.000000e+00> : vector<1x32x32xf32>
    %315 = tpu.matmul %308, %311, %cst_109 {dimension_numbers = #tpu.dot_dimension_numbers<[2], [2], [1], [1], [0, 0, 0, 1, 1, 1], [0], [0]>} : vector<1x32x16xbf16>, vector<1x32x16xbf16>, vector<1x32x32xf32> -> vector<1x32x32xf32>
    "tpu.trace_stop"() : () -> ()
    %cst_110 = arith.constant dense<0xFF800000> : vector<1x32xf32>
    %316 = vector.multi_reduction <maximumf>, %315, %cst_110 [2] : vector<1x32x32xf32> to vector<1x32xf32>
    %317 = vector.shape_cast %316 : vector<1x32xf32> to vector<1x32x1xf32>
    %318 = vector.broadcast %317 : vector<1x32x1xf32> to vector<1x32x32xf32>
    %319 = arith.subf %315, %318 : vector<1x32x32xf32>
    %320 = math.exp %319 : vector<1x32x32xf32>
    %cst_111 = arith.constant dense<0.000000e+00> : vector<1x32xf32>
    %321 = vector.multi_reduction <add>, %320, %cst_111 [2] : vector<1x32x32xf32> to vector<1x32xf32>
    %322 = vector.shape_cast %321 : vector<1x32xf32> to vector<1x32x1xf32>
    %323 = tpu.reciprocal %322 : vector<1x32x1xf32> -> vector<1x32x1xf32>
    %324 = vector.broadcast %323 : vector<1x32x1xf32> to vector<1x32x32xf32>
    %325 = arith.mulf %320, %324 : vector<1x32x32xf32>
    %326 = arith.truncf %325 : vector<1x32x32xf32> to vector<1x32x32xbf16>
    "tpu.trace_start"() <{level = 10 : i32, message = "bqk,bkd->bqd"}> : () -> ()
    %cst_112 = arith.constant dense<0.000000e+00> : vector<1x32x16xf32>
    %327 = tpu.matmul %326, %314, %cst_112 {dimension_numbers = #tpu.dot_dimension_numbers<[2], [1], [1], [2], [0, 0, 0, 1, 1, 2], [0], [0]>} : vector<1x32x32xbf16>, vector<1x32x16xbf16>, vector<1x32x16xf32> -> vector<1x32x16xf32>
    "tpu.trace_stop"() : () -> ()
    %328 = vector.shape_cast %327 : vector<1x32x16xf32> to vector<32x16xf32>
    %329 = arith.truncf %328 : vector<32x16xf32> to vector<32x16xbf16>
    %330 = vector.extract_strided_slice %223 {offsets = [48, 0], sizes = [16, 64], strides = [1, 1]} : vector<64x64xbf16> to vector<16x64xbf16>
    %cst_113 = arith.constant dense<0.000000e+00> : vector<32x64xf32>
    %331 = tpu.matmul %329, %330, %cst_113 {dimension_numbers = #tpu.dot_dimension_numbers<[1], [0], [0], [1], [0, 0, 1, 1], [], []>} : vector<32x16xbf16>, vector<16x64xbf16>, vector<32x64xf32> -> vector<32x64xf32>
    %332 = arith.addf %305, %331 : vector<32x64xf32>
    %c1_114 = arith.constant 1 : index
    %c0_115 = arith.constant 0 : index
    %c0_116 = arith.constant 0 : index
    %333 = vector.load %arg9[%c1_114, %c0_115, %c0_116] : memref<4x1x64xf32, #tpu.memory_space<vmem>>, vector<1x1x64xf32>
    %334 = vector.shape_cast %333 : vector<1x1x64xf32> to vector<1x64xf32>
    %335 = vector.broadcast %334 : vector<1x64xf32> to vector<32x64xf32>
    %336 = arith.addf %332, %335 : vector<32x64xf32>
    %337 = arith.addf %213, %336 : vector<32x64xf32>
    %c1_117 = arith.constant 1 : index
    %c0_118 = arith.constant 0 : index
    %c0_119 = arith.constant 0 : index
    %338 = vector.load %arg14[%c1_117, %c0_118, %c0_119] : memref<4x1x64xf32, #tpu.memory_space<vmem>>, vector<1x1x64xf32>
    %339 = vector.shape_cast %338 : vector<1x1x64xf32> to vector<1x64xf32>
    %c1_120 = arith.constant 1 : index
    %c0_121 = arith.constant 0 : index
    %c0_122 = arith.constant 0 : index
    %340 = vector.load %arg15[%c1_120, %c0_121, %c0_122] : memref<4x1x64xf32, #tpu.memory_space<vmem>>, vector<1x1x64xf32>
    %341 = vector.shape_cast %340 : vector<1x1x64xf32> to vector<1x64xf32>
    %cst_123 = arith.constant dense<0.000000e+00> : vector<32xf32>
    %342 = vector.multi_reduction <add>, %337, %cst_123 [1] : vector<32x64xf32> to vector<32xf32>
    %343 = vector.shape_cast %342 : vector<32xf32> to vector<32x1xf32>
    %cst_124 = arith.constant 6.400000e+01 : f32
    %344 = vector.broadcast %cst_124 : f32 to vector<32x1xf32>
    %345 = arith.divf %343, %344 : vector<32x1xf32>
    %346 = vector.broadcast %345 : vector<32x1xf32> to vector<32x64xf32>
    %347 = arith.subf %337, %346 : vector<32x64xf32>
    %348 = arith.mulf %347, %347 : vector<32x64xf32>
    %cst_125 = arith.constant dense<0.000000e+00> : vector<32xf32>
    %349 = vector.multi_reduction <add>, %348, %cst_125 [1] : vector<32x64xf32> to vector<32xf32>
    %350 = vector.shape_cast %349 : vector<32xf32> to vector<32x1xf32>
    %cst_126 = arith.constant 6.400000e+01 : f32
    %351 = vector.broadcast %cst_126 : f32 to vector<32x1xf32>
    %352 = arith.divf %350, %351 : vector<32x1xf32>
    %353 = vector.broadcast %345 : vector<32x1xf32> to vector<32x64xf32>
    %354 = arith.subf %337, %353 : vector<32x64xf32>
    %cst_127 = arith.constant 9.99999974E-6 : f32
    %355 = vector.broadcast %cst_127 : f32 to vector<32x1xf32>
    %356 = arith.addf %352, %355 : vector<32x1xf32>
    %357 = math.rsqrt %356 : vector<32x1xf32>
    %358 = vector.broadcast %357 : vector<32x1xf32> to vector<32x64xf32>
    %359 = arith.mulf %354, %358 : vector<32x64xf32>
    %360 = vector.broadcast %339 : vector<1x64xf32> to vector<32x64xf32>
    %361 = arith.mulf %359, %360 : vector<32x64xf32>
    %362 = vector.broadcast %341 : vector<1x64xf32> to vector<32x64xf32>
    %363 = arith.addf %361, %362 : vector<32x64xf32>
    %364 = arith.truncf %363 : vector<32x64xf32> to vector<32x64xbf16>
    %c1_128 = arith.constant 1 : index
    %c0_129 = arith.constant 0 : index
    %c0_130 = arith.constant 0 : index
    %365 = vector.load %arg10[%c1_128, %c0_129, %c0_130] : memref<4x64x256xbf16, #tpu.memory_space<vmem>>, vector<1x64x256xbf16>
    %366 = vector.shape_cast %365 : vector<1x64x256xbf16> to vector<64x256xbf16>
    %cst_131 = arith.constant dense<0.000000e+00> : vector<32x256xf32>
    %367 = tpu.matmul %364, %366, %cst_131 {dimension_numbers = #tpu.dot_dimension_numbers<[1], [0], [0], [1], [0, 0, 1, 1], [], []>} : vector<32x64xbf16>, vector<64x256xbf16>, vector<32x256xf32> -> vector<32x256xf32>
    %c1_132 = arith.constant 1 : index
    %c0_133 = arith.constant 0 : index
    %c0_134 = arith.constant 0 : index
    %368 = vector.load %arg11[%c1_132, %c0_133, %c0_134] : memref<4x1x256xf32, #tpu.memory_space<vmem>>, vector<1x1x256xf32>
    %369 = vector.shape_cast %368 : vector<1x1x256xf32> to vector<1x256xf32>
    %370 = vector.broadcast %369 : vector<1x256xf32> to vector<32x256xf32>
    %371 = arith.addf %367, %370 : vector<32x256xf32>
    %cst_135 = arith.constant 0.000000e+00 : f32
    %372 = vector.broadcast %cst_135 : f32 to vector<32x256xf32>
    %373 = arith.maximumf %371, %372 : vector<32x256xf32>
    %374 = arith.truncf %373 : vector<32x256xf32> to vector<32x256xbf16>
    %c1_136 = arith.constant 1 : index
    %c0_137 = arith.constant 0 : index
    %c0_138 = arith.constant 0 : index
    %375 = vector.load %arg12[%c1_136, %c0_137, %c0_138] : memref<4x256x64xbf16, #tpu.memory_space<vmem>>, vector<1x256x64xbf16>
    %376 = vector.shape_cast %375 : vector<1x256x64xbf16> to vector<256x64xbf16>
    %cst_139 = arith.constant dense<0.000000e+00> : vector<32x64xf32>
    %377 = tpu.matmul %374, %376, %cst_139 {dimension_numbers = #tpu.dot_dimension_numbers<[1], [0], [0], [1], [0, 0, 1, 1], [], []>} : vector<32x256xbf16>, vector<256x64xbf16>, vector<32x64xf32> -> vector<32x64xf32>
    %c1_140 = arith.constant 1 : index
    %c0_141 = arith.constant 0 : index
    %c0_142 = arith.constant 0 : index
    %378 = vector.load %arg13[%c1_140, %c0_141, %c0_142] : memref<4x1x64xf32, #tpu.memory_space<vmem>>, vector<1x1x64xf32>
    %379 = vector.shape_cast %378 : vector<1x1x64xf32> to vector<1x64xf32>
    %380 = vector.broadcast %379 : vector<1x64xf32> to vector<32x64xf32>
    %381 = arith.addf %377, %380 : vector<32x64xf32>
    %382 = arith.addf %363, %381 : vector<32x64xf32>
    %c1_143 = arith.constant 1 : index
    %c0_144 = arith.constant 0 : index
    %c0_145 = arith.constant 0 : index
    %383 = vector.load %arg16[%c1_143, %c0_144, %c0_145] : memref<4x1x64xf32, #tpu.memory_space<vmem>>, vector<1x1x64xf32>
    %384 = vector.shape_cast %383 : vector<1x1x64xf32> to vector<1x64xf32>
    %c1_146 = arith.constant 1 : index
    %c0_147 = arith.constant 0 : index
    %c0_148 = arith.constant 0 : index
    %385 = vector.load %arg17[%c1_146, %c0_147, %c0_148] : memref<4x1x64xf32, #tpu.memory_space<vmem>>, vector<1x1x64xf32>
    %386 = vector.shape_cast %385 : vector<1x1x64xf32> to vector<1x64xf32>
    %cst_149 = arith.constant dense<0.000000e+00> : vector<32xf32>
    %387 = vector.multi_reduction <add>, %382, %cst_149 [1] : vector<32x64xf32> to vector<32xf32>
    %388 = vector.shape_cast %387 : vector<32xf32> to vector<32x1xf32>
    %cst_150 = arith.constant 6.400000e+01 : f32
    %389 = vector.broadcast %cst_150 : f32 to vector<32x1xf32>
    %390 = arith.divf %388, %389 : vector<32x1xf32>
    %391 = vector.broadcast %390 : vector<32x1xf32> to vector<32x64xf32>
    %392 = arith.subf %382, %391 : vector<32x64xf32>
    %393 = arith.mulf %392, %392 : vector<32x64xf32>
    %cst_151 = arith.constant dense<0.000000e+00> : vector<32xf32>
    %394 = vector.multi_reduction <add>, %393, %cst_151 [1] : vector<32x64xf32> to vector<32xf32>
    %395 = vector.shape_cast %394 : vector<32xf32> to vector<32x1xf32>
    %cst_152 = arith.constant 6.400000e+01 : f32
    %396 = vector.broadcast %cst_152 : f32 to vector<32x1xf32>
    %397 = arith.divf %395, %396 : vector<32x1xf32>
    %398 = vector.broadcast %390 : vector<32x1xf32> to vector<32x64xf32>
    %399 = arith.subf %382, %398 : vector<32x64xf32>
    %cst_153 = arith.constant 9.99999974E-6 : f32
    %400 = vector.broadcast %cst_153 : f32 to vector<32x1xf32>
    %401 = arith.addf %397, %400 : vector<32x1xf32>
    %402 = math.rsqrt %401 : vector<32x1xf32>
    %403 = vector.broadcast %402 : vector<32x1xf32> to vector<32x64xf32>
    %404 = arith.mulf %399, %403 : vector<32x64xf32>
    %405 = vector.broadcast %384 : vector<1x64xf32> to vector<32x64xf32>
    %406 = arith.mulf %404, %405 : vector<32x64xf32>
    %407 = vector.broadcast %386 : vector<1x64xf32> to vector<32x64xf32>
    %408 = arith.addf %406, %407 : vector<32x64xf32>
    %409 = arith.truncf %408 : vector<32x64xf32> to vector<32x64xbf16>
    %c2 = arith.constant 2 : index
    %c0_154 = arith.constant 0 : index
    %c0_155 = arith.constant 0 : index
    %410 = vector.load %arg6[%c2, %c0_154, %c0_155] : memref<4x64x192xbf16, #tpu.memory_space<vmem>>, vector<1x64x192xbf16>
    %411 = vector.shape_cast %410 : vector<1x64x192xbf16> to vector<64x192xbf16>
    %cst_156 = arith.constant dense<0.000000e+00> : vector<32x192xf32>
    %412 = tpu.matmul %409, %411, %cst_156 {dimension_numbers = #tpu.dot_dimension_numbers<[1], [0], [0], [1], [0, 0, 1, 1], [], []>} : vector<32x64xbf16>, vector<64x192xbf16>, vector<32x192xf32> -> vector<32x192xf32>
    %c2_157 = arith.constant 2 : index
    %c0_158 = arith.constant 0 : index
    %c0_159 = arith.constant 0 : index
    %413 = vector.load %arg7[%c2_157, %c0_158, %c0_159] : memref<4x1x192xf32, #tpu.memory_space<vmem>>, vector<1x1x192xf32>
    %414 = vector.shape_cast %413 : vector<1x1x192xf32> to vector<1x192xf32>
    %415 = vector.broadcast %414 : vector<1x192xf32> to vector<32x192xf32>
    %416 = arith.addf %412, %415 : vector<32x192xf32>
    %c2_160 = arith.constant 2 : index
    %c0_161 = arith.constant 0 : index
    %c0_162 = arith.constant 0 : index
    %417 = vector.load %arg8[%c2_160, %c0_161, %c0_162] : memref<4x64x64xbf16, #tpu.memory_space<vmem>>, vector<1x64x64xbf16>
    %418 = vector.shape_cast %417 : vector<1x64x64xbf16> to vector<64x64xbf16>
    %cst_163 = arith.constant 0.000000e+00 : f32
    %419 = vector.broadcast %cst_163 : f32 to vector<32x64xf32>
    %420 = vector.extract_strided_slice %416 {offsets = [0, 0], sizes = [32, 16], strides = [1, 1]} : vector<32x192xf32> to vector<32x16xf32>
    %421 = vector.shape_cast %420 : vector<32x16xf32> to vector<1x32x16xf32>
    %422 = arith.truncf %421 : vector<1x32x16xf32> to vector<1x32x16xbf16>
    %423 = vector.extract_strided_slice %416 {offsets = [0, 64], sizes = [32, 16], strides = [1, 1]} : vector<32x192xf32> to vector<32x16xf32>
    %424 = vector.shape_cast %423 : vector<32x16xf32> to vector<1x32x16xf32>
    %425 = arith.truncf %424 : vector<1x32x16xf32> to vector<1x32x16xbf16>
    %426 = vector.extract_strided_slice %416 {offsets = [0, 128], sizes = [32, 16], strides = [1, 1]} : vector<32x192xf32> to vector<32x16xf32>
    %427 = vector.shape_cast %426 : vector<32x16xf32> to vector<1x32x16xf32>
    %428 = arith.truncf %427 : vector<1x32x16xf32> to vector<1x32x16xbf16>
    "tpu.trace_start"() <{level = 10 : i32, message = "bqd,bkd->bqk"}> : () -> ()
    %cst_164 = arith.constant dense<0.000000e+00> : vector<1x32x32xf32>
    %429 = tpu.matmul %422, %425, %cst_164 {dimension_numbers = #tpu.dot_dimension_numbers<[2], [2], [1], [1], [0, 0, 0, 1, 1, 1], [0], [0]>} : vector<1x32x16xbf16>, vector<1x32x16xbf16>, vector<1x32x32xf32> -> vector<1x32x32xf32>
    "tpu.trace_stop"() : () -> ()
    %cst_165 = arith.constant dense<0xFF800000> : vector<1x32xf32>
    %430 = vector.multi_reduction <maximumf>, %429, %cst_165 [2] : vector<1x32x32xf32> to vector<1x32xf32>
    %431 = vector.shape_cast %430 : vector<1x32xf32> to vector<1x32x1xf32>
    %432 = vector.broadcast %431 : vector<1x32x1xf32> to vector<1x32x32xf32>
    %433 = arith.subf %429, %432 : vector<1x32x32xf32>
    %434 = math.exp %433 : vector<1x32x32xf32>
    %cst_166 = arith.constant dense<0.000000e+00> : vector<1x32xf32>
    %435 = vector.multi_reduction <add>, %434, %cst_166 [2] : vector<1x32x32xf32> to vector<1x32xf32>
    %436 = vector.shape_cast %435 : vector<1x32xf32> to vector<1x32x1xf32>
    %437 = tpu.reciprocal %436 : vector<1x32x1xf32> -> vector<1x32x1xf32>
    %438 = vector.broadcast %437 : vector<1x32x1xf32> to vector<1x32x32xf32>
    %439 = arith.mulf %434, %438 : vector<1x32x32xf32>
    %440 = arith.truncf %439 : vector<1x32x32xf32> to vector<1x32x32xbf16>
    "tpu.trace_start"() <{level = 10 : i32, message = "bqk,bkd->bqd"}> : () -> ()
    %cst_167 = arith.constant dense<0.000000e+00> : vector<1x32x16xf32>
    %441 = tpu.matmul %440, %428, %cst_167 {dimension_numbers = #tpu.dot_dimension_numbers<[2], [1], [1], [2], [0, 0, 0, 1, 1, 2], [0], [0]>} : vector<1x32x32xbf16>, vector<1x32x16xbf16>, vector<1x32x16xf32> -> vector<1x32x16xf32>
    "tpu.trace_stop"() : () -> ()
    %442 = vector.shape_cast %441 : vector<1x32x16xf32> to vector<32x16xf32>
    %443 = arith.truncf %442 : vector<32x16xf32> to vector<32x16xbf16>
    %444 = vector.extract_strided_slice %418 {offsets = [0, 0], sizes = [16, 64], strides = [1, 1]} : vector<64x64xbf16> to vector<16x64xbf16>
    %cst_168 = arith.constant dense<0.000000e+00> : vector<32x64xf32>
    %445 = tpu.matmul %443, %444, %cst_168 {dimension_numbers = #tpu.dot_dimension_numbers<[1], [0], [0], [1], [0, 0, 1, 1], [], []>} : vector<32x16xbf16>, vector<16x64xbf16>, vector<32x64xf32> -> vector<32x64xf32>
    %446 = arith.addf %419, %445 : vector<32x64xf32>
    %447 = vector.extract_strided_slice %416 {offsets = [0, 16], sizes = [32, 16], strides = [1, 1]} : vector<32x192xf32> to vector<32x16xf32>
    %448 = vector.shape_cast %447 : vector<32x16xf32> to vector<1x32x16xf32>
    %449 = arith.truncf %448 : vector<1x32x16xf32> to vector<1x32x16xbf16>
    %450 = vector.extract_strided_slice %416 {offsets = [0, 80], sizes = [32, 16], strides = [1, 1]} : vector<32x192xf32> to vector<32x16xf32>
    %451 = vector.shape_cast %450 : vector<32x16xf32> to vector<1x32x16xf32>
    %452 = arith.truncf %451 : vector<1x32x16xf32> to vector<1x32x16xbf16>
    %453 = vector.extract_strided_slice %416 {offsets = [0, 144], sizes = [32, 16], strides = [1, 1]} : vector<32x192xf32> to vector<32x16xf32>
    %454 = vector.shape_cast %453 : vector<32x16xf32> to vector<1x32x16xf32>
    %455 = arith.truncf %454 : vector<1x32x16xf32> to vector<1x32x16xbf16>
    "tpu.trace_start"() <{level = 10 : i32, message = "bqd,bkd->bqk"}> : () -> ()
    %cst_169 = arith.constant dense<0.000000e+00> : vector<1x32x32xf32>
    %456 = tpu.matmul %449, %452, %cst_169 {dimension_numbers = #tpu.dot_dimension_numbers<[2], [2], [1], [1], [0, 0, 0, 1, 1, 1], [0], [0]>} : vector<1x32x16xbf16>, vector<1x32x16xbf16>, vector<1x32x32xf32> -> vector<1x32x32xf32>
    "tpu.trace_stop"() : () -> ()
    %cst_170 = arith.constant dense<0xFF800000> : vector<1x32xf32>
    %457 = vector.multi_reduction <maximumf>, %456, %cst_170 [2] : vector<1x32x32xf32> to vector<1x32xf32>
    %458 = vector.shape_cast %457 : vector<1x32xf32> to vector<1x32x1xf32>
    %459 = vector.broadcast %458 : vector<1x32x1xf32> to vector<1x32x32xf32>
    %460 = arith.subf %456, %459 : vector<1x32x32xf32>
    %461 = math.exp %460 : vector<1x32x32xf32>
    %cst_171 = arith.constant dense<0.000000e+00> : vector<1x32xf32>
    %462 = vector.multi_reduction <add>, %461, %cst_171 [2] : vector<1x32x32xf32> to vector<1x32xf32>
    %463 = vector.shape_cast %462 : vector<1x32xf32> to vector<1x32x1xf32>
    %464 = tpu.reciprocal %463 : vector<1x32x1xf32> -> vector<1x32x1xf32>
    %465 = vector.broadcast %464 : vector<1x32x1xf32> to vector<1x32x32xf32>
    %466 = arith.mulf %461, %465 : vector<1x32x32xf32>
    %467 = arith.truncf %466 : vector<1x32x32xf32> to vector<1x32x32xbf16>
    "tpu.trace_start"() <{level = 10 : i32, message = "bqk,bkd->bqd"}> : () -> ()
    %cst_172 = arith.constant dense<0.000000e+00> : vector<1x32x16xf32>
    %468 = tpu.matmul %467, %455, %cst_172 {dimension_numbers = #tpu.dot_dimension_numbers<[2], [1], [1], [2], [0, 0, 0, 1, 1, 2], [0], [0]>} : vector<1x32x32xbf16>, vector<1x32x16xbf16>, vector<1x32x16xf32> -> vector<1x32x16xf32>
    "tpu.trace_stop"() : () -> ()
    %469 = vector.shape_cast %468 : vector<1x32x16xf32> to vector<32x16xf32>
    %470 = arith.truncf %469 : vector<32x16xf32> to vector<32x16xbf16>
    %471 = vector.extract_strided_slice %418 {offsets = [16, 0], sizes = [16, 64], strides = [1, 1]} : vector<64x64xbf16> to vector<16x64xbf16>
    %cst_173 = arith.constant dense<0.000000e+00> : vector<32x64xf32>
    %472 = tpu.matmul %470, %471, %cst_173 {dimension_numbers = #tpu.dot_dimension_numbers<[1], [0], [0], [1], [0, 0, 1, 1], [], []>} : vector<32x16xbf16>, vector<16x64xbf16>, vector<32x64xf32> -> vector<32x64xf32>
    %473 = arith.addf %446, %472 : vector<32x64xf32>
    %474 = vector.extract_strided_slice %416 {offsets = [0, 32], sizes = [32, 16], strides = [1, 1]} : vector<32x192xf32> to vector<32x16xf32>
    %475 = vector.shape_cast %474 : vector<32x16xf32> to vector<1x32x16xf32>
    %476 = arith.truncf %475 : vector<1x32x16xf32> to vector<1x32x16xbf16>
    %477 = vector.extract_strided_slice %416 {offsets = [0, 96], sizes = [32, 16], strides = [1, 1]} : vector<32x192xf32> to vector<32x16xf32>
    %478 = vector.shape_cast %477 : vector<32x16xf32> to vector<1x32x16xf32>
    %479 = arith.truncf %478 : vector<1x32x16xf32> to vector<1x32x16xbf16>
    %480 = vector.extract_strided_slice %416 {offsets = [0, 160], sizes = [32, 16], strides = [1, 1]} : vector<32x192xf32> to vector<32x16xf32>
    %481 = vector.shape_cast %480 : vector<32x16xf32> to vector<1x32x16xf32>
    %482 = arith.truncf %481 : vector<1x32x16xf32> to vector<1x32x16xbf16>
    "tpu.trace_start"() <{level = 10 : i32, message = "bqd,bkd->bqk"}> : () -> ()
    %cst_174 = arith.constant dense<0.000000e+00> : vector<1x32x32xf32>
    %483 = tpu.matmul %476, %479, %cst_174 {dimension_numbers = #tpu.dot_dimension_numbers<[2], [2], [1], [1], [0, 0, 0, 1, 1, 1], [0], [0]>} : vector<1x32x16xbf16>, vector<1x32x16xbf16>, vector<1x32x32xf32> -> vector<1x32x32xf32>
    "tpu.trace_stop"() : () -> ()
    %cst_175 = arith.constant dense<0xFF800000> : vector<1x32xf32>
    %484 = vector.multi_reduction <maximumf>, %483, %cst_175 [2] : vector<1x32x32xf32> to vector<1x32xf32>
    %485 = vector.shape_cast %484 : vector<1x32xf32> to vector<1x32x1xf32>
    %486 = vector.broadcast %485 : vector<1x32x1xf32> to vector<1x32x32xf32>
    %487 = arith.subf %483, %486 : vector<1x32x32xf32>
    %488 = math.exp %487 : vector<1x32x32xf32>
    %cst_176 = arith.constant dense<0.000000e+00> : vector<1x32xf32>
    %489 = vector.multi_reduction <add>, %488, %cst_176 [2] : vector<1x32x32xf32> to vector<1x32xf32>
    %490 = vector.shape_cast %489 : vector<1x32xf32> to vector<1x32x1xf32>
    %491 = tpu.reciprocal %490 : vector<1x32x1xf32> -> vector<1x32x1xf32>
    %492 = vector.broadcast %491 : vector<1x32x1xf32> to vector<1x32x32xf32>
    %493 = arith.mulf %488, %492 : vector<1x32x32xf32>
    %494 = arith.truncf %493 : vector<1x32x32xf32> to vector<1x32x32xbf16>
    "tpu.trace_start"() <{level = 10 : i32, message = "bqk,bkd->bqd"}> : () -> ()
    %cst_177 = arith.constant dense<0.000000e+00> : vector<1x32x16xf32>
    %495 = tpu.matmul %494, %482, %cst_177 {dimension_numbers = #tpu.dot_dimension_numbers<[2], [1], [1], [2], [0, 0, 0, 1, 1, 2], [0], [0]>} : vector<1x32x32xbf16>, vector<1x32x16xbf16>, vector<1x32x16xf32> -> vector<1x32x16xf32>
    "tpu.trace_stop"() : () -> ()
    %496 = vector.shape_cast %495 : vector<1x32x16xf32> to vector<32x16xf32>
    %497 = arith.truncf %496 : vector<32x16xf32> to vector<32x16xbf16>
    %498 = vector.extract_strided_slice %418 {offsets = [32, 0], sizes = [16, 64], strides = [1, 1]} : vector<64x64xbf16> to vector<16x64xbf16>
    %cst_178 = arith.constant dense<0.000000e+00> : vector<32x64xf32>
    %499 = tpu.matmul %497, %498, %cst_178 {dimension_numbers = #tpu.dot_dimension_numbers<[1], [0], [0], [1], [0, 0, 1, 1], [], []>} : vector<32x16xbf16>, vector<16x64xbf16>, vector<32x64xf32> -> vector<32x64xf32>
    %500 = arith.addf %473, %499 : vector<32x64xf32>
    %501 = vector.extract_strided_slice %416 {offsets = [0, 48], sizes = [32, 16], strides = [1, 1]} : vector<32x192xf32> to vector<32x16xf32>
    %502 = vector.shape_cast %501 : vector<32x16xf32> to vector<1x32x16xf32>
    %503 = arith.truncf %502 : vector<1x32x16xf32> to vector<1x32x16xbf16>
    %504 = vector.extract_strided_slice %416 {offsets = [0, 112], sizes = [32, 16], strides = [1, 1]} : vector<32x192xf32> to vector<32x16xf32>
    %505 = vector.shape_cast %504 : vector<32x16xf32> to vector<1x32x16xf32>
    %506 = arith.truncf %505 : vector<1x32x16xf32> to vector<1x32x16xbf16>
    %507 = vector.extract_strided_slice %416 {offsets = [0, 176], sizes = [32, 16], strides = [1, 1]} : vector<32x192xf32> to vector<32x16xf32>
    %508 = vector.shape_cast %507 : vector<32x16xf32> to vector<1x32x16xf32>
    %509 = arith.truncf %508 : vector<1x32x16xf32> to vector<1x32x16xbf16>
    "tpu.trace_start"() <{level = 10 : i32, message = "bqd,bkd->bqk"}> : () -> ()
    %cst_179 = arith.constant dense<0.000000e+00> : vector<1x32x32xf32>
    %510 = tpu.matmul %503, %506, %cst_179 {dimension_numbers = #tpu.dot_dimension_numbers<[2], [2], [1], [1], [0, 0, 0, 1, 1, 1], [0], [0]>} : vector<1x32x16xbf16>, vector<1x32x16xbf16>, vector<1x32x32xf32> -> vector<1x32x32xf32>
    "tpu.trace_stop"() : () -> ()
    %cst_180 = arith.constant dense<0xFF800000> : vector<1x32xf32>
    %511 = vector.multi_reduction <maximumf>, %510, %cst_180 [2] : vector<1x32x32xf32> to vector<1x32xf32>
    %512 = vector.shape_cast %511 : vector<1x32xf32> to vector<1x32x1xf32>
    %513 = vector.broadcast %512 : vector<1x32x1xf32> to vector<1x32x32xf32>
    %514 = arith.subf %510, %513 : vector<1x32x32xf32>
    %515 = math.exp %514 : vector<1x32x32xf32>
    %cst_181 = arith.constant dense<0.000000e+00> : vector<1x32xf32>
    %516 = vector.multi_reduction <add>, %515, %cst_181 [2] : vector<1x32x32xf32> to vector<1x32xf32>
    %517 = vector.shape_cast %516 : vector<1x32xf32> to vector<1x32x1xf32>
    %518 = tpu.reciprocal %517 : vector<1x32x1xf32> -> vector<1x32x1xf32>
    %519 = vector.broadcast %518 : vector<1x32x1xf32> to vector<1x32x32xf32>
    %520 = arith.mulf %515, %519 : vector<1x32x32xf32>
    %521 = arith.truncf %520 : vector<1x32x32xf32> to vector<1x32x32xbf16>
    "tpu.trace_start"() <{level = 10 : i32, message = "bqk,bkd->bqd"}> : () -> ()
    %cst_182 = arith.constant dense<0.000000e+00> : vector<1x32x16xf32>
    %522 = tpu.matmul %521, %509, %cst_182 {dimension_numbers = #tpu.dot_dimension_numbers<[2], [1], [1], [2], [0, 0, 0, 1, 1, 2], [0], [0]>} : vector<1x32x32xbf16>, vector<1x32x16xbf16>, vector<1x32x16xf32> -> vector<1x32x16xf32>
    "tpu.trace_stop"() : () -> ()
    %523 = vector.shape_cast %522 : vector<1x32x16xf32> to vector<32x16xf32>
    %524 = arith.truncf %523 : vector<32x16xf32> to vector<32x16xbf16>
    %525 = vector.extract_strided_slice %418 {offsets = [48, 0], sizes = [16, 64], strides = [1, 1]} : vector<64x64xbf16> to vector<16x64xbf16>
    %cst_183 = arith.constant dense<0.000000e+00> : vector<32x64xf32>
    %526 = tpu.matmul %524, %525, %cst_183 {dimension_numbers = #tpu.dot_dimension_numbers<[1], [0], [0], [1], [0, 0, 1, 1], [], []>} : vector<32x16xbf16>, vector<16x64xbf16>, vector<32x64xf32> -> vector<32x64xf32>
    %527 = arith.addf %500, %526 : vector<32x64xf32>
    %c2_184 = arith.constant 2 : index
    %c0_185 = arith.constant 0 : index
    %c0_186 = arith.constant 0 : index
    %528 = vector.load %arg9[%c2_184, %c0_185, %c0_186] : memref<4x1x64xf32, #tpu.memory_space<vmem>>, vector<1x1x64xf32>
    %529 = vector.shape_cast %528 : vector<1x1x64xf32> to vector<1x64xf32>
    %530 = vector.broadcast %529 : vector<1x64xf32> to vector<32x64xf32>
    %531 = arith.addf %527, %530 : vector<32x64xf32>
    %532 = arith.addf %408, %531 : vector<32x64xf32>
    %c2_187 = arith.constant 2 : index
    %c0_188 = arith.constant 0 : index
    %c0_189 = arith.constant 0 : index
    %533 = vector.load %arg14[%c2_187, %c0_188, %c0_189] : memref<4x1x64xf32, #tpu.memory_space<vmem>>, vector<1x1x64xf32>
    %534 = vector.shape_cast %533 : vector<1x1x64xf32> to vector<1x64xf32>
    %c2_190 = arith.constant 2 : index
    %c0_191 = arith.constant 0 : index
    %c0_192 = arith.constant 0 : index
    %535 = vector.load %arg15[%c2_190, %c0_191, %c0_192] : memref<4x1x64xf32, #tpu.memory_space<vmem>>, vector<1x1x64xf32>
    %536 = vector.shape_cast %535 : vector<1x1x64xf32> to vector<1x64xf32>
    %cst_193 = arith.constant dense<0.000000e+00> : vector<32xf32>
    %537 = vector.multi_reduction <add>, %532, %cst_193 [1] : vector<32x64xf32> to vector<32xf32>
    %538 = vector.shape_cast %537 : vector<32xf32> to vector<32x1xf32>
    %cst_194 = arith.constant 6.400000e+01 : f32
    %539 = vector.broadcast %cst_194 : f32 to vector<32x1xf32>
    %540 = arith.divf %538, %539 : vector<32x1xf32>
    %541 = vector.broadcast %540 : vector<32x1xf32> to vector<32x64xf32>
    %542 = arith.subf %532, %541 : vector<32x64xf32>
    %543 = arith.mulf %542, %542 : vector<32x64xf32>
    %cst_195 = arith.constant dense<0.000000e+00> : vector<32xf32>
    %544 = vector.multi_reduction <add>, %543, %cst_195 [1] : vector<32x64xf32> to vector<32xf32>
    %545 = vector.shape_cast %544 : vector<32xf32> to vector<32x1xf32>
    %cst_196 = arith.constant 6.400000e+01 : f32
    %546 = vector.broadcast %cst_196 : f32 to vector<32x1xf32>
    %547 = arith.divf %545, %546 : vector<32x1xf32>
    %548 = vector.broadcast %540 : vector<32x1xf32> to vector<32x64xf32>
    %549 = arith.subf %532, %548 : vector<32x64xf32>
    %cst_197 = arith.constant 9.99999974E-6 : f32
    %550 = vector.broadcast %cst_197 : f32 to vector<32x1xf32>
    %551 = arith.addf %547, %550 : vector<32x1xf32>
    %552 = math.rsqrt %551 : vector<32x1xf32>
    %553 = vector.broadcast %552 : vector<32x1xf32> to vector<32x64xf32>
    %554 = arith.mulf %549, %553 : vector<32x64xf32>
    %555 = vector.broadcast %534 : vector<1x64xf32> to vector<32x64xf32>
    %556 = arith.mulf %554, %555 : vector<32x64xf32>
    %557 = vector.broadcast %536 : vector<1x64xf32> to vector<32x64xf32>
    %558 = arith.addf %556, %557 : vector<32x64xf32>
    %559 = arith.truncf %558 : vector<32x64xf32> to vector<32x64xbf16>
    %c2_198 = arith.constant 2 : index
    %c0_199 = arith.constant 0 : index
    %c0_200 = arith.constant 0 : index
    %560 = vector.load %arg10[%c2_198, %c0_199, %c0_200] : memref<4x64x256xbf16, #tpu.memory_space<vmem>>, vector<1x64x256xbf16>
    %561 = vector.shape_cast %560 : vector<1x64x256xbf16> to vector<64x256xbf16>
    %cst_201 = arith.constant dense<0.000000e+00> : vector<32x256xf32>
    %562 = tpu.matmul %559, %561, %cst_201 {dimension_numbers = #tpu.dot_dimension_numbers<[1], [0], [0], [1], [0, 0, 1, 1], [], []>} : vector<32x64xbf16>, vector<64x256xbf16>, vector<32x256xf32> -> vector<32x256xf32>
    %c2_202 = arith.constant 2 : index
    %c0_203 = arith.constant 0 : index
    %c0_204 = arith.constant 0 : index
    %563 = vector.load %arg11[%c2_202, %c0_203, %c0_204] : memref<4x1x256xf32, #tpu.memory_space<vmem>>, vector<1x1x256xf32>
    %564 = vector.shape_cast %563 : vector<1x1x256xf32> to vector<1x256xf32>
    %565 = vector.broadcast %564 : vector<1x256xf32> to vector<32x256xf32>
    %566 = arith.addf %562, %565 : vector<32x256xf32>
    %cst_205 = arith.constant 0.000000e+00 : f32
    %567 = vector.broadcast %cst_205 : f32 to vector<32x256xf32>
    %568 = arith.maximumf %566, %567 : vector<32x256xf32>
    %569 = arith.truncf %568 : vector<32x256xf32> to vector<32x256xbf16>
    %c2_206 = arith.constant 2 : index
    %c0_207 = arith.constant 0 : index
    %c0_208 = arith.constant 0 : index
    %570 = vector.load %arg12[%c2_206, %c0_207, %c0_208] : memref<4x256x64xbf16, #tpu.memory_space<vmem>>, vector<1x256x64xbf16>
    %571 = vector.shape_cast %570 : vector<1x256x64xbf16> to vector<256x64xbf16>
    %cst_209 = arith.constant dense<0.000000e+00> : vector<32x64xf32>
    %572 = tpu.matmul %569, %571, %cst_209 {dimension_numbers = #tpu.dot_dimension_numbers<[1], [0], [0], [1], [0, 0, 1, 1], [], []>} : vector<32x256xbf16>, vector<256x64xbf16>, vector<32x64xf32> -> vector<32x64xf32>
    %c2_210 = arith.constant 2 : index
    %c0_211 = arith.constant 0 : index
    %c0_212 = arith.constant 0 : index
    %573 = vector.load %arg13[%c2_210, %c0_211, %c0_212] : memref<4x1x64xf32, #tpu.memory_space<vmem>>, vector<1x1x64xf32>
    %574 = vector.shape_cast %573 : vector<1x1x64xf32> to vector<1x64xf32>
    %575 = vector.broadcast %574 : vector<1x64xf32> to vector<32x64xf32>
    %576 = arith.addf %572, %575 : vector<32x64xf32>
    %577 = arith.addf %558, %576 : vector<32x64xf32>
    %c2_213 = arith.constant 2 : index
    %c0_214 = arith.constant 0 : index
    %c0_215 = arith.constant 0 : index
    %578 = vector.load %arg16[%c2_213, %c0_214, %c0_215] : memref<4x1x64xf32, #tpu.memory_space<vmem>>, vector<1x1x64xf32>
    %579 = vector.shape_cast %578 : vector<1x1x64xf32> to vector<1x64xf32>
    %c2_216 = arith.constant 2 : index
    %c0_217 = arith.constant 0 : index
    %c0_218 = arith.constant 0 : index
    %580 = vector.load %arg17[%c2_216, %c0_217, %c0_218] : memref<4x1x64xf32, #tpu.memory_space<vmem>>, vector<1x1x64xf32>
    %581 = vector.shape_cast %580 : vector<1x1x64xf32> to vector<1x64xf32>
    %cst_219 = arith.constant dense<0.000000e+00> : vector<32xf32>
    %582 = vector.multi_reduction <add>, %577, %cst_219 [1] : vector<32x64xf32> to vector<32xf32>
    %583 = vector.shape_cast %582 : vector<32xf32> to vector<32x1xf32>
    %cst_220 = arith.constant 6.400000e+01 : f32
    %584 = vector.broadcast %cst_220 : f32 to vector<32x1xf32>
    %585 = arith.divf %583, %584 : vector<32x1xf32>
    %586 = vector.broadcast %585 : vector<32x1xf32> to vector<32x64xf32>
    %587 = arith.subf %577, %586 : vector<32x64xf32>
    %588 = arith.mulf %587, %587 : vector<32x64xf32>
    %cst_221 = arith.constant dense<0.000000e+00> : vector<32xf32>
    %589 = vector.multi_reduction <add>, %588, %cst_221 [1] : vector<32x64xf32> to vector<32xf32>
    %590 = vector.shape_cast %589 : vector<32xf32> to vector<32x1xf32>
    %cst_222 = arith.constant 6.400000e+01 : f32
    %591 = vector.broadcast %cst_222 : f32 to vector<32x1xf32>
    %592 = arith.divf %590, %591 : vector<32x1xf32>
    %593 = vector.broadcast %585 : vector<32x1xf32> to vector<32x64xf32>
    %594 = arith.subf %577, %593 : vector<32x64xf32>
    %cst_223 = arith.constant 9.99999974E-6 : f32
    %595 = vector.broadcast %cst_223 : f32 to vector<32x1xf32>
    %596 = arith.addf %592, %595 : vector<32x1xf32>
    %597 = math.rsqrt %596 : vector<32x1xf32>
    %598 = vector.broadcast %597 : vector<32x1xf32> to vector<32x64xf32>
    %599 = arith.mulf %594, %598 : vector<32x64xf32>
    %600 = vector.broadcast %579 : vector<1x64xf32> to vector<32x64xf32>
    %601 = arith.mulf %599, %600 : vector<32x64xf32>
    %602 = vector.broadcast %581 : vector<1x64xf32> to vector<32x64xf32>
    %603 = arith.addf %601, %602 : vector<32x64xf32>
    %604 = arith.truncf %603 : vector<32x64xf32> to vector<32x64xbf16>
    %c3 = arith.constant 3 : index
    %c0_224 = arith.constant 0 : index
    %c0_225 = arith.constant 0 : index
    %605 = vector.load %arg6[%c3, %c0_224, %c0_225] : memref<4x64x192xbf16, #tpu.memory_space<vmem>>, vector<1x64x192xbf16>
    %606 = vector.shape_cast %605 : vector<1x64x192xbf16> to vector<64x192xbf16>
    %cst_226 = arith.constant dense<0.000000e+00> : vector<32x192xf32>
    %607 = tpu.matmul %604, %606, %cst_226 {dimension_numbers = #tpu.dot_dimension_numbers<[1], [0], [0], [1], [0, 0, 1, 1], [], []>} : vector<32x64xbf16>, vector<64x192xbf16>, vector<32x192xf32> -> vector<32x192xf32>
    %c3_227 = arith.constant 3 : index
    %c0_228 = arith.constant 0 : index
    %c0_229 = arith.constant 0 : index
    %608 = vector.load %arg7[%c3_227, %c0_228, %c0_229] : memref<4x1x192xf32, #tpu.memory_space<vmem>>, vector<1x1x192xf32>
    %609 = vector.shape_cast %608 : vector<1x1x192xf32> to vector<1x192xf32>
    %610 = vector.broadcast %609 : vector<1x192xf32> to vector<32x192xf32>
    %611 = arith.addf %607, %610 : vector<32x192xf32>
    %c3_230 = arith.constant 3 : index
    %c0_231 = arith.constant 0 : index
    %c0_232 = arith.constant 0 : index
    %612 = vector.load %arg8[%c3_230, %c0_231, %c0_232] : memref<4x64x64xbf16, #tpu.memory_space<vmem>>, vector<1x64x64xbf16>
    %613 = vector.shape_cast %612 : vector<1x64x64xbf16> to vector<64x64xbf16>
    %cst_233 = arith.constant 0.000000e+00 : f32
    %614 = vector.broadcast %cst_233 : f32 to vector<32x64xf32>
    %615 = vector.extract_strided_slice %611 {offsets = [0, 0], sizes = [32, 16], strides = [1, 1]} : vector<32x192xf32> to vector<32x16xf32>
    %616 = vector.shape_cast %615 : vector<32x16xf32> to vector<1x32x16xf32>
    %617 = arith.truncf %616 : vector<1x32x16xf32> to vector<1x32x16xbf16>
    %618 = vector.extract_strided_slice %611 {offsets = [0, 64], sizes = [32, 16], strides = [1, 1]} : vector<32x192xf32> to vector<32x16xf32>
    %619 = vector.shape_cast %618 : vector<32x16xf32> to vector<1x32x16xf32>
    %620 = arith.truncf %619 : vector<1x32x16xf32> to vector<1x32x16xbf16>
    %621 = vector.extract_strided_slice %611 {offsets = [0, 128], sizes = [32, 16], strides = [1, 1]} : vector<32x192xf32> to vector<32x16xf32>
    %622 = vector.shape_cast %621 : vector<32x16xf32> to vector<1x32x16xf32>
    %623 = arith.truncf %622 : vector<1x32x16xf32> to vector<1x32x16xbf16>
    "tpu.trace_start"() <{level = 10 : i32, message = "bqd,bkd->bqk"}> : () -> ()
    %cst_234 = arith.constant dense<0.000000e+00> : vector<1x32x32xf32>
    %624 = tpu.matmul %617, %620, %cst_234 {dimension_numbers = #tpu.dot_dimension_numbers<[2], [2], [1], [1], [0, 0, 0, 1, 1, 1], [0], [0]>} : vector<1x32x16xbf16>, vector<1x32x16xbf16>, vector<1x32x32xf32> -> vector<1x32x32xf32>
    "tpu.trace_stop"() : () -> ()
    %cst_235 = arith.constant dense<0xFF800000> : vector<1x32xf32>
    %625 = vector.multi_reduction <maximumf>, %624, %cst_235 [2] : vector<1x32x32xf32> to vector<1x32xf32>
    %626 = vector.shape_cast %625 : vector<1x32xf32> to vector<1x32x1xf32>
    %627 = vector.broadcast %626 : vector<1x32x1xf32> to vector<1x32x32xf32>
    %628 = arith.subf %624, %627 : vector<1x32x32xf32>
    %629 = math.exp %628 : vector<1x32x32xf32>
    %cst_236 = arith.constant dense<0.000000e+00> : vector<1x32xf32>
    %630 = vector.multi_reduction <add>, %629, %cst_236 [2] : vector<1x32x32xf32> to vector<1x32xf32>
    %631 = vector.shape_cast %630 : vector<1x32xf32> to vector<1x32x1xf32>
    %632 = tpu.reciprocal %631 : vector<1x32x1xf32> -> vector<1x32x1xf32>
    %633 = vector.broadcast %632 : vector<1x32x1xf32> to vector<1x32x32xf32>
    %634 = arith.mulf %629, %633 : vector<1x32x32xf32>
    %635 = arith.truncf %634 : vector<1x32x32xf32> to vector<1x32x32xbf16>
    "tpu.trace_start"() <{level = 10 : i32, message = "bqk,bkd->bqd"}> : () -> ()
    %cst_237 = arith.constant dense<0.000000e+00> : vector<1x32x16xf32>
    %636 = tpu.matmul %635, %623, %cst_237 {dimension_numbers = #tpu.dot_dimension_numbers<[2], [1], [1], [2], [0, 0, 0, 1, 1, 2], [0], [0]>} : vector<1x32x32xbf16>, vector<1x32x16xbf16>, vector<1x32x16xf32> -> vector<1x32x16xf32>
    "tpu.trace_stop"() : () -> ()
    %637 = vector.shape_cast %636 : vector<1x32x16xf32> to vector<32x16xf32>
    %638 = arith.truncf %637 : vector<32x16xf32> to vector<32x16xbf16>
    %639 = vector.extract_strided_slice %613 {offsets = [0, 0], sizes = [16, 64], strides = [1, 1]} : vector<64x64xbf16> to vector<16x64xbf16>
    %cst_238 = arith.constant dense<0.000000e+00> : vector<32x64xf32>
    %640 = tpu.matmul %638, %639, %cst_238 {dimension_numbers = #tpu.dot_dimension_numbers<[1], [0], [0], [1], [0, 0, 1, 1], [], []>} : vector<32x16xbf16>, vector<16x64xbf16>, vector<32x64xf32> -> vector<32x64xf32>
    %641 = arith.addf %614, %640 : vector<32x64xf32>
    %642 = vector.extract_strided_slice %611 {offsets = [0, 16], sizes = [32, 16], strides = [1, 1]} : vector<32x192xf32> to vector<32x16xf32>
    %643 = vector.shape_cast %642 : vector<32x16xf32> to vector<1x32x16xf32>
    %644 = arith.truncf %643 : vector<1x32x16xf32> to vector<1x32x16xbf16>
    %645 = vector.extract_strided_slice %611 {offsets = [0, 80], sizes = [32, 16], strides = [1, 1]} : vector<32x192xf32> to vector<32x16xf32>
    %646 = vector.shape_cast %645 : vector<32x16xf32> to vector<1x32x16xf32>
    %647 = arith.truncf %646 : vector<1x32x16xf32> to vector<1x32x16xbf16>
    %648 = vector.extract_strided_slice %611 {offsets = [0, 144], sizes = [32, 16], strides = [1, 1]} : vector<32x192xf32> to vector<32x16xf32>
    %649 = vector.shape_cast %648 : vector<32x16xf32> to vector<1x32x16xf32>
    %650 = arith.truncf %649 : vector<1x32x16xf32> to vector<1x32x16xbf16>
    "tpu.trace_start"() <{level = 10 : i32, message = "bqd,bkd->bqk"}> : () -> ()
    %cst_239 = arith.constant dense<0.000000e+00> : vector<1x32x32xf32>
    %651 = tpu.matmul %644, %647, %cst_239 {dimension_numbers = #tpu.dot_dimension_numbers<[2], [2], [1], [1], [0, 0, 0, 1, 1, 1], [0], [0]>} : vector<1x32x16xbf16>, vector<1x32x16xbf16>, vector<1x32x32xf32> -> vector<1x32x32xf32>
    "tpu.trace_stop"() : () -> ()
    %cst_240 = arith.constant dense<0xFF800000> : vector<1x32xf32>
    %652 = vector.multi_reduction <maximumf>, %651, %cst_240 [2] : vector<1x32x32xf32> to vector<1x32xf32>
    %653 = vector.shape_cast %652 : vector<1x32xf32> to vector<1x32x1xf32>
    %654 = vector.broadcast %653 : vector<1x32x1xf32> to vector<1x32x32xf32>
    %655 = arith.subf %651, %654 : vector<1x32x32xf32>
    %656 = math.exp %655 : vector<1x32x32xf32>
    %cst_241 = arith.constant dense<0.000000e+00> : vector<1x32xf32>
    %657 = vector.multi_reduction <add>, %656, %cst_241 [2] : vector<1x32x32xf32> to vector<1x32xf32>
    %658 = vector.shape_cast %657 : vector<1x32xf32> to vector<1x32x1xf32>
    %659 = tpu.reciprocal %658 : vector<1x32x1xf32> -> vector<1x32x1xf32>
    %660 = vector.broadcast %659 : vector<1x32x1xf32> to vector<1x32x32xf32>
    %661 = arith.mulf %656, %660 : vector<1x32x32xf32>
    %662 = arith.truncf %661 : vector<1x32x32xf32> to vector<1x32x32xbf16>
    "tpu.trace_start"() <{level = 10 : i32, message = "bqk,bkd->bqd"}> : () -> ()
    %cst_242 = arith.constant dense<0.000000e+00> : vector<1x32x16xf32>
    %663 = tpu.matmul %662, %650, %cst_242 {dimension_numbers = #tpu.dot_dimension_numbers<[2], [1], [1], [2], [0, 0, 0, 1, 1, 2], [0], [0]>} : vector<1x32x32xbf16>, vector<1x32x16xbf16>, vector<1x32x16xf32> -> vector<1x32x16xf32>
    "tpu.trace_stop"() : () -> ()
    %664 = vector.shape_cast %663 : vector<1x32x16xf32> to vector<32x16xf32>
    %665 = arith.truncf %664 : vector<32x16xf32> to vector<32x16xbf16>
    %666 = vector.extract_strided_slice %613 {offsets = [16, 0], sizes = [16, 64], strides = [1, 1]} : vector<64x64xbf16> to vector<16x64xbf16>
    %cst_243 = arith.constant dense<0.000000e+00> : vector<32x64xf32>
    %667 = tpu.matmul %665, %666, %cst_243 {dimension_numbers = #tpu.dot_dimension_numbers<[1], [0], [0], [1], [0, 0, 1, 1], [], []>} : vector<32x16xbf16>, vector<16x64xbf16>, vector<32x64xf32> -> vector<32x64xf32>
    %668 = arith.addf %641, %667 : vector<32x64xf32>
    %669 = vector.extract_strided_slice %611 {offsets = [0, 32], sizes = [32, 16], strides = [1, 1]} : vector<32x192xf32> to vector<32x16xf32>
    %670 = vector.shape_cast %669 : vector<32x16xf32> to vector<1x32x16xf32>
    %671 = arith.truncf %670 : vector<1x32x16xf32> to vector<1x32x16xbf16>
    %672 = vector.extract_strided_slice %611 {offsets = [0, 96], sizes = [32, 16], strides = [1, 1]} : vector<32x192xf32> to vector<32x16xf32>
    %673 = vector.shape_cast %672 : vector<32x16xf32> to vector<1x32x16xf32>
    %674 = arith.truncf %673 : vector<1x32x16xf32> to vector<1x32x16xbf16>
    %675 = vector.extract_strided_slice %611 {offsets = [0, 160], sizes = [32, 16], strides = [1, 1]} : vector<32x192xf32> to vector<32x16xf32>
    %676 = vector.shape_cast %675 : vector<32x16xf32> to vector<1x32x16xf32>
    %677 = arith.truncf %676 : vector<1x32x16xf32> to vector<1x32x16xbf16>
    "tpu.trace_start"() <{level = 10 : i32, message = "bqd,bkd->bqk"}> : () -> ()
    %cst_244 = arith.constant dense<0.000000e+00> : vector<1x32x32xf32>
    %678 = tpu.matmul %671, %674, %cst_244 {dimension_numbers = #tpu.dot_dimension_numbers<[2], [2], [1], [1], [0, 0, 0, 1, 1, 1], [0], [0]>} : vector<1x32x16xbf16>, vector<1x32x16xbf16>, vector<1x32x32xf32> -> vector<1x32x32xf32>
    "tpu.trace_stop"() : () -> ()
    %cst_245 = arith.constant dense<0xFF800000> : vector<1x32xf32>
    %679 = vector.multi_reduction <maximumf>, %678, %cst_245 [2] : vector<1x32x32xf32> to vector<1x32xf32>
    %680 = vector.shape_cast %679 : vector<1x32xf32> to vector<1x32x1xf32>
    %681 = vector.broadcast %680 : vector<1x32x1xf32> to vector<1x32x32xf32>
    %682 = arith.subf %678, %681 : vector<1x32x32xf32>
    %683 = math.exp %682 : vector<1x32x32xf32>
    %cst_246 = arith.constant dense<0.000000e+00> : vector<1x32xf32>
    %684 = vector.multi_reduction <add>, %683, %cst_246 [2] : vector<1x32x32xf32> to vector<1x32xf32>
    %685 = vector.shape_cast %684 : vector<1x32xf32> to vector<1x32x1xf32>
    %686 = tpu.reciprocal %685 : vector<1x32x1xf32> -> vector<1x32x1xf32>
    %687 = vector.broadcast %686 : vector<1x32x1xf32> to vector<1x32x32xf32>
    %688 = arith.mulf %683, %687 : vector<1x32x32xf32>
    %689 = arith.truncf %688 : vector<1x32x32xf32> to vector<1x32x32xbf16>
    "tpu.trace_start"() <{level = 10 : i32, message = "bqk,bkd->bqd"}> : () -> ()
    %cst_247 = arith.constant dense<0.000000e+00> : vector<1x32x16xf32>
    %690 = tpu.matmul %689, %677, %cst_247 {dimension_numbers = #tpu.dot_dimension_numbers<[2], [1], [1], [2], [0, 0, 0, 1, 1, 2], [0], [0]>} : vector<1x32x32xbf16>, vector<1x32x16xbf16>, vector<1x32x16xf32> -> vector<1x32x16xf32>
    "tpu.trace_stop"() : () -> ()
    %691 = vector.shape_cast %690 : vector<1x32x16xf32> to vector<32x16xf32>
    %692 = arith.truncf %691 : vector<32x16xf32> to vector<32x16xbf16>
    %693 = vector.extract_strided_slice %613 {offsets = [32, 0], sizes = [16, 64], strides = [1, 1]} : vector<64x64xbf16> to vector<16x64xbf16>
    %cst_248 = arith.constant dense<0.000000e+00> : vector<32x64xf32>
    %694 = tpu.matmul %692, %693, %cst_248 {dimension_numbers = #tpu.dot_dimension_numbers<[1], [0], [0], [1], [0, 0, 1, 1], [], []>} : vector<32x16xbf16>, vector<16x64xbf16>, vector<32x64xf32> -> vector<32x64xf32>
    %695 = arith.addf %668, %694 : vector<32x64xf32>
    %696 = vector.extract_strided_slice %611 {offsets = [0, 48], sizes = [32, 16], strides = [1, 1]} : vector<32x192xf32> to vector<32x16xf32>
    %697 = vector.shape_cast %696 : vector<32x16xf32> to vector<1x32x16xf32>
    %698 = arith.truncf %697 : vector<1x32x16xf32> to vector<1x32x16xbf16>
    %699 = vector.extract_strided_slice %611 {offsets = [0, 112], sizes = [32, 16], strides = [1, 1]} : vector<32x192xf32> to vector<32x16xf32>
    %700 = vector.shape_cast %699 : vector<32x16xf32> to vector<1x32x16xf32>
    %701 = arith.truncf %700 : vector<1x32x16xf32> to vector<1x32x16xbf16>
    %702 = vector.extract_strided_slice %611 {offsets = [0, 176], sizes = [32, 16], strides = [1, 1]} : vector<32x192xf32> to vector<32x16xf32>
    %703 = vector.shape_cast %702 : vector<32x16xf32> to vector<1x32x16xf32>
    %704 = arith.truncf %703 : vector<1x32x16xf32> to vector<1x32x16xbf16>
    "tpu.trace_start"() <{level = 10 : i32, message = "bqd,bkd->bqk"}> : () -> ()
    %cst_249 = arith.constant dense<0.000000e+00> : vector<1x32x32xf32>
    %705 = tpu.matmul %698, %701, %cst_249 {dimension_numbers = #tpu.dot_dimension_numbers<[2], [2], [1], [1], [0, 0, 0, 1, 1, 1], [0], [0]>} : vector<1x32x16xbf16>, vector<1x32x16xbf16>, vector<1x32x32xf32> -> vector<1x32x32xf32>
    "tpu.trace_stop"() : () -> ()
    %cst_250 = arith.constant dense<0xFF800000> : vector<1x32xf32>
    %706 = vector.multi_reduction <maximumf>, %705, %cst_250 [2] : vector<1x32x32xf32> to vector<1x32xf32>
    %707 = vector.shape_cast %706 : vector<1x32xf32> to vector<1x32x1xf32>
    %708 = vector.broadcast %707 : vector<1x32x1xf32> to vector<1x32x32xf32>
    %709 = arith.subf %705, %708 : vector<1x32x32xf32>
    %710 = math.exp %709 : vector<1x32x32xf32>
    %cst_251 = arith.constant dense<0.000000e+00> : vector<1x32xf32>
    %711 = vector.multi_reduction <add>, %710, %cst_251 [2] : vector<1x32x32xf32> to vector<1x32xf32>
    %712 = vector.shape_cast %711 : vector<1x32xf32> to vector<1x32x1xf32>
    %713 = tpu.reciprocal %712 : vector<1x32x1xf32> -> vector<1x32x1xf32>
    %714 = vector.broadcast %713 : vector<1x32x1xf32> to vector<1x32x32xf32>
    %715 = arith.mulf %710, %714 : vector<1x32x32xf32>
    %716 = arith.truncf %715 : vector<1x32x32xf32> to vector<1x32x32xbf16>
    "tpu.trace_start"() <{level = 10 : i32, message = "bqk,bkd->bqd"}> : () -> ()
    %cst_252 = arith.constant dense<0.000000e+00> : vector<1x32x16xf32>
    %717 = tpu.matmul %716, %704, %cst_252 {dimension_numbers = #tpu.dot_dimension_numbers<[2], [1], [1], [2], [0, 0, 0, 1, 1, 2], [0], [0]>} : vector<1x32x32xbf16>, vector<1x32x16xbf16>, vector<1x32x16xf32> -> vector<1x32x16xf32>
    "tpu.trace_stop"() : () -> ()
    %718 = vector.shape_cast %717 : vector<1x32x16xf32> to vector<32x16xf32>
    %719 = arith.truncf %718 : vector<32x16xf32> to vector<32x16xbf16>
    %720 = vector.extract_strided_slice %613 {offsets = [48, 0], sizes = [16, 64], strides = [1, 1]} : vector<64x64xbf16> to vector<16x64xbf16>
    %cst_253 = arith.constant dense<0.000000e+00> : vector<32x64xf32>
    %721 = tpu.matmul %719, %720, %cst_253 {dimension_numbers = #tpu.dot_dimension_numbers<[1], [0], [0], [1], [0, 0, 1, 1], [], []>} : vector<32x16xbf16>, vector<16x64xbf16>, vector<32x64xf32> -> vector<32x64xf32>
    %722 = arith.addf %695, %721 : vector<32x64xf32>
    %c3_254 = arith.constant 3 : index
    %c0_255 = arith.constant 0 : index
    %c0_256 = arith.constant 0 : index
    %723 = vector.load %arg9[%c3_254, %c0_255, %c0_256] : memref<4x1x64xf32, #tpu.memory_space<vmem>>, vector<1x1x64xf32>
    %724 = vector.shape_cast %723 : vector<1x1x64xf32> to vector<1x64xf32>
    %725 = vector.broadcast %724 : vector<1x64xf32> to vector<32x64xf32>
    %726 = arith.addf %722, %725 : vector<32x64xf32>
    %727 = arith.addf %603, %726 : vector<32x64xf32>
    %c3_257 = arith.constant 3 : index
    %c0_258 = arith.constant 0 : index
    %c0_259 = arith.constant 0 : index
    %728 = vector.load %arg14[%c3_257, %c0_258, %c0_259] : memref<4x1x64xf32, #tpu.memory_space<vmem>>, vector<1x1x64xf32>
    %729 = vector.shape_cast %728 : vector<1x1x64xf32> to vector<1x64xf32>
    %c3_260 = arith.constant 3 : index
    %c0_261 = arith.constant 0 : index
    %c0_262 = arith.constant 0 : index
    %730 = vector.load %arg15[%c3_260, %c0_261, %c0_262] : memref<4x1x64xf32, #tpu.memory_space<vmem>>, vector<1x1x64xf32>
    %731 = vector.shape_cast %730 : vector<1x1x64xf32> to vector<1x64xf32>
    %cst_263 = arith.constant dense<0.000000e+00> : vector<32xf32>
    %732 = vector.multi_reduction <add>, %727, %cst_263 [1] : vector<32x64xf32> to vector<32xf32>
    %733 = vector.shape_cast %732 : vector<32xf32> to vector<32x1xf32>
    %cst_264 = arith.constant 6.400000e+01 : f32
    %734 = vector.broadcast %cst_264 : f32 to vector<32x1xf32>
    %735 = arith.divf %733, %734 : vector<32x1xf32>
    %736 = vector.broadcast %735 : vector<32x1xf32> to vector<32x64xf32>
    %737 = arith.subf %727, %736 : vector<32x64xf32>
    %738 = arith.mulf %737, %737 : vector<32x64xf32>
    %cst_265 = arith.constant dense<0.000000e+00> : vector<32xf32>
    %739 = vector.multi_reduction <add>, %738, %cst_265 [1] : vector<32x64xf32> to vector<32xf32>
    %740 = vector.shape_cast %739 : vector<32xf32> to vector<32x1xf32>
    %cst_266 = arith.constant 6.400000e+01 : f32
    %741 = vector.broadcast %cst_266 : f32 to vector<32x1xf32>
    %742 = arith.divf %740, %741 : vector<32x1xf32>
    %743 = vector.broadcast %735 : vector<32x1xf32> to vector<32x64xf32>
    %744 = arith.subf %727, %743 : vector<32x64xf32>
    %cst_267 = arith.constant 9.99999974E-6 : f32
    %745 = vector.broadcast %cst_267 : f32 to vector<32x1xf32>
    %746 = arith.addf %742, %745 : vector<32x1xf32>
    %747 = math.rsqrt %746 : vector<32x1xf32>
    %748 = vector.broadcast %747 : vector<32x1xf32> to vector<32x64xf32>
    %749 = arith.mulf %744, %748 : vector<32x64xf32>
    %750 = vector.broadcast %729 : vector<1x64xf32> to vector<32x64xf32>
    %751 = arith.mulf %749, %750 : vector<32x64xf32>
    %752 = vector.broadcast %731 : vector<1x64xf32> to vector<32x64xf32>
    %753 = arith.addf %751, %752 : vector<32x64xf32>
    %754 = arith.truncf %753 : vector<32x64xf32> to vector<32x64xbf16>
    %c3_268 = arith.constant 3 : index
    %c0_269 = arith.constant 0 : index
    %c0_270 = arith.constant 0 : index
    %755 = vector.load %arg10[%c3_268, %c0_269, %c0_270] : memref<4x64x256xbf16, #tpu.memory_space<vmem>>, vector<1x64x256xbf16>
    %756 = vector.shape_cast %755 : vector<1x64x256xbf16> to vector<64x256xbf16>
    %cst_271 = arith.constant dense<0.000000e+00> : vector<32x256xf32>
    %757 = tpu.matmul %754, %756, %cst_271 {dimension_numbers = #tpu.dot_dimension_numbers<[1], [0], [0], [1], [0, 0, 1, 1], [], []>} : vector<32x64xbf16>, vector<64x256xbf16>, vector<32x256xf32> -> vector<32x256xf32>
    %c3_272 = arith.constant 3 : index
    %c0_273 = arith.constant 0 : index
    %c0_274 = arith.constant 0 : index
    %758 = vector.load %arg11[%c3_272, %c0_273, %c0_274] : memref<4x1x256xf32, #tpu.memory_space<vmem>>, vector<1x1x256xf32>
    %759 = vector.shape_cast %758 : vector<1x1x256xf32> to vector<1x256xf32>
    %760 = vector.broadcast %759 : vector<1x256xf32> to vector<32x256xf32>
    %761 = arith.addf %757, %760 : vector<32x256xf32>
    %cst_275 = arith.constant 0.000000e+00 : f32
    %762 = vector.broadcast %cst_275 : f32 to vector<32x256xf32>
    %763 = arith.maximumf %761, %762 : vector<32x256xf32>
    %764 = arith.truncf %763 : vector<32x256xf32> to vector<32x256xbf16>
    %c3_276 = arith.constant 3 : index
    %c0_277 = arith.constant 0 : index
    %c0_278 = arith.constant 0 : index
    %765 = vector.load %arg12[%c3_276, %c0_277, %c0_278] : memref<4x256x64xbf16, #tpu.memory_space<vmem>>, vector<1x256x64xbf16>
    %766 = vector.shape_cast %765 : vector<1x256x64xbf16> to vector<256x64xbf16>
    %cst_279 = arith.constant dense<0.000000e+00> : vector<32x64xf32>
    %767 = tpu.matmul %764, %766, %cst_279 {dimension_numbers = #tpu.dot_dimension_numbers<[1], [0], [0], [1], [0, 0, 1, 1], [], []>} : vector<32x256xbf16>, vector<256x64xbf16>, vector<32x64xf32> -> vector<32x64xf32>
    %c3_280 = arith.constant 3 : index
    %c0_281 = arith.constant 0 : index
    %c0_282 = arith.constant 0 : index
    %768 = vector.load %arg13[%c3_280, %c0_281, %c0_282] : memref<4x1x64xf32, #tpu.memory_space<vmem>>, vector<1x1x64xf32>
    %769 = vector.shape_cast %768 : vector<1x1x64xf32> to vector<1x64xf32>
    %770 = vector.broadcast %769 : vector<1x64xf32> to vector<32x64xf32>
    %771 = arith.addf %767, %770 : vector<32x64xf32>
    %772 = arith.addf %753, %771 : vector<32x64xf32>
    %c3_283 = arith.constant 3 : index
    %c0_284 = arith.constant 0 : index
    %c0_285 = arith.constant 0 : index
    %773 = vector.load %arg16[%c3_283, %c0_284, %c0_285] : memref<4x1x64xf32, #tpu.memory_space<vmem>>, vector<1x1x64xf32>
    %774 = vector.shape_cast %773 : vector<1x1x64xf32> to vector<1x64xf32>
    %c3_286 = arith.constant 3 : index
    %c0_287 = arith.constant 0 : index
    %c0_288 = arith.constant 0 : index
    %775 = vector.load %arg17[%c3_286, %c0_287, %c0_288] : memref<4x1x64xf32, #tpu.memory_space<vmem>>, vector<1x1x64xf32>
    %776 = vector.shape_cast %775 : vector<1x1x64xf32> to vector<1x64xf32>
    %cst_289 = arith.constant dense<0.000000e+00> : vector<32xf32>
    %777 = vector.multi_reduction <add>, %772, %cst_289 [1] : vector<32x64xf32> to vector<32xf32>
    %778 = vector.shape_cast %777 : vector<32xf32> to vector<32x1xf32>
    %cst_290 = arith.constant 6.400000e+01 : f32
    %779 = vector.broadcast %cst_290 : f32 to vector<32x1xf32>
    %780 = arith.divf %778, %779 : vector<32x1xf32>
    %781 = vector.broadcast %780 : vector<32x1xf32> to vector<32x64xf32>
    %782 = arith.subf %772, %781 : vector<32x64xf32>
    %783 = arith.mulf %782, %782 : vector<32x64xf32>
    %cst_291 = arith.constant dense<0.000000e+00> : vector<32xf32>
    %784 = vector.multi_reduction <add>, %783, %cst_291 [1] : vector<32x64xf32> to vector<32xf32>
    %785 = vector.shape_cast %784 : vector<32xf32> to vector<32x1xf32>
    %cst_292 = arith.constant 6.400000e+01 : f32
    %786 = vector.broadcast %cst_292 : f32 to vector<32x1xf32>
    %787 = arith.divf %785, %786 : vector<32x1xf32>
    %788 = vector.broadcast %780 : vector<32x1xf32> to vector<32x64xf32>
    %789 = arith.subf %772, %788 : vector<32x64xf32>
    %cst_293 = arith.constant 9.99999974E-6 : f32
    %790 = vector.broadcast %cst_293 : f32 to vector<32x1xf32>
    %791 = arith.addf %787, %790 : vector<32x1xf32>
    %792 = math.rsqrt %791 : vector<32x1xf32>
    %793 = vector.broadcast %792 : vector<32x1xf32> to vector<32x64xf32>
    %794 = arith.mulf %789, %793 : vector<32x64xf32>
    %795 = vector.broadcast %774 : vector<1x64xf32> to vector<32x64xf32>
    %796 = arith.mulf %794, %795 : vector<32x64xf32>
    %797 = vector.broadcast %776 : vector<1x64xf32> to vector<32x64xf32>
    %798 = arith.addf %796, %797 : vector<32x64xf32>
    %799 = vector.shape_cast %798 : vector<32x64xf32> to vector<1x32x64xf32>
    %c0_294 = arith.constant 0 : index
    %c0_295 = arith.constant 0 : index
    %c0_296 = arith.constant 0 : index
    %800 = vector.load %arg18[%c0_294, %c0_295, %c0_296] : memref<1x32x64xf32, #tpu.memory_space<vmem>>, vector<1x32x64xf32>
    tpu.vector_store %arg18[%c0_294, %c0_295, %c0_296], %799 {strides = array<i32>} : memref<1x32x64xf32, #tpu.memory_space<vmem>>, vector<1x32x64xf32>,
    return
  }
  func.func @transform_0(%arg0: i32) -> (i32, i32, i32) {
    %c0_i32 = arith.constant 0 : i32
    %c0_i32_0 = arith.constant 0 : i32
    %c0_i32_1 = arith.constant 0 : i32
    return %arg0, %c0_i32, %c0_i32_0 : i32, i32, i32
  }
  func.func @transform_1(%arg0: i32) -> (i32, i32) {
    %c0_i32 = arith.constant 0 : i32
    %c0_i32_0 = arith.constant 0 : i32
    %c0_i32_1 = arith.constant 0 : i32
    return %c0_i32, %c0_i32_0 : i32, i32
  }
  func.func @transform_2(%arg0: i32) -> (i32, i32) {
    %c0_i32 = arith.constant 0 : i32
    %c0_i32_0 = arith.constant 0 : i32
    %c0_i32_1 = arith.constant 0 : i32
    return %c0_i32, %c0_i32_0 : i32, i32
  }
  func.func @transform_3(%arg0: i32) -> (i32, i32) {
    %c0_i32 = arith.constant 0 : i32
    %c0_i32_0 = arith.constant 0 : i32
    %c0_i32_1 = arith.constant 0 : i32
    return %c0_i32, %c0_i32_0 : i32, i32
  }
  func.func @transform_4(%arg0: i32) -> (i32, i32) {
    %c0_i32 = arith.constant 0 : i32
    %c0_i32_0 = arith.constant 0 : i32
    %c0_i32_1 = arith.constant 0 : i32
    return %c0_i32, %c0_i32_0 : i32, i32
  }
  func.func @transform_5(%arg0: i32) -> (i32, i32, i32) {
    %c0_i32 = arith.constant 0 : i32
    %c0_i32_0 = arith.constant 0 : i32
    %c0_i32_1 = arith.constant 0 : i32
    %c0_i32_2 = arith.constant 0 : i32
    return %c0_i32, %c0_i32_0, %c0_i32_1 : i32, i32, i32
  }
  func.func @transform_6(%arg0: i32) -> (i32, i32, i32) {
    %c0_i32 = arith.constant 0 : i32
    %c0_i32_0 = arith.constant 0 : i32
    %c0_i32_1 = arith.constant 0 : i32
    %c0_i32_2 = arith.constant 0 : i32
    return %c0_i32, %c0_i32_0, %c0_i32_1 : i32, i32, i32
  }
  func.func @transform_7(%arg0: i32) -> (i32, i32, i32) {
    %c0_i32 = arith.constant 0 : i32
    %c0_i32_0 = arith.constant 0 : i32
    %c0_i32_1 = arith.constant 0 : i32
    %c0_i32_2 = arith.constant 0 : i32
    return %c0_i32, %c0_i32_0, %c0_i32_1 : i32, i32, i32
  }
  func.func @transform_8(%arg0: i32) -> (i32, i32, i32) {
    %c0_i32 = arith.constant 0 : i32
    %c0_i32_0 = arith.constant 0 : i32
    %c0_i32_1 = arith.constant 0 : i32
    %c0_i32_2 = arith.constant 0 : i32
    return %c0_i32, %c0_i32_0, %c0_i32_1 : i32, i32, i32
  }
  func.func @transform_9(%arg0: i32) -> (i32, i32, i32) {
    %c0_i32 = arith.constant 0 : i32
    %c0_i32_0 = arith.constant 0 : i32
    %c0_i32_1 = arith.constant 0 : i32
    %c0_i32_2 = arith.constant 0 : i32
    return %c0_i32, %c0_i32_0, %c0_i32_1 : i32, i32, i32
  }
  func.func @transform_10(%arg0: i32) -> (i32, i32, i32) {
    %c0_i32 = arith.constant 0 : i32
    %c0_i32_0 = arith.constant 0 : i32
    %c0_i32_1 = arith.constant 0 : i32
    %c0_i32_2 = arith.constant 0 : i32
    return %c0_i32, %c0_i32_0, %c0_i32_1 : i32, i32, i32
  }
  func.func @transform_11(%arg0: i32) -> (i32, i32, i32) {
    %c0_i32 = arith.constant 0 : i32
    %c0_i32_0 = arith.constant 0 : i32
    %c0_i32_1 = arith.constant 0 : i32
    %c0_i32_2 = arith.constant 0 : i32
    return %c0_i32, %c0_i32_0, %c0_i32_1 : i32, i32, i32
  }
  func.func @transform_12(%arg0: i32) -> (i32, i32, i32) {
    %c0_i32 = arith.constant 0 : i32
    %c0_i32_0 = arith.constant 0 : i32
    %c0_i32_1 = arith.constant 0 : i32
    %c0_i32_2 = arith.constant 0 : i32
    return %c0_i32, %c0_i32_0, %c0_i32_1 : i32, i32, i32
  }
  func.func @transform_13(%arg0: i32) -> (i32, i32, i32) {
    %c0_i32 = arith.constant 0 : i32
    %c0_i32_0 = arith.constant 0 : i32
    %c0_i32_1 = arith.constant 0 : i32
    %c0_i32_2 = arith.constant 0 : i32
    return %c0_i32, %c0_i32_0, %c0_i32_1 : i32, i32, i32
  }
  func.func @transform_14(%arg0: i32) -> (i32, i32, i32) {
    %c0_i32 = arith.constant 0 : i32
    %c0_i32_0 = arith.constant 0 : i32
    %c0_i32_1 = arith.constant 0 : i32
    %c0_i32_2 = arith.constant 0 : i32
    return %c0_i32, %c0_i32_0, %c0_i32_1 : i32, i32, i32
  }
  func.func @transform_15(%arg0: i32) -> (i32, i32, i32) {
    %c0_i32 = arith.constant 0 : i32
    %c0_i32_0 = arith.constant 0 : i32
    %c0_i32_1 = arith.constant 0 : i32
    %c0_i32_2 = arith.constant 0 : i32
    return %c0_i32, %c0_i32_0, %c0_i32_1 : i32, i32, i32
  }
  func.func @transform_16(%arg0: i32) -> (i32, i32, i32) {
    %c0_i32 = arith.constant 0 : i32
    %c0_i32_0 = arith.constant 0 : i32
    %c0_i32_1 = arith.constant 0 : i32
    %c0_i32_2 = arith.constant 0 : i32
    return %c0_i32, %c0_i32_0, %c0_i32_1 : i32, i32, i32
  }
  func.func @transform_17(%arg0: i32) -> (i32, i32, i32) {
    %c0_i32 = arith.constant 0 : i32
    %c0_i32_0 = arith.constant 0 : i32
    %c0_i32_1 = arith.constant 0 : i32
    return %arg0, %c0_i32, %c0_i32_0 : i32, i32, i32
  }
}

</mosaic_0001>

<llo_original>
// kernel: encoder_branch_forward.1
$region0: #{encoder_branch_forward.1}
  #allocation0 [shape = 'u32[]', space=smem, size = 0x4, offset = 0x4, fixed_abs, tag = 'smem constant byte address 0x4 - core index']
  #allocation1 [shape = 'u32[144,128]{1,0:T(1,128)}', space=vmem, size = 0x12000, scoped, tag = 'internal scratch']
  %s0 = inlined_call_operand.vmem [shape: f32[2,32,1024], index: 0, kind: input, shape index: {}]
  %s1 = inlined_call_operand.vmem [shape: bf16[1024,512], index: 1, kind: input, shape index: {}]
  %s2 = inlined_call_operand.vmem [shape: f32[1,512], index: 2, kind: input, shape index: {}]
  %s3 = inlined_call_operand.vmem [shape: bf16[512,64], index: 3, kind: input, shape index: {}]
  %s4 = inlined_call_operand.vmem [shape: f32[1,64], index: 4, kind: input, shape index: {}]
  %s5 = inlined_call_operand.vmem [shape: bf16[4,64,192], index: 5, kind: input, shape index: {}]
  %s6 = inlined_call_operand.vmem [shape: f32[4,1,192], index: 6, kind: input, shape index: {}]
  %s7 = inlined_call_operand.vmem [shape: bf16[4,64,64], index: 7, kind: input, shape index: {}]
  %s8 = inlined_call_operand.vmem [shape: f32[4,1,64], index: 8, kind: input, shape index: {}]
  %s9 = inlined_call_operand.vmem [shape: bf16[4,64,256], index: 9, kind: input, shape index: {}]
  %s10 = inlined_call_operand.vmem [shape: f32[4,1,256], index: 10, kind: input, shape index: {}]
  %s11 = inlined_call_operand.vmem [shape: bf16[4,256,64], index: 11, kind: input, shape index: {}]
  %s12 = inlined_call_operand.vmem [shape: f32[4,1,64], index: 12, kind: input, shape index: {}]
  %s13 = inlined_call_operand.vmem [shape: f32[4,1,64], index: 13, kind: input, shape index: {}]
  %s14 = inlined_call_operand.vmem [shape: f32[4,1,64], index: 14, kind: input, shape index: {}]
  %s15 = inlined_call_operand.vmem [shape: f32[4,1,64], index: 15, kind: input, shape index: {}]
  %s16 = inlined_call_operand.vmem [shape: f32[4,1,64], index: 16, kind: input, shape index: {}]
  %s17 = inlined_call_operand.hbm [shape: f32[2,32,64], index: 17, kind: output, shape index: {}]
  %s18 = sld [smem:[#allocation0]]
  $region101: #{encoder_branch_forward.1} parent=0
    _
  %s20 = ssub.s32 1, %s18
  %s21 = scalar_select 0, %s20, %s18
  $region1: #{encoder_branch_forward.1} parent=0
    #allocation2 [shape = 'u8[32768]{0}', space=vmem, size = 0x8000, scoped, tag = 'output window, operand 0']
    #allocation3 [shape = 's32[2]{0}', space=sflag, size = 0x8, scoped, tag = 'scoped memory for encoder_branch_forward.1']
    %22 = vsyncpa [#allocation3], 0
    %s23 = scalar_lea.sflag [#allocation3], 1
    %24 = vsyncpa %s23, 0
    loop: start=0, step=1, limit=4
    $region2: #{encoder_branch_forward.1} parent=1 // loop_pre_header
      _
    $region3: #{encoder_branch_forward.1} parent=1 // loop_header
      %s26 = sphi 0, %s30
      %p27 = scmp.ge.s32.totalorder %s26, 4
      %s36 = sphi 0, %s38
      %s39 = sphi 0, %s36
      %s40 = sphi 0, %s39
      %s56 = sphi 0, %s40
      %s60 = sphi 0, %s60
      %s62 = sphi 0, %s60
      %s63 = sphi 0, %s62
      %s77 = sphi 0, %s63
      %s81 = sphi 0, %s81
      %s83 = sphi 0, %s81
      %s84 = sphi 0, %s83
      %s98 = sphi 0, %s84
      %s102 = sphi 0, %s102
      %s104 = sphi 0, %s102
      %s105 = sphi 0, %s104
      %s119 = sphi 0, %s105
      %s123 = sphi 0, %s123
      %s125 = sphi 0, %s123
      %s126 = sphi 0, %s125
      %s140 = sphi 0, %s126
      %s144 = sphi 0, %s144
      %s146 = sphi 0, %s144
      %s147 = sphi 0, %s146
      %s161 = sphi 0, %s147
      %s165 = sphi 0, %s165
      %s167 = sphi 0, %s165
      %s168 = sphi 0, %s167
      %s182 = sphi 0, %s168
      %s186 = sphi 0, %s186
      %s188 = sphi 0, %s186
      %s189 = sphi 0, %s188
      %s203 = sphi 0, %s189
      %s207 = sphi 0, %s207
      %s209 = sphi 0, %s207
      %s210 = sphi 0, %s209
      %s224 = sphi 0, %s210
      %s228 = sphi 0, %s228
      %s230 = sphi 0, %s228
      %s231 = sphi 0, %s230
      %s245 = sphi 0, %s231
      %s249 = sphi 0, %s249
      %s251 = sphi 0, %s249
      %s252 = sphi 0, %s251
      %s266 = sphi 0, %s252
      %s270 = sphi 0, %s270
      %s272 = sphi 0, %s270
      %s273 = sphi 0, %s272
      %s287 = sphi 0, %s273
      %s291 = sphi 0, %s291
      %s293 = sphi 0, %s291
      %s294 = sphi 0, %s293
      %s308 = sphi 0, %s294
      %s312 = sphi 0, %s312
      %s314 = sphi 0, %s312
      %s315 = sphi 0, %s314
      %s329 = sphi 0, %s315
      %s333 = sphi 0, %s333
      %s335 = sphi 0, %s333
      %s336 = sphi 0, %s335
      %s350 = sphi 0, %s336
      %s354 = sphi 0, %s354
      %s356 = sphi 0, %s354
      %s357 = sphi 0, %s356
      %s371 = sphi 0, %s357
      %s375 = sphi 0, %s375
      %s377 = sphi 0, %s375
      %s378 = sphi 0, %s377
      %s392 = sphi 0, %s378
      %s398 = sphi 0, %s400
      %s401 = sphi 0, %s398
      %s402 = sphi 0, %s401
      %s418 = sphi 0, %s402
    $region4: #{encoder_branch_forward.1} parent=1 // loop_header_branch
      %29 = sbr.rel (%p27) target = $region8
    $region5: #{encoder_branch_forward.1} parent=1 // loop_body
      %s31 = ssub.s32 %s26, 1
      %s32 = ssub.s32 %s26, 2
      %s33 = sadd.s32 %s26, 1
      %s34 = ssub.s32 %s26, %s33
      %p35 = scmp.eq.s32.totalorder %s34, 0
      %s37 = sadd.s32 %s36, 1
      %s38 = scalar_select %p35, %s36, %s37
      %p41 = pneg %p35
      %p42 = scmp.eq.s32.totalorder %s26, 1
      %p43 = por %p41, %p42
      %p44 = scmp.ne.s32.totalorder %s36, %s39
      %p45 = scmp.eq.s32.totalorder %s26, 0
      %p46 = por %p44, %p45
      %p47 = scmp.ne.s32.totalorder %s36, %s39
      %p48 = scmp.eq.s32.totalorder %s31, 1
      %p49 = por %p47, %p48
      %p50 = scmp.ne.s32.totalorder %s39, %s40
      %p51 = scmp.eq.s32.totalorder %s31, 0
      %p52 = por %p50, %p51
      %p53 = scmp.ne.s32.totalorder %s39, %s40
      %p54 = scmp.eq.s32.totalorder %s32, 1
      %p55 = por %p53, %p54
      %p57 = scmp.ne.s32.totalorder %s40, %s56
      %p58 = scmp.eq.s32.totalorder %s32, 0
      %p59 = por %p57, %p58
      %s61 = sadd.s32 %s60, 1
      %p64 = scmp.eq.s32.totalorder %s26, 1
      %p65 = scmp.ne.s32.totalorder %s60, %s62
      %p66 = scmp.eq.s32.totalorder %s26, 0
      %p67 = por %p65, %p66
      %p68 = scmp.ne.s32.totalorder %s60, %s62
      %p69 = scmp.eq.s32.totalorder %s31, 1
      %p70 = por %p68, %p69
      %p71 = scmp.ne.s32.totalorder %s62, %s63
      %p72 = scmp.eq.s32.totalorder %s31, 0
      %p73 = por %p71, %p72
      %p74 = scmp.ne.s32.totalorder %s62, %s63
      %p75 = scmp.eq.s32.totalorder %s32, 1
      %p76 = por %p74, %p75
      %p78 = scmp.ne.s32.totalorder %s63, %s77
      %p79 = scmp.eq.s32.totalorder %s32, 0
      %p80 = por %p78, %p79
      %s82 = sadd.s32 %s81, 1
      %p85 = scmp.eq.s32.totalorder %s26, 1
      %p86 = scmp.ne.s32.totalorder %s81, %s83
      %p87 = scmp.eq.s32.totalorder %s26, 0
      %p88 = por %p86, %p87
      %p89 = scmp.ne.s32.totalorder %s81, %s83
      %p90 = scmp.eq.s32.totalorder %s31, 1
      %p91 = por %p89, %p90
      %p92 = scmp.ne.s32.totalorder %s83, %s84
      %p93 = scmp.eq.s32.totalorder %s31, 0
      %p94 = por %p92, %p93
      %p95 = scmp.ne.s32.totalorder %s83, %s84
      %p96 = scmp.eq.s32.totalorder %s32, 1
      %p97 = por %p95, %p96
      %p99 = scmp.ne.s32.totalorder %s84, %s98
      %p100 = scmp.eq.s32.totalorder %s32, 0
      %p101 = por %p99, %p100
      %s103 = sadd.s32 %s102, 1
      %p106 = scmp.eq.s32.totalorder %s26, 1
      %p107 = scmp.ne.s32.totalorder %s102, %s104
      %p108 = scmp.eq.s32.totalorder %s26, 0
      %p109 = por %p107, %p108
      %p110 = scmp.ne.s32.totalorder %s102, %s104
      %p111 = scmp.eq.s32.totalorder %s31, 1
      %p112 = por %p110, %p111
      %p113 = scmp.ne.s32.totalorder %s104, %s105
      %p114 = scmp.eq.s32.totalorder %s31, 0
      %p115 = por %p113, %p114
      %p116 = scmp.ne.s32.totalorder %s104, %s105
      %p117 = scmp.eq.s32.totalorder %s32, 1
      %p118 = por %p116, %p117
      %p120 = scmp.ne.s32.totalorder %s105, %s119
      %p121 = scmp.eq.s32.totalorder %s32, 0
      %p122 = por %p120, %p121
      %s124 = sadd.s32 %s123, 1
      %p127 = scmp.eq.s32.totalorder %s26, 1
      %p128 = scmp.ne.s32.totalorder %s123, %s125
      %p129 = scmp.eq.s32.totalorder %s26, 0
      %p130 = por %p128, %p129
      %p131 = scmp.ne.s32.totalorder %s123, %s125
      %p132 = scmp.eq.s32.totalorder %s31, 1
      %p133 = por %p131, %p132
      %p134 = scmp.ne.s32.totalorder %s125, %s126
      %p135 = scmp.eq.s32.totalorder %s31, 0
      %p136 = por %p134, %p135
      %p137 = scmp.ne.s32.totalorder %s125, %s126
      %p138 = scmp.eq.s32.totalorder %s32, 1
      %p139 = por %p137, %p138
      %p141 = scmp.ne.s32.totalorder %s126, %s140
      %p142 = scmp.eq.s32.totalorder %s32, 0
      %p143 = por %p141, %p142
      %s145 = sadd.s32 %s144, 1
      %p148 = scmp.eq.s32.totalorder %s26, 1
      %p149 = scmp.ne.s32.totalorder %s144, %s146
      %p150 = scmp.eq.s32.totalorder %s26, 0
      %p151 = por %p149, %p150
      %p152 = scmp.ne.s32.totalorder %s144, %s146
      %p153 = scmp.eq.s32.totalorder %s31, 1
      %p154 = por %p152, %p153
      %p155 = scmp.ne.s32.totalorder %s146, %s147
      %p156 = scmp.eq.s32.totalorder %s31, 0
      %p157 = por %p155, %p156
      %p158 = scmp.ne.s32.totalorder %s146, %s147
      %p159 = scmp.eq.s32.totalorder %s32, 1
      %p160 = por %p158, %p159
      %p162 = scmp.ne.s32.totalorder %s147, %s161
      %p163 = scmp.eq.s32.totalorder %s32, 0
      %p164 = por %p162, %p163
      %s166 = sadd.s32 %s165, 1
      %p169 = scmp.eq.s32.totalorder %s26, 1
      %p170 = scmp.ne.s32.totalorder %s165, %s167
      %p171 = scmp.eq.s32.totalorder %s26, 0
      %p172 = por %p170, %p171
      %p173 = scmp.ne.s32.totalorder %s165, %s167
      %p174 = scmp.eq.s32.totalorder %s31, 1
      %p175 = por %p173, %p174
      %p176 = scmp.ne.s32.totalorder %s167, %s168
      %p177 = scmp.eq.s32.totalorder %s31, 0
      %p178 = por %p176, %p177
      %p179 = scmp.ne.s32.totalorder %s167, %s168
      %p180 = scmp.eq.s32.totalorder %s32, 1
      %p181 = por %p179, %p180
      %p183 = scmp.ne.s32.totalorder %s168, %s182
      %p184 = scmp.eq.s32.totalorder %s32, 0
      %p185 = por %p183, %p184
      %s187 = sadd.s32 %s186, 1
      %p190 = scmp.eq.s32.totalorder %s26, 1
      %p191 = scmp.ne.s32.totalorder %s186, %s188
      %p192 = scmp.eq.s32.totalorder %s26, 0
      %p193 = por %p191, %p192
      %p194 = scmp.ne.s32.totalorder %s186, %s188
      %p195 = scmp.eq.s32.totalorder %s31, 1
      %p196 = por %p194, %p195
      %p197 = scmp.ne.s32.totalorder %s188, %s189
      %p198 = scmp.eq.s32.totalorder %s31, 0
      %p199 = por %p197, %p198
      %p200 = scmp.ne.s32.totalorder %s188, %s189
      %p201 = scmp.eq.s32.totalorder %s32, 1
      %p202 = por %p200, %p201
      %p204 = scmp.ne.s32.totalorder %s189, %s203
      %p205 = scmp.eq.s32.totalorder %s32, 0
      %p206 = por %p204, %p205
      %s208 = sadd.s32 %s207, 1
      %p211 = scmp.eq.s32.totalorder %s26, 1
      %p212 = scmp.ne.s32.totalorder %s207, %s209
      %p213 = scmp.eq.s32.totalorder %s26, 0
      %p214 = por %p212, %p213
      %p215 = scmp.ne.s32.totalorder %s207, %s209
      %p216 = scmp.eq.s32.totalorder %s31, 1
      %p217 = por %p215, %p216
      %p218 = scmp.ne.s32.totalorder %s209, %s210
      %p219 = scmp.eq.s32.totalorder %s31, 0
      %p220 = por %p218, %p219
      %p221 = scmp.ne.s32.totalorder %s209, %s210
      %p222 = scmp.eq.s32.totalorder %s32, 1
      %p223 = por %p221, %p222
      %p225 = scmp.ne.s32.totalorder %s210, %s224
      %p226 = scmp.eq.s32.totalorder %s32, 0
      %p227 = por %p225, %p226
      %s229 = sadd.s32 %s228, 1
      %p232 = scmp.eq.s32.totalorder %s26, 1
      %p233 = scmp.ne.s32.totalorder %s228, %s230
      %p234 = scmp.eq.s32.totalorder %s26, 0
      %p235 = por %p233, %p234
      %p236 = scmp.ne.s32.totalorder %s228, %s230
      %p237 = scmp.eq.s32.totalorder %s31, 1
      %p238 = por %p236, %p237
      %p239 = scmp.ne.s32.totalorder %s230, %s231
      %p240 = scmp.eq.s32.totalorder %s31, 0
      %p241 = por %p239, %p240
      %p242 = scmp.ne.s32.totalorder %s230, %s231
      %p243 = scmp.eq.s32.totalorder %s32, 1
      %p244 = por %p242, %p243
      %p246 = scmp.ne.s32.totalorder %s231, %s245
      %p247 = scmp.eq.s32.totalorder %s32, 0
      %p248 = por %p246, %p247
      %s250 = sadd.s32 %s249, 1
      %p253 = scmp.eq.s32.totalorder %s26, 1
      %p254 = scmp.ne.s32.totalorder %s249, %s251
      %p255 = scmp.eq.s32.totalorder %s26, 0
      %p256 = por %p254, %p255
      %p257 = scmp.ne.s32.totalorder %s249, %s251
      %p258 = scmp.eq.s32.totalorder %s31, 1
      %p259 = por %p257, %p258
      %p260 = scmp.ne.s32.totalorder %s251, %s252
      %p261 = scmp.eq.s32.totalorder %s31, 0
      %p262 = por %p260, %p261
      %p263 = scmp.ne.s32.totalorder %s251, %s252
      %p264 = scmp.eq.s32.totalorder %s32, 1
      %p265 = por %p263, %p264
      %p267 = scmp.ne.s32.totalorder %s252, %s266
      %p268 = scmp.eq.s32.totalorder %s32, 0
      %p269 = por %p267, %p268
      %s271 = sadd.s32 %s270, 1
      %p274 = scmp.eq.s32.totalorder %s26, 1
      %p275 = scmp.ne.s32.totalorder %s270, %s272
      %p276 = scmp.eq.s32.totalorder %s26, 0
      %p277 = por %p275, %p276
      %p278 = scmp.ne.s32.totalorder %s270, %s272
      %p279 = scmp.eq.s32.totalorder %s31, 1
      %p280 = por %p278, %p279
      %p281 = scmp.ne.s32.totalorder %s272, %s273
      %p282 = scmp.eq.s32.totalorder %s31, 0
      %p283 = por %p281, %p282
      %p284 = scmp.ne.s32.totalorder %s272, %s273
      %p285 = scmp.eq.s32.totalorder %s32, 1
      %p286 = por %p284, %p285
      %p288 = scmp.ne.s32.totalorder %s273, %s287
      %p289 = scmp.eq.s32.totalorder %s32, 0
      %p290 = por %p288, %p289
      %s292 = sadd.s32 %s291, 1
      %p295 = scmp.eq.s32.totalorder %s26, 1
      %p296 = scmp.ne.s32.totalorder %s291, %s293
      %p297 = scmp.eq.s32.totalorder %s26, 0
      %p298 = por %p296, %p297
      %p299 = scmp.ne.s32.totalorder %s291, %s293
      %p300 = scmp.eq.s32.totalorder %s31, 1
      %p301 = por %p299, %p300
      %p302 = scmp.ne.s32.totalorder %s293, %s294
      %p303 = scmp.eq.s32.totalorder %s31, 0
      %p304 = por %p302, %p303
      %p305 = scmp.ne.s32.totalorder %s293, %s294
      %p306 = scmp.eq.s32.totalorder %s32, 1
      %p307 = por %p305, %p306
      %p309 = scmp.ne.s32.totalorder %s294, %s308
      %p310 = scmp.eq.s32.totalorder %s32, 0
      %p311 = por %p309, %p310
      %s313 = sadd.s32 %s312, 1
      %p316 = scmp.eq.s32.totalorder %s26, 1
      %p317 = scmp.ne.s32.totalorder %s312, %s314
      %p318 = scmp.eq.s32.totalorder %s26, 0
      %p319 = por %p317, %p318
      %p320 = scmp.ne.s32.totalorder %s312, %s314
      %p321 = scmp.eq.s32.totalorder %s31, 1
      %p322 = por %p320, %p321
      %p323 = scmp.ne.s32.totalorder %s314, %s315
      %p324 = scmp.eq.s32.totalorder %s31, 0
      %p325 = por %p323, %p324
      %p326 = scmp.ne.s32.totalorder %s314, %s315
      %p327 = scmp.eq.s32.totalorder %s32, 1
      %p328 = por %p326, %p327
      %p330 = scmp.ne.s32.totalorder %s315, %s329
      %p331 = scmp.eq.s32.totalorder %s32, 0
      %p332 = por %p330, %p331
      %s334 = sadd.s32 %s333, 1
      %p337 = scmp.eq.s32.totalorder %s26, 1
      %p338 = scmp.ne.s32.totalorder %s333, %s335
      %p339 = scmp.eq.s32.totalorder %s26, 0
      %p340 = por %p338, %p339
      %p341 = scmp.ne.s32.totalorder %s333, %s335
      %p342 = scmp.eq.s32.totalorder %s31, 1
      %p343 = por %p341, %p342
      %p344 = scmp.ne.s32.totalorder %s335, %s336
      %p345 = scmp.eq.s32.totalorder %s31, 0
      %p346 = por %p344, %p345
      %p347 = scmp.ne.s32.totalorder %s335, %s336
      %p348 = scmp.eq.s32.totalorder %s32, 1
      %p349 = por %p347, %p348
      %p351 = scmp.ne.s32.totalorder %s336, %s350
      %p352 = scmp.eq.s32.totalorder %s32, 0
      %p353 = por %p351, %p352
      %s355 = sadd.s32 %s354, 1
      %p358 = scmp.eq.s32.totalorder %s26, 1
      %p359 = scmp.ne.s32.totalorder %s354, %s356
      %p360 = scmp.eq.s32.totalorder %s26, 0
      %p361 = por %p359, %p360
      %p362 = scmp.ne.s32.totalorder %s354, %s356
      %p363 = scmp.eq.s32.totalorder %s31, 1
      %p364 = por %p362, %p363
      %p365 = scmp.ne.s32.totalorder %s356, %s357
      %p366 = scmp.eq.s32.totalorder %s31, 0
      %p367 = por %p365, %p366
      %p368 = scmp.ne.s32.totalorder %s356, %s357
      %p369 = scmp.eq.s32.totalorder %s32, 1
      %p370 = por %p368, %p369
      %p372 = scmp.ne.s32.totalorder %s357, %s371
      %p373 = scmp.eq.s32.totalorder %s32, 0
      %p374 = por %p372, %p373
      %s376 = sadd.s32 %s375, 1
      %p379 = scmp.eq.s32.totalorder %s26, 1
      %p380 = scmp.ne.s32.totalorder %s375, %s377
      %p381 = scmp.eq.s32.totalorder %s26, 0
      %p382 = por %p380, %p381
      %p383 = scmp.ne.s32.totalorder %s375, %s377
      %p384 = scmp.eq.s32.totalorder %s31, 1
      %p385 = por %p383, %p384
      %p386 = scmp.ne.s32.totalorder %s377, %s378
      %p387 = scmp.eq.s32.totalorder %s31, 0
      %p388 = por %p386, %p387
      %p389 = scmp.ne.s32.totalorder %s377, %s378
      %p390 = scmp.eq.s32.totalorder %s32, 1
      %p391 = por %p389, %p390
      %p393 = scmp.ne.s32.totalorder %s378, %s392
      %p394 = scmp.eq.s32.totalorder %s32, 0
      %p395 = por %p393, %p394
      %s396 = ssub.s32 %s26, %s33
      %p397 = scmp.eq.s32.totalorder %s396, 0
      %s399 = sadd.s32 %s398, 1
      %s400 = scalar_select %p397, %s398, %s399
      %p403 = pneg %p397
      %p404 = scmp.eq.s32.totalorder %s26, 1
      %p405 = por %p403, %p404
      %p406 = scmp.ne.s32.totalorder %s398, %s401
      %p407 = scmp.eq.s32.totalorder %s26, 0
      %p408 = por %p406, %p407
      %p409 = scmp.ne.s32.totalorder %s398, %s401
      %p410 = scmp.eq.s32.totalorder %s31, 1
      %p411 = por %p409, %p410
      %p412 = scmp.ne.s32.totalorder %s401, %s402
      %p413 = scmp.eq.s32.totalorder %s31, 0
      %p414 = por %p412, %p413
      %p415 = scmp.ne.s32.totalorder %s401, %s402
      %p416 = scmp.eq.s32.totalorder %s32, 1
      %p417 = por %p415, %p416
      %p419 = scmp.ne.s32.totalorder %s402, %s418
      %p420 = scmp.eq.s32.totalorder %s32, 0
      %p421 = por %p419, %p420
      %p422 = scmp.le.s32.totalorder 1, %s26
      %p423 = scmp.lt.s32.totalorder %s26, 3
      %p424 = pnand %p422, %p423
      %p425 = pneg %p424
      // Predicated region
      $region9: #{encoder_branch_forward.1} parent=5 // pred_check
        _
      $region10: #{encoder_branch_forward.1} parent=5 // pred_check_branch
        %427 = sbr.rel (%p424) target = $region12
      $region11: #{encoder_branch_forward.1} parent=5 // pred_region
        %s428 = ssub.s32 %s26, 1
        // Predicated region
        $region13: #{encoder_branch_forward.1} parent=11 // pred_check
          %p429 = pneg %p73
        $region14: #{encoder_branch_forward.1} parent=11 // pred_check_branch
          %431 = sbr.rel (%p429) target = $region16
        $region15: #{encoder_branch_forward.1} parent=11 // pred_region
          _
        $region16: #{encoder_branch_forward.1} parent=11 // pred_fallthru
          _
        // Predicated region
        $region17: #{encoder_branch_forward.1} parent=11 // pred_check
          %p432 = pneg %p94
        $region18: #{encoder_branch_forward.1} parent=11 // pred_check_branch
          %434 = sbr.rel (%p432) target = $region20
        $region19: #{encoder_branch_forward.1} parent=11 // pred_region
          _
        $region20: #{encoder_branch_forward.1} parent=11 // pred_fallthru
          _
        // Predicated region
        $region21: #{encoder_branch_forward.1} parent=11 // pred_check
          %p435 = pneg %p115
        $region22: #{encoder_branch_forward.1} parent=11 // pred_check_branch
          %437 = sbr.rel (%p435) target = $region24
        $region23: #{encoder_branch_forward.1} parent=11 // pred_region
          _
        $region24: #{encoder_branch_forward.1} parent=11 // pred_fallthru
          _
        // Predicated region
        $region25: #{encoder_branch_forward.1} parent=11 // pred_check
          %p438 = pneg %p136
        $region26: #{encoder_branch_forward.1} parent=11 // pred_check_branch
          %440 = sbr.rel (%p438) target = $region28
        $region27: #{encoder_branch_forward.1} parent=11 // pred_region
          _
        $region28: #{encoder_branch_forward.1} parent=11 // pred_fallthru
          _
        // Predicated region
        $region29: #{encoder_branch_forward.1} parent=11 // pred_check
          %p441 = pneg %p157
        $region30: #{encoder_branch_forward.1} parent=11 // pred_check_branch
          %443 = sbr.rel (%p441) target = $region32
        $region31: #{encoder_branch_forward.1} parent=11 // pred_region
          _
        $region32: #{encoder_branch_forward.1} parent=11 // pred_fallthru
          _
        // Predicated region
        $region33: #{encoder_branch_forward.1} parent=11 // pred_check
          %p444 = pneg %p178
        $region34: #{encoder_branch_forward.1} parent=11 // pred_check_branch
          %446 = sbr.rel (%p444) target = $region36
        $region35: #{encoder_branch_forward.1} parent=11 // pred_region
          _
        $region36: #{encoder_branch_forward.1} parent=11 // pred_fallthru
          _
        // Predicated region
        $region37: #{encoder_branch_forward.1} parent=11 // pred_check
          %p447 = pneg %p199
        $region38: #{encoder_branch_forward.1} parent=11 // pred_check_branch
          %449 = sbr.rel (%p447) target = $region40
        $region39: #{encoder_branch_forward.1} parent=11 // pred_region
          _
        $region40: #{encoder_branch_forward.1} parent=11 // pred_fallthru
          _
        // Predicated region
        $region41: #{encoder_branch_forward.1} parent=11 // pred_check
          %p450 = pneg %p220
        $region42: #{encoder_branch_forward.1} parent=11 // pred_check_branch
          %452 = sbr.rel (%p450) target = $region44
        $region43: #{encoder_branch_forward.1} parent=11 // pred_region
          _
        $region44: #{encoder_branch_forward.1} parent=11 // pred_fallthru
          _
        // Predicated region
        $region45: #{encoder_branch_forward.1} parent=11 // pred_check
          %p453 = pneg %p241
        $region46: #{encoder_branch_forward.1} parent=11 // pred_check_branch
          %455 = sbr.rel (%p453) target = $region48
        $region47: #{encoder_branch_forward.1} parent=11 // pred_region
          _
        $region48: #{encoder_branch_forward.1} parent=11 // pred_fallthru
          _
        // Predicated region
        $region49: #{encoder_branch_forward.1} parent=11 // pred_check
          %p456 = pneg %p262
        $region50: #{encoder_branch_forward.1} parent=11 // pred_check_branch
          %458 = sbr.rel (%p456) target = $region52
        $region51: #{encoder_branch_forward.1} parent=11 // pred_region
          _
        $region52: #{encoder_branch_forward.1} parent=11 // pred_fallthru
          _
        // Predicated region
        $region53: #{encoder_branch_forward.1} parent=11 // pred_check
          %p459 = pneg %p283
        $region54: #{encoder_branch_forward.1} parent=11 // pred_check_branch
          %461 = sbr.rel (%p459) target = $region56
        $region55: #{encoder_branch_forward.1} parent=11 // pred_region
          _
        $region56: #{encoder_branch_forward.1} parent=11 // pred_fallthru
          _
        // Predicated region
        $region57: #{encoder_branch_forward.1} parent=11 // pred_check
          %p462 = pneg %p304
        $region58: #{encoder_branch_forward.1} parent=11 // pred_check_branch
          %464 = sbr.rel (%p462) target = $region60
        $region59: #{encoder_branch_forward.1} parent=11 // pred_region
          _
        $region60: #{encoder_branch_forward.1} parent=11 // pred_fallthru
          _
        // Predicated region
        $region61: #{encoder_branch_forward.1} parent=11 // pred_check
          %p465 = pneg %p325
        $region62: #{encoder_branch_forward.1} parent=11 // pred_check_branch
          %467 = sbr.rel (%p465) target = $region64
        $region63: #{encoder_branch_forward.1} parent=11 // pred_region
          _
        $region64: #{encoder_branch_forward.1} parent=11 // pred_fallthru
          _
        // Predicated region
        $region65: #{encoder_branch_forward.1} parent=11 // pred_check
          %p468 = pneg %p346
        $region66: #{encoder_branch_forward.1} parent=11 // pred_check_branch
          %470 = sbr.rel (%p468) target = $region68
        $region67: #{encoder_branch_forward.1} parent=11 // pred_region
          _
        $region68: #{encoder_branch_forward.1} parent=11 // pred_fallthru
          _
        // Predicated region
        $region69: #{encoder_branch_forward.1} parent=11 // pred_check
          %p471 = pneg %p367
        $region70: #{encoder_branch_forward.1} parent=11 // pred_check_branch
          %473 = sbr.rel (%p471) target = $region72
        $region71: #{encoder_branch_forward.1} parent=11 // pred_region
          _
        $region72: #{encoder_branch_forward.1} parent=11 // pred_fallthru
          _
        // Predicated region
        $region73: #{encoder_branch_forward.1} parent=11 // pred_check
          %p474 = pneg %p388
        $region74: #{encoder_branch_forward.1} parent=11 // pred_check_branch
          %476 = sbr.rel (%p474) target = $region76
        $region75: #{encoder_branch_forward.1} parent=11 // pred_region
          _
        $region76: #{encoder_branch_forward.1} parent=11 // pred_fallthru
          _
      $region12: #{encoder_branch_forward.1} parent=5 // pred_fallthru
        _
      %p477 = scmp.lt.s32.totalorder %s26, 2
      // Predicated region
      $region77: #{encoder_branch_forward.1} parent=5 // pred_check
        %p478 = pneg %p477
      $region78: #{encoder_branch_forward.1} parent=5 // pred_check_branch
        %480 = sbr.rel (%p478) target = $region80
      $region79: #{encoder_branch_forward.1} parent=5 // pred_region
        // Predicated region
        $region81: #{encoder_branch_forward.1} parent=79 // pred_check
          %p481 = pneg %p46
        $region82: #{encoder_branch_forward.1} parent=79 // pred_check_branch
          %483 = sbr.rel (%p481) target = $region84
        $region83: #{encoder_branch_forward.1} parent=79 // pred_region
          %p484 = scmp.lt.s32.totalorder %s26, 1
          %s485 = scalar_select %p484, %s26, 1
          %s486 = smul.addr %s485, 32
          %s487 = smul.addr %s486, 8
          %s488 = scalar_lea.vmem %s0, %s487
        $region84: #{encoder_branch_forward.1} parent=79 // pred_fallthru
          _
      $region80: #{encoder_branch_forward.1} parent=5 // pred_fallthru
        _
      %p489 = scmp.le.s32.totalorder 1, %s26
      %p490 = scmp.lt.s32.totalorder %s26, 3
      %p491 = pnand %p489, %p490
      %p492 = pneg %p491
      // Predicated region
      $region85: #{encoder_branch_forward.1} parent=5 // pred_check
        _
      $region86: #{encoder_branch_forward.1} parent=5 // pred_check_branch
        %494 = sbr.rel (%p491) target = $region88
      $region87: #{encoder_branch_forward.1} parent=5 // pred_region
        %s495 = ssub.s32 %s26, 1
        %p496 = scmp.lt.s32.totalorder %s31, 1
        %s497 = scalar_select %p496, %s31, 1
        %s498 = smul.addr %s497, 32
        %s499 = smul.addr %s498, 8
        %s500 = scalar_lea.vmem %s0, %s499
        %p501 = pneg %p52
        %p502 = pneg %p49
        %p503 = pneg %p73
        %p504 = pneg %p70
        %p505 = pneg %p94
        %p506 = pneg %p91
        %p507 = pneg %p115
        %p508 = pneg %p112
        %p509 = pneg %p136
        %p510 = pneg %p133
        %p511 = pneg %p157
        %p512 = pneg %p154
        %p513 = pneg %p178
        %p514 = pneg %p175
        %p515 = pneg %p199
        %p516 = pneg %p196
        %p517 = pneg %p220
        %p518 = pneg %p217
        %p519 = pneg %p241
        %p520 = pneg %p238
        %p521 = pneg %p262
        %p522 = pneg %p259
        %p523 = pneg %p283
        %p524 = pneg %p280
        %p525 = pneg %p304
        %p526 = pneg %p301
        %p527 = pneg %p325
        %p528 = pneg %p322
        %p529 = pneg %p346
        %p530 = pneg %p343
        %p531 = pneg %p367
        %p532 = pneg %p364
        %p533 = pneg %p388
        %p534 = pneg %p385
        %p535 = pneg %p414
        %p536 = pneg %p411
        %s537 = sand.u32 %s401, 1
        %s538 = scalar_lea.sflag [#allocation3], %s537
        %s539 = sand.u32 %s401, 1
        %s540 = smul.addr %s539, 32
        %s541 = scalar_lea.vmem [#allocation2], %s540
        %p542 = scmp.lt.s32.totalorder %s31, 1
        %s543 = scalar_select %p542, %s31, 1
        %s544 = smul.addr %s543, 32
        %s545 = smul.addr %s544, 8
        %s546 = scalar_lea.vmem %s0, %s545
        %v548 = vld [vmem:[%s546] sm:$0xff]
        %v549 = vld [vmem:[%s546 + $0x8] sm:$0xff]
        %v550 = vld [vmem:[%s546 + $0x10] sm:$0xff]
        %v551 = vld [vmem:[%s546 + $0x18] sm:$0xff]
        %v552 = vld [vmem:[%s546 + $0x20] sm:$0xff]
        %v553 = vld [vmem:[%s546 + $0x28] sm:$0xff]
        %v554 = vld [vmem:[%s546 + $0x30] sm:$0xff]
        %v555 = vld [vmem:[%s546 + $0x38] sm:$0xff]
        %v556 = vld [vmem:[%s546 + $0x40] sm:$0xff]
        %v557 = vld [vmem:[%s546 + $0x48] sm:$0xff]
        %v558 = vld [vmem:[%s546 + $0x50] sm:$0xff]
        %v559 = vld [vmem:[%s546 + $0x58] sm:$0xff]
        %v560 = vld [vmem:[%s546 + $0x60] sm:$0xff]
        %v561 = vld [vmem:[%s546 + $0x68] sm:$0xff]
        %v562 = vld [vmem:[%s546 + $0x70] sm:$0xff]
        %v563 = vld [vmem:[%s546 + $0x78] sm:$0xff]
        %v564 = vld [vmem:[%s546 + $0x80] sm:$0xff]
        %v565 = vld [vmem:[%s546 + $0x88] sm:$0xff]
        %v566 = vld [vmem:[%s546 + $0x90] sm:$0xff]
        %v567 = vld [vmem:[%s546 + $0x98] sm:$0xff]
        %v568 = vld [vmem:[%s546 + $0xa0] sm:$0xff]
        %v569 = vld [vmem:[%s546 + $0xa8] sm:$0xff]
        %v570 = vld [vmem:[%s546 + $0xb0] sm:$0xff]
        %v571 = vld [vmem:[%s546 + $0xb8] sm:$0xff]
        %v572 = vld [vmem:[%s546 + $0xc0] sm:$0xff]
        %v573 = vld [vmem:[%s546 + $0xc8] sm:$0xff]
        %v574 = vld [vmem:[%s546 + $0xd0] sm:$0xff]
        %v575 = vld [vmem:[%s546 + $0xd8] sm:$0xff]
        %v576 = vld [vmem:[%s546 + $0xe0] sm:$0xff]
        %v577 = vld [vmem:[%s546 + $0xe8] sm:$0xff]
        %v578 = vld [vmem:[%s546 + $0xf0] sm:$0xff]
        %v579 = vld [vmem:[%s546 + $0xf8] sm:$0xff]
        %v580 = vpack.c.bf16 %v556, %v548
        %v581 = vpack.c.bf16 %v557, %v549
        %v582 = vpack.c.bf16 %v558, %v550
        %v583 = vpack.c.bf16 %v559, %v551
        %v584 = vpack.c.bf16 %v560, %v552
        %v585 = vpack.c.bf16 %v561, %v553
        %v586 = vpack.c.bf16 %v562, %v554
        %v587 = vpack.c.bf16 %v563, %v555
        %v588 = vpack.c.bf16 %v572, %v564
        %v589 = vpack.c.bf16 %v573, %v565
        %v590 = vpack.c.bf16 %v574, %v566
        %v591 = vpack.c.bf16 %v575, %v567
        %v592 = vpack.c.bf16 %v576, %v568
        %v593 = vpack.c.bf16 %v577, %v569
        %v594 = vpack.c.bf16 %v578, %v570
        %v595 = vpack.c.bf16 %v579, %v571
        %v596 = vld [vmem:[%s1] sm:$0xff]
        %v597 = vld [vmem:[%s1 + $0x8] sm:$0xff]
        %v598 = vld [vmem:[%s1 + $0x10] sm:$0xff]
        %v599 = vld [vmem:[%s1 + $0x18] sm:$0xff]
        %v600 = vld [vmem:[%s1 + $0x20] sm:$0xff]
        %v601 = vld [vmem:[%s1 + $0x28] sm:$0xff]
        %v602 = vld [vmem:[%s1 + $0x30] sm:$0xff]
        %v603 = vld [vmem:[%s1 + $0x38] sm:$0xff]
        %v604 = vld [vmem:[%s1 + $0x40] sm:$0xff]
        %v605 = vld [vmem:[%s1 + $0x48] sm:$0xff]
        %v606 = vld [vmem:[%s1 + $0x50] sm:$0xff]
        %v607 = vld [vmem:[%s1 + $0x58] sm:$0xff]
        %v608 = vld [vmem:[%s1 + $0x60] sm:$0xff]
        %v609 = vld [vmem:[%s1 + $0x68] sm:$0xff]
        %v610 = vld [vmem:[%s1 + $0x70] sm:$0xff]
        %v611 = vld [vmem:[%s1 + $0x78] sm:$0xff]
        %v612 = vld [vmem:[%s1 + $0x80] sm:$0xff]
        %v613 = vld [vmem:[%s1 + $0x88] sm:$0xff]
        %v614 = vld [vmem:[%s1 + $0x90] sm:$0xff]
        %v615 = vld [vmem:[%s1 + $0x98] sm:$0xff]
        %v616 = vld [vmem:[%s1 + $0xa0] sm:$0xff]
        %v617 = vld [vmem:[%s1 + $0xa8] sm:$0xff]
        %v618 = vld [vmem:[%s1 + $0xb0] sm:$0xff]
        %v619 = vld [vmem:[%s1 + $0xb8] sm:$0xff]
        %v620 = vld [vmem:[%s1 + $0xc0] sm:$0xff]
        %v621 = vld [vmem:[%s1 + $0xc8] sm:$0xff]
        %v622 = vld [vmem:[%s1 + $0xd0] sm:$0xff]
        %v623 = vld [vmem:[%s1 + $0xd8] sm:$0xff]
        %v624 = vld [vmem:[%s1 + $0xe0] sm:$0xff]
        %v625 = vld [vmem:[%s1 + $0xe8] sm:$0xff]
        %v626 = vld [vmem:[%s1 + $0xf0] sm:$0xff]
        %v627 = vld [vmem:[%s1 + $0xf8] sm:$0xff]
        %v628 = vld [vmem:[%s1 + $0x100] sm:$0xff]
        %v629 = vld [vmem:[%s1 + $0x108] sm:$0xff]
        %v630 = vld [vmem:[%s1 + $0x110] sm:$0xff]
        %v631 = vld [vmem:[%s1 + $0x118] sm:$0xff]
        %v632 = vld [vmem:[%s1 + $0x120] sm:$0xff]
        %v633 = vld [vmem:[%s1 + $0x128] sm:$0xff]
        %v634 = vld [vmem:[%s1 + $0x130] sm:$0xff]
        %v635 = vld [vmem:[%s1 + $0x138] sm:$0xff]
        %v636 = vld [vmem:[%s1 + $0x140] sm:$0xff]
        %v637 = vld [vmem:[%s1 + $0x148] sm:$0xff]
        %v638 = vld [vmem:[%s1 + $0x150] sm:$0xff]
        %v639 = vld [vmem:[%s1 + $0x158] sm:$0xff]
        %v640 = vld [vmem:[%s1 + $0x160] sm:$0xff]
        %v641 = vld [vmem:[%s1 + $0x168] sm:$0xff]
        %v642 = vld [vmem:[%s1 + $0x170] sm:$0xff]
        %v643 = vld [vmem:[%s1 + $0x178] sm:$0xff]
        %v644 = vld [vmem:[%s1 + $0x180] sm:$0xff]
        %v645 = vld [vmem:[%s1 + $0x188] sm:$0xff]
        %v646 = vld [vmem:[%s1 + $0x190] sm:$0xff]
        %v647 = vld [vmem:[%s1 + $0x198] sm:$0xff]
        %v648 = vld [vmem:[%s1 + $0x1a0] sm:$0xff]
        %v649 = vld [vmem:[%s1 + $0x1a8] sm:$0xff]
        %v650 = vld [vmem:[%s1 + $0x1b0] sm:$0xff]
        %v651 = vld [vmem:[%s1 + $0x1b8] sm:$0xff]
        %v652 = vld [vmem:[%s1 + $0x1c0] sm:$0xff]
        %v653 = vld [vmem:[%s1 + $0x1c8] sm:$0xff]
        %v654 = vld [vmem:[%s1 + $0x1d0] sm:$0xff]
        %v655 = vld [vmem:[%s1 + $0x1d8] sm:$0xff]
        %v656 = vld [vmem:[%s1 + $0x1e0] sm:$0xff]
        %v657 = vld [vmem:[%s1 + $0x1e8] sm:$0xff]
        %v658 = vld [vmem:[%s1 + $0x1f0] sm:$0xff]
        %v659 = vld [vmem:[%s1 + $0x1f8] sm:$0xff]
        %v660 = vld [vmem:[%s1 + $0x200] sm:$0xff]
        %v661 = vld [vmem:[%s1 + $0x208] sm:$0xff]
        %v662 = vld [vmem:[%s1 + $0x210] sm:$0xff]
        %v663 = vld [vmem:[%s1 + $0x218] sm:$0xff]
        %v664 = vld [vmem:[%s1 + $0x220] sm:$0xff]
        %v665 = vld [vmem:[%s1 + $0x228] sm:$0xff]
        %v666 = vld [vmem:[%s1 + $0x230] sm:$0xff]
        %v667 = vld [vmem:[%s1 + $0x238] sm:$0xff]
        %v668 = vld [vmem:[%s1 + $0x240] sm:$0xff]
        %v669 = vld [vmem:[%s1 + $0x248] sm:$0xff]
        %v670 = vld [vmem:[%s1 + $0x250] sm:$0xff]
        %v671 = vld [vmem:[%s1 + $0x258] sm:$0xff]
        %v672 = vld [vmem:[%s1 + $0x260] sm:$0xff]
        %v673 = vld [vmem:[%s1 + $0x268] sm:$0xff]
        %v674 = vld [vmem:[%s1 + $0x270] sm:$0xff]
        %v675 = vld [vmem:[%s1 + $0x278] sm:$0xff]
        %v676 = vld [vmem:[%s1 + $0x280] sm:$0xff]
        %v677 = vld [vmem:[%s1 + $0x288] sm:$0xff]
        %v678 = vld [vmem:[%s1 + $0x290] sm:$0xff]
        %v679 = vld [vmem:[%s1 + $0x298] sm:$0xff]
        %v680 = vld [vmem:[%s1 + $0x2a0] sm:$0xff]
        %v681 = vld [vmem:[%s1 + $0x2a8] sm:$0xff]
        %v682 = vld [vmem:[%s1 + $0x2b0] sm:$0xff]
        %v683 = vld [vmem:[%s1 + $0x2b8] sm:$0xff]
        %v684 = vld [vmem:[%s1 + $0x2c0] sm:$0xff]
        %v685 = vld [vmem:[%s1 + $0x2c8] sm:$0xff]
        %v686 = vld [vmem:[%s1 + $0x2d0] sm:$0xff]
        %v687 = vld [vmem:[%s1 + $0x2d8] sm:$0xff]
        %v688 = vld [vmem:[%s1 + $0x2e0] sm:$0xff]
        %v689 = vld [vmem:[%s1 + $0x2e8] sm:$0xff]
        %v690 = vld [vmem:[%s1 + $0x2f0] sm:$0xff]
        %v691 = vld [vmem:[%s1 + $0x2f8] sm:$0xff]
        %v692 = vld [vmem:[%s1 + $0x300] sm:$0xff]
        %v693 = vld [vmem:[%s1 + $0x308] sm:$0xff]
        %v694 = vld [vmem:[%s1 + $0x310] sm:$0xff]
        %v695 = vld [vmem:[%s1 + $0x318] sm:$0xff]
        %v696 = vld [vmem:[%s1 + $0x320] sm:$0xff]
        %v697 = vld [vmem:[%s1 + $0x328] sm:$0xff]
        %v698 = vld [vmem:[%s1 + $0x330] sm:$0xff]
        %v699 = vld [vmem:[%s1 + $0x338] sm:$0xff]
        %v700 = vld [vmem:[%s1 + $0x340] sm:$0xff]
        %v701 = vld [vmem:[%s1 + $0x348] sm:$0xff]
        %v702 = vld [vmem:[%s1 + $0x350] sm:$0xff]
        %v703 = vld [vmem:[%s1 + $0x358] sm:$0xff]
        %v704 = vld [vmem:[%s1 + $0x360] sm:$0xff]
        %v705 = vld [vmem:[%s1 + $0x368] sm:$0xff]
        %v706 = vld [vmem:[%s1 + $0x370] sm:$0xff]
        %v707 = vld [vmem:[%s1 + $0x378] sm:$0xff]
        %v708 = vld [vmem:[%s1 + $0x380] sm:$0xff]
        %v709 = vld [vmem:[%s1 + $0x388] sm:$0xff]
        %v710 = vld [vmem:[%s1 + $0x390] sm:$0xff]
        %v711 = vld [vmem:[%s1 + $0x398] sm:$0xff]
        %v712 = vld [vmem:[%s1 + $0x3a0] sm:$0xff]
        %v713 = vld [vmem:[%s1 + $0x3a8] sm:$0xff]
        %v714 = vld [vmem:[%s1 + $0x3b0] sm:$0xff]
        %v715 = vld [vmem:[%s1 + $0x3b8] sm:$0xff]
        %v716 = vld [vmem:[%s1 + $0x3c0] sm:$0xff]
        %v717 = vld [vmem:[%s1 + $0x3c8] sm:$0xff]
        %v718 = vld [vmem:[%s1 + $0x3d0] sm:$0xff]
        %v719 = vld [vmem:[%s1 + $0x3d8] sm:$0xff]
        %v720 = vld [vmem:[%s1 + $0x3e0] sm:$0xff]
        %v721 = vld [vmem:[%s1 + $0x3e8] sm:$0xff]
        %v722 = vld [vmem:[%s1 + $0x3f0] sm:$0xff]
        %v723 = vld [vmem:[%s1 + $0x3f8] sm:$0xff]
        %v724 = vld [vmem:[%s1 + $0x400] sm:$0xff]
        %v725 = vld [vmem:[%s1 + $0x408] sm:$0xff]
        %v726 = vld [vmem:[%s1 + $0x410] sm:$0xff]
        %v727 = vld [vmem:[%s1 + $0x418] sm:$0xff]
        %v728 = vld [vmem:[%s1 + $0x420] sm:$0xff]
        %v729 = vld [vmem:[%s1 + $0x428] sm:$0xff]
        %v730 = vld [vmem:[%s1 + $0x430] sm:$0xff]
        %v731 = vld [vmem:[%s1 + $0x438] sm:$0xff]
        %v732 = vld [vmem:[%s1 + $0x440] sm:$0xff]
        %v733 = vld [vmem:[%s1 + $0x448] sm:$0xff]
        %v734 = vld [vmem:[%s1 + $0x450] sm:$0xff]
        %v735 = vld [vmem:[%s1 + $0x458] sm:$0xff]
        %v736 = vld [vmem:[%s1 + $0x460] sm:$0xff]
        %v737 = vld [vmem:[%s1 + $0x468] sm:$0xff]
        %v738 = vld [vmem:[%s1 + $0x470] sm:$0xff]
        %v739 = vld [vmem:[%s1 + $0x478] sm:$0xff]
        %v740 = vld [vmem:[%s1 + $0x480] sm:$0xff]
        %v741 = vld [vmem:[%s1 + $0x488] sm:$0xff]
        %v742 = vld [vmem:[%s1 + $0x490] sm:$0xff]
        %v743 = vld [vmem:[%s1 + $0x498] sm:$0xff]
        %v744 = vld [vmem:[%s1 + $0x4a0] sm:$0xff]
        %v745 = vld [vmem:[%s1 + $0x4a8] sm:$0xff]
        %v746 = vld [vmem:[%s1 + $0x4b0] sm:$0xff]
        %v747 = vld [vmem:[%s1 + $0x4b8] sm:$0xff]
        %v748 = vld [vmem:[%s1 + $0x4c0] sm:$0xff]
        %v749 = vld [vmem:[%s1 + $0x4c8] sm:$0xff]
        %v750 = vld [vmem:[%s1 + $0x4d0] sm:$0xff]
        %v751 = vld [vmem:[%s1 + $0x4d8] sm:$0xff]
        %v752 = vld [vmem:[%s1 + $0x4e0] sm:$0xff]
        %v753 = vld [vmem:[%s1 + $0x4e8] sm:$0xff]
        %v754 = vld [vmem:[%s1 + $0x4f0] sm:$0xff]
        %v755 = vld [vmem:[%s1 + $0x4f8] sm:$0xff]
        %v756 = vld [vmem:[%s1 + $0x500] sm:$0xff]
        %v757 = vld [vmem:[%s1 + $0x508] sm:$0xff]
        %v758 = vld [vmem:[%s1 + $0x510] sm:$0xff]
        %v759 = vld [vmem:[%s1 + $0x518] sm:$0xff]
        %v760 = vld [vmem:[%s1 + $0x520] sm:$0xff]
        %v761 = vld [vmem:[%s1 + $0x528] sm:$0xff]
        %v762 = vld [vmem:[%s1 + $0x530] sm:$0xff]
        %v763 = vld [vmem:[%s1 + $0x538] sm:$0xff]
        %v764 = vld [vmem:[%s1 + $0x540] sm:$0xff]
        %v765 = vld [vmem:[%s1 + $0x548] sm:$0xff]
        %v766 = vld [vmem:[%s1 + $0x550] sm:$0xff]
        %v767 = vld [vmem:[%s1 + $0x558] sm:$0xff]
        %v768 = vld [vmem:[%s1 + $0x560] sm:$0xff]
        %v769 = vld [vmem:[%s1 + $0x568] sm:$0xff]
        %v770 = vld [vmem:[%s1 + $0x570] sm:$0xff]
        %v771 = vld [vmem:[%s1 + $0x578] sm:$0xff]
        %v772 = vld [vmem:[%s1 + $0x580] sm:$0xff]
        %v773 = vld [vmem:[%s1 + $0x588] sm:$0xff]
        %v774 = vld [vmem:[%s1 + $0x590] sm:$0xff]
        %v775 = vld [vmem:[%s1 + $0x598] sm:$0xff]
        %v776 = vld [vmem:[%s1 + $0x5a0] sm:$0xff]
        %v777 = vld [vmem:[%s1 + $0x5a8] sm:$0xff]
        %v778 = vld [vmem:[%s1 + $0x5b0] sm:$0xff]
        %v779 = vld [vmem:[%s1 + $0x5b8] sm:$0xff]
        %v780 = vld [vmem:[%s1 + $0x5c0] sm:$0xff]
        %v781 = vld [vmem:[%s1 + $0x5c8] sm:$0xff]
        %v782 = vld [vmem:[%s1 + $0x5d0] sm:$0xff]
        %v783 = vld [vmem:[%s1 + $0x5d8] sm:$0xff]
        %v784 = vld [vmem:[%s1 + $0x5e0] sm:$0xff]
        %v785 = vld [vmem:[%s1 + $0x5e8] sm:$0xff]
        %v786 = vld [vmem:[%s1 + $0x5f0] sm:$0xff]
        %v787 = vld [vmem:[%s1 + $0x5f8] sm:$0xff]
        %v788 = vld [vmem:[%s1 + $0x600] sm:$0xff]
        %v789 = vld [vmem:[%s1 + $0x608] sm:$0xff]
        %v790 = vld [vmem:[%s1 + $0x610] sm:$0xff]
        %v791 = vld [vmem:[%s1 + $0x618] sm:$0xff]
        %v792 = vld [vmem:[%s1 + $0x620] sm:$0xff]
        %v793 = vld [vmem:[%s1 + $0x628] sm:$0xff]
        %v794 = vld [vmem:[%s1 + $0x630] sm:$0xff]
        %v795 = vld [vmem:[%s1 + $0x638] sm:$0xff]
        %v796 = vld [vmem:[%s1 + $0x640] sm:$0xff]
        %v797 = vld [vmem:[%s1 + $0x648] sm:$0xff]
        %v798 = vld [vmem:[%s1 + $0x650] sm:$0xff]
        %v799 = vld [vmem:[%s1 + $0x658] sm:$0xff]
        %v800 = vld [vmem:[%s1 + $0x660] sm:$0xff]
        %v801 = vld [vmem:[%s1 + $0x668] sm:$0xff]
        %v802 = vld [vmem:[%s1 + $0x670] sm:$0xff]
        %v803 = vld [vmem:[%s1 + $0x678] sm:$0xff]
        %v804 = vld [vmem:[%s1 + $0x680] sm:$0xff]
        %v805 = vld [vmem:[%s1 + $0x688] sm:$0xff]
        %v806 = vld [vmem:[%s1 + $0x690] sm:$0xff]
        %v807 = vld [vmem:[%s1 + $0x698] sm:$0xff]
        %v808 = vld [vmem:[%s1 + $0x6a0] sm:$0xff]
        %v809 = vld [vmem:[%s1 + $0x6a8] sm:$0xff]
        %v810 = vld [vmem:[%s1 + $0x6b0] sm:$0xff]
        %v811 = vld [vmem:[%s1 + $0x6b8] sm:$0xff]
        %v812 = vld [vmem:[%s1 + $0x6c0] sm:$0xff]
        %v813 = vld [vmem:[%s1 + $0x6c8] sm:$0xff]
        %v814 = vld [vmem:[%s1 + $0x6d0] sm:$0xff]
        %v815 = vld [vmem:[%s1 + $0x6d8] sm:$0xff]
        %v816 = vld [vmem:[%s1 + $0x6e0] sm:$0xff]
        %v817 = vld [vmem:[%s1 + $0x6e8] sm:$0xff]
        %v818 = vld [vmem:[%s1 + $0x6f0] sm:$0xff]
        %v819 = vld [vmem:[%s1 + $0x6f8] sm:$0xff]
        %v820 = vld [vmem:[%s1 + $0x700] sm:$0xff]
        %v821 = vld [vmem:[%s1 + $0x708] sm:$0xff]
        %v822 = vld [vmem:[%s1 + $0x710] sm:$0xff]
        %v823 = vld [vmem:[%s1 + $0x718] sm:$0xff]
        %v824 = vld [vmem:[%s1 + $0x720] sm:$0xff]
        %v825 = vld [vmem:[%s1 + $0x728] sm:$0xff]
        %v826 = vld [vmem:[%s1 + $0x730] sm:$0xff]
        %v827 = vld [vmem:[%s1 + $0x738] sm:$0xff]
        %v828 = vld [vmem:[%s1 + $0x740] sm:$0xff]
        %v829 = vld [vmem:[%s1 + $0x748] sm:$0xff]
        %v830 = vld [vmem:[%s1 + $0x750] sm:$0xff]
        %v831 = vld [vmem:[%s1 + $0x758] sm:$0xff]
        %v832 = vld [vmem:[%s1 + $0x760] sm:$0xff]
        %v833 = vld [vmem:[%s1 + $0x768] sm:$0xff]
        %v834 = vld [vmem:[%s1 + $0x770] sm:$0xff]
        %v835 = vld [vmem:[%s1 + $0x778] sm:$0xff]
        %v836 = vld [vmem:[%s1 + $0x780] sm:$0xff]
        %v837 = vld [vmem:[%s1 + $0x788] sm:$0xff]
        %v838 = vld [vmem:[%s1 + $0x790] sm:$0xff]
        %v839 = vld [vmem:[%s1 + $0x798] sm:$0xff]
        %v840 = vld [vmem:[%s1 + $0x7a0] sm:$0xff]
        %v841 = vld [vmem:[%s1 + $0x7a8] sm:$0xff]
        %v842 = vld [vmem:[%s1 + $0x7b0] sm:$0xff]
        %v843 = vld [vmem:[%s1 + $0x7b8] sm:$0xff]
        %v844 = vld [vmem:[%s1 + $0x7c0] sm:$0xff]
        %v845 = vld [vmem:[%s1 + $0x7c8] sm:$0xff]
        %v846 = vld [vmem:[%s1 + $0x7d0] sm:$0xff]
        %v847 = vld [vmem:[%s1 + $0x7d8] sm:$0xff]
        %v848 = vld [vmem:[%s1 + $0x7e0] sm:$0xff]
        %v849 = vld [vmem:[%s1 + $0x7e8] sm:$0xff]
        %v850 = vld [vmem:[%s1 + $0x7f0] sm:$0xff]
        %v851 = vld [vmem:[%s1 + $0x7f8] sm:$0xff]
        %v852 = vld [vmem:[%s2] sm:$0xf]
        %v854 = vlaneseq
        %v855 = vshrl.u32 %v854, 7
        %v856 = vsub.s32 0, %v855
        %v857 = vrot.slane %v852, %v856
        %v858 = vlaneseq
        %v859 = vshrl.u32 %v858, 7
        %v860 = vsub.s32 1, %v859
        %v861 = vrot.slane %v852, %v860
        %v862 = vlaneseq
        %v863 = vshrl.u32 %v862, 7
        %v864 = vsub.s32 2, %v863
        %v865 = vrot.slane %v852, %v864
        %v866 = vlaneseq
        %v867 = vshrl.u32 %v866, 7
        %v868 = vsub.s32 3, %v867
        %v869 = vrot.slane %v852, %v868
        %v1130 = vunpack.c.l.b16 %v596
        %v1131 = vunpack.c.h.b16 %v596
        %v1132 = vunpack.c.l.b16 %v597
        %v1133 = vunpack.c.h.b16 %v597
        %v1134 = vunpack.c.l.b16 %v598
        %v1135 = vunpack.c.h.b16 %v598
        %v1136 = vunpack.c.l.b16 %v599
        %v1137 = vunpack.c.h.b16 %v599
        %v1138 = vunpack.c.l.b16 %v600
        %v1139 = vunpack.c.h.b16 %v600
        %v1140 = vunpack.c.l.b16 %v601
        %v1141 = vunpack.c.h.b16 %v601
        %v1142 = vunpack.c.l.b16 %v602
        %v1143 = vunpack.c.h.b16 %v602
        %v1144 = vunpack.c.l.b16 %v603
        %v1145 = vunpack.c.h.b16 %v603
        %v1146 = vunpack.c.l.b16 %v604
        %v1147 = vunpack.c.h.b16 %v604
        %v1148 = vunpack.c.l.b16 %v605
        %v1149 = vunpack.c.h.b16 %v605
        %v1150 = vunpack.c.l.b16 %v606
        %v1151 = vunpack.c.h.b16 %v606
        %v1152 = vunpack.c.l.b16 %v607
        %v1153 = vunpack.c.h.b16 %v607
        %v1154 = vunpack.c.l.b16 %v608
        %v1155 = vunpack.c.h.b16 %v608
        %v1156 = vunpack.c.l.b16 %v609
        %v1157 = vunpack.c.h.b16 %v609
        %v1158 = vunpack.c.l.b16 %v610
        %v1159 = vunpack.c.h.b16 %v610
        %v1160 = vunpack.c.l.b16 %v611
        %v1161 = vunpack.c.h.b16 %v611
        %v1162 = vunpack.c.l.b16 %v612
        %v1163 = vunpack.c.h.b16 %v612
        %v1164 = vunpack.c.l.b16 %v613
        %v1165 = vunpack.c.h.b16 %v613
        %v1166 = vunpack.c.l.b16 %v614
        %v1167 = vunpack.c.h.b16 %v614
        %v1168 = vunpack.c.l.b16 %v615
        %v1169 = vunpack.c.h.b16 %v615
        %v1170 = vunpack.c.l.b16 %v616
        %v1171 = vunpack.c.h.b16 %v616
        %v1172 = vunpack.c.l.b16 %v617
        %v1173 = vunpack.c.h.b16 %v617
        %v1174 = vunpack.c.l.b16 %v618
        %v1175 = vunpack.c.h.b16 %v618
        %v1176 = vunpack.c.l.b16 %v619
        %v1177 = vunpack.c.h.b16 %v619
        %v1178 = vunpack.c.l.b16 %v620
        %v1179 = vunpack.c.h.b16 %v620
        %v1180 = vunpack.c.l.b16 %v621
        %v1181 = vunpack.c.h.b16 %v621
        %v1182 = vunpack.c.l.b16 %v622
        %v1183 = vunpack.c.h.b16 %v622
        %v1184 = vunpack.c.l.b16 %v623
        %v1185 = vunpack.c.h.b16 %v623
        %v1186 = vunpack.c.l.b16 %v624
        %v1187 = vunpack.c.h.b16 %v624
        %v1188 = vunpack.c.l.b16 %v625
        %v1189 = vunpack.c.h.b16 %v625
        %v1190 = vunpack.c.l.b16 %v626
        %v1191 = vunpack.c.h.b16 %v626
        %v1192 = vunpack.c.l.b16 %v627
        %v1193 = vunpack.c.h.b16 %v627
        %v1194 = vunpack.c.l.b16 %v628
        %v1195 = vunpack.c.h.b16 %v628
        %v1196 = vunpack.c.l.b16 %v629
        %v1197 = vunpack.c.h.b16 %v629
        %v1198 = vunpack.c.l.b16 %v630
        %v1199 = vunpack.c.h.b16 %v630
        %v1200 = vunpack.c.l.b16 %v631
        %v1201 = vunpack.c.h.b16 %v631
        %v1202 = vunpack.c.l.b16 %v632
        %v1203 = vunpack.c.h.b16 %v632
        %v1204 = vunpack.c.l.b16 %v633
        %v1205 = vunpack.c.h.b16 %v633
        %v1206 = vunpack.c.l.b16 %v634
        %v1207 = vunpack.c.h.b16 %v634
        %v1208 = vunpack.c.l.b16 %v635
        %v1209 = vunpack.c.h.b16 %v635
        %v1210 = vunpack.c.l.b16 %v636
        %v1211 = vunpack.c.h.b16 %v636
        %v1212 = vunpack.c.l.b16 %v637
        %v1213 = vunpack.c.h.b16 %v637
        %v1214 = vunpack.c.l.b16 %v638
        %v1215 = vunpack.c.h.b16 %v638
        %v1216 = vunpack.c.l.b16 %v639
        %v1217 = vunpack.c.h.b16 %v639
        %v1218 = vunpack.c.l.b16 %v640
        %v1219 = vunpack.c.h.b16 %v640
        %v1220 = vunpack.c.l.b16 %v641
        %v1221 = vunpack.c.h.b16 %v641
        %v1222 = vunpack.c.l.b16 %v642
        %v1223 = vunpack.c.h.b16 %v642
        %v1224 = vunpack.c.l.b16 %v643
        %v1225 = vunpack.c.h.b16 %v643
        %v1226 = vunpack.c.l.b16 %v644
        %v1227 = vunpack.c.h.b16 %v644
        %v1228 = vunpack.c.l.b16 %v645
        %v1229 = vunpack.c.h.b16 %v645
        %v1230 = vunpack.c.l.b16 %v646
        %v1231 = vunpack.c.h.b16 %v646
        %v1232 = vunpack.c.l.b16 %v647
        %v1233 = vunpack.c.h.b16 %v647
        %v1234 = vunpack.c.l.b16 %v648
        %v1235 = vunpack.c.h.b16 %v648
        %v1236 = vunpack.c.l.b16 %v649
        %v1237 = vunpack.c.h.b16 %v649
        %v1238 = vunpack.c.l.b16 %v650
        %v1239 = vunpack.c.h.b16 %v650
        %v1240 = vunpack.c.l.b16 %v651
        %v1241 = vunpack.c.h.b16 %v651
        %v1242 = vunpack.c.l.b16 %v652
        %v1243 = vunpack.c.h.b16 %v652
        %v1244 = vunpack.c.l.b16 %v653
        %v1245 = vunpack.c.h.b16 %v653
        %v1246 = vunpack.c.l.b16 %v654
        %v1247 = vunpack.c.h.b16 %v654
        %v1248 = vunpack.c.l.b16 %v655
        %v1249 = vunpack.c.h.b16 %v655
        %v1250 = vunpack.c.l.b16 %v656
        %v1251 = vunpack.c.h.b16 %v656
        %v1252 = vunpack.c.l.b16 %v657
        %v1253 = vunpack.c.h.b16 %v657
        %v1254 = vunpack.c.l.b16 %v658
        %v1255 = vunpack.c.h.b16 %v658
        %v1256 = vunpack.c.l.b16 %v659
        %v1257 = vunpack.c.h.b16 %v659
        %v1258 = vunpack.c.l.b16 %v660
        %v1259 = vunpack.c.h.b16 %v660
        %v1260 = vunpack.c.l.b16 %v661
        %v1261 = vunpack.c.h.b16 %v661
        %v1262 = vunpack.c.l.b16 %v662
        %v1263 = vunpack.c.h.b16 %v662
        %v1264 = vunpack.c.l.b16 %v663
        %v1265 = vunpack.c.h.b16 %v663
        %v1266 = vunpack.c.l.b16 %v664
        %v1267 = vunpack.c.h.b16 %v664
        %v1268 = vunpack.c.l.b16 %v665
        %v1269 = vunpack.c.h.b16 %v665
        %v1270 = vunpack.c.l.b16 %v666
        %v1271 = vunpack.c.h.b16 %v666
        %v1272 = vunpack.c.l.b16 %v667
        %v1273 = vunpack.c.h.b16 %v667
        %v1274 = vunpack.c.l.b16 %v668
        %v1275 = vunpack.c.h.b16 %v668
        %v1276 = vunpack.c.l.b16 %v669
        %v1277 = vunpack.c.h.b16 %v669
        %v1278 = vunpack.c.l.b16 %v670
        %v1279 = vunpack.c.h.b16 %v670
        %v1280 = vunpack.c.l.b16 %v671
        %v1281 = vunpack.c.h.b16 %v671
        %v1282 = vunpack.c.l.b16 %v672
        %v1283 = vunpack.c.h.b16 %v672
        %v1284 = vunpack.c.l.b16 %v673
        %v1285 = vunpack.c.h.b16 %v673
        %v1286 = vunpack.c.l.b16 %v674
        %v1287 = vunpack.c.h.b16 %v674
        %v1288 = vunpack.c.l.b16 %v675
        %v1289 = vunpack.c.h.b16 %v675
        %v1290 = vunpack.c.l.b16 %v676
        %v1291 = vunpack.c.h.b16 %v676
        %v1292 = vunpack.c.l.b16 %v677
        %v1293 = vunpack.c.h.b16 %v677
        %v1294 = vunpack.c.l.b16 %v678
        %v1295 = vunpack.c.h.b16 %v678
        %v1296 = vunpack.c.l.b16 %v679
        %v1297 = vunpack.c.h.b16 %v679
        %v1298 = vunpack.c.l.b16 %v680
        %v1299 = vunpack.c.h.b16 %v680
        %v1300 = vunpack.c.l.b16 %v681
        %v1301 = vunpack.c.h.b16 %v681
        %v1302 = vunpack.c.l.b16 %v682
        %v1303 = vunpack.c.h.b16 %v682
        %v1304 = vunpack.c.l.b16 %v683
        %v1305 = vunpack.c.h.b16 %v683
        %v1306 = vunpack.c.l.b16 %v684
        %v1307 = vunpack.c.h.b16 %v684
        %v1308 = vunpack.c.l.b16 %v685
        %v1309 = vunpack.c.h.b16 %v685
        %v1310 = vunpack.c.l.b16 %v686
        %v1311 = vunpack.c.h.b16 %v686
        %v1312 = vunpack.c.l.b16 %v687
        %v1313 = vunpack.c.h.b16 %v687
        %v1314 = vunpack.c.l.b16 %v688
        %v1315 = vunpack.c.h.b16 %v688
        %v1316 = vunpack.c.l.b16 %v689
        %v1317 = vunpack.c.h.b16 %v689
        %v1318 = vunpack.c.l.b16 %v690
        %v1319 = vunpack.c.h.b16 %v690
        %v1320 = vunpack.c.l.b16 %v691
        %v1321 = vunpack.c.h.b16 %v691
        %v1322 = vunpack.c.l.b16 %v692
        %v1323 = vunpack.c.h.b16 %v692
        %v1324 = vunpack.c.l.b16 %v693
        %v1325 = vunpack.c.h.b16 %v693
        %v1326 = vunpack.c.l.b16 %v694
        %v1327 = vunpack.c.h.b16 %v694
        %v1328 = vunpack.c.l.b16 %v695
        %v1329 = vunpack.c.h.b16 %v695
        %v1330 = vunpack.c.l.b16 %v696
        %v1331 = vunpack.c.h.b16 %v696
        %v1332 = vunpack.c.l.b16 %v697
        %v1333 = vunpack.c.h.b16 %v697
        %v1334 = vunpack.c.l.b16 %v698
        %v1335 = vunpack.c.h.b16 %v698
        %v1336 = vunpack.c.l.b16 %v699
        %v1337 = vunpack.c.h.b16 %v699
        %v1338 = vunpack.c.l.b16 %v700
        %v1339 = vunpack.c.h.b16 %v700
        %v1340 = vunpack.c.l.b16 %v701
        %v1341 = vunpack.c.h.b16 %v701
        %v1342 = vunpack.c.l.b16 %v702
        %v1343 = vunpack.c.h.b16 %v702
        %v1344 = vunpack.c.l.b16 %v703
        %v1345 = vunpack.c.h.b16 %v703
        %v1346 = vunpack.c.l.b16 %v704
        %v1347 = vunpack.c.h.b16 %v704
        %v1348 = vunpack.c.l.b16 %v705
        %v1349 = vunpack.c.h.b16 %v705
        %v1350 = vunpack.c.l.b16 %v706
        %v1351 = vunpack.c.h.b16 %v706
        %v1352 = vunpack.c.l.b16 %v707
        %v1353 = vunpack.c.h.b16 %v707
        %v1354 = vunpack.c.l.b16 %v708
        %v1355 = vunpack.c.h.b16 %v708
        %v1356 = vunpack.c.l.b16 %v709
        %v1357 = vunpack.c.h.b16 %v709
        %v1358 = vunpack.c.l.b16 %v710
        %v1359 = vunpack.c.h.b16 %v710
        %v1360 = vunpack.c.l.b16 %v711
        %v1361 = vunpack.c.h.b16 %v711
        %v1362 = vunpack.c.l.b16 %v712
        %v1363 = vunpack.c.h.b16 %v712
        %v1364 = vunpack.c.l.b16 %v713
        %v1365 = vunpack.c.h.b16 %v713
        %v1366 = vunpack.c.l.b16 %v714
        %v1367 = vunpack.c.h.b16 %v714
        %v1368 = vunpack.c.l.b16 %v715
        %v1369 = vunpack.c.h.b16 %v715
        %v1370 = vunpack.c.l.b16 %v716
        %v1371 = vunpack.c.h.b16 %v716
        %v1372 = vunpack.c.l.b16 %v717
        %v1373 = vunpack.c.h.b16 %v717
        %v1374 = vunpack.c.l.b16 %v718
        %v1375 = vunpack.c.h.b16 %v718
        %v1376 = vunpack.c.l.b16 %v719
        %v1377 = vunpack.c.h.b16 %v719
        %v1378 = vunpack.c.l.b16 %v720
        %v1379 = vunpack.c.h.b16 %v720
        %v1380 = vunpack.c.l.b16 %v721
        %v1381 = vunpack.c.h.b16 %v721
        %v1382 = vunpack.c.l.b16 %v722
        %v1383 = vunpack.c.h.b16 %v722
        %v1384 = vunpack.c.l.b16 %v723
        %v1385 = vunpack.c.h.b16 %v723
        %v1386 = vunpack.c.l.b16 %v724
        %v1387 = vunpack.c.h.b16 %v724
        %v1388 = vunpack.c.l.b16 %v725
        %v1389 = vunpack.c.h.b16 %v725
        %v1390 = vunpack.c.l.b16 %v726
        %v1391 = vunpack.c.h.b16 %v726
        %v1392 = vunpack.c.l.b16 %v727
        %v1393 = vunpack.c.h.b16 %v727
        %v1394 = vunpack.c.l.b16 %v728
        %v1395 = vunpack.c.h.b16 %v728
        %v1396 = vunpack.c.l.b16 %v729
        %v1397 = vunpack.c.h.b16 %v729
        %v1398 = vunpack.c.l.b16 %v730
        %v1399 = vunpack.c.h.b16 %v730
        %v1400 = vunpack.c.l.b16 %v731
        %v1401 = vunpack.c.h.b16 %v731
        %v1402 = vunpack.c.l.b16 %v732
        %v1403 = vunpack.c.h.b16 %v732
        %v1404 = vunpack.c.l.b16 %v733
        %v1405 = vunpack.c.h.b16 %v733
        %v1406 = vunpack.c.l.b16 %v734
        %v1407 = vunpack.c.h.b16 %v734
        %v1408 = vunpack.c.l.b16 %v735
        %v1409 = vunpack.c.h.b16 %v735
        %v1410 = vunpack.c.l.b16 %v736
        %v1411 = vunpack.c.h.b16 %v736
        %v1412 = vunpack.c.l.b16 %v737
        %v1413 = vunpack.c.h.b16 %v737
        %v1414 = vunpack.c.l.b16 %v738
        %v1415 = vunpack.c.h.b16 %v738
        %v1416 = vunpack.c.l.b16 %v739
        %v1417 = vunpack.c.h.b16 %v739
        %v1418 = vunpack.c.l.b16 %v740
        %v1419 = vunpack.c.h.b16 %v740
        %v1420 = vunpack.c.l.b16 %v741
        %v1421 = vunpack.c.h.b16 %v741
        %v1422 = vunpack.c.l.b16 %v742
        %v1423 = vunpack.c.h.b16 %v742
        %v1424 = vunpack.c.l.b16 %v743
        %v1425 = vunpack.c.h.b16 %v743
        %v1426 = vunpack.c.l.b16 %v744
        %v1427 = vunpack.c.h.b16 %v744
        %v1428 = vunpack.c.l.b16 %v745
        %v1429 = vunpack.c.h.b16 %v745
        %v1430 = vunpack.c.l.b16 %v746
        %v1431 = vunpack.c.h.b16 %v746
        %v1432 = vunpack.c.l.b16 %v747
        %v1433 = vunpack.c.h.b16 %v747
        %v1434 = vunpack.c.l.b16 %v748
        %v1435 = vunpack.c.h.b16 %v748
        %v1436 = vunpack.c.l.b16 %v749
        %v1437 = vunpack.c.h.b16 %v749
        %v1438 = vunpack.c.l.b16 %v750
        %v1439 = vunpack.c.h.b16 %v750
        %v1440 = vunpack.c.l.b16 %v751
        %v1441 = vunpack.c.h.b16 %v751
        %v1442 = vunpack.c.l.b16 %v752
        %v1443 = vunpack.c.h.b16 %v752
        %v1444 = vunpack.c.l.b16 %v753
        %v1445 = vunpack.c.h.b16 %v753
        %v1446 = vunpack.c.l.b16 %v754
        %v1447 = vunpack.c.h.b16 %v754
        %v1448 = vunpack.c.l.b16 %v755
        %v1449 = vunpack.c.h.b16 %v755
        %v1450 = vunpack.c.l.b16 %v756
        %v1451 = vunpack.c.h.b16 %v756
        %v1452 = vunpack.c.l.b16 %v757
        %v1453 = vunpack.c.h.b16 %v757
        %v1454 = vunpack.c.l.b16 %v758
        %v1455 = vunpack.c.h.b16 %v758
        %v1456 = vunpack.c.l.b16 %v759
        %v1457 = vunpack.c.h.b16 %v759
        %v1458 = vunpack.c.l.b16 %v760
        %v1459 = vunpack.c.h.b16 %v760
        %v1460 = vunpack.c.l.b16 %v761
        %v1461 = vunpack.c.h.b16 %v761
        %v1462 = vunpack.c.l.b16 %v762
        %v1463 = vunpack.c.h.b16 %v762
        %v1464 = vunpack.c.l.b16 %v763
        %v1465 = vunpack.c.h.b16 %v763
        %v1466 = vunpack.c.l.b16 %v764
        %v1467 = vunpack.c.h.b16 %v764
        %v1468 = vunpack.c.l.b16 %v765
        %v1469 = vunpack.c.h.b16 %v765
        %v1470 = vunpack.c.l.b16 %v766
        %v1471 = vunpack.c.h.b16 %v766
        %v1472 = vunpack.c.l.b16 %v767
        %v1473 = vunpack.c.h.b16 %v767
        %v1474 = vunpack.c.l.b16 %v768
        %v1475 = vunpack.c.h.b16 %v768
        %v1476 = vunpack.c.l.b16 %v769
        %v1477 = vunpack.c.h.b16 %v769
        %v1478 = vunpack.c.l.b16 %v770
        %v1479 = vunpack.c.h.b16 %v770
        %v1480 = vunpack.c.l.b16 %v771
        %v1481 = vunpack.c.h.b16 %v771
        %v1482 = vunpack.c.l.b16 %v772
        %v1483 = vunpack.c.h.b16 %v772
        %v1484 = vunpack.c.l.b16 %v773
        %v1485 = vunpack.c.h.b16 %v773
        %v1486 = vunpack.c.l.b16 %v774
        %v1487 = vunpack.c.h.b16 %v774
        %v1488 = vunpack.c.l.b16 %v775
        %v1489 = vunpack.c.h.b16 %v775
        %v1490 = vunpack.c.l.b16 %v776
        %v1491 = vunpack.c.h.b16 %v776
        %v1492 = vunpack.c.l.b16 %v777
        %v1493 = vunpack.c.h.b16 %v777
        %v1494 = vunpack.c.l.b16 %v778
        %v1495 = vunpack.c.h.b16 %v778
        %v1496 = vunpack.c.l.b16 %v779
        %v1497 = vunpack.c.h.b16 %v779
        %v1498 = vunpack.c.l.b16 %v780
        %v1499 = vunpack.c.h.b16 %v780
        %v1500 = vunpack.c.l.b16 %v781
        %v1501 = vunpack.c.h.b16 %v781
        %v1502 = vunpack.c.l.b16 %v782
        %v1503 = vunpack.c.h.b16 %v782
        %v1504 = vunpack.c.l.b16 %v783
        %v1505 = vunpack.c.h.b16 %v783
        %v1506 = vunpack.c.l.b16 %v784
        %v1507 = vunpack.c.h.b16 %v784
        %v1508 = vunpack.c.l.b16 %v785
        %v1509 = vunpack.c.h.b16 %v785
        %v1510 = vunpack.c.l.b16 %v786
        %v1511 = vunpack.c.h.b16 %v786
        %v1512 = vunpack.c.l.b16 %v787
        %v1513 = vunpack.c.h.b16 %v787
        %v1514 = vunpack.c.l.b16 %v788
        %v1515 = vunpack.c.h.b16 %v788
        %v1516 = vunpack.c.l.b16 %v789
        %v1517 = vunpack.c.h.b16 %v789
        %v1518 = vunpack.c.l.b16 %v790
        %v1519 = vunpack.c.h.b16 %v790
        %v1520 = vunpack.c.l.b16 %v791
        %v1521 = vunpack.c.h.b16 %v791
        %v1522 = vunpack.c.l.b16 %v792
        %v1523 = vunpack.c.h.b16 %v792
        %v1524 = vunpack.c.l.b16 %v793
        %v1525 = vunpack.c.h.b16 %v793
        %v1526 = vunpack.c.l.b16 %v794
        %v1527 = vunpack.c.h.b16 %v794
        %v1528 = vunpack.c.l.b16 %v795
        %v1529 = vunpack.c.h.b16 %v795
        %v1530 = vunpack.c.l.b16 %v796
        %v1531 = vunpack.c.h.b16 %v796
        %v1532 = vunpack.c.l.b16 %v797
        %v1533 = vunpack.c.h.b16 %v797
        %v1534 = vunpack.c.l.b16 %v798
        %v1535 = vunpack.c.h.b16 %v798
        %v1536 = vunpack.c.l.b16 %v799
        %v1537 = vunpack.c.h.b16 %v799
        %v1538 = vunpack.c.l.b16 %v800
        %v1539 = vunpack.c.h.b16 %v800
        %v1540 = vunpack.c.l.b16 %v801
        %v1541 = vunpack.c.h.b16 %v801
        %v1542 = vunpack.c.l.b16 %v802
        %v1543 = vunpack.c.h.b16 %v802
        %v1544 = vunpack.c.l.b16 %v803
        %v1545 = vunpack.c.h.b16 %v803
        %v1546 = vunpack.c.l.b16 %v804
        %v1547 = vunpack.c.h.b16 %v804
        %v1548 = vunpack.c.l.b16 %v805
        %v1549 = vunpack.c.h.b16 %v805
        %v1550 = vunpack.c.l.b16 %v806
        %v1551 = vunpack.c.h.b16 %v806
        %v1552 = vunpack.c.l.b16 %v807
        %v1553 = vunpack.c.h.b16 %v807
        %v1554 = vunpack.c.l.b16 %v808
        %v1555 = vunpack.c.h.b16 %v808
        %v1556 = vunpack.c.l.b16 %v809
        %v1557 = vunpack.c.h.b16 %v809
        %v1558 = vunpack.c.l.b16 %v810
        %v1559 = vunpack.c.h.b16 %v810
        %v1560 = vunpack.c.l.b16 %v811
        %v1561 = vunpack.c.h.b16 %v811
        %v1562 = vunpack.c.l.b16 %v812
        %v1563 = vunpack.c.h.b16 %v812
        %v1564 = vunpack.c.l.b16 %v813
        %v1565 = vunpack.c.h.b16 %v813
        %v1566 = vunpack.c.l.b16 %v814
        %v1567 = vunpack.c.h.b16 %v814
        %v1568 = vunpack.c.l.b16 %v815
        %v1569 = vunpack.c.h.b16 %v815
        %v1570 = vunpack.c.l.b16 %v816
        %v1571 = vunpack.c.h.b16 %v816
        %v1572 = vunpack.c.l.b16 %v817
        %v1573 = vunpack.c.h.b16 %v817
        %v1574 = vunpack.c.l.b16 %v818
        %v1575 = vunpack.c.h.b16 %v818
        %v1576 = vunpack.c.l.b16 %v819
        %v1577 = vunpack.c.h.b16 %v819
        %v1578 = vunpack.c.l.b16 %v820
        %v1579 = vunpack.c.h.b16 %v820
        %v1580 = vunpack.c.l.b16 %v821
        %v1581 = vunpack.c.h.b16 %v821
        %v1582 = vunpack.c.l.b16 %v822
        %v1583 = vunpack.c.h.b16 %v822
        %v1584 = vunpack.c.l.b16 %v823
        %v1585 = vunpack.c.h.b16 %v823
        %v1586 = vunpack.c.l.b16 %v824
        %v1587 = vunpack.c.h.b16 %v824
        %v1588 = vunpack.c.l.b16 %v825
        %v1589 = vunpack.c.h.b16 %v825
        %v1590 = vunpack.c.l.b16 %v826
        %v1591 = vunpack.c.h.b16 %v826
        %v1592 = vunpack.c.l.b16 %v827
        %v1593 = vunpack.c.h.b16 %v827
        %v1594 = vunpack.c.l.b16 %v828
        %v1595 = vunpack.c.h.b16 %v828
        %v1596 = vunpack.c.l.b16 %v829
        %v1597 = vunpack.c.h.b16 %v829
        %v1598 = vunpack.c.l.b16 %v830
        %v1599 = vunpack.c.h.b16 %v830
        %v1600 = vunpack.c.l.b16 %v831
        %v1601 = vunpack.c.h.b16 %v831
        %v1602 = vunpack.c.l.b16 %v832
        %v1603 = vunpack.c.h.b16 %v832
        %v1604 = vunpack.c.l.b16 %v833
        %v1605 = vunpack.c.h.b16 %v833
        %v1606 = vunpack.c.l.b16 %v834
        %v1607 = vunpack.c.h.b16 %v834
        %v1608 = vunpack.c.l.b16 %v835
        %v1609 = vunpack.c.h.b16 %v835
        %v1610 = vunpack.c.l.b16 %v836
        %v1611 = vunpack.c.h.b16 %v836
        %v1612 = vunpack.c.l.b16 %v837
        %v1613 = vunpack.c.h.b16 %v837
        %v1614 = vunpack.c.l.b16 %v838
        %v1615 = vunpack.c.h.b16 %v838
        %v1616 = vunpack.c.l.b16 %v839
        %v1617 = vunpack.c.h.b16 %v839
        %v1618 = vunpack.c.l.b16 %v840
        %v1619 = vunpack.c.h.b16 %v840
        %v1620 = vunpack.c.l.b16 %v841
        %v1621 = vunpack.c.h.b16 %v841
        %v1622 = vunpack.c.l.b16 %v842
        %v1623 = vunpack.c.h.b16 %v842
        %v1624 = vunpack.c.l.b16 %v843
        %v1625 = vunpack.c.h.b16 %v843
        %v1626 = vunpack.c.l.b16 %v844
        %v1627 = vunpack.c.h.b16 %v844
        %v1628 = vunpack.c.l.b16 %v845
        %v1629 = vunpack.c.h.b16 %v845
        %v1630 = vunpack.c.l.b16 %v846
        %v1631 = vunpack.c.h.b16 %v846
        %v1632 = vunpack.c.l.b16 %v847
        %v1633 = vunpack.c.h.b16 %v847
        %v1634 = vunpack.c.l.b16 %v848
        %v1635 = vunpack.c.h.b16 %v848
        %v1636 = vunpack.c.l.b16 %v849
        %v1637 = vunpack.c.h.b16 %v849
        %v1638 = vunpack.c.l.b16 %v850
        %v1639 = vunpack.c.h.b16 %v850
        %v1640 = vunpack.c.l.b16 %v851
        %v1641 = vunpack.c.h.b16 %v851
        %v1642 = vpack.c.b16 %v1134, %v1130
        %v1643 = vpack.c.b16 %v1135, %v1131
        %v1644 = vpack.c.b16 %v1136, %v1132
        %v1645 = vpack.c.b16 %v1137, %v1133
        %v1646 = vpack.c.b16 %v1142, %v1138
        %v1647 = vpack.c.b16 %v1143, %v1139
        %v1648 = vpack.c.b16 %v1144, %v1140
        %v1649 = vpack.c.b16 %v1145, %v1141
        %v1650 = vpack.c.b16 %v1150, %v1146
        %v1651 = vpack.c.b16 %v1151, %v1147
        %v1652 = vpack.c.b16 %v1152, %v1148
        %v1653 = vpack.c.b16 %v1153, %v1149
        %v1654 = vpack.c.b16 %v1158, %v1154
        %v1655 = vpack.c.b16 %v1159, %v1155
        %v1656 = vpack.c.b16 %v1160, %v1156
        %v1657 = vpack.c.b16 %v1161, %v1157
        %v1658 = vpack.c.b16 %v1166, %v1162
        %v1659 = vpack.c.b16 %v1167, %v1163
        %v1660 = vpack.c.b16 %v1168, %v1164
        %v1661 = vpack.c.b16 %v1169, %v1165
        %v1662 = vpack.c.b16 %v1174, %v1170
        %v1663 = vpack.c.b16 %v1175, %v1171
        %v1664 = vpack.c.b16 %v1176, %v1172
        %v1665 = vpack.c.b16 %v1177, %v1173
        %v1666 = vpack.c.b16 %v1182, %v1178
        %v1667 = vpack.c.b16 %v1183, %v1179
        %v1668 = vpack.c.b16 %v1184, %v1180
        %v1669 = vpack.c.b16 %v1185, %v1181
        %v1670 = vpack.c.b16 %v1190, %v1186
        %v1671 = vpack.c.b16 %v1191, %v1187
        %v1672 = vpack.c.b16 %v1192, %v1188
        %v1673 = vpack.c.b16 %v1193, %v1189
        %v1674 = vpack.c.b16 %v1198, %v1194
        %v1675 = vpack.c.b16 %v1199, %v1195
        %v1676 = vpack.c.b16 %v1200, %v1196
        %v1677 = vpack.c.b16 %v1201, %v1197
        %v1678 = vpack.c.b16 %v1206, %v1202
        %v1679 = vpack.c.b16 %v1207, %v1203
        %v1680 = vpack.c.b16 %v1208, %v1204
        %v1681 = vpack.c.b16 %v1209, %v1205
        %v1682 = vpack.c.b16 %v1214, %v1210
        %v1683 = vpack.c.b16 %v1215, %v1211
        %v1684 = vpack.c.b16 %v1216, %v1212
        %v1685 = vpack.c.b16 %v1217, %v1213
        %v1686 = vpack.c.b16 %v1222, %v1218
        %v1687 = vpack.c.b16 %v1223, %v1219
        %v1688 = vpack.c.b16 %v1224, %v1220
        %v1689 = vpack.c.b16 %v1225, %v1221
        %v1690 = vpack.c.b16 %v1230, %v1226
        %v1691 = vpack.c.b16 %v1231, %v1227
        %v1692 = vpack.c.b16 %v1232, %v1228
        %v1693 = vpack.c.b16 %v1233, %v1229
        %v1694 = vpack.c.b16 %v1238, %v1234
        %v1695 = vpack.c.b16 %v1239, %v1235
        %v1696 = vpack.c.b16 %v1240, %v1236
        %v1697 = vpack.c.b16 %v1241, %v1237
        %v1698 = vpack.c.b16 %v1246, %v1242
        %v1699 = vpack.c.b16 %v1247, %v1243
        %v1700 = vpack.c.b16 %v1248, %v1244
        %v1701 = vpack.c.b16 %v1249, %v1245
        %v1702 = vpack.c.b16 %v1254, %v1250
        %v1703 = vpack.c.b16 %v1255, %v1251
        %v1704 = vpack.c.b16 %v1256, %v1252
        %v1705 = vpack.c.b16 %v1257, %v1253
        %v1706 = vpack.c.b16 %v1262, %v1258
        %v1707 = vpack.c.b16 %v1263, %v1259
        %v1708 = vpack.c.b16 %v1264, %v1260
        %v1709 = vpack.c.b16 %v1265, %v1261
        %v1710 = vpack.c.b16 %v1270, %v1266
        %v1711 = vpack.c.b16 %v1271, %v1267
        %v1712 = vpack.c.b16 %v1272, %v1268
        %v1713 = vpack.c.b16 %v1273, %v1269
        %v1714 = vpack.c.b16 %v1278, %v1274
        %v1715 = vpack.c.b16 %v1279, %v1275
        %v1716 = vpack.c.b16 %v1280, %v1276
        %v1717 = vpack.c.b16 %v1281, %v1277
        %v1718 = vpack.c.b16 %v1286, %v1282
        %v1719 = vpack.c.b16 %v1287, %v1283
        %v1720 = vpack.c.b16 %v1288, %v1284
        %v1721 = vpack.c.b16 %v1289, %v1285
        %v1722 = vpack.c.b16 %v1294, %v1290
        %v1723 = vpack.c.b16 %v1295, %v1291
        %v1724 = vpack.c.b16 %v1296, %v1292
        %v1725 = vpack.c.b16 %v1297, %v1293
        %v1726 = vpack.c.b16 %v1302, %v1298
        %v1727 = vpack.c.b16 %v1303, %v1299
        %v1728 = vpack.c.b16 %v1304, %v1300
        %v1729 = vpack.c.b16 %v1305, %v1301
        %v1730 = vpack.c.b16 %v1310, %v1306
        %v1731 = vpack.c.b16 %v1311, %v1307
        %v1732 = vpack.c.b16 %v1312, %v1308
        %v1733 = vpack.c.b16 %v1313, %v1309
        %v1734 = vpack.c.b16 %v1318, %v1314
        %v1735 = vpack.c.b16 %v1319, %v1315
        %v1736 = vpack.c.b16 %v1320, %v1316
        %v1737 = vpack.c.b16 %v1321, %v1317
        %v1738 = vpack.c.b16 %v1326, %v1322
        %v1739 = vpack.c.b16 %v1327, %v1323
        %v1740 = vpack.c.b16 %v1328, %v1324
        %v1741 = vpack.c.b16 %v1329, %v1325
        %v1742 = vpack.c.b16 %v1334, %v1330
        %v1743 = vpack.c.b16 %v1335, %v1331
        %v1744 = vpack.c.b16 %v1336, %v1332
        %v1745 = vpack.c.b16 %v1337, %v1333
        %v1746 = vpack.c.b16 %v1342, %v1338
        %v1747 = vpack.c.b16 %v1343, %v1339
        %v1748 = vpack.c.b16 %v1344, %v1340
        %v1749 = vpack.c.b16 %v1345, %v1341
        %v1750 = vpack.c.b16 %v1350, %v1346
        %v1751 = vpack.c.b16 %v1351, %v1347
        %v1752 = vpack.c.b16 %v1352, %v1348
        %v1753 = vpack.c.b16 %v1353, %v1349
        %v1754 = vpack.c.b16 %v1358, %v1354
        %v1755 = vpack.c.b16 %v1359, %v1355
        %v1756 = vpack.c.b16 %v1360, %v1356
        %v1757 = vpack.c.b16 %v1361, %v1357
        %v1758 = vpack.c.b16 %v1366, %v1362
        %v1759 = vpack.c.b16 %v1367, %v1363
        %v1760 = vpack.c.b16 %v1368, %v1364
        %v1761 = vpack.c.b16 %v1369, %v1365
        %v1762 = vpack.c.b16 %v1374, %v1370
        %v1763 = vpack.c.b16 %v1375, %v1371
        %v1764 = vpack.c.b16 %v1376, %v1372
        %v1765 = vpack.c.b16 %v1377, %v1373
        %v1766 = vpack.c.b16 %v1382, %v1378
        %v1767 = vpack.c.b16 %v1383, %v1379
        %v1768 = vpack.c.b16 %v1384, %v1380
        %v1769 = vpack.c.b16 %v1385, %v1381
        %v1770 = vpack.c.b16 %v1390, %v1386
        %v1771 = vpack.c.b16 %v1391, %v1387
        %v1772 = vpack.c.b16 %v1392, %v1388
        %v1773 = vpack.c.b16 %v1393, %v1389
        %v1774 = vpack.c.b16 %v1398, %v1394
        %v1775 = vpack.c.b16 %v1399, %v1395
        %v1776 = vpack.c.b16 %v1400, %v1396
        %v1777 = vpack.c.b16 %v1401, %v1397
        %v1778 = vpack.c.b16 %v1406, %v1402
        %v1779 = vpack.c.b16 %v1407, %v1403
        %v1780 = vpack.c.b16 %v1408, %v1404
        %v1781 = vpack.c.b16 %v1409, %v1405
        %v1782 = vpack.c.b16 %v1414, %v1410
        %v1783 = vpack.c.b16 %v1415, %v1411
        %v1784 = vpack.c.b16 %v1416, %v1412
        %v1785 = vpack.c.b16 %v1417, %v1413
        %v1786 = vpack.c.b16 %v1422, %v1418
        %v1787 = vpack.c.b16 %v1423, %v1419
        %v1788 = vpack.c.b16 %v1424, %v1420
        %v1789 = vpack.c.b16 %v1425, %v1421
        %v1790 = vpack.c.b16 %v1430, %v1426
        %v1791 = vpack.c.b16 %v1431, %v1427
        %v1792 = vpack.c.b16 %v1432, %v1428
        %v1793 = vpack.c.b16 %v1433, %v1429
        %v1794 = vpack.c.b16 %v1438, %v1434
        %v1795 = vpack.c.b16 %v1439, %v1435
        %v1796 = vpack.c.b16 %v1440, %v1436
        %v1797 = vpack.c.b16 %v1441, %v1437
        %v1798 = vpack.c.b16 %v1446, %v1442
        %v1799 = vpack.c.b16 %v1447, %v1443
        %v1800 = vpack.c.b16 %v1448, %v1444
        %v1801 = vpack.c.b16 %v1449, %v1445
        %v1802 = vpack.c.b16 %v1454, %v1450
        %v1803 = vpack.c.b16 %v1455, %v1451
        %v1804 = vpack.c.b16 %v1456, %v1452
        %v1805 = vpack.c.b16 %v1457, %v1453
        %v1806 = vpack.c.b16 %v1462, %v1458
        %v1807 = vpack.c.b16 %v1463, %v1459
        %v1808 = vpack.c.b16 %v1464, %v1460
        %v1809 = vpack.c.b16 %v1465, %v1461
        %v1810 = vpack.c.b16 %v1470, %v1466
        %v1811 = vpack.c.b16 %v1471, %v1467
        %v1812 = vpack.c.b16 %v1472, %v1468
        %v1813 = vpack.c.b16 %v1473, %v1469
        %v1814 = vpack.c.b16 %v1478, %v1474
        %v1815 = vpack.c.b16 %v1479, %v1475
        %v1816 = vpack.c.b16 %v1480, %v1476
        %v1817 = vpack.c.b16 %v1481, %v1477
        %v1818 = vpack.c.b16 %v1486, %v1482
        %v1819 = vpack.c.b16 %v1487, %v1483
        %v1820 = vpack.c.b16 %v1488, %v1484
        %v1821 = vpack.c.b16 %v1489, %v1485
        %v1822 = vpack.c.b16 %v1494, %v1490
        %v1823 = vpack.c.b16 %v1495, %v1491
        %v1824 = vpack.c.b16 %v1496, %v1492
        %v1825 = vpack.c.b16 %v1497, %v1493
        %v1826 = vpack.c.b16 %v1502, %v1498
        %v1827 = vpack.c.b16 %v1503, %v1499
        %v1828 = vpack.c.b16 %v1504, %v1500
        %v1829 = vpack.c.b16 %v1505, %v1501
        %v1830 = vpack.c.b16 %v1510, %v1506
        %v1831 = vpack.c.b16 %v1511, %v1507
        %v1832 = vpack.c.b16 %v1512, %v1508
        %v1833 = vpack.c.b16 %v1513, %v1509
        %v1834 = vpack.c.b16 %v1518, %v1514
        %v1835 = vpack.c.b16 %v1519, %v1515
        %v1836 = vpack.c.b16 %v1520, %v1516
        %v1837 = vpack.c.b16 %v1521, %v1517
        %v1838 = vpack.c.b16 %v1526, %v1522
        %v1839 = vpack.c.b16 %v1527, %v1523
        %v1840 = vpack.c.b16 %v1528, %v1524
        %v1841 = vpack.c.b16 %v1529, %v1525
        %v1842 = vpack.c.b16 %v1534, %v1530
        %v1843 = vpack.c.b16 %v1535, %v1531
        %v1844 = vpack.c.b16 %v1536, %v1532
        %v1845 = vpack.c.b16 %v1537, %v1533
        %v1846 = vpack.c.b16 %v1542, %v1538
        %v1847 = vpack.c.b16 %v1543, %v1539
        %v1848 = vpack.c.b16 %v1544, %v1540
        %v1849 = vpack.c.b16 %v1545, %v1541
        %v1850 = vpack.c.b16 %v1550, %v1546
        %v1851 = vpack.c.b16 %v1551, %v1547
        %v1852 = vpack.c.b16 %v1552, %v1548
        %v1853 = vpack.c.b16 %v1553, %v1549
        %v1854 = vpack.c.b16 %v1558, %v1554
        %v1855 = vpack.c.b16 %v1559, %v1555
        %v1856 = vpack.c.b16 %v1560, %v1556
        %v1857 = vpack.c.b16 %v1561, %v1557
        %v1858 = vpack.c.b16 %v1566, %v1562
        %v1859 = vpack.c.b16 %v1567, %v1563
        %v1860 = vpack.c.b16 %v1568, %v1564
        %v1861 = vpack.c.b16 %v1569, %v1565
        %v1862 = vpack.c.b16 %v1574, %v1570
        %v1863 = vpack.c.b16 %v1575, %v1571
        %v1864 = vpack.c.b16 %v1576, %v1572
        %v1865 = vpack.c.b16 %v1577, %v1573
        %v1866 = vpack.c.b16 %v1582, %v1578
        %v1867 = vpack.c.b16 %v1583, %v1579
        %v1868 = vpack.c.b16 %v1584, %v1580
        %v1869 = vpack.c.b16 %v1585, %v1581
        %v1870 = vpack.c.b16 %v1590, %v1586
        %v1871 = vpack.c.b16 %v1591, %v1587
        %v1872 = vpack.c.b16 %v1592, %v1588
        %v1873 = vpack.c.b16 %v1593, %v1589
        %v1874 = vpack.c.b16 %v1598, %v1594
        %v1875 = vpack.c.b16 %v1599, %v1595
        %v1876 = vpack.c.b16 %v1600, %v1596
        %v1877 = vpack.c.b16 %v1601, %v1597
        %v1878 = vpack.c.b16 %v1606, %v1602
        %v1879 = vpack.c.b16 %v1607, %v1603
        %v1880 = vpack.c.b16 %v1608, %v1604
        %v1881 = vpack.c.b16 %v1609, %v1605
        %v1882 = vpack.c.b16 %v1614, %v1610
        %v1883 = vpack.c.b16 %v1615, %v1611
        %v1884 = vpack.c.b16 %v1616, %v1612
        %v1885 = vpack.c.b16 %v1617, %v1613
        %v1886 = vpack.c.b16 %v1622, %v1618
        %v1887 = vpack.c.b16 %v1623, %v1619
        %v1888 = vpack.c.b16 %v1624, %v1620
        %v1889 = vpack.c.b16 %v1625, %v1621
        %v1890 = vpack.c.b16 %v1630, %v1626
        %v1891 = vpack.c.b16 %v1631, %v1627
        %v1892 = vpack.c.b16 %v1632, %v1628
        %v1893 = vpack.c.b16 %v1633, %v1629
        %v1894 = vpack.c.b16 %v1638, %v1634
        %v1895 = vpack.c.b16 %v1639, %v1635
        %v1896 = vpack.c.b16 %v1640, %v1636
        %v1897 = vpack.c.b16 %v1641, %v1637
        %2154 = vmatprep.subr.bf16.mxu0 %v1643
        %2155 = vmatpush1.bf16.msra.mxu0 %v1642
        %2156 = vmatprep.subr.bf16.mxu0 %v1647
        %2157 = vmatpush1.bf16.msra.mxu0 %v1646
        %2158 = vmatprep.subr.bf16.mxu0 %v1651
        %2159 = vmatpush1.bf16.msra.mxu0 %v1650
        %2160 = vmatprep.subr.bf16.mxu0 %v1655
        %2161 = vmatpush1.bf16.msra.mxu0 %v1654
        %2162 = vmatprep.subr.bf16.mxu0 %v1659
        %2163 = vmatpush1.bf16.msra.mxu0 %v1658
        %2164 = vmatprep.subr.bf16.mxu0 %v1663
        %2165 = vmatpush1.bf16.msra.mxu0 %v1662
        %2166 = vmatprep.subr.bf16.mxu0 %v1667
        %2167 = vmatpush1.bf16.msra.mxu0 %v1666
        %2168 = vmatprep.subr.bf16.mxu0 %v1671
        %2169 = vmatpush1.bf16.msra.mxu0 %v1670
        %2170 = vmatprep.subr.bf16.mxu0 %v1675
        %2171 = vmatpush1.bf16.msra.mxu0 %v1674
        %2172 = vmatprep.subr.bf16.mxu0 %v1679
        %2173 = vmatpush1.bf16.msra.mxu0 %v1678
        %2174 = vmatprep.subr.bf16.mxu0 %v1683
        %2175 = vmatpush1.bf16.msra.mxu0 %v1682
        %2176 = vmatprep.subr.bf16.mxu0 %v1687
        %2177 = vmatpush1.bf16.msra.mxu0 %v1686
        %2178 = vmatprep.subr.bf16.mxu0 %v1691
        %2179 = vmatpush1.bf16.msra.mxu0 %v1690
        %2180 = vmatprep.subr.bf16.mxu0 %v1695
        %2181 = vmatpush1.bf16.msra.mxu0 %v1694
        %2182 = vmatprep.subr.bf16.mxu0 %v1699
        %2183 = vmatpush1.bf16.msra.mxu0 %v1698
        %2184 = vmatprep.subr.bf16.mxu0 %v1703
        %2185 = vmatpush1.bf16.msra.mxu0 %v1702
        %2186 = vmatprep.mubr.bf16.mxu0 %v581
        %2187 = vmatmul.mubr.bf16.gmra.mrb[0].mxu0 %v580
        %v2188 = vpop.f32.mrb[0].mxu0
        %v2189 = vadd.f32 %v857, %v2188
        %v2190 = vpop.f32.mrb[0].mxu0
        %v2191 = vadd.f32 %v861, %v2190
        %v2192 = vpop.f32.mrb[0].mxu0
        %v2193 = vadd.f32 %v857, %v2192
        %v2194 = vpop.f32.mrb[0].mxu0
        %v2195 = vadd.f32 %v861, %v2194
        %2196 = vmatprep.mubr.bf16.mxu0 %v589
        %2197 = vmatmul.mubr.bf16.gmra.mrb[0].mxu0 %v588
        %v2198 = vpop.f32.mrb[0].mxu0
        %v2199 = vadd.f32 %v857, %v2198
        %v2200 = vpop.f32.mrb[0].mxu0
        %v2201 = vadd.f32 %v861, %v2200
        %v2202 = vpop.f32.mrb[0].mxu0
        %v2203 = vadd.f32 %v857, %v2202
        %v2204 = vpop.f32.mrb[0].mxu0
        %v2205 = vadd.f32 %v861, %v2204
        %2206 = vdwg.mxu0
        %2207 = vmatprep.subr.bf16.mxu0 %v1707
        %2208 = vmatpush1.bf16.msra.mxu0 %v1706
        %2209 = vmatprep.subr.bf16.mxu0 %v1711
        %2210 = vmatpush1.bf16.msra.mxu0 %v1710
        %2211 = vmatprep.subr.bf16.mxu0 %v1715
        %2212 = vmatpush1.bf16.msra.mxu0 %v1714
        %2213 = vmatprep.subr.bf16.mxu0 %v1719
        %2214 = vmatpush1.bf16.msra.mxu0 %v1718
        %2215 = vmatprep.subr.bf16.mxu0 %v1723
        %2216 = vmatpush1.bf16.msra.mxu0 %v1722
        %2217 = vmatprep.subr.bf16.mxu0 %v1727
        %2218 = vmatpush1.bf16.msra.mxu0 %v1726
        %2219 = vmatprep.subr.bf16.mxu0 %v1731
        %2220 = vmatpush1.bf16.msra.mxu0 %v1730
        %2221 = vmatprep.subr.bf16.mxu0 %v1735
        %2222 = vmatpush1.bf16.msra.mxu0 %v1734
        %2223 = vmatprep.subr.bf16.mxu0 %v1739
        %2224 = vmatpush1.bf16.msra.mxu0 %v1738
        %2225 = vmatprep.subr.bf16.mxu0 %v1743
        %2226 = vmatpush1.bf16.msra.mxu0 %v1742
        %2227 = vmatprep.subr.bf16.mxu0 %v1747
        %2228 = vmatpush1.bf16.msra.mxu0 %v1746
        %2229 = vmatprep.subr.bf16.mxu0 %v1751
        %2230 = vmatpush1.bf16.msra.mxu0 %v1750
        %2231 = vmatprep.subr.bf16.mxu0 %v1755
        %2232 = vmatpush1.bf16.msra.mxu0 %v1754
        %2233 = vmatprep.subr.bf16.mxu0 %v1759
        %2234 = vmatpush1.bf16.msra.mxu0 %v1758
        %2235 = vmatprep.subr.bf16.mxu0 %v1763
        %2236 = vmatpush1.bf16.msra.mxu0 %v1762
        %2237 = vmatprep.subr.bf16.mxu0 %v1767
        %2238 = vmatpush1.bf16.msra.mxu0 %v1766
        %2239 = vmatprep.mubr.bf16.mxu0 %v583
        %2240 = vmatmul.mubr.bf16.gmra.mrb[0].mxu0 %v582
        %v2241 = vpop.f32.mrb[0].mxu0
        %v2242 = vadd.f32 %v2189, %v2241
        %v2243 = vpop.f32.mrb[0].mxu0
        %v2244 = vadd.f32 %v2191, %v2243
        %v2245 = vpop.f32.mrb[0].mxu0
        %v2246 = vadd.f32 %v2193, %v2245
        %v2247 = vpop.f32.mrb[0].mxu0
        %v2248 = vadd.f32 %v2195, %v2247
        %2249 = vmatprep.mubr.bf16.mxu0 %v591
        %2250 = vmatmul.mubr.bf16.gmra.mrb[0].mxu0 %v590
        %v2251 = vpop.f32.mrb[0].mxu0
        %v2252 = vadd.f32 %v2199, %v2251
        %v2253 = vpop.f32.mrb[0].mxu0
        %v2254 = vadd.f32 %v2201, %v2253
        %v2255 = vpop.f32.mrb[0].mxu0
        %v2256 = vadd.f32 %v2203, %v2255
        %v2257 = vpop.f32.mrb[0].mxu0
        %v2258 = vadd.f32 %v2205, %v2257
        %2259 = vdwg.mxu0
        %2260 = vmatprep.subr.bf16.mxu0 %v1771
        %2261 = vmatpush1.bf16.msra.mxu0 %v1770
        %2262 = vmatprep.subr.bf16.mxu0 %v1775
        %2263 = vmatpush1.bf16.msra.mxu0 %v1774
        %2264 = vmatprep.subr.bf16.mxu0 %v1779
        %2265 = vmatpush1.bf16.msra.mxu0 %v1778
        %2266 = vmatprep.subr.bf16.mxu0 %v1783
        %2267 = vmatpush1.bf16.msra.mxu0 %v1782
        %2268 = vmatprep.subr.bf16.mxu0 %v1787
        %2269 = vmatpush1.bf16.msra.mxu0 %v1786
        %2270 = vmatprep.subr.bf16.mxu0 %v1791
        %2271 = vmatpush1.bf16.msra.mxu0 %v1790
        %2272 = vmatprep.subr.bf16.mxu0 %v1795
        %2273 = vmatpush1.bf16.msra.mxu0 %v1794
        %2274 = vmatprep.subr.bf16.mxu0 %v1799
        %2275 = vmatpush1.bf16.msra.mxu0 %v1798
        %2276 = vmatprep.subr.bf16.mxu0 %v1803
        %2277 = vmatpush1.bf16.msra.mxu0 %v1802
        %2278 = vmatprep.subr.bf16.mxu0 %v1807
        %2279 = vmatpush1.bf16.msra.mxu0 %v1806
        %2280 = vmatprep.subr.bf16.mxu0 %v1811
        %2281 = vmatpush1.bf16.msra.mxu0 %v1810
        %2282 = vmatprep.subr.bf16.mxu0 %v1815
        %2283 = vmatpush1.bf16.msra.mxu0 %v1814
        %2284 = vmatprep.subr.bf16.mxu0 %v1819
        %2285 = vmatpush1.bf16.msra.mxu0 %v1818
        %2286 = vmatprep.subr.bf16.mxu0 %v1823
        %2287 = vmatpush1.bf16.msra.mxu0 %v1822
        %2288 = vmatprep.subr.bf16.mxu0 %v1827
        %2289 = vmatpush1.bf16.msra.mxu0 %v1826
        %2290 = vmatprep.subr.bf16.mxu0 %v1831
        %2291 = vmatpush1.bf16.msra.mxu0 %v1830
        %2292 = vmatprep.mubr.bf16.mxu0 %v585
        %2293 = vmatmul.mubr.bf16.gmra.mrb[0].mxu0 %v584
        %v2294 = vpop.f32.mrb[0].mxu0
        %v2295 = vadd.f32 %v2242, %v2294
        %v2296 = vpop.f32.mrb[0].mxu0
        %v2297 = vadd.f32 %v2244, %v2296
        %v2298 = vpop.f32.mrb[0].mxu0
        %v2299 = vadd.f32 %v2246, %v2298
        %v2300 = vpop.f32.mrb[0].mxu0
        %v2301 = vadd.f32 %v2248, %v2300
        %2302 = vmatprep.mubr.bf16.mxu0 %v593
        %2303 = vmatmul.mubr.bf16.gmra.mrb[0].mxu0 %v592
        %v2304 = vpop.f32.mrb[0].mxu0
        %v2305 = vadd.f32 %v2252, %v2304
        %v2306 = vpop.f32.mrb[0].mxu0
        %v2307 = vadd.f32 %v2254, %v2306
        %v2308 = vpop.f32.mrb[0].mxu0
        %v2309 = vadd.f32 %v2256, %v2308
        %v2310 = vpop.f32.mrb[0].mxu0
        %v2311 = vadd.f32 %v2258, %v2310
        %2312 = vdwg.mxu0
        %2313 = vmatprep.subr.bf16.mxu0 %v1835
        %2314 = vmatpush1.bf16.msra.mxu0 %v1834
        %2315 = vmatprep.subr.bf16.mxu0 %v1839
        %2316 = vmatpush1.bf16.msra.mxu0 %v1838
        %2317 = vmatprep.subr.bf16.mxu0 %v1843
        %2318 = vmatpush1.bf16.msra.mxu0 %v1842
        %2319 = vmatprep.subr.bf16.mxu0 %v1847
        %2320 = vmatpush1.bf16.msra.mxu0 %v1846
        %2321 = vmatprep.subr.bf16.mxu0 %v1851
        %2322 = vmatpush1.bf16.msra.mxu0 %v1850
        %2323 = vmatprep.subr.bf16.mxu0 %v1855
        %2324 = vmatpush1.bf16.msra.mxu0 %v1854
        %2325 = vmatprep.subr.bf16.mxu0 %v1859
        %2326 = vmatpush1.bf16.msra.mxu0 %v1858
        %2327 = vmatprep.subr.bf16.mxu0 %v1863
        %2328 = vmatpush1.bf16.msra.mxu0 %v1862
        %2329 = vmatprep.subr.bf16.mxu0 %v1867
        %2330 = vmatpush1.bf16.msra.mxu0 %v1866
        %2331 = vmatprep.subr.bf16.mxu0 %v1871
        %2332 = vmatpush1.bf16.msra.mxu0 %v1870
        %2333 = vmatprep.subr.bf16.mxu0 %v1875
        %2334 = vmatpush1.bf16.msra.mxu0 %v1874
        %2335 = vmatprep.subr.bf16.mxu0 %v1879
        %2336 = vmatpush1.bf16.msra.mxu0 %v1878
        %2337 = vmatprep.subr.bf16.mxu0 %v1883
        %2338 = vmatpush1.bf16.msra.mxu0 %v1882
        %2339 = vmatprep.subr.bf16.mxu0 %v1887
        %2340 = vmatpush1.bf16.msra.mxu0 %v1886
        %2341 = vmatprep.subr.bf16.mxu0 %v1891
        %2342 = vmatpush1.bf16.msra.mxu0 %v1890
        %2343 = vmatprep.subr.bf16.mxu0 %v1895
        %2344 = vmatpush1.bf16.msra.mxu0 %v1894
        %2345 = vmatprep.mubr.bf16.mxu0 %v587
        %2346 = vmatmul.mubr.bf16.gmra.mrb[0].mxu0 %v586
        %v2347 = vpop.f32.mrb[0].mxu0
        %v2348 = vadd.f32 %v2295, %v2347
        %v2349 = vpop.f32.mrb[0].mxu0
        %v2350 = vadd.f32 %v2297, %v2349
        %v2351 = vpop.f32.mrb[0].mxu0
        %v2352 = vadd.f32 %v2299, %v2351
        %v2353 = vpop.f32.mrb[0].mxu0
        %v2354 = vadd.f32 %v2301, %v2353
        %2355 = vmatprep.mubr.bf16.mxu0 %v595
        %2356 = vmatmul.mubr.bf16.gmra.mrb[0].mxu0 %v594
        %v2357 = vpop.f32.mrb[0].mxu0
        %v2358 = vadd.f32 %v2305, %v2357
        %v2359 = vpop.f32.mrb[0].mxu0
        %v2360 = vadd.f32 %v2307, %v2359
        %v2361 = vpop.f32.mrb[0].mxu0
        %v2362 = vadd.f32 %v2309, %v2361
        %v2363 = vpop.f32.mrb[0].mxu0
        %v2364 = vadd.f32 %v2311, %v2363
        %2365 = vdwg.mxu0
        %2366 = vmatprep.subr.bf16.mxu0 %v1645
        %2367 = vmatpush1.bf16.msra.mxu0 %v1644
        %2368 = vmatprep.subr.bf16.mxu0 %v1649
        %2369 = vmatpush1.bf16.msra.mxu0 %v1648
        %2370 = vmatprep.subr.bf16.mxu0 %v1653
        %2371 = vmatpush1.bf16.msra.mxu0 %v1652
        %2372 = vmatprep.subr.bf16.mxu0 %v1657
        %2373 = vmatpush1.bf16.msra.mxu0 %v1656
        %2374 = vmatprep.subr.bf16.mxu0 %v1661
        %2375 = vmatpush1.bf16.msra.mxu0 %v1660
        %2376 = vmatprep.subr.bf16.mxu0 %v1665
        %2377 = vmatpush1.bf16.msra.mxu0 %v1664
        %2378 = vmatprep.subr.bf16.mxu0 %v1669
        %2379 = vmatpush1.bf16.msra.mxu0 %v1668
        %2380 = vmatprep.subr.bf16.mxu0 %v1673
        %2381 = vmatpush1.bf16.msra.mxu0 %v1672
        %2382 = vmatprep.subr.bf16.mxu0 %v1677
        %2383 = vmatpush1.bf16.msra.mxu0 %v1676
        %2384 = vmatprep.subr.bf16.mxu0 %v1681
        %2385 = vmatpush1.bf16.msra.mxu0 %v1680
        %2386 = vmatprep.subr.bf16.mxu0 %v1685
        %2387 = vmatpush1.bf16.msra.mxu0 %v1684
        %2388 = vmatprep.subr.bf16.mxu0 %v1689
        %2389 = vmatpush1.bf16.msra.mxu0 %v1688
        %2390 = vmatprep.subr.bf16.mxu0 %v1693
        %2391 = vmatpush1.bf16.msra.mxu0 %v1692
        %2392 = vmatprep.subr.bf16.mxu0 %v1697
        %2393 = vmatpush1.bf16.msra.mxu0 %v1696
        %2394 = vmatprep.subr.bf16.mxu0 %v1701
        %2395 = vmatpush1.bf16.msra.mxu0 %v1700
        %2396 = vmatprep.subr.bf16.mxu0 %v1705
        %2397 = vmatpush1.bf16.msra.mxu0 %v1704
        %2398 = vmatprep.mubr.bf16.mxu0 %v581
        %2399 = vmatmul.mubr.bf16.gmra.mrb[0].mxu0 %v580
        %v2400 = vpop.f32.mrb[0].mxu0
        %v2401 = vadd.f32 %v865, %v2400
        %v2402 = vpop.f32.mrb[0].mxu0
        %v2403 = vadd.f32 %v869, %v2402
        %v2404 = vpop.f32.mrb[0].mxu0
        %v2405 = vadd.f32 %v865, %v2404
        %v2406 = vpop.f32.mrb[0].mxu0
        %v2407 = vadd.f32 %v869, %v2406
        %2408 = vmatprep.mubr.bf16.mxu0 %v589
        %2409 = vmatmul.mubr.bf16.gmra.mrb[0].mxu0 %v588
        %v2410 = vpop.f32.mrb[0].mxu0
        %v2411 = vadd.f32 %v865, %v2410
        %v2412 = vpop.f32.mrb[0].mxu0
        %v2413 = vadd.f32 %v869, %v2412
        %v2414 = vpop.f32.mrb[0].mxu0
        %v2415 = vadd.f32 %v865, %v2414
        %v2416 = vpop.f32.mrb[0].mxu0
        %v2417 = vadd.f32 %v869, %v2416
        %2418 = vdwg.mxu0
        %2419 = vmatprep.subr.bf16.mxu0 %v1709
        %2420 = vmatpush1.bf16.msra.mxu0 %v1708
        %2421 = vmatprep.subr.bf16.mxu0 %v1713
        %2422 = vmatpush1.bf16.msra.mxu0 %v1712
        %2423 = vmatprep.subr.bf16.mxu0 %v1717
        %2424 = vmatpush1.bf16.msra.mxu0 %v1716
        %2425 = vmatprep.subr.bf16.mxu0 %v1721
        %2426 = vmatpush1.bf16.msra.mxu0 %v1720
        %2427 = vmatprep.subr.bf16.mxu0 %v1725
        %2428 = vmatpush1.bf16.msra.mxu0 %v1724
        %2429 = vmatprep.subr.bf16.mxu0 %v1729
        %2430 = vmatpush1.bf16.msra.mxu0 %v1728
        %2431 = vmatprep.subr.bf16.mxu0 %v1733
        %2432 = vmatpush1.bf16.msra.mxu0 %v1732
        %2433 = vmatprep.subr.bf16.mxu0 %v1737
        %2434 = vmatpush1.bf16.msra.mxu0 %v1736
        %2435 = vmatprep.subr.bf16.mxu0 %v1741
        %2436 = vmatpush1.bf16.msra.mxu0 %v1740
        %2437 = vmatprep.subr.bf16.mxu0 %v1745
        %2438 = vmatpush1.bf16.msra.mxu0 %v1744
        %2439 = vmatprep.subr.bf16.mxu0 %v1749
        %2440 = vmatpush1.bf16.msra.mxu0 %v1748
        %2441 = vmatprep.subr.bf16.mxu0 %v1753
        %2442 = vmatpush1.bf16.msra.mxu0 %v1752
        %2443 = vmatprep.subr.bf16.mxu0 %v1757
        %2444 = vmatpush1.bf16.msra.mxu0 %v1756
        %2445 = vmatprep.subr.bf16.mxu0 %v1761
        %2446 = vmatpush1.bf16.msra.mxu0 %v1760
        %2447 = vmatprep.subr.bf16.mxu0 %v1765
        %2448 = vmatpush1.bf16.msra.mxu0 %v1764
        %2449 = vmatprep.subr.bf16.mxu0 %v1769
        %2450 = vmatpush1.bf16.msra.mxu0 %v1768
        %2451 = vmatprep.mubr.bf16.mxu0 %v583
        %2452 = vmatmul.mubr.bf16.gmra.mrb[0].mxu0 %v582
        %v2453 = vpop.f32.mrb[0].mxu0
        %v2454 = vadd.f32 %v2401, %v2453
        %v2455 = vpop.f32.mrb[0].mxu0
        %v2456 = vadd.f32 %v2403, %v2455
        %v2457 = vpop.f32.mrb[0].mxu0
        %v2458 = vadd.f32 %v2405, %v2457
        %v2459 = vpop.f32.mrb[0].mxu0
        %v2460 = vadd.f32 %v2407, %v2459
        %2461 = vmatprep.mubr.bf16.mxu0 %v591
        %2462 = vmatmul.mubr.bf16.gmra.mrb[0].mxu0 %v590
        %v2463 = vpop.f32.mrb[0].mxu0
        %v2464 = vadd.f32 %v2411, %v2463
        %v2465 = vpop.f32.mrb[0].mxu0
        %v2466 = vadd.f32 %v2413, %v2465
        %v2467 = vpop.f32.mrb[0].mxu0
        %v2468 = vadd.f32 %v2415, %v2467
        %v2469 = vpop.f32.mrb[0].mxu0
        %v2470 = vadd.f32 %v2417, %v2469
        %2471 = vdwg.mxu0
        %2472 = vmatprep.subr.bf16.mxu0 %v1773
        %2473 = vmatpush1.bf16.msra.mxu0 %v1772
        %2474 = vmatprep.subr.bf16.mxu0 %v1777
        %2475 = vmatpush1.bf16.msra.mxu0 %v1776
        %2476 = vmatprep.subr.bf16.mxu0 %v1781
        %2477 = vmatpush1.bf16.msra.mxu0 %v1780
        %2478 = vmatprep.subr.bf16.mxu0 %v1785
        %2479 = vmatpush1.bf16.msra.mxu0 %v1784
        %2480 = vmatprep.subr.bf16.mxu0 %v1789
        %2481 = vmatpush1.bf16.msra.mxu0 %v1788
        %2482 = vmatprep.subr.bf16.mxu0 %v1793
        %2483 = vmatpush1.bf16.msra.mxu0 %v1792
        %2484 = vmatprep.subr.bf16.mxu0 %v1797
        %2485 = vmatpush1.bf16.msra.mxu0 %v1796
        %2486 = vmatprep.subr.bf16.mxu0 %v1801
        %2487 = vmatpush1.bf16.msra.mxu0 %v1800
        %2488 = vmatprep.subr.bf16.mxu0 %v1805
        %2489 = vmatpush1.bf16.msra.mxu0 %v1804
        %2490 = vmatprep.subr.bf16.mxu0 %v1809
        %2491 = vmatpush1.bf16.msra.mxu0 %v1808
        %2492 = vmatprep.subr.bf16.mxu0 %v1813
        %2493 = vmatpush1.bf16.msra.mxu0 %v1812
        %2494 = vmatprep.subr.bf16.mxu0 %v1817
        %2495 = vmatpush1.bf16.msra.mxu0 %v1816
        %2496 = vmatprep.subr.bf16.mxu0 %v1821
        %2497 = vmatpush1.bf16.msra.mxu0 %v1820
        %2498 = vmatprep.subr.bf16.mxu0 %v1825
        %2499 = vmatpush1.bf16.msra.mxu0 %v1824
        %2500 = vmatprep.subr.bf16.mxu0 %v1829
        %2501 = vmatpush1.bf16.msra.mxu0 %v1828
        %2502 = vmatprep.subr.bf16.mxu0 %v1833
        %2503 = vmatpush1.bf16.msra.mxu0 %v1832
        %2504 = vmatprep.mubr.bf16.mxu0 %v585
        %2505 = vmatmul.mubr.bf16.gmra.mrb[0].mxu0 %v584
        %v2506 = vpop.f32.mrb[0].mxu0
        %v2507 = vadd.f32 %v2454, %v2506
        %v2508 = vpop.f32.mrb[0].mxu0
        %v2509 = vadd.f32 %v2456, %v2508
        %v2510 = vpop.f32.mrb[0].mxu0
        %v2511 = vadd.f32 %v2458, %v2510
        %v2512 = vpop.f32.mrb[0].mxu0
        %v2513 = vadd.f32 %v2460, %v2512
        %2514 = vmatprep.mubr.bf16.mxu0 %v593
        %2515 = vmatmul.mubr.bf16.gmra.mrb[0].mxu0 %v592
        %v2516 = vpop.f32.mrb[0].mxu0
        %v2517 = vadd.f32 %v2464, %v2516
        %v2518 = vpop.f32.mrb[0].mxu0
        %v2519 = vadd.f32 %v2466, %v2518
        %v2520 = vpop.f32.mrb[0].mxu0
        %v2521 = vadd.f32 %v2468, %v2520
        %v2522 = vpop.f32.mrb[0].mxu0
        %v2523 = vadd.f32 %v2470, %v2522
        %2524 = vdwg.mxu0
        %2525 = vmatprep.subr.bf16.mxu0 %v1837
        %2526 = vmatpush1.bf16.msra.mxu0 %v1836
        %2527 = vmatprep.subr.bf16.mxu0 %v1841
        %2528 = vmatpush1.bf16.msra.mxu0 %v1840
        %2529 = vmatprep.subr.bf16.mxu0 %v1845
        %2530 = vmatpush1.bf16.msra.mxu0 %v1844
        %2531 = vmatprep.subr.bf16.mxu0 %v1849
        %2532 = vmatpush1.bf16.msra.mxu0 %v1848
        %2533 = vmatprep.subr.bf16.mxu0 %v1853
        %2534 = vmatpush1.bf16.msra.mxu0 %v1852
        %2535 = vmatprep.subr.bf16.mxu0 %v1857
        %2536 = vmatpush1.bf16.msra.mxu0 %v1856
        %2537 = vmatprep.subr.bf16.mxu0 %v1861
        %2538 = vmatpush1.bf16.msra.mxu0 %v1860
        %2539 = vmatprep.subr.bf16.mxu0 %v1865
        %2540 = vmatpush1.bf16.msra.mxu0 %v1864
        %2541 = vmatprep.subr.bf16.mxu0 %v1869
        %2542 = vmatpush1.bf16.msra.mxu0 %v1868
        %2543 = vmatprep.subr.bf16.mxu0 %v1873
        %2544 = vmatpush1.bf16.msra.mxu0 %v1872
        %2545 = vmatprep.subr.bf16.mxu0 %v1877
        %2546 = vmatpush1.bf16.msra.mxu0 %v1876
        %2547 = vmatprep.subr.bf16.mxu0 %v1881
        %2548 = vmatpush1.bf16.msra.mxu0 %v1880
        %2549 = vmatprep.subr.bf16.mxu0 %v1885
        %2550 = vmatpush1.bf16.msra.mxu0 %v1884
        %2551 = vmatprep.subr.bf16.mxu0 %v1889
        %2552 = vmatpush1.bf16.msra.mxu0 %v1888
        %2553 = vmatprep.subr.bf16.mxu0 %v1893
        %2554 = vmatpush1.bf16.msra.mxu0 %v1892
        %2555 = vmatprep.subr.bf16.mxu0 %v1897
        %2556 = vmatpush1.bf16.msra.mxu0 %v1896
        %2557 = vmatprep.mubr.bf16.mxu0 %v587
        %2558 = vmatmul.mubr.bf16.gmra.mrb[0].mxu0 %v586
        %v2559 = vpop.f32.mrb[0].mxu0
        %v2560 = vadd.f32 %v2507, %v2559
        %v2561 = vpop.f32.mrb[0].mxu0
        %v2562 = vadd.f32 %v2509, %v2561
        %v2563 = vpop.f32.mrb[0].mxu0
        %v2564 = vadd.f32 %v2511, %v2563
        %v2565 = vpop.f32.mrb[0].mxu0
        %v2566 = vadd.f32 %v2513, %v2565
        %2567 = vmatprep.mubr.bf16.mxu0 %v595
        %2568 = vmatmul.mubr.bf16.gmra.mrb[0].mxu0 %v594
        %v2569 = vpop.f32.mrb[0].mxu0
        %v2570 = vadd.f32 %v2517, %v2569
        %v2571 = vpop.f32.mrb[0].mxu0
        %v2572 = vadd.f32 %v2519, %v2571
        %v2573 = vpop.f32.mrb[0].mxu0
        %v2574 = vadd.f32 %v2521, %v2573
        %v2575 = vpop.f32.mrb[0].mxu0
        %v2576 = vadd.f32 %v2523, %v2575
        %2577 = vdwg.mxu0
        %vm2578 = vcmp.ge.f32.partialorder %v2348, 0.0
        %vm2579 = vcmp.ge.f32.partialorder %v2350, 0.0
        %vm2580 = vcmp.ge.f32.partialorder %v2560, 0.0
        %vm2581 = vcmp.ge.f32.partialorder %v2562, 0.0
        %vm2582 = vcmp.ge.f32.partialorder %v2352, 0.0
        %vm2583 = vcmp.ge.f32.partialorder %v2354, 0.0
        %vm2584 = vcmp.ge.f32.partialorder %v2564, 0.0
        %vm2585 = vcmp.ge.f32.partialorder %v2566, 0.0
        %vm2586 = vcmp.ge.f32.partialorder %v2358, 0.0
        %vm2587 = vcmp.ge.f32.partialorder %v2360, 0.0
        %vm2588 = vcmp.ge.f32.partialorder %v2570, 0.0
        %vm2589 = vcmp.ge.f32.partialorder %v2572, 0.0
        %vm2590 = vcmp.ge.f32.partialorder %v2362, 0.0
        %vm2591 = vcmp.ge.f32.partialorder %v2364, 0.0
        %vm2592 = vcmp.ge.f32.partialorder %v2574, 0.0
        %vm2593 = vcmp.ge.f32.partialorder %v2576, 0.0
        %v2594 = vmul.f32 %v2348, 0.2
        %v2595 = vmul.f32 %v2350, 0.2
        %v2596 = vmul.f32 %v2560, 0.2
        %v2597 = vmul.f32 %v2562, 0.2
        %v2598 = vmul.f32 %v2352, 0.2
        %v2599 = vmul.f32 %v2354, 0.2
        %v2600 = vmul.f32 %v2564, 0.2
        %v2601 = vmul.f32 %v2566, 0.2
        %v2602 = vmul.f32 %v2358, 0.2
        %v2603 = vmul.f32 %v2360, 0.2
        %v2604 = vmul.f32 %v2570, 0.2
        %v2605 = vmul.f32 %v2572, 0.2
        %v2606 = vmul.f32 %v2362, 0.2
        %v2607 = vmul.f32 %v2364, 0.2
        %v2608 = vmul.f32 %v2574, 0.2
        %v2609 = vmul.f32 %v2576, 0.2
        %v2610 = vsel %vm2578, %v2348, %v2594
        %v2611 = vsel %vm2579, %v2350, %v2595
        %v2612 = vsel %vm2580, %v2560, %v2596
        %v2613 = vsel %vm2581, %v2562, %v2597
        %v2614 = vsel %vm2582, %v2352, %v2598
        %v2615 = vsel %vm2583, %v2354, %v2599
        %v2616 = vsel %vm2584, %v2564, %v2600
        %v2617 = vsel %vm2585, %v2566, %v2601
        %v2618 = vsel %vm2586, %v2358, %v2602
        %v2619 = vsel %vm2587, %v2360, %v2603
        %v2620 = vsel %vm2588, %v2570, %v2604
        %v2621 = vsel %vm2589, %v2572, %v2605
        %v2622 = vsel %vm2590, %v2362, %v2606
        %v2623 = vsel %vm2591, %v2364, %v2607
        %v2624 = vsel %vm2592, %v2574, %v2608
        %v2625 = vsel %vm2593, %v2576, %v2609
        %v2626 = vpack.c.bf16 %v2614, %v2610
        %v2627 = vpack.c.bf16 %v2615, %v2611
        %v2628 = vpack.c.bf16 %v2616, %v2612
        %v2629 = vpack.c.bf16 %v2617, %v2613
        %v2630 = vpack.c.bf16 %v2622, %v2618
        %v2631 = vpack.c.bf16 %v2623, %v2619
        %v2632 = vpack.c.bf16 %v2624, %v2620
        %v2633 = vpack.c.bf16 %v2625, %v2621
        %v2634 = vld [vmem:[%s3] sm:$0xf]
        %v2635 = vld [vmem:[%s3 + $0x4] sm:$0xf]
        %v2636 = vld [vmem:[%s3 + $0x8] sm:$0xf]
        %v2637 = vld [vmem:[%s3 + $0xc] sm:$0xf]
        %v2638 = vld [vmem:[%s3 + $0x10] sm:$0xf]
        %v2639 = vld [vmem:[%s3 + $0x14] sm:$0xf]
        %v2640 = vld [vmem:[%s3 + $0x18] sm:$0xf]
        %v2641 = vld [vmem:[%s3 + $0x1c] sm:$0xf]
        %v2642 = vld [vmem:[%s3 + $0x20] sm:$0xf]
        %v2643 = vld [vmem:[%s3 + $0x24] sm:$0xf]
        %v2644 = vld [vmem:[%s3 + $0x28] sm:$0xf]
        %v2645 = vld [vmem:[%s3 + $0x2c] sm:$0xf]
        %v2646 = vld [vmem:[%s3 + $0x30] sm:$0xf]
        %v2647 = vld [vmem:[%s3 + $0x34] sm:$0xf]
        %v2648 = vld [vmem:[%s3 + $0x38] sm:$0xf]
        %v2649 = vld [vmem:[%s3 + $0x3c] sm:$0xf]
        %v2650 = vld [vmem:[%s3 + $0x40] sm:$0xf]
        %v2651 = vld [vmem:[%s3 + $0x44] sm:$0xf]
        %v2652 = vld [vmem:[%s3 + $0x48] sm:$0xf]
        %v2653 = vld [vmem:[%s3 + $0x4c] sm:$0xf]
        %v2654 = vld [vmem:[%s3 + $0x50] sm:$0xf]
        %v2655 = vld [vmem:[%s3 + $0x54] sm:$0xf]
        %v2656 = vld [vmem:[%s3 + $0x58] sm:$0xf]
        %v2657 = vld [vmem:[%s3 + $0x5c] sm:$0xf]
        %v2658 = vld [vmem:[%s3 + $0x60] sm:$0xf]
        %v2659 = vld [vmem:[%s3 + $0x64] sm:$0xf]
        %v2660 = vld [vmem:[%s3 + $0x68] sm:$0xf]
        %v2661 = vld [vmem:[%s3 + $0x6c] sm:$0xf]
        %v2662 = vld [vmem:[%s3 + $0x70] sm:$0xf]
        %v2663 = vld [vmem:[%s3 + $0x74] sm:$0xf]
        %v2664 = vld [vmem:[%s3 + $0x78] sm:$0xf]
        %v2665 = vld [vmem:[%s3 + $0x7c] sm:$0xf]
        %v2666 = vld [vmem:[%s3 + $0x80] sm:$0xf]
        %v2667 = vld [vmem:[%s3 + $0x84] sm:$0xf]
        %v2668 = vld [vmem:[%s3 + $0x88] sm:$0xf]
        %v2669 = vld [vmem:[%s3 + $0x8c] sm:$0xf]
        %v2670 = vld [vmem:[%s3 + $0x90] sm:$0xf]
        %v2671 = vld [vmem:[%s3 + $0x94] sm:$0xf]
        %v2672 = vld [vmem:[%s3 + $0x98] sm:$0xf]
        %v2673 = vld [vmem:[%s3 + $0x9c] sm:$0xf]
        %v2674 = vld [vmem:[%s3 + $0xa0] sm:$0xf]
        %v2675 = vld [vmem:[%s3 + $0xa4] sm:$0xf]
        %v2676 = vld [vmem:[%s3 + $0xa8] sm:$0xf]
        %v2677 = vld [vmem:[%s3 + $0xac] sm:$0xf]
        %v2678 = vld [vmem:[%s3 + $0xb0] sm:$0xf]
        %v2679 = vld [vmem:[%s3 + $0xb4] sm:$0xf]
        %v2680 = vld [vmem:[%s3 + $0xb8] sm:$0xf]
        %v2681 = vld [vmem:[%s3 + $0xbc] sm:$0xf]
        %v2682 = vld [vmem:[%s3 + $0xc0] sm:$0xf]
        %v2683 = vld [vmem:[%s3 + $0xc4] sm:$0xf]
        %v2684 = vld [vmem:[%s3 + $0xc8] sm:$0xf]
        %v2685 = vld [vmem:[%s3 + $0xcc] sm:$0xf]
        %v2686 = vld [vmem:[%s3 + $0xd0] sm:$0xf]
        %v2687 = vld [vmem:[%s3 + $0xd4] sm:$0xf]
        %v2688 = vld [vmem:[%s3 + $0xd8] sm:$0xf]
        %v2689 = vld [vmem:[%s3 + $0xdc] sm:$0xf]
        %v2690 = vld [vmem:[%s3 + $0xe0] sm:$0xf]
        %v2691 = vld [vmem:[%s3 + $0xe4] sm:$0xf]
        %v2692 = vld [vmem:[%s3 + $0xe8] sm:$0xf]
        %v2693 = vld [vmem:[%s3 + $0xec] sm:$0xf]
        %v2694 = vld [vmem:[%s3 + $0xf0] sm:$0xf]
        %v2695 = vld [vmem:[%s3 + $0xf4] sm:$0xf]
        %v2696 = vld [vmem:[%s3 + $0xf8] sm:$0xf]
        %v2697 = vld [vmem:[%s3 + $0xfc] sm:$0xf]
        %v2698 = vld [vmem:[%s4] sm:$0x1]
        %v2700 = vlaneseq
        %v2701 = vshrl.u32 %v2700, 7
        %v2702 = vsub.s32 0, %v2701
        %v2703 = vrot.slane %v2698, %v2702
        %v2769 = vunpack.c.l.b16 %v2634
        %v2770 = vunpack.c.l.b16 %v2635
        %v2771 = vunpack.c.l.b16 %v2636
        %v2772 = vunpack.c.l.b16 %v2637
        %v2773 = vunpack.c.l.b16 %v2638
        %v2774 = vunpack.c.l.b16 %v2639
        %v2775 = vunpack.c.l.b16 %v2640
        %v2776 = vunpack.c.l.b16 %v2641
        %v2777 = vunpack.c.l.b16 %v2642
        %v2778 = vunpack.c.l.b16 %v2643
        %v2779 = vunpack.c.l.b16 %v2644
        %v2780 = vunpack.c.l.b16 %v2645
        %v2781 = vunpack.c.l.b16 %v2646
        %v2782 = vunpack.c.l.b16 %v2647
        %v2783 = vunpack.c.l.b16 %v2648
        %v2784 = vunpack.c.l.b16 %v2649
        %v2785 = vunpack.c.l.b16 %v2650
        %v2786 = vunpack.c.l.b16 %v2651
        %v2787 = vunpack.c.l.b16 %v2652
        %v2788 = vunpack.c.l.b16 %v2653
        %v2789 = vunpack.c.l.b16 %v2654
        %v2790 = vunpack.c.l.b16 %v2655
        %v2791 = vunpack.c.l.b16 %v2656
        %v2792 = vunpack.c.l.b16 %v2657
        %v2793 = vunpack.c.l.b16 %v2658
        %v2794 = vunpack.c.l.b16 %v2659
        %v2795 = vunpack.c.l.b16 %v2660
        %v2796 = vunpack.c.l.b16 %v2661
        %v2797 = vunpack.c.l.b16 %v2662
        %v2798 = vunpack.c.l.b16 %v2663
        %v2799 = vunpack.c.l.b16 %v2664
        %v2800 = vunpack.c.l.b16 %v2665
        %v2801 = vunpack.c.l.b16 %v2666
        %v2802 = vunpack.c.l.b16 %v2667
        %v2803 = vunpack.c.l.b16 %v2668
        %v2804 = vunpack.c.l.b16 %v2669
        %v2805 = vunpack.c.l.b16 %v2670
        %v2806 = vunpack.c.l.b16 %v2671
        %v2807 = vunpack.c.l.b16 %v2672
        %v2808 = vunpack.c.l.b16 %v2673
        %v2809 = vunpack.c.l.b16 %v2674
        %v2810 = vunpack.c.l.b16 %v2675
        %v2811 = vunpack.c.l.b16 %v2676
        %v2812 = vunpack.c.l.b16 %v2677
        %v2813 = vunpack.c.l.b16 %v2678
        %v2814 = vunpack.c.l.b16 %v2679
        %v2815 = vunpack.c.l.b16 %v2680
        %v2816 = vunpack.c.l.b16 %v2681
        %v2817 = vunpack.c.l.b16 %v2682
        %v2818 = vunpack.c.l.b16 %v2683
        %v2819 = vunpack.c.l.b16 %v2684
        %v2820 = vunpack.c.l.b16 %v2685
        %v2821 = vunpack.c.l.b16 %v2686
        %v2822 = vunpack.c.l.b16 %v2687
        %v2823 = vunpack.c.l.b16 %v2688
        %v2824 = vunpack.c.l.b16 %v2689
        %v2825 = vunpack.c.l.b16 %v2690
        %v2826 = vunpack.c.l.b16 %v2691
        %v2827 = vunpack.c.l.b16 %v2692
        %v2828 = vunpack.c.l.b16 %v2693
        %v2829 = vunpack.c.l.b16 %v2694
        %v2830 = vunpack.c.l.b16 %v2695
        %v2831 = vunpack.c.l.b16 %v2696
        %v2832 = vunpack.c.l.b16 %v2697
        %v2833 = vpack.c.b16 %v2770, %v2769
        %v2834 = vpack.c.b16 %v2772, %v2771
        %v2835 = vpack.c.b16 %v2774, %v2773
        %v2836 = vpack.c.b16 %v2776, %v2775
        %v2837 = vpack.c.b16 %v2778, %v2777
        %v2838 = vpack.c.b16 %v2780, %v2779
        %v2839 = vpack.c.b16 %v2782, %v2781
        %v2840 = vpack.c.b16 %v2784, %v2783
        %v2841 = vpack.c.b16 %v2786, %v2785
        %v2842 = vpack.c.b16 %v2788, %v2787
        %v2843 = vpack.c.b16 %v2790, %v2789
        %v2844 = vpack.c.b16 %v2792, %v2791
        %v2845 = vpack.c.b16 %v2794, %v2793
        %v2846 = vpack.c.b16 %v2796, %v2795
        %v2847 = vpack.c.b16 %v2798, %v2797
        %v2848 = vpack.c.b16 %v2800, %v2799
        %v2849 = vpack.c.b16 %v2802, %v2801
        %v2850 = vpack.c.b16 %v2804, %v2803
        %v2851 = vpack.c.b16 %v2806, %v2805
        %v2852 = vpack.c.b16 %v2808, %v2807
        %v2853 = vpack.c.b16 %v2810, %v2809
        %v2854 = vpack.c.b16 %v2812, %v2811
        %v2855 = vpack.c.b16 %v2814, %v2813
        %v2856 = vpack.c.b16 %v2816, %v2815
        %v2857 = vpack.c.b16 %v2818, %v2817
        %v2858 = vpack.c.b16 %v2820, %v2819
        %v2859 = vpack.c.b16 %v2822, %v2821
        %v2860 = vpack.c.b16 %v2824, %v2823
        %v2861 = vpack.c.b16 %v2826, %v2825
        %v2862 = vpack.c.b16 %v2828, %v2827
        %v2863 = vpack.c.b16 %v2830, %v2829
        %v2864 = vpack.c.b16 %v2832, %v2831
        %2897 = vmatprep.subr.bf16.mxu0 0
        %2898 = vmatpush1.bf16.msra.mxu0 %v2833
        %2899 = vmatprep.subr.bf16.mxu0 0
        %2900 = vmatpush1.bf16.msra.mxu0 %v2834
        %2901 = vmatprep.subr.bf16.mxu0 0
        %2902 = vmatpush1.bf16.msra.mxu0 %v2835
        %2903 = vmatprep.subr.bf16.mxu0 0
        %2904 = vmatpush1.bf16.msra.mxu0 %v2836
        %2905 = vmatprep.subr.bf16.mxu0 0
        %2906 = vmatpush1.bf16.msra.mxu0 %v2837
        %2907 = vmatprep.subr.bf16.mxu0 0
        %2908 = vmatpush1.bf16.msra.mxu0 %v2838
        %2909 = vmatprep.subr.bf16.mxu0 0
        %2910 = vmatpush1.bf16.msra.mxu0 %v2839
        %2911 = vmatprep.subr.bf16.mxu0 0
        %2912 = vmatpush1.bf16.msra.mxu0 %v2840
        %2913 = vmatprep.subr.bf16.mxu0 0
        %2914 = vmatpush1.bf16.msra.mxu0 %v2841
        %2915 = vmatprep.subr.bf16.mxu0 0
        %2916 = vmatpush1.bf16.msra.mxu0 %v2842
        %2917 = vmatprep.subr.bf16.mxu0 0
        %2918 = vmatpush1.bf16.msra.mxu0 %v2843
        %2919 = vmatprep.subr.bf16.mxu0 0
        %2920 = vmatpush1.bf16.msra.mxu0 %v2844
        %2921 = vmatprep.subr.bf16.mxu0 0
        %2922 = vmatpush1.bf16.msra.mxu0 %v2845
        %2923 = vmatprep.subr.bf16.mxu0 0
        %2924 = vmatpush1.bf16.msra.mxu0 %v2846
        %2925 = vmatprep.subr.bf16.mxu0 0
        %2926 = vmatpush1.bf16.msra.mxu0 %v2847
        %2927 = vmatprep.subr.bf16.mxu0 0
        %2928 = vmatpush1.bf16.msra.mxu0 %v2848
        %2929 = vmatprep.mubr.bf16.mxu0 %v2627
        %2930 = vmatmul.mubr.bf16.gmra.mrb[0].mxu0 %v2626
        %v2931 = vpop.f32.mrb[0].mxu0
        %v2932 = vadd.f32 %v2703, %v2931
        %v2933 = vpop.f32.mrb[0].mxu0
        %v2934 = vpop.f32.mrb[0].mxu0
        %v2935 = vadd.f32 %v2703, %v2934
        %v2936 = vpop.f32.mrb[0].mxu0
        %2937 = vmatprep.mubr.bf16.mxu0 %v2631
        %2938 = vmatmul.mubr.bf16.gmra.mrb[0].mxu0 %v2630
        %v2939 = vpop.f32.mrb[0].mxu0
        %v2940 = vadd.f32 %v2703, %v2939
        %v2941 = vpop.f32.mrb[0].mxu0
        %v2942 = vpop.f32.mrb[0].mxu0
        %v2943 = vadd.f32 %v2703, %v2942
        %v2944 = vpop.f32.mrb[0].mxu0
        %2945 = vdwg.mxu0
        %2946 = vmatprep.subr.bf16.mxu0 0
        %2947 = vmatpush1.bf16.msra.mxu0 %v2849
        %2948 = vmatprep.subr.bf16.mxu0 0
        %2949 = vmatpush1.bf16.msra.mxu0 %v2850
        %2950 = vmatprep.subr.bf16.mxu0 0
        %2951 = vmatpush1.bf16.msra.mxu0 %v2851
        %2952 = vmatprep.subr.bf16.mxu0 0
        %2953 = vmatpush1.bf16.msra.mxu0 %v2852
        %2954 = vmatprep.subr.bf16.mxu0 0
        %2955 = vmatpush1.bf16.msra.mxu0 %v2853
        %2956 = vmatprep.subr.bf16.mxu0 0
        %2957 = vmatpush1.bf16.msra.mxu0 %v2854
        %2958 = vmatprep.subr.bf16.mxu0 0
        %2959 = vmatpush1.bf16.msra.mxu0 %v2855
        %2960 = vmatprep.subr.bf16.mxu0 0
        %2961 = vmatpush1.bf16.msra.mxu0 %v2856
        %2962 = vmatprep.subr.bf16.mxu0 0
        %2963 = vmatpush1.bf16.msra.mxu0 %v2857
        %2964 = vmatprep.subr.bf16.mxu0 0
        %2965 = vmatpush1.bf16.msra.mxu0 %v2858
        %2966 = vmatprep.subr.bf16.mxu0 0
        %2967 = vmatpush1.bf16.msra.mxu0 %v2859
        %2968 = vmatprep.subr.bf16.mxu0 0
        %2969 = vmatpush1.bf16.msra.mxu0 %v2860
        %2970 = vmatprep.subr.bf16.mxu0 0
        %2971 = vmatpush1.bf16.msra.mxu0 %v2861
        %2972 = vmatprep.subr.bf16.mxu0 0
        %2973 = vmatpush1.bf16.msra.mxu0 %v2862
        %2974 = vmatprep.subr.bf16.mxu0 0
        %2975 = vmatpush1.bf16.msra.mxu0 %v2863
        %2976 = vmatprep.subr.bf16.mxu0 0
        %2977 = vmatpush1.bf16.msra.mxu0 %v2864
        %2978 = vmatprep.mubr.bf16.mxu0 %v2629
        %2979 = vmatmul.mubr.bf16.gmra.mrb[0].mxu0 %v2628
        %v2980 = vpop.f32.mrb[0].mxu0
        %v2981 = vadd.f32 %v2932, %v2980
        %v2982 = vpop.f32.mrb[0].mxu0
        %v2983 = vpop.f32.mrb[0].mxu0
        %v2984 = vadd.f32 %v2935, %v2983
        %v2985 = vpop.f32.mrb[0].mxu0
        %2986 = vmatprep.mubr.bf16.mxu0 %v2633
        %2987 = vmatmul.mubr.bf16.gmra.mrb[0].mxu0 %v2632
        %v2988 = vpop.f32.mrb[0].mxu0
        %v2989 = vadd.f32 %v2940, %v2988
        %v2990 = vpop.f32.mrb[0].mxu0
        %v2991 = vpop.f32.mrb[0].mxu0
        %v2992 = vadd.f32 %v2943, %v2991
        %v2993 = vpop.f32.mrb[0].mxu0
        %2994 = vdwg.mxu0
        %v2995 = vpack.c.bf16 %v2984, %v2981
        %v2996 = vpack.c.bf16 %v2992, %v2989
        %v2997 = vld [vmem:[%s5] sm:$0xff]
        %v2998 = vld [vmem:[%s5 + $0x8] sm:$0xff]
        %v2999 = vld [vmem:[%s5 + $0x10] sm:$0xff]
        %v3000 = vld [vmem:[%s5 + $0x18] sm:$0xff]
        %v3001 = vld [vmem:[%s5 + $0x20] sm:$0xff]
        %v3002 = vld [vmem:[%s5 + $0x28] sm:$0xff]
        %v3003 = vld [vmem:[%s5 + $0x30] sm:$0xff]
        %v3004 = vld [vmem:[%s5 + $0x38] sm:$0xff]
        %v3005 = vld [vmem:[%s6] sm:$0x3]
        %v3007 = vlaneseq
        %v3008 = vshrl.u32 %v3007, 7
        %v3009 = vsub.s32 0, %v3008
        %v3010 = vrot.slane %v3005, %v3009
        %v3011 = vlaneseq
        %v3012 = vshrl.u32 %v3011, 7
        %v3013 = vsub.s32 1, %v3012
        %v3014 = vrot.slane %v3005, %v3013
        %v3025 = vunpack.c.l.b16 %v2997
        %v3026 = vunpack.c.h.b16 %v2997
        %v3027 = vunpack.c.l.b16 %v2998
        %v3028 = vunpack.c.h.b16 %v2998
        %v3029 = vunpack.c.l.b16 %v2999
        %v3030 = vunpack.c.h.b16 %v2999
        %v3031 = vunpack.c.l.b16 %v3000
        %v3032 = vunpack.c.h.b16 %v3000
        %v3033 = vunpack.c.l.b16 %v3001
        %v3034 = vunpack.c.h.b16 %v3001
        %v3035 = vunpack.c.l.b16 %v3002
        %v3036 = vunpack.c.h.b16 %v3002
        %v3037 = vunpack.c.l.b16 %v3003
        %v3038 = vunpack.c.h.b16 %v3003
        %v3039 = vunpack.c.l.b16 %v3004
        %v3040 = vunpack.c.h.b16 %v3004
        %v3041 = vpack.c.b16 %v3027, %v3025
        %v3042 = vpack.c.b16 %v3028, %v3026
        %v3043 = vpack.c.b16 %v3031, %v3029
        %v3044 = vpack.c.b16 %v3032, %v3030
        %v3045 = vpack.c.b16 %v3035, %v3033
        %v3046 = vpack.c.b16 %v3036, %v3034
        %v3047 = vpack.c.b16 %v3039, %v3037
        %v3048 = vpack.c.b16 %v3040, %v3038
        %vm3057 = vcmask 523264
        %v3059 = vsel %vm3057, %v2995, 0
        %v3062 = vsel %vm3057, %v2996, 0
        %3064 = vmatprep.subr.bf16.mxu0 %v3042
        %3065 = vmatpush1.bf16.msra.mxu0 %v3041
        %3066 = vmatprep.subr.bf16.mxu0 %v3044
        %3067 = vmatpush1.bf16.msra.mxu0 %v3043
        %3068 = vmatprep.subr.bf16.mxu0 %v3046
        %3069 = vmatpush1.bf16.msra.mxu0 %v3045
        %3070 = vmatprep.subr.bf16.mxu0 %v3048
        %3071 = vmatpush1.bf16.msra.mxu0 %v3047
        %3072 = vmatprep.subr.bf16.mxu0 0
        %3073 = vmatpush1.bf16.msra.mxu0 0
        %3074 = vmatprep.subr.bf16.mxu0 0
        %3075 = vmatpush1.bf16.msra.mxu0 0
        %3076 = vmatprep.subr.bf16.mxu0 0
        %3077 = vmatpush1.bf16.msra.mxu0 0
        %3078 = vmatprep.subr.bf16.mxu0 0
        %3079 = vmatpush1.bf16.msra.mxu0 0
        %3080 = vmatprep.subr.bf16.mxu0 0
        %3081 = vmatpush1.bf16.msra.mxu0 0
        %3082 = vmatprep.subr.bf16.mxu0 0
        %3083 = vmatpush1.bf16.msra.mxu0 0
        %3084 = vmatprep.subr.bf16.mxu0 0
        %3085 = vmatpush1.bf16.msra.mxu0 0
        %3086 = vmatprep.subr.bf16.mxu0 0
        %3087 = vmatpush1.bf16.msra.mxu0 0
        %3088 = vmatprep.subr.bf16.mxu0 0
        %3089 = vmatpush1.bf16.msra.mxu0 0
        %3090 = vmatprep.subr.bf16.mxu0 0
        %3091 = vmatpush1.bf16.msra.mxu0 0
        %3092 = vmatprep.subr.bf16.mxu0 0
        %3093 = vmatpush1.bf16.msra.mxu0 0
        %3094 = vmatprep.subr.bf16.mxu0 0
        %3095 = vmatpush1.bf16.msra.mxu0 0
        %3096 = vmatprep.mubr.bf16.mxu0 0
        %3097 = vmatmul.mubr.bf16.gmra.mrb[0].mxu0 %v3059
        %v3098 = vpop.f32.mrb[0].mxu0
        %v3099 = vadd.f32 %v3010, %v3098
        %v3100 = vpop.f32.mrb[0].mxu0
        %v3101 = vadd.f32 %v3014, %v3100
        %v3102 = vpop.f32.mrb[0].mxu0
        %v3103 = vadd.f32 %v3010, %v3102
        %v3104 = vpop.f32.mrb[0].mxu0
        %v3105 = vadd.f32 %v3014, %v3104
        %3106 = vmatprep.mubr.bf16.mxu0 0
        %3107 = vmatmul.mubr.bf16.gmra.mrb[0].mxu0 %v3062
        %v3108 = vpop.f32.mrb[0].mxu0
        %v3109 = vadd.f32 %v3010, %v3108
        %v3110 = vpop.f32.mrb[0].mxu0
        %v3111 = vadd.f32 %v3014, %v3110
        %v3112 = vpop.f32.mrb[0].mxu0
        %v3113 = vadd.f32 %v3010, %v3112
        %v3114 = vpop.f32.mrb[0].mxu0
        %v3115 = vadd.f32 %v3014, %v3114
        %3116 = vdwg.mxu0
        %v3117 = vld [vmem:[%s7] sm:$0xf]
        %v3118 = vld [vmem:[%s7 + $0x4] sm:$0xf]
        %v3119 = vld [vmem:[%s7 + $0x8] sm:$0xf]
        %v3120 = vld [vmem:[%s7 + $0xc] sm:$0xf]
        %v3121 = vld [vmem:[%s7 + $0x10] sm:$0xf]
        %v3122 = vld [vmem:[%s7 + $0x14] sm:$0xf]
        %v3123 = vld [vmem:[%s7 + $0x18] sm:$0xf]
        %v3124 = vld [vmem:[%s7 + $0x1c] sm:$0xf]
        %v3125 = vpack.c.bf16 %v3103, %v3099
        %v3126 = vpack.c.bf16 %v3113, %v3109
        %v3127 = vpack.c.bf16 %v3105, %v3101
        %v3128 = vpack.c.bf16 %v3115, %v3111
        %3131 = vrot.lane.b32.xlu0 %v3125, 64
        %v3132 = vpop.permute.xlu0 %3131
        %3133 = vrot.lane.b32.xlu0 %v3126, 64
        %v3134 = vpop.permute.xlu0 %3133
        %vm3135 = vcmask 130048
        %v3137 = vsel %vm3135, %v3125, 0
        %v3140 = vsel %vm3135, %v3126, 0
        %v3143 = vsel %vm3135, %v3132, 0
        %v3146 = vsel %vm3135, %v3134, 0
        %3148 = vmatprep.subr.bf16.mxu0 0
        %3149 = vmatpush1.bf16.xpose.msra.mxu0 %v3143
        %3150 = vmatprep.subr.bf16.mxu0 0
        %3151 = vmatpush1.bf16.xpose.msra.mxu0 %v3146
        %3152 = vmatprep.subr.bf16.mxu0 0
        %3153 = vmatpush1.bf16.xpose.msra.mxu0 0
        %3154 = vmatprep.subr.bf16.mxu0 0
        %3155 = vmatpush1.bf16.xpose.msra.mxu0 0
        %3156 = vmatprep.subr.bf16.mxu0 0
        %3157 = vmatpush1.bf16.xpose.msra.mxu0 0
        %3158 = vmatprep.subr.bf16.mxu0 0
        %3159 = vmatpush1.bf16.xpose.msra.mxu0 0
        %3160 = vmatprep.subr.bf16.mxu0 0
        %3161 = vmatpush1.bf16.xpose.msra.mxu0 0
        %3162 = vmatprep.subr.bf16.mxu0 0
        %3163 = vmatpush1.bf16.xpose.msra.mxu0 0
        %3164 = vmatprep.subr.bf16.mxu0 0
        %3165 = vmatpush1.bf16.xpose.msra.mxu0 0
        %3166 = vmatprep.subr.bf16.mxu0 0
        %3167 = vmatpush1.bf16.xpose.msra.mxu0 0
        %3168 = vmatprep.subr.bf16.mxu0 0
        %3169 = vmatpush1.bf16.xpose.msra.mxu0 0
        %3170 = vmatprep.subr.bf16.mxu0 0
        %3171 = vmatpush1.bf16.xpose.msra.mxu0 0
        %3172 = vmatprep.subr.bf16.mxu0 0
        %3173 = vmatpush1.bf16.xpose.msra.mxu0 0
        %3174 = vmatprep.subr.bf16.mxu0 0
        %3175 = vmatpush1.bf16.xpose.msra.mxu0 0
        %3176 = vmatprep.subr.bf16.mxu0 0
        %3177 = vmatpush1.bf16.xpose.msra.mxu0 0
        %3178 = vmatprep.subr.bf16.mxu0 0
        %3179 = vmatpush1.bf16.xpose.msra.mxu0 0
        %3180 = vmatprep.mubr.bf16.mxu0 0
        %3181 = vmatmul.mubr.bf16.gmra.mrb[0].mxu0 %v3137
        %v3182 = vpop.f32.mrb[0].mxu0
        %v3183 = vadd.f32 0.0, %v3182
        %v3184 = vpop.f32.mrb[0].mxu0
        %v3185 = vpop.f32.mrb[0].mxu0
        %v3186 = vadd.f32 0.0, %v3185
        %v3187 = vpop.f32.mrb[0].mxu0
        %3188 = vmatprep.mubr.bf16.mxu0 0
        %3189 = vmatmul.mubr.bf16.gmra.mrb[0].mxu0 %v3140
        %v3190 = vpop.f32.mrb[0].mxu0
        %v3191 = vadd.f32 0.0, %v3190
        %v3192 = vpop.f32.mrb[0].mxu0
        %v3193 = vpop.f32.mrb[0].mxu0
        %v3194 = vadd.f32 0.0, %v3193
        %v3195 = vpop.f32.mrb[0].mxu0
        %3196 = vdwg.mxu0
        %vm3197 = vcmask 261120
        %v3198 = vsel %vm3197, %v3183, -inf
        %3199 = vmax.xlane.f32.xlu0 %v3198
        %v3200 = vpop.xlane.xlu0 %3199
        %v3201 = vsel %vm3197, %v3186, -inf
        %3202 = vmax.xlane.f32.xlu0 %v3201
        %v3203 = vpop.xlane.xlu0 %3202
        %v3204 = vsel %vm3197, %v3191, -inf
        %3205 = vmax.xlane.f32.xlu0 %v3204
        %v3206 = vpop.xlane.xlu0 %3205
        %v3207 = vsel %vm3197, %v3194, -inf
        %3208 = vmax.xlane.f32.xlu0 %v3207
        %v3209 = vpop.xlane.xlu0 %3208
        %v3210 = vsub.f32 %v3183, %v3200
        %v3211 = vsub.f32 %v3186, %v3203
        %v3212 = vsub.f32 %v3191, %v3206
        %v3213 = vsub.f32 %v3194, %v3209
        %v3214 = vmul.f32 %v3210, 1.442695
        %v3215 = vpow.pop %v3214
        %v3216 = vmul.f32 %v3211, 1.442695
        %v3217 = vpow.pop %v3216
        %v3218 = vmul.f32 %v3212, 1.442695
        %v3219 = vpow.pop %v3218
        %v3220 = vmul.f32 %v3213, 1.442695
        %v3221 = vpow.pop %v3220
        %v3222 = vsel %vm3197, %v3215, 0.0
        %3223 = vadd.xlane.f32.xlu0 %v3222
        %v3224 = vpop.xlane.xlu0 %3223
        %v3225 = vsel %vm3197, %v3217, 0.0
        %3226 = vadd.xlane.f32.xlu0 %v3225
        %v3227 = vpop.xlane.xlu0 %3226
        %v3228 = vsel %vm3197, %v3219, 0.0
        %3229 = vadd.xlane.f32.xlu0 %v3228
        %v3230 = vpop.xlane.xlu0 %3229
        %v3231 = vsel %vm3197, %v3221, 0.0
        %3232 = vadd.xlane.f32.xlu0 %v3231
        %v3233 = vpop.xlane.xlu0 %3232
        %v3234 = vrcp.pop %v3224
        %v3235 = vrcp.pop %v3227
        %v3236 = vrcp.pop %v3230
        %v3237 = vrcp.pop %v3233
        %v3238 = vmul.f32 %v3215, %v3234
        %v3239 = vmul.f32 %v3217, %v3235
        %v3240 = vmul.f32 %v3219, %v3236
        %v3241 = vmul.f32 %v3221, %v3237
        %v3242 = vpack.c.bf16 %v3239, %v3238
        %v3243 = vpack.c.bf16 %v3241, %v3240
        %v3245 = vsel %vm3197, %v3242, 0
        %v3248 = vsel %vm3197, %v3243, 0
        %3250 = vmatprep.subr.bf16.mxu0 0
        %3251 = vmatpush1.bf16.msra.mxu0 %v3127
        %3252 = vmatprep.subr.bf16.mxu0 0
        %3253 = vmatpush1.bf16.msra.mxu0 %v3128
        %3254 = vmatprep.subr.bf16.mxu0 0
        %3255 = vmatpush1.bf16.msra.mxu0 0
        %3256 = vmatprep.subr.bf16.mxu0 0
        %3257 = vmatpush1.bf16.msra.mxu0 0
        %3258 = vmatprep.subr.bf16.mxu0 0
        %3259 = vmatpush1.bf16.msra.mxu0 0
        %3260 = vmatprep.subr.bf16.mxu0 0
        %3261 = vmatpush1.bf16.msra.mxu0 0
        %3262 = vmatprep.subr.bf16.mxu0 0
        %3263 = vmatpush1.bf16.msra.mxu0 0
        %3264 = vmatprep.subr.bf16.mxu0 0
        %3265 = vmatpush1.bf16.msra.mxu0 0
        %3266 = vmatprep.subr.bf16.mxu0 0
        %3267 = vmatpush1.bf16.msra.mxu0 0
        %3268 = vmatprep.subr.bf16.mxu0 0
        %3269 = vmatpush1.bf16.msra.mxu0 0
        %3270 = vmatprep.subr.bf16.mxu0 0
        %3271 = vmatpush1.bf16.msra.mxu0 0
        %3272 = vmatprep.subr.bf16.mxu0 0
        %3273 = vmatpush1.bf16.msra.mxu0 0
        %3274 = vmatprep.subr.bf16.mxu0 0
        %3275 = vmatpush1.bf16.msra.mxu0 0
        %3276 = vmatprep.subr.bf16.mxu0 0
        %3277 = vmatpush1.bf16.msra.mxu0 0
        %3278 = vmatprep.subr.bf16.mxu0 0
        %3279 = vmatpush1.bf16.msra.mxu0 0
        %3280 = vmatprep.subr.bf16.mxu0 0
        %3281 = vmatpush1.bf16.msra.mxu0 0
        %3282 = vmatprep.mubr.bf16.mxu0 0
        %3283 = vmatmul.mubr.bf16.gmra.mrb[0].mxu0 %v3245
        %v3284 = vpop.f32.mrb[0].mxu0
        %v3285 = vadd.f32 0.0, %v3284
        %v3286 = vpop.f32.mrb[0].mxu0
        %v3287 = vpop.f32.mrb[0].mxu0
        %v3288 = vadd.f32 0.0, %v3287
        %v3289 = vpop.f32.mrb[0].mxu0
        %3290 = vmatprep.mubr.bf16.mxu0 0
        %3291 = vmatmul.mubr.bf16.gmra.mrb[0].mxu0 %v3248
        %v3292 = vpop.f32.mrb[0].mxu0
        %v3293 = vadd.f32 0.0, %v3292
        %v3294 = vpop.f32.mrb[0].mxu0
        %v3295 = vpop.f32.mrb[0].mxu0
        %v3296 = vadd.f32 0.0, %v3295
        %v3297 = vpop.f32.mrb[0].mxu0
        %3298 = vdwg.mxu0
        %v3299 = vpack.c.bf16 %v3288, %v3285
        %v3300 = vpack.c.bf16 %v3296, %v3293
        %3301 = vrot.lane.b32.xlu0 %v3125, 112
        %v3302 = vpop.permute.xlu0 %3301
        %3303 = vrot.lane.b32.xlu0 %v3126, 112
        %v3304 = vpop.permute.xlu0 %3303
        %3305 = vrot.lane.b32.xlu0 %v3125, 48
        %v3306 = vpop.permute.xlu0 %3305
        %3307 = vrot.lane.b32.xlu0 %v3126, 48
        %v3308 = vpop.permute.xlu0 %3307
        %v3310 = vsel %vm3135, %v3302, 0
        %v3313 = vsel %vm3135, %v3304, 0
        %v3316 = vsel %vm3135, %v3306, 0
        %v3319 = vsel %vm3135, %v3308, 0
        %3321 = vmatprep.subr.bf16.mxu0 0
        %3322 = vmatpush1.bf16.xpose.msra.mxu0 %v3316
        %3323 = vmatprep.subr.bf16.mxu0 0
        %3324 = vmatpush1.bf16.xpose.msra.mxu0 %v3319
        %3325 = vmatprep.subr.bf16.mxu0 0
        %3326 = vmatpush1.bf16.xpose.msra.mxu0 0
        %3327 = vmatprep.subr.bf16.mxu0 0
        %3328 = vmatpush1.bf16.xpose.msra.mxu0 0
        %3329 = vmatprep.subr.bf16.mxu0 0
        %3330 = vmatpush1.bf16.xpose.msra.mxu0 0
        %3331 = vmatprep.subr.bf16.mxu0 0
        %3332 = vmatpush1.bf16.xpose.msra.mxu0 0
        %3333 = vmatprep.subr.bf16.mxu0 0
        %3334 = vmatpush1.bf16.xpose.msra.mxu0 0
        %3335 = vmatprep.subr.bf16.mxu0 0
        %3336 = vmatpush1.bf16.xpose.msra.mxu0 0
        %3337 = vmatprep.subr.bf16.mxu0 0
        %3338 = vmatpush1.bf16.xpose.msra.mxu0 0
        %3339 = vmatprep.subr.bf16.mxu0 0
        %3340 = vmatpush1.bf16.xpose.msra.mxu0 0
        %3341 = vmatprep.subr.bf16.mxu0 0
        %3342 = vmatpush1.bf16.xpose.msra.mxu0 0
        %3343 = vmatprep.subr.bf16.mxu0 0
        %3344 = vmatpush1.bf16.xpose.msra.mxu0 0
        %3345 = vmatprep.subr.bf16.mxu0 0
        %3346 = vmatpush1.bf16.xpose.msra.mxu0 0
        %3347 = vmatprep.subr.bf16.mxu0 0
        %3348 = vmatpush1.bf16.xpose.msra.mxu0 0
        %3349 = vmatprep.subr.bf16.mxu0 0
        %3350 = vmatpush1.bf16.xpose.msra.mxu0 0
        %3351 = vmatprep.subr.bf16.mxu0 0
        %3352 = vmatpush1.bf16.xpose.msra.mxu0 0
        %3353 = vmatprep.mubr.bf16.mxu0 0
        %3354 = vmatmul.mubr.bf16.gmra.mrb[0].mxu0 %v3310
        %v3355 = vpop.f32.mrb[0].mxu0
        %v3356 = vadd.f32 0.0, %v3355
        %v3357 = vpop.f32.mrb[0].mxu0
        %v3358 = vpop.f32.mrb[0].mxu0
        %v3359 = vadd.f32 0.0, %v3358
        %v3360 = vpop.f32.mrb[0].mxu0
        %3361 = vmatprep.mubr.bf16.mxu0 0
        %3362 = vmatmul.mubr.bf16.gmra.mrb[0].mxu0 %v3313
        %v3363 = vpop.f32.mrb[0].mxu0
        %v3364 = vadd.f32 0.0, %v3363
        %v3365 = vpop.f32.mrb[0].mxu0
        %v3366 = vpop.f32.mrb[0].mxu0
        %v3367 = vadd.f32 0.0, %v3366
        %v3368 = vpop.f32.mrb[0].mxu0
        %3369 = vdwg.mxu0
        %v3370 = vsel %vm3197, %v3356, -inf
        %3371 = vmax.xlane.f32.xlu0 %v3370
        %v3372 = vpop.xlane.xlu0 %3371
        %v3373 = vsel %vm3197, %v3359, -inf
        %3374 = vmax.xlane.f32.xlu0 %v3373
        %v3375 = vpop.xlane.xlu0 %3374
        %v3376 = vsel %vm3197, %v3364, -inf
        %3377 = vmax.xlane.f32.xlu0 %v3376
        %v3378 = vpop.xlane.xlu0 %3377
        %v3379 = vsel %vm3197, %v3367, -inf
        %3380 = vmax.xlane.f32.xlu0 %v3379
        %v3381 = vpop.xlane.xlu0 %3380
        %v3382 = vsub.f32 %v3356, %v3372
        %v3383 = vsub.f32 %v3359, %v3375
        %v3384 = vsub.f32 %v3364, %v3378
        %v3385 = vsub.f32 %v3367, %v3381
        %v3386 = vmul.f32 %v3382, 1.442695
        %v3387 = vpow.pop %v3386
        %v3388 = vmul.f32 %v3383, 1.442695
        %v3389 = vpow.pop %v3388
        %v3390 = vmul.f32 %v3384, 1.442695
        %v3391 = vpow.pop %v3390
        %v3392 = vmul.f32 %v3385, 1.442695
        %v3393 = vpow.pop %v3392
        %v3394 = vsel %vm3197, %v3387, 0.0
        %3395 = vadd.xlane.f32.xlu0 %v3394
        %v3396 = vpop.xlane.xlu0 %3395
        %v3397 = vsel %vm3197, %v3389, 0.0
        %3398 = vadd.xlane.f32.xlu0 %v3397
        %v3399 = vpop.xlane.xlu0 %3398
        %v3400 = vsel %vm3197, %v3391, 0.0
        %3401 = vadd.xlane.f32.xlu0 %v3400
        %v3402 = vpop.xlane.xlu0 %3401
        %v3403 = vsel %vm3197, %v3393, 0.0
        %3404 = vadd.xlane.f32.xlu0 %v3403
        %v3405 = vpop.xlane.xlu0 %3404
        %v3406 = vrcp.pop %v3396
        %v3407 = vrcp.pop %v3399
        %v3408 = vrcp.pop %v3402
        %v3409 = vrcp.pop %v3405
        %v3410 = vmul.f32 %v3387, %v3406
        %v3411 = vmul.f32 %v3389, %v3407
        %v3412 = vmul.f32 %v3391, %v3408
        %v3413 = vmul.f32 %v3393, %v3409
        %v3414 = vpack.c.bf16 %v3411, %v3410
        %v3415 = vpack.c.bf16 %v3413, %v3412
        %3418 = vrot.lane.b32.xlu0 %v3127, 112
        %v3419 = vpop.permute.xlu0 %3418
        %3420 = vrot.lane.b32.xlu0 %v3128, 112
        %v3421 = vpop.permute.xlu0 %3420
        %v3425 = vsel %vm3197, %v3414, 0
        %v3428 = vsel %vm3197, %v3415, 0
        %3430 = vmatprep.subr.bf16.mxu0 0
        %3431 = vmatpush1.bf16.msra.mxu0 %v3419
        %3432 = vmatprep.subr.bf16.mxu0 0
        %3433 = vmatpush1.bf16.msra.mxu0 %v3421
        %3434 = vmatprep.subr.bf16.mxu0 0
        %3435 = vmatpush1.bf16.msra.mxu0 0
        %3436 = vmatprep.subr.bf16.mxu0 0
        %3437 = vmatpush1.bf16.msra.mxu0 0
        %3438 = vmatprep.subr.bf16.mxu0 0
        %3439 = vmatpush1.bf16.msra.mxu0 0
        %3440 = vmatprep.subr.bf16.mxu0 0
        %3441 = vmatpush1.bf16.msra.mxu0 0
        %3442 = vmatprep.subr.bf16.mxu0 0
        %3443 = vmatpush1.bf16.msra.mxu0 0
        %3444 = vmatprep.subr.bf16.mxu0 0
        %3445 = vmatpush1.bf16.msra.mxu0 0
        %3446 = vmatprep.subr.bf16.mxu0 0
        %3447 = vmatpush1.bf16.msra.mxu0 0
        %3448 = vmatprep.subr.bf16.mxu0 0
        %3449 = vmatpush1.bf16.msra.mxu0 0
        %3450 = vmatprep.subr.bf16.mxu0 0
        %3451 = vmatpush1.bf16.msra.mxu0 0
        %3452 = vmatprep.subr.bf16.mxu0 0
        %3453 = vmatpush1.bf16.msra.mxu0 0
        %3454 = vmatprep.subr.bf16.mxu0 0
        %3455 = vmatpush1.bf16.msra.mxu0 0
        %3456 = vmatprep.subr.bf16.mxu0 0
        %3457 = vmatpush1.bf16.msra.mxu0 0
        %3458 = vmatprep.subr.bf16.mxu0 0
        %3459 = vmatpush1.bf16.msra.mxu0 0
        %3460 = vmatprep.subr.bf16.mxu0 0
        %3461 = vmatpush1.bf16.msra.mxu0 0
        %3462 = vmatprep.mubr.bf16.mxu0 0
        %3463 = vmatmul.mubr.bf16.gmra.mrb[0].mxu0 %v3425
        %v3464 = vpop.f32.mrb[0].mxu0
        %v3465 = vadd.f32 0.0, %v3464
        %v3466 = vpop.f32.mrb[0].mxu0
        %v3467 = vpop.f32.mrb[0].mxu0
        %v3468 = vadd.f32 0.0, %v3467
        %v3469 = vpop.f32.mrb[0].mxu0
        %3470 = vmatprep.mubr.bf16.mxu0 0
        %3471 = vmatmul.mubr.bf16.gmra.mrb[0].mxu0 %v3428
        %v3472 = vpop.f32.mrb[0].mxu0
        %v3473 = vadd.f32 0.0, %v3472
        %v3474 = vpop.f32.mrb[0].mxu0
        %v3475 = vpop.f32.mrb[0].mxu0
        %v3476 = vadd.f32 0.0, %v3475
        %v3477 = vpop.f32.mrb[0].mxu0
        %3478 = vdwg.mxu0
        %v3479 = vpack.c.bf16 %v3468, %v3465
        %v3480 = vpack.c.bf16 %v3476, %v3473
        %v3483 = vunpack.c.l.b16 %v3119
        %v3484 = vunpack.c.l.b16 %v3120
        %v3485 = vpack.c.b16 %v3484, %v3483
        %v3488 = vsel %vm3135, %v3479, 0
        %v3491 = vsel %vm3135, %v3480, 0
        %3493 = vmatprep.subr.bf16.mxu0 0
        %3494 = vmatpush1.bf16.msra.mxu0 %v3485
        %3495 = vmatprep.subr.bf16.mxu0 0
        %3496 = vmatpush1.bf16.msra.mxu0 0
        %3497 = vmatprep.subr.bf16.mxu0 0
        %3498 = vmatpush1.bf16.msra.mxu0 0
        %3499 = vmatprep.subr.bf16.mxu0 0
        %3500 = vmatpush1.bf16.msra.mxu0 0
        %3501 = vmatprep.subr.bf16.mxu0 0
        %3502 = vmatpush1.bf16.msra.mxu0 0
        %3503 = vmatprep.subr.bf16.mxu0 0
        %3504 = vmatpush1.bf16.msra.mxu0 0
        %3505 = vmatprep.subr.bf16.mxu0 0
        %3506 = vmatpush1.bf16.msra.mxu0 0
        %3507 = vmatprep.subr.bf16.mxu0 0
        %3508 = vmatpush1.bf16.msra.mxu0 0
        %3509 = vmatprep.subr.bf16.mxu0 0
        %3510 = vmatpush1.bf16.msra.mxu0 0
        %3511 = vmatprep.subr.bf16.mxu0 0
        %3512 = vmatpush1.bf16.msra.mxu0 0
        %3513 = vmatprep.subr.bf16.mxu0 0
        %3514 = vmatpush1.bf16.msra.mxu0 0
        %3515 = vmatprep.subr.bf16.mxu0 0
        %3516 = vmatpush1.bf16.msra.mxu0 0
        %3517 = vmatprep.subr.bf16.mxu0 0
        %3518 = vmatpush1.bf16.msra.mxu0 0
        %3519 = vmatprep.subr.bf16.mxu0 0
        %3520 = vmatpush1.bf16.msra.mxu0 0
        %3521 = vmatprep.subr.bf16.mxu0 0
        %3522 = vmatpush1.bf16.msra.mxu0 0
        %3523 = vmatprep.subr.bf16.mxu0 0
        %3524 = vmatpush1.bf16.msra.mxu0 0
        %3525 = vmatprep.mubr.bf16.mxu0 0
        %3526 = vmatmul.mubr.bf16.gmra.mrb[0].mxu0 %v3488
        %v3527 = vpop.f32.mrb[0].mxu0
        %v3528 = vadd.f32 0.0, %v3527
        %v3529 = vpop.f32.mrb[0].mxu0
        %v3530 = vpop.f32.mrb[0].mxu0
        %v3531 = vadd.f32 0.0, %v3530
        %v3532 = vpop.f32.mrb[0].mxu0
        %3533 = vmatprep.mubr.bf16.mxu0 0
        %3534 = vmatmul.mubr.bf16.gmra.mrb[0].mxu0 %v3491
        %v3535 = vpop.f32.mrb[0].mxu0
        %v3536 = vadd.f32 0.0, %v3535
        %v3537 = vpop.f32.mrb[0].mxu0
        %v3538 = vpop.f32.mrb[0].mxu0
        %v3539 = vadd.f32 0.0, %v3538
        %v3540 = vpop.f32.mrb[0].mxu0
        %3541 = vdwg.mxu0
        %v3544 = vunpack.c.l.b16 %v3117
        %v3545 = vunpack.c.l.b16 %v3118
        %v3546 = vpack.c.b16 %v3545, %v3544
        %v3549 = vsel %vm3135, %v3299, 0
        %v3552 = vsel %vm3135, %v3300, 0
        %3554 = vmatprep.subr.bf16.mxu0 0
        %3555 = vmatpush1.bf16.msra.mxu0 %v3546
        %3556 = vmatprep.subr.bf16.mxu0 0
        %3557 = vmatpush1.bf16.msra.mxu0 0
        %3558 = vmatprep.subr.bf16.mxu0 0
        %3559 = vmatpush1.bf16.msra.mxu0 0
        %3560 = vmatprep.subr.bf16.mxu0 0
        %3561 = vmatpush1.bf16.msra.mxu0 0
        %3562 = vmatprep.subr.bf16.mxu0 0
        %3563 = vmatpush1.bf16.msra.mxu0 0
        %3564 = vmatprep.subr.bf16.mxu0 0
        %3565 = vmatpush1.bf16.msra.mxu0 0
        %3566 = vmatprep.subr.bf16.mxu0 0
        %3567 = vmatpush1.bf16.msra.mxu0 0
        %3568 = vmatprep.subr.bf16.mxu0 0
        %3569 = vmatpush1.bf16.msra.mxu0 0
        %3570 = vmatprep.subr.bf16.mxu0 0
        %3571 = vmatpush1.bf16.msra.mxu0 0
        %3572 = vmatprep.subr.bf16.mxu0 0
        %3573 = vmatpush1.bf16.msra.mxu0 0
        %3574 = vmatprep.subr.bf16.mxu0 0
        %3575 = vmatpush1.bf16.msra.mxu0 0
        %3576 = vmatprep.subr.bf16.mxu0 0
        %3577 = vmatpush1.bf16.msra.mxu0 0
        %3578 = vmatprep.subr.bf16.mxu0 0
        %3579 = vmatpush1.bf16.msra.mxu0 0
        %3580 = vmatprep.subr.bf16.mxu0 0
        %3581 = vmatpush1.bf16.msra.mxu0 0
        %3582 = vmatprep.subr.bf16.mxu0 0
        %3583 = vmatpush1.bf16.msra.mxu0 0
        %3584 = vmatprep.subr.bf16.mxu0 0
        %3585 = vmatpush1.bf16.msra.mxu0 0
        %3586 = vmatprep.mubr.bf16.mxu0 0
        %3587 = vmatmul.mubr.bf16.gmra.mrb[0].mxu0 %v3549
        %v3588 = vpop.f32.mrb[0].mxu0
        %v3589 = vadd.f32 %v3528, %v3588
        %v3590 = vpop.f32.mrb[0].mxu0
        %v3591 = vpop.f32.mrb[0].mxu0
        %v3592 = vadd.f32 %v3531, %v3591
        %v3593 = vpop.f32.mrb[0].mxu0
        %3594 = vmatprep.mubr.bf16.mxu0 0
        %3595 = vmatmul.mubr.bf16.gmra.mrb[0].mxu0 %v3552
        %v3596 = vpop.f32.mrb[0].mxu0
        %v3597 = vadd.f32 %v3536, %v3596
        %v3598 = vpop.f32.mrb[0].mxu0
        %v3599 = vpop.f32.mrb[0].mxu0
        %v3600 = vadd.f32 %v3539, %v3599
        %v3601 = vpop.f32.mrb[0].mxu0
        %3602 = vdwg.mxu0
        %3603 = vrot.lane.b32.xlu0 %v3125, 96
        %v3604 = vpop.permute.xlu0 %3603
        %3605 = vrot.lane.b32.xlu0 %v3126, 96
        %v3606 = vpop.permute.xlu0 %3605
        %3607 = vrot.lane.b32.xlu0 %v3125, 32
        %v3608 = vpop.permute.xlu0 %3607
        %3609 = vrot.lane.b32.xlu0 %v3126, 32
        %v3610 = vpop.permute.xlu0 %3609
        %v3612 = vsel %vm3135, %v3604, 0
        %v3615 = vsel %vm3135, %v3606, 0
        %v3618 = vsel %vm3135, %v3608, 0
        %v3621 = vsel %vm3135, %v3610, 0
        %3623 = vmatprep.subr.bf16.mxu0 0
        %3624 = vmatpush1.bf16.xpose.msra.mxu0 %v3618
        %3625 = vmatprep.subr.bf16.mxu0 0
        %3626 = vmatpush1.bf16.xpose.msra.mxu0 %v3621
        %3627 = vmatprep.subr.bf16.mxu0 0
        %3628 = vmatpush1.bf16.xpose.msra.mxu0 0
        %3629 = vmatprep.subr.bf16.mxu0 0
        %3630 = vmatpush1.bf16.xpose.msra.mxu0 0
        %3631 = vmatprep.subr.bf16.mxu0 0
        %3632 = vmatpush1.bf16.xpose.msra.mxu0 0
        %3633 = vmatprep.subr.bf16.mxu0 0
        %3634 = vmatpush1.bf16.xpose.msra.mxu0 0
        %3635 = vmatprep.subr.bf16.mxu0 0
        %3636 = vmatpush1.bf16.xpose.msra.mxu0 0
        %3637 = vmatprep.subr.bf16.mxu0 0
        %3638 = vmatpush1.bf16.xpose.msra.mxu0 0
        %3639 = vmatprep.subr.bf16.mxu0 0
        %3640 = vmatpush1.bf16.xpose.msra.mxu0 0
        %3641 = vmatprep.subr.bf16.mxu0 0
        %3642 = vmatpush1.bf16.xpose.msra.mxu0 0
        %3643 = vmatprep.subr.bf16.mxu0 0
        %3644 = vmatpush1.bf16.xpose.msra.mxu0 0
        %3645 = vmatprep.subr.bf16.mxu0 0
        %3646 = vmatpush1.bf16.xpose.msra.mxu0 0
        %3647 = vmatprep.subr.bf16.mxu0 0
        %3648 = vmatpush1.bf16.xpose.msra.mxu0 0
        %3649 = vmatprep.subr.bf16.mxu0 0
        %3650 = vmatpush1.bf16.xpose.msra.mxu0 0
        %3651 = vmatprep.subr.bf16.mxu0 0
        %3652 = vmatpush1.bf16.xpose.msra.mxu0 0
        %3653 = vmatprep.subr.bf16.mxu0 0
        %3654 = vmatpush1.bf16.xpose.msra.mxu0 0
        %3655 = vmatprep.mubr.bf16.mxu0 0
        %3656 = vmatmul.mubr.bf16.gmra.mrb[0].mxu0 %v3612
        %v3657 = vpop.f32.mrb[0].mxu0
        %v3658 = vadd.f32 0.0, %v3657
        %v3659 = vpop.f32.mrb[0].mxu0
        %v3660 = vpop.f32.mrb[0].mxu0
        %v3661 = vadd.f32 0.0, %v3660
        %v3662 = vpop.f32.mrb[0].mxu0
        %3663 = vmatprep.mubr.bf16.mxu0 0
        %3664 = vmatmul.mubr.bf16.gmra.mrb[0].mxu0 %v3615
        %v3665 = vpop.f32.mrb[0].mxu0
        %v3666 = vadd.f32 0.0, %v3665
        %v3667 = vpop.f32.mrb[0].mxu0
        %v3668 = vpop.f32.mrb[0].mxu0
        %v3669 = vadd.f32 0.0, %v3668
        %v3670 = vpop.f32.mrb[0].mxu0
        %3671 = vdwg.mxu0
        %v3672 = vsel %vm3197, %v3658, -inf
        %3673 = vmax.xlane.f32.xlu0 %v3672
        %v3674 = vpop.xlane.xlu0 %3673
        %v3675 = vsel %vm3197, %v3661, -inf
        %3676 = vmax.xlane.f32.xlu0 %v3675
        %v3677 = vpop.xlane.xlu0 %3676
        %v3678 = vsel %vm3197, %v3666, -inf
        %3679 = vmax.xlane.f32.xlu0 %v3678
        %v3680 = vpop.xlane.xlu0 %3679
        %v3681 = vsel %vm3197, %v3669, -inf
        %3682 = vmax.xlane.f32.xlu0 %v3681
        %v3683 = vpop.xlane.xlu0 %3682
        %v3684 = vsub.f32 %v3658, %v3674
        %v3685 = vsub.f32 %v3661, %v3677
        %v3686 = vsub.f32 %v3666, %v3680
        %v3687 = vsub.f32 %v3669, %v3683
        %v3688 = vmul.f32 %v3684, 1.442695
        %v3689 = vpow.pop %v3688
        %v3690 = vmul.f32 %v3685, 1.442695
        %v3691 = vpow.pop %v3690
        %v3692 = vmul.f32 %v3686, 1.442695
        %v3693 = vpow.pop %v3692
        %v3694 = vmul.f32 %v3687, 1.442695
        %v3695 = vpow.pop %v3694
        %v3696 = vsel %vm3197, %v3689, 0.0
        %3697 = vadd.xlane.f32.xlu0 %v3696
        %v3698 = vpop.xlane.xlu0 %3697
        %v3699 = vsel %vm3197, %v3691, 0.0
        %3700 = vadd.xlane.f32.xlu0 %v3699
        %v3701 = vpop.xlane.xlu0 %3700
        %v3702 = vsel %vm3197, %v3693, 0.0
        %3703 = vadd.xlane.f32.xlu0 %v3702
        %v3704 = vpop.xlane.xlu0 %3703
        %v3705 = vsel %vm3197, %v3695, 0.0
        %3706 = vadd.xlane.f32.xlu0 %v3705
        %v3707 = vpop.xlane.xlu0 %3706
        %v3708 = vrcp.pop %v3698
        %v3709 = vrcp.pop %v3701
        %v3710 = vrcp.pop %v3704
        %v3711 = vrcp.pop %v3707
        %v3712 = vmul.f32 %v3689, %v3708
        %v3713 = vmul.f32 %v3691, %v3709
        %v3714 = vmul.f32 %v3693, %v3710
        %v3715 = vmul.f32 %v3695, %v3711
        %v3716 = vpack.c.bf16 %v3713, %v3712
        %v3717 = vpack.c.bf16 %v3715, %v3714
        %3718 = vrot.lane.b32.xlu0 %v3127, 96
        %v3719 = vpop.permute.xlu0 %3718
        %3720 = vrot.lane.b32.xlu0 %v3128, 96
        %v3721 = vpop.permute.xlu0 %3720
        %v3725 = vsel %vm3197, %v3716, 0
        %v3728 = vsel %vm3197, %v3717, 0
        %3730 = vmatprep.subr.bf16.mxu0 0
        %3731 = vmatpush1.bf16.msra.mxu0 %v3719
        %3732 = vmatprep.subr.bf16.mxu0 0
        %3733 = vmatpush1.bf16.msra.mxu0 %v3721
        %3734 = vmatprep.subr.bf16.mxu0 0
        %3735 = vmatpush1.bf16.msra.mxu0 0
        %3736 = vmatprep.subr.bf16.mxu0 0
        %3737 = vmatpush1.bf16.msra.mxu0 0
        %3738 = vmatprep.subr.bf16.mxu0 0
        %3739 = vmatpush1.bf16.msra.mxu0 0
        %3740 = vmatprep.subr.bf16.mxu0 0
        %3741 = vmatpush1.bf16.msra.mxu0 0
        %3742 = vmatprep.subr.bf16.mxu0 0
        %3743 = vmatpush1.bf16.msra.mxu0 0
        %3744 = vmatprep.subr.bf16.mxu0 0
        %3745 = vmatpush1.bf16.msra.mxu0 0
        %3746 = vmatprep.subr.bf16.mxu0 0
        %3747 = vmatpush1.bf16.msra.mxu0 0
        %3748 = vmatprep.subr.bf16.mxu0 0
        %3749 = vmatpush1.bf16.msra.mxu0 0
        %3750 = vmatprep.subr.bf16.mxu0 0
        %3751 = vmatpush1.bf16.msra.mxu0 0
        %3752 = vmatprep.subr.bf16.mxu0 0
        %3753 = vmatpush1.bf16.msra.mxu0 0
        %3754 = vmatprep.subr.bf16.mxu0 0
        %3755 = vmatpush1.bf16.msra.mxu0 0
        %3756 = vmatprep.subr.bf16.mxu0 0
        %3757 = vmatpush1.bf16.msra.mxu0 0
        %3758 = vmatprep.subr.bf16.mxu0 0
        %3759 = vmatpush1.bf16.msra.mxu0 0
        %3760 = vmatprep.subr.bf16.mxu0 0
        %3761 = vmatpush1.bf16.msra.mxu0 0
        %3762 = vmatprep.mubr.bf16.mxu0 0
        %3763 = vmatmul.mubr.bf16.gmra.mrb[0].mxu0 %v3725
        %v3764 = vpop.f32.mrb[0].mxu0
        %v3765 = vadd.f32 0.0, %v3764
        %v3766 = vpop.f32.mrb[0].mxu0
        %v3767 = vpop.f32.mrb[0].mxu0
        %v3768 = vadd.f32 0.0, %v3767
        %v3769 = vpop.f32.mrb[0].mxu0
        %3770 = vmatprep.mubr.bf16.mxu0 0
        %3771 = vmatmul.mubr.bf16.gmra.mrb[0].mxu0 %v3728
        %v3772 = vpop.f32.mrb[0].mxu0
        %v3773 = vadd.f32 0.0, %v3772
        %v3774 = vpop.f32.mrb[0].mxu0
        %v3775 = vpop.f32.mrb[0].mxu0
        %v3776 = vadd.f32 0.0, %v3775
        %v3777 = vpop.f32.mrb[0].mxu0
        %3778 = vdwg.mxu0
        %v3779 = vpack.c.bf16 %v3768, %v3765
        %v3780 = vpack.c.bf16 %v3776, %v3773
        %v3783 = vunpack.c.l.b16 %v3121
        %v3784 = vunpack.c.l.b16 %v3122
        %v3785 = vpack.c.b16 %v3784, %v3783
        %v3788 = vsel %vm3135, %v3779, 0
        %v3791 = vsel %vm3135, %v3780, 0
        %3793 = vmatprep.subr.bf16.mxu0 0
        %3794 = vmatpush1.bf16.msra.mxu0 %v3785
        %3795 = vmatprep.subr.bf16.mxu0 0
        %3796 = vmatpush1.bf16.msra.mxu0 0
        %3797 = vmatprep.subr.bf16.mxu0 0
        %3798 = vmatpush1.bf16.msra.mxu0 0
        %3799 = vmatprep.subr.bf16.mxu0 0
        %3800 = vmatpush1.bf16.msra.mxu0 0
        %3801 = vmatprep.subr.bf16.mxu0 0
        %3802 = vmatpush1.bf16.msra.mxu0 0
        %3803 = vmatprep.subr.bf16.mxu0 0
        %3804 = vmatpush1.bf16.msra.mxu0 0
        %3805 = vmatprep.subr.bf16.mxu0 0
        %3806 = vmatpush1.bf16.msra.mxu0 0
        %3807 = vmatprep.subr.bf16.mxu0 0
        %3808 = vmatpush1.bf16.msra.mxu0 0
        %3809 = vmatprep.subr.bf16.mxu0 0
        %3810 = vmatpush1.bf16.msra.mxu0 0
        %3811 = vmatprep.subr.bf16.mxu0 0
        %3812 = vmatpush1.bf16.msra.mxu0 0
        %3813 = vmatprep.subr.bf16.mxu0 0
        %3814 = vmatpush1.bf16.msra.mxu0 0
        %3815 = vmatprep.subr.bf16.mxu0 0
        %3816 = vmatpush1.bf16.msra.mxu0 0
        %3817 = vmatprep.subr.bf16.mxu0 0
        %3818 = vmatpush1.bf16.msra.mxu0 0
        %3819 = vmatprep.subr.bf16.mxu0 0
        %3820 = vmatpush1.bf16.msra.mxu0 0
        %3821 = vmatprep.subr.bf16.mxu0 0
        %3822 = vmatpush1.bf16.msra.mxu0 0
        %3823 = vmatprep.subr.bf16.mxu0 0
        %3824 = vmatpush1.bf16.msra.mxu0 0
        %3825 = vmatprep.mubr.bf16.mxu0 0
        %3826 = vmatmul.mubr.bf16.gmra.mrb[0].mxu0 %v3788
        %v3827 = vpop.f32.mrb[0].mxu0
        %v3828 = vadd.f32 0.0, %v3827
        %v3829 = vpop.f32.mrb[0].mxu0
        %v3830 = vpop.f32.mrb[0].mxu0
        %v3831 = vadd.f32 0.0, %v3830
        %v3832 = vpop.f32.mrb[0].mxu0
        %3833 = vmatprep.mubr.bf16.mxu0 0
        %3834 = vmatmul.mubr.bf16.gmra.mrb[0].mxu0 %v3791
        %v3835 = vpop.f32.mrb[0].mxu0
        %v3836 = vadd.f32 0.0, %v3835
        %v3837 = vpop.f32.mrb[0].mxu0
        %v3838 = vpop.f32.mrb[0].mxu0
        %v3839 = vadd.f32 0.0, %v3838
        %v3840 = vpop.f32.mrb[0].mxu0
        %3841 = vdwg.mxu0
        %v3842 = vadd.f32 %v3589, %v3828
        %v3843 = vadd.f32 %v3592, %v3831
        %v3844 = vadd.f32 %v3597, %v3836
        %v3845 = vadd.f32 %v3600, %v3839
        %3846 = vrot.lane.b32.xlu0 %v3125, 80
        %v3847 = vpop.permute.xlu0 %3846
        %3848 = vrot.lane.b32.xlu0 %v3126, 80
        %v3849 = vpop.permute.xlu0 %3848
        %3850 = vrot.lane.b32.xlu0 %v3125, 16
        %v3851 = vpop.permute.xlu0 %3850
        %3852 = vrot.lane.b32.xlu0 %v3126, 16
        %v3853 = vpop.permute.xlu0 %3852
        %v3855 = vsel %vm3135, %v3847, 0
        %v3858 = vsel %vm3135, %v3849, 0
        %v3861 = vsel %vm3135, %v3851, 0
        %v3864 = vsel %vm3135, %v3853, 0
        %3866 = vmatprep.subr.bf16.mxu0 0
        %3867 = vmatpush1.bf16.xpose.msra.mxu0 %v3861
        %3868 = vmatprep.subr.bf16.mxu0 0
        %3869 = vmatpush1.bf16.xpose.msra.mxu0 %v3864
        %3870 = vmatprep.subr.bf16.mxu0 0
        %3871 = vmatpush1.bf16.xpose.msra.mxu0 0
        %3872 = vmatprep.subr.bf16.mxu0 0
        %3873 = vmatpush1.bf16.xpose.msra.mxu0 0
        %3874 = vmatprep.subr.bf16.mxu0 0
        %3875 = vmatpush1.bf16.xpose.msra.mxu0 0
        %3876 = vmatprep.subr.bf16.mxu0 0
        %3877 = vmatpush1.bf16.xpose.msra.mxu0 0
        %3878 = vmatprep.subr.bf16.mxu0 0
        %3879 = vmatpush1.bf16.xpose.msra.mxu0 0
        %3880 = vmatprep.subr.bf16.mxu0 0
        %3881 = vmatpush1.bf16.xpose.msra.mxu0 0
        %3882 = vmatprep.subr.bf16.mxu0 0
        %3883 = vmatpush1.bf16.xpose.msra.mxu0 0
        %3884 = vmatprep.subr.bf16.mxu0 0
        %3885 = vmatpush1.bf16.xpose.msra.mxu0 0
        %3886 = vmatprep.subr.bf16.mxu0 0
        %3887 = vmatpush1.bf16.xpose.msra.mxu0 0
        %3888 = vmatprep.subr.bf16.mxu0 0
        %3889 = vmatpush1.bf16.xpose.msra.mxu0 0
        %3890 = vmatprep.subr.bf16.mxu0 0
        %3891 = vmatpush1.bf16.xpose.msra.mxu0 0
        %3892 = vmatprep.subr.bf16.mxu0 0
        %3893 = vmatpush1.bf16.xpose.msra.mxu0 0
        %3894 = vmatprep.subr.bf16.mxu0 0
        %3895 = vmatpush1.bf16.xpose.msra.mxu0 0
        %3896 = vmatprep.subr.bf16.mxu0 0
        %3897 = vmatpush1.bf16.xpose.msra.mxu0 0
        %3898 = vmatprep.mubr.bf16.mxu0 0
        %3899 = vmatmul.mubr.bf16.gmra.mrb[0].mxu0 %v3855
        %v3900 = vpop.f32.mrb[0].mxu0
        %v3901 = vadd.f32 0.0, %v3900
        %v3902 = vpop.f32.mrb[0].mxu0
        %v3903 = vpop.f32.mrb[0].mxu0
        %v3904 = vadd.f32 0.0, %v3903
        %v3905 = vpop.f32.mrb[0].mxu0
        %3906 = vmatprep.mubr.bf16.mxu0 0
        %3907 = vmatmul.mubr.bf16.gmra.mrb[0].mxu0 %v3858
        %v3908 = vpop.f32.mrb[0].mxu0
        %v3909 = vadd.f32 0.0, %v3908
        %v3910 = vpop.f32.mrb[0].mxu0
        %v3911 = vpop.f32.mrb[0].mxu0
        %v3912 = vadd.f32 0.0, %v3911
        %v3913 = vpop.f32.mrb[0].mxu0
        %3914 = vdwg.mxu0
        %v3915 = vsel %vm3197, %v3901, -inf
        %3916 = vmax.xlane.f32.xlu0 %v3915
        %v3917 = vpop.xlane.xlu0 %3916
        %v3918 = vsel %vm3197, %v3904, -inf
        %3919 = vmax.xlane.f32.xlu0 %v3918
        %v3920 = vpop.xlane.xlu0 %3919
        %v3921 = vsel %vm3197, %v3909, -inf
        %3922 = vmax.xlane.f32.xlu0 %v3921
        %v3923 = vpop.xlane.xlu0 %3922
        %v3924 = vsel %vm3197, %v3912, -inf
        %3925 = vmax.xlane.f32.xlu0 %v3924
        %v3926 = vpop.xlane.xlu0 %3925
        %v3927 = vsub.f32 %v3901, %v3917
        %v3928 = vsub.f32 %v3904, %v3920
        %v3929 = vsub.f32 %v3909, %v3923
        %v3930 = vsub.f32 %v3912, %v3926
        %v3931 = vmul.f32 %v3927, 1.442695
        %v3932 = vpow.pop %v3931
        %v3933 = vmul.f32 %v3928, 1.442695
        %v3934 = vpow.pop %v3933
        %v3935 = vmul.f32 %v3929, 1.442695
        %v3936 = vpow.pop %v3935
        %v3937 = vmul.f32 %v3930, 1.442695
        %v3938 = vpow.pop %v3937
        %v3939 = vsel %vm3197, %v3932, 0.0
        %3940 = vadd.xlane.f32.xlu0 %v3939
        %v3941 = vpop.xlane.xlu0 %3940
        %v3942 = vsel %vm3197, %v3934, 0.0
        %3943 = vadd.xlane.f32.xlu0 %v3942
        %v3944 = vpop.xlane.xlu0 %3943
        %v3945 = vsel %vm3197, %v3936, 0.0
        %3946 = vadd.xlane.f32.xlu0 %v3945
        %v3947 = vpop.xlane.xlu0 %3946
        %v3948 = vsel %vm3197, %v3938, 0.0
        %3949 = vadd.xlane.f32.xlu0 %v3948
        %v3950 = vpop.xlane.xlu0 %3949
        %v3951 = vrcp.pop %v3941
        %v3952 = vrcp.pop %v3944
        %v3953 = vrcp.pop %v3947
        %v3954 = vrcp.pop %v3950
        %v3955 = vmul.f32 %v3932, %v3951
        %v3956 = vmul.f32 %v3934, %v3952
        %v3957 = vmul.f32 %v3936, %v3953
        %v3958 = vmul.f32 %v3938, %v3954
        %v3959 = vpack.c.bf16 %v3956, %v3955
        %v3960 = vpack.c.bf16 %v3958, %v3957
        %3961 = vrot.lane.b32.xlu0 %v3127, 80
        %v3962 = vpop.permute.xlu0 %3961
        %3963 = vrot.lane.b32.xlu0 %v3128, 80
        %v3964 = vpop.permute.xlu0 %3963
        %v3968 = vsel %vm3197, %v3959, 0
        %v3971 = vsel %vm3197, %v3960, 0
        %3973 = vmatprep.subr.bf16.mxu0 0
        %3974 = vmatpush1.bf16.msra.mxu0 %v3962
        %3975 = vmatprep.subr.bf16.mxu0 0
        %3976 = vmatpush1.bf16.msra.mxu0 %v3964
        %3977 = vmatprep.subr.bf16.mxu0 0
        %3978 = vmatpush1.bf16.msra.mxu0 0
        %3979 = vmatprep.subr.bf16.mxu0 0
        %3980 = vmatpush1.bf16.msra.mxu0 0
        %3981 = vmatprep.subr.bf16.mxu0 0
        %3982 = vmatpush1.bf16.msra.mxu0 0
        %3983 = vmatprep.subr.bf16.mxu0 0
        %3984 = vmatpush1.bf16.msra.mxu0 0
        %3985 = vmatprep.subr.bf16.mxu0 0
        %3986 = vmatpush1.bf16.msra.mxu0 0
        %3987 = vmatprep.subr.bf16.mxu0 0
        %3988 = vmatpush1.bf16.msra.mxu0 0
        %3989 = vmatprep.subr.bf16.mxu0 0
        %3990 = vmatpush1.bf16.msra.mxu0 0
        %3991 = vmatprep.subr.bf16.mxu0 0
        %3992 = vmatpush1.bf16.msra.mxu0 0
        %3993 = vmatprep.subr.bf16.mxu0 0
        %3994 = vmatpush1.bf16.msra.mxu0 0
        %3995 = vmatprep.subr.bf16.mxu0 0
        %3996 = vmatpush1.bf16.msra.mxu0 0
        %3997 = vmatprep.subr.bf16.mxu0 0
        %3998 = vmatpush1.bf16.msra.mxu0 0
        %3999 = vmatprep.subr.bf16.mxu0 0
        %4000 = vmatpush1.bf16.msra.mxu0 0
        %4001 = vmatprep.subr.bf16.mxu0 0
        %4002 = vmatpush1.bf16.msra.mxu0 0
        %4003 = vmatprep.subr.bf16.mxu0 0
        %4004 = vmatpush1.bf16.msra.mxu0 0
        %4005 = vmatprep.mubr.bf16.mxu0 0
        %4006 = vmatmul.mubr.bf16.gmra.mrb[0].mxu0 %v3968
        %v4007 = vpop.f32.mrb[0].mxu0
        %v4008 = vadd.f32 0.0, %v4007
        %v4009 = vpop.f32.mrb[0].mxu0
        %v4010 = vpop.f32.mrb[0].mxu0
        %v4011 = vadd.f32 0.0, %v4010
        %v4012 = vpop.f32.mrb[0].mxu0
        %4013 = vmatprep.mubr.bf16.mxu0 0
        %4014 = vmatmul.mubr.bf16.gmra.mrb[0].mxu0 %v3971
        %v4015 = vpop.f32.mrb[0].mxu0
        %v4016 = vadd.f32 0.0, %v4015
        %v4017 = vpop.f32.mrb[0].mxu0
        %v4018 = vpop.f32.mrb[0].mxu0
        %v4019 = vadd.f32 0.0, %v4018
        %v4020 = vpop.f32.mrb[0].mxu0
        %4021 = vdwg.mxu0
        %v4022 = vpack.c.bf16 %v4011, %v4008
        %v4023 = vpack.c.bf16 %v4019, %v4016
        %v4026 = vunpack.c.l.b16 %v3123
        %v4027 = vunpack.c.l.b16 %v3124
        %v4028 = vpack.c.b16 %v4027, %v4026
        %v4031 = vsel %vm3135, %v4022, 0
        %v4034 = vsel %vm3135, %v4023, 0
        %4036 = vmatprep.subr.bf16.mxu0 0
        %4037 = vmatpush1.bf16.msra.mxu0 %v4028
        %4038 = vmatprep.subr.bf16.mxu0 0
        %4039 = vmatpush1.bf16.msra.mxu0 0
        %4040 = vmatprep.subr.bf16.mxu0 0
        %4041 = vmatpush1.bf16.msra.mxu0 0
        %4042 = vmatprep.subr.bf16.mxu0 0
        %4043 = vmatpush1.bf16.msra.mxu0 0
        %4044 = vmatprep.subr.bf16.mxu0 0
        %4045 = vmatpush1.bf16.msra.mxu0 0
        %4046 = vmatprep.subr.bf16.mxu0 0
        %4047 = vmatpush1.bf16.msra.mxu0 0
        %4048 = vmatprep.subr.bf16.mxu0 0
        %4049 = vmatpush1.bf16.msra.mxu0 0
        %4050 = vmatprep.subr.bf16.mxu0 0
        %4051 = vmatpush1.bf16.msra.mxu0 0
        %4052 = vmatprep.subr.bf16.mxu0 0
        %4053 = vmatpush1.bf16.msra.mxu0 0
        %4054 = vmatprep.subr.bf16.mxu0 0
        %4055 = vmatpush1.bf16.msra.mxu0 0
        %4056 = vmatprep.subr.bf16.mxu0 0
        %4057 = vmatpush1.bf16.msra.mxu0 0
        %4058 = vmatprep.subr.bf16.mxu0 0
        %4059 = vmatpush1.bf16.msra.mxu0 0
        %4060 = vmatprep.subr.bf16.mxu0 0
        %4061 = vmatpush1.bf16.msra.mxu0 0
        %4062 = vmatprep.subr.bf16.mxu0 0
        %4063 = vmatpush1.bf16.msra.mxu0 0
        %4064 = vmatprep.subr.bf16.mxu0 0
        %4065 = vmatpush1.bf16.msra.mxu0 0
        %4066 = vmatprep.subr.bf16.mxu0 0
        %4067 = vmatpush1.bf16.msra.mxu0 0
        %4068 = vmatprep.mubr.bf16.mxu0 0
        %4069 = vmatmul.mubr.bf16.gmra.mrb[0].mxu0 %v4031
        %v4070 = vpop.f32.mrb[0].mxu0
        %v4071 = vadd.f32 0.0, %v4070
        %v4072 = vpop.f32.mrb[0].mxu0
        %v4073 = vpop.f32.mrb[0].mxu0
        %v4074 = vadd.f32 0.0, %v4073
        %v4075 = vpop.f32.mrb[0].mxu0
        %4076 = vmatprep.mubr.bf16.mxu0 0
        %4077 = vmatmul.mubr.bf16.gmra.mrb[0].mxu0 %v4034
        %v4078 = vpop.f32.mrb[0].mxu0
        %v4079 = vadd.f32 0.0, %v4078
        %v4080 = vpop.f32.mrb[0].mxu0
        %v4081 = vpop.f32.mrb[0].mxu0
        %v4082 = vadd.f32 0.0, %v4081
        %v4083 = vpop.f32.mrb[0].mxu0
        %4084 = vdwg.mxu0
        %v4085 = vadd.f32 %v3842, %v4071
        %v4086 = vadd.f32 %v3843, %v4074
        %v4087 = vadd.f32 %v3844, %v4079
        %v4088 = vadd.f32 %v3845, %v4082
        %v4089 = vld [vmem:[%s8] sm:$0x1]
        %v4091 = vlaneseq
        %v4092 = vshrl.u32 %v4091, 7
        %v4093 = vsub.s32 0, %v4092
        %v4094 = vrot.slane %v4089, %v4093
        %v4096 = vadd.f32 %v4085, %v4094
        %v4097 = vadd.f32 %v4086, %v4094
        %v4098 = vadd.f32 %v4087, %v4094
        %v4099 = vadd.f32 %v4088, %v4094
        %v4100 = vadd.f32 %v2981, %v4096
        %v4101 = vadd.f32 %v2984, %v4097
        %v4102 = vadd.f32 %v2989, %v4098
        %v4103 = vadd.f32 %v2992, %v4099
        %v4104 = vld [vmem:[%s13] sm:$0x1]
        %v4105 = vld [vmem:[%s14] sm:$0x1]
        %v4106 = vsel %vm3057, %v4100, 0.0
        %4107 = vadd.xlane.f32.xlu0 %v4106
        %v4108 = vpop.xlane.xlu0 %4107
        %v4109 = vsel %vm3057, %v4101, 0.0
        %4110 = vadd.xlane.f32.xlu0 %v4109
        %v4111 = vpop.xlane.xlu0 %4110
        %v4112 = vsel %vm3057, %v4102, 0.0
        %4113 = vadd.xlane.f32.xlu0 %v4112
        %v4114 = vpop.xlane.xlu0 %4113
        %v4115 = vsel %vm3057, %v4103, 0.0
        %4116 = vadd.xlane.f32.xlu0 %v4115
        %v4117 = vpop.xlane.xlu0 %4116
        %v4118 = vrcp.pop 64.0
        %v4119 = vmul.f32 %v4108, %v4118
        %v4120 = vmul.f32 %v4111, %v4118
        %v4121 = vmul.f32 %v4114, %v4118
        %v4122 = vmul.f32 %v4117, %v4118
        %v4123 = vsub.f32 %v4100, %v4119
        %v4124 = vsub.f32 %v4101, %v4120
        %v4125 = vsub.f32 %v4102, %v4121
        %v4126 = vsub.f32 %v4103, %v4122
        %v4127 = vmul.f32 %v4123, %v4123
        %v4128 = vmul.f32 %v4124, %v4124
        %v4129 = vmul.f32 %v4125, %v4125
        %v4130 = vmul.f32 %v4126, %v4126
        %v4131 = vsel %vm3057, %v4127, 0.0
        %4132 = vadd.xlane.f32.xlu0 %v4131
        %v4133 = vpop.xlane.xlu0 %4132
        %v4134 = vsel %vm3057, %v4128, 0.0
        %4135 = vadd.xlane.f32.xlu0 %v4134
        %v4136 = vpop.xlane.xlu0 %4135
        %v4137 = vsel %vm3057, %v4129, 0.0
        %4138 = vadd.xlane.f32.xlu0 %v4137
        %v4139 = vpop.xlane.xlu0 %4138
        %v4140 = vsel %vm3057, %v4130, 0.0
        %4141 = vadd.xlane.f32.xlu0 %v4140
        %v4142 = vpop.xlane.xlu0 %4141
        %v4143 = vmul.f32 %v4133, %v4118
        %v4144 = vmul.f32 %v4136, %v4118
        %v4145 = vmul.f32 %v4139, %v4118
        %v4146 = vmul.f32 %v4142, %v4118
        %v4147 = vadd.f32 %v4143, 1e-05
        %v4148 = vadd.f32 %v4144, 1e-05
        %v4149 = vadd.f32 %v4145, 1e-05
        %v4150 = vadd.f32 %v4146, 1e-05
        %v4151 = vrsqrt.pop %v4147
        %v4152 = vrsqrt.pop %v4148
        %v4153 = vrsqrt.pop %v4149
        %v4154 = vrsqrt.pop %v4150
        %v4155 = vmul.f32 %v4123, %v4151
        %v4156 = vmul.f32 %v4124, %v4152
        %v4157 = vmul.f32 %v4125, %v4153
        %v4158 = vmul.f32 %v4126, %v4154
        %v4160 = vlaneseq
        %v4161 = vshrl.u32 %v4160, 7
        %v4162 = vsub.s32 0, %v4161
        %v4163 = vrot.slane %v4104, %v4162
        %v4165 = vmul.f32 %v4155, %v4163
        %v4166 = vmul.f32 %v4156, %v4163
        %v4167 = vmul.f32 %v4157, %v4163
        %v4168 = vmul.f32 %v4158, %v4163
        %v4170 = vlaneseq
        %v4171 = vshrl.u32 %v4170, 7
        %v4172 = vsub.s32 0, %v4171
        %v4173 = vrot.slane %v4105, %v4172
        %v4175 = vadd.f32 %v4165, %v4173
        %v4176 = vadd.f32 %v4166, %v4173
        %v4177 = vadd.f32 %v4167, %v4173
        %v4178 = vadd.f32 %v4168, %v4173
        %v4179 = vpack.c.bf16 %v4176, %v4175
        %v4180 = vpack.c.bf16 %v4178, %v4177
        %v4181 = vld [vmem:[%s9] sm:$0xff]
        %v4182 = vld [vmem:[%s9 + $0x8] sm:$0xff]
        %v4183 = vld [vmem:[%s9 + $0x10] sm:$0xff]
        %v4184 = vld [vmem:[%s9 + $0x18] sm:$0xff]
        %v4185 = vld [vmem:[%s9 + $0x20] sm:$0xff]
        %v4186 = vld [vmem:[%s9 + $0x28] sm:$0xff]
        %v4187 = vld [vmem:[%s9 + $0x30] sm:$0xff]
        %v4188 = vld [vmem:[%s9 + $0x38] sm:$0xff]
        %v4189 = vld [vmem:[%s10] sm:$0x3]
        %v4191 = vlaneseq
        %v4192 = vshrl.u32 %v4191, 7
        %v4193 = vsub.s32 0, %v4192
        %v4194 = vrot.slane %v4189, %v4193
        %v4195 = vlaneseq
        %v4196 = vshrl.u32 %v4195, 7
        %v4197 = vsub.s32 1, %v4196
        %v4198 = vrot.slane %v4189, %v4197
        %v4209 = vunpack.c.l.b16 %v4181
        %v4210 = vunpack.c.h.b16 %v4181
        %v4211 = vunpack.c.l.b16 %v4182
        %v4212 = vunpack.c.h.b16 %v4182
        %v4213 = vunpack.c.l.b16 %v4183
        %v4214 = vunpack.c.h.b16 %v4183
        %v4215 = vunpack.c.l.b16 %v4184
        %v4216 = vunpack.c.h.b16 %v4184
        %v4217 = vunpack.c.l.b16 %v4185
        %v4218 = vunpack.c.h.b16 %v4185
        %v4219 = vunpack.c.l.b16 %v4186
        %v4220 = vunpack.c.h.b16 %v4186
        %v4221 = vunpack.c.l.b16 %v4187
        %v4222 = vunpack.c.h.b16 %v4187
        %v4223 = vunpack.c.l.b16 %v4188
        %v4224 = vunpack.c.h.b16 %v4188
        %v4225 = vpack.c.b16 %v4211, %v4209
        %v4226 = vpack.c.b16 %v4212, %v4210
        %v4227 = vpack.c.b16 %v4215, %v4213
        %v4228 = vpack.c.b16 %v4216, %v4214
        %v4229 = vpack.c.b16 %v4219, %v4217
        %v4230 = vpack.c.b16 %v4220, %v4218
        %v4231 = vpack.c.b16 %v4223, %v4221
        %v4232 = vpack.c.b16 %v4224, %v4222
        %v4242 = vsel %vm3057, %v4179, 0
        %v4245 = vsel %vm3057, %v4180, 0
        %4247 = vmatprep.subr.bf16.mxu0 %v4226
        %4248 = vmatpush1.bf16.msra.mxu0 %v4225
        %4249 = vmatprep.subr.bf16.mxu0 %v4228
        %4250 = vmatpush1.bf16.msra.mxu0 %v4227
        %4251 = vmatprep.subr.bf16.mxu0 %v4230
        %4252 = vmatpush1.bf16.msra.mxu0 %v4229
        %4253 = vmatprep.subr.bf16.mxu0 %v4232
        %4254 = vmatpush1.bf16.msra.mxu0 %v4231
        %4255 = vmatprep.subr.bf16.mxu0 0
        %4256 = vmatpush1.bf16.msra.mxu0 0
        %4257 = vmatprep.subr.bf16.mxu0 0
        %4258 = vmatpush1.bf16.msra.mxu0 0
        %4259 = vmatprep.subr.bf16.mxu0 0
        %4260 = vmatpush1.bf16.msra.mxu0 0
        %4261 = vmatprep.subr.bf16.mxu0 0
        %4262 = vmatpush1.bf16.msra.mxu0 0
        %4263 = vmatprep.subr.bf16.mxu0 0
        %4264 = vmatpush1.bf16.msra.mxu0 0
        %4265 = vmatprep.subr.bf16.mxu0 0
        %4266 = vmatpush1.bf16.msra.mxu0 0
        %4267 = vmatprep.subr.bf16.mxu0 0
        %4268 = vmatpush1.bf16.msra.mxu0 0
        %4269 = vmatprep.subr.bf16.mxu0 0
        %4270 = vmatpush1.bf16.msra.mxu0 0
        %4271 = vmatprep.subr.bf16.mxu0 0
        %4272 = vmatpush1.bf16.msra.mxu0 0
        %4273 = vmatprep.subr.bf16.mxu0 0
        %4274 = vmatpush1.bf16.msra.mxu0 0
        %4275 = vmatprep.subr.bf16.mxu0 0
        %4276 = vmatpush1.bf16.msra.mxu0 0
        %4277 = vmatprep.subr.bf16.mxu0 0
        %4278 = vmatpush1.bf16.msra.mxu0 0
        %4279 = vmatprep.mubr.bf16.mxu0 0
        %4280 = vmatmul.mubr.bf16.gmra.mrb[0].mxu0 %v4242
        %v4281 = vpop.f32.mrb[0].mxu0
        %v4282 = vadd.f32 %v4194, %v4281
        %v4283 = vpop.f32.mrb[0].mxu0
        %v4284 = vadd.f32 %v4198, %v4283
        %v4285 = vpop.f32.mrb[0].mxu0
        %v4286 = vadd.f32 %v4194, %v4285
        %v4287 = vpop.f32.mrb[0].mxu0
        %v4288 = vadd.f32 %v4198, %v4287
        %4289 = vmatprep.mubr.bf16.mxu0 0
        %4290 = vmatmul.mubr.bf16.gmra.mrb[0].mxu0 %v4245
        %v4291 = vpop.f32.mrb[0].mxu0
        %v4292 = vadd.f32 %v4194, %v4291
        %v4293 = vpop.f32.mrb[0].mxu0
        %v4294 = vadd.f32 %v4198, %v4293
        %v4295 = vpop.f32.mrb[0].mxu0
        %v4296 = vadd.f32 %v4194, %v4295
        %v4297 = vpop.f32.mrb[0].mxu0
        %v4298 = vadd.f32 %v4198, %v4297
        %4299 = vdwg.mxu0
        %v4300 = vmax.f32 %v4282, 0.0
        %v4301 = vmax.f32 %v4284, 0.0
        %v4302 = vmax.f32 %v4286, 0.0
        %v4303 = vmax.f32 %v4288, 0.0
        %v4304 = vmax.f32 %v4292, 0.0
        %v4305 = vmax.f32 %v4294, 0.0
        %v4306 = vmax.f32 %v4296, 0.0
        %v4307 = vmax.f32 %v4298, 0.0
        %v4308 = vpack.c.bf16 %v4302, %v4300
        %v4309 = vpack.c.bf16 %v4303, %v4301
        %v4310 = vpack.c.bf16 %v4306, %v4304
        %v4311 = vpack.c.bf16 %v4307, %v4305
        %v4312 = vld [vmem:[%s11] sm:$0xf]
        %v4313 = vld [vmem:[%s11 + $0x4] sm:$0xf]
        %v4314 = vld [vmem:[%s11 + $0x8] sm:$0xf]
        %v4315 = vld [vmem:[%s11 + $0xc] sm:$0xf]
        %v4316 = vld [vmem:[%s11 + $0x10] sm:$0xf]
        %v4317 = vld [vmem:[%s11 + $0x14] sm:$0xf]
        %v4318 = vld [vmem:[%s11 + $0x18] sm:$0xf]
        %v4319 = vld [vmem:[%s11 + $0x1c] sm:$0xf]
        %v4320 = vld [vmem:[%s11 + $0x20] sm:$0xf]
        %v4321 = vld [vmem:[%s11 + $0x24] sm:$0xf]
        %v4322 = vld [vmem:[%s11 + $0x28] sm:$0xf]
        %v4323 = vld [vmem:[%s11 + $0x2c] sm:$0xf]
        %v4324 = vld [vmem:[%s11 + $0x30] sm:$0xf]
        %v4325 = vld [vmem:[%s11 + $0x34] sm:$0xf]
        %v4326 = vld [vmem:[%s11 + $0x38] sm:$0xf]
        %v4327 = vld [vmem:[%s11 + $0x3c] sm:$0xf]
        %v4328 = vld [vmem:[%s11 + $0x40] sm:$0xf]
        %v4329 = vld [vmem:[%s11 + $0x44] sm:$0xf]
        %v4330 = vld [vmem:[%s11 + $0x48] sm:$0xf]
        %v4331 = vld [vmem:[%s11 + $0x4c] sm:$0xf]
        %v4332 = vld [vmem:[%s11 + $0x50] sm:$0xf]
        %v4333 = vld [vmem:[%s11 + $0x54] sm:$0xf]
        %v4334 = vld [vmem:[%s11 + $0x58] sm:$0xf]
        %v4335 = vld [vmem:[%s11 + $0x5c] sm:$0xf]
        %v4336 = vld [vmem:[%s11 + $0x60] sm:$0xf]
        %v4337 = vld [vmem:[%s11 + $0x64] sm:$0xf]
        %v4338 = vld [vmem:[%s11 + $0x68] sm:$0xf]
        %v4339 = vld [vmem:[%s11 + $0x6c] sm:$0xf]
        %v4340 = vld [vmem:[%s11 + $0x70] sm:$0xf]
        %v4341 = vld [vmem:[%s11 + $0x74] sm:$0xf]
        %v4342 = vld [vmem:[%s11 + $0x78] sm:$0xf]
        %v4343 = vld [vmem:[%s11 + $0x7c] sm:$0xf]
        %v4344 = vld [vmem:[%s12] sm:$0x1]
        %v4346 = vlaneseq
        %v4347 = vshrl.u32 %v4346, 7
        %v4348 = vsub.s32 0, %v4347
        %v4349 = vrot.slane %v4344, %v4348
        %v4383 = vunpack.c.l.b16 %v4312
        %v4384 = vunpack.c.l.b16 %v4313
        %v4385 = vunpack.c.l.b16 %v4314
        %v4386 = vunpack.c.l.b16 %v4315
        %v4387 = vunpack.c.l.b16 %v4316
        %v4388 = vunpack.c.l.b16 %v4317
        %v4389 = vunpack.c.l.b16 %v4318
        %v4390 = vunpack.c.l.b16 %v4319
        %v4391 = vunpack.c.l.b16 %v4320
        %v4392 = vunpack.c.l.b16 %v4321
        %v4393 = vunpack.c.l.b16 %v4322
        %v4394 = vunpack.c.l.b16 %v4323
        %v4395 = vunpack.c.l.b16 %v4324
        %v4396 = vunpack.c.l.b16 %v4325
        %v4397 = vunpack.c.l.b16 %v4326
        %v4398 = vunpack.c.l.b16 %v4327
        %v4399 = vunpack.c.l.b16 %v4328
        %v4400 = vunpack.c.l.b16 %v4329
        %v4401 = vunpack.c.l.b16 %v4330
        %v4402 = vunpack.c.l.b16 %v4331
        %v4403 = vunpack.c.l.b16 %v4332
        %v4404 = vunpack.c.l.b16 %v4333
        %v4405 = vunpack.c.l.b16 %v4334
        %v4406 = vunpack.c.l.b16 %v4335
        %v4407 = vunpack.c.l.b16 %v4336
        %v4408 = vunpack.c.l.b16 %v4337
        %v4409 = vunpack.c.l.b16 %v4338
        %v4410 = vunpack.c.l.b16 %v4339
        %v4411 = vunpack.c.l.b16 %v4340
        %v4412 = vunpack.c.l.b16 %v4341
        %v4413 = vunpack.c.l.b16 %v4342
        %v4414 = vunpack.c.l.b16 %v4343
        %v4415 = vpack.c.b16 %v4384, %v4383
        %v4416 = vpack.c.b16 %v4386, %v4385
        %v4417 = vpack.c.b16 %v4388, %v4387
        %v4418 = vpack.c.b16 %v4390, %v4389
        %v4419 = vpack.c.b16 %v4392, %v4391
        %v4420 = vpack.c.b16 %v4394, %v4393
        %v4421 = vpack.c.b16 %v4396, %v4395
        %v4422 = vpack.c.b16 %v4398, %v4397
        %v4423 = vpack.c.b16 %v4400, %v4399
        %v4424 = vpack.c.b16 %v4402, %v4401
        %v4425 = vpack.c.b16 %v4404, %v4403
        %v4426 = vpack.c.b16 %v4406, %v4405
        %v4427 = vpack.c.b16 %v4408, %v4407
        %v4428 = vpack.c.b16 %v4410, %v4409
        %v4429 = vpack.c.b16 %v4412, %v4411
        %v4430 = vpack.c.b16 %v4414, %v4413
        %4447 = vmatprep.subr.bf16.mxu0 0
        %4448 = vmatpush1.bf16.msra.mxu0 %v4415
        %4449 = vmatprep.subr.bf16.mxu0 0
        %4450 = vmatpush1.bf16.msra.mxu0 %v4416
        %4451 = vmatprep.subr.bf16.mxu0 0
        %4452 = vmatpush1.bf16.msra.mxu0 %v4417
        %4453 = vmatprep.subr.bf16.mxu0 0
        %4454 = vmatpush1.bf16.msra.mxu0 %v4418
        %4455 = vmatprep.subr.bf16.mxu0 0
        %4456 = vmatpush1.bf16.msra.mxu0 %v4419
        %4457 = vmatprep.subr.bf16.mxu0 0
        %4458 = vmatpush1.bf16.msra.mxu0 %v4420
        %4459 = vmatprep.subr.bf16.mxu0 0
        %4460 = vmatpush1.bf16.msra.mxu0 %v4421
        %4461 = vmatprep.subr.bf16.mxu0 0
        %4462 = vmatpush1.bf16.msra.mxu0 %v4422
        %4463 = vmatprep.subr.bf16.mxu0 0
        %4464 = vmatpush1.bf16.msra.mxu0 %v4423
        %4465 = vmatprep.subr.bf16.mxu0 0
        %4466 = vmatpush1.bf16.msra.mxu0 %v4424
        %4467 = vmatprep.subr.bf16.mxu0 0
        %4468 = vmatpush1.bf16.msra.mxu0 %v4425
        %4469 = vmatprep.subr.bf16.mxu0 0
        %4470 = vmatpush1.bf16.msra.mxu0 %v4426
        %4471 = vmatprep.subr.bf16.mxu0 0
        %4472 = vmatpush1.bf16.msra.mxu0 %v4427
        %4473 = vmatprep.subr.bf16.mxu0 0
        %4474 = vmatpush1.bf16.msra.mxu0 %v4428
        %4475 = vmatprep.subr.bf16.mxu0 0
        %4476 = vmatpush1.bf16.msra.mxu0 %v4429
        %4477 = vmatprep.subr.bf16.mxu0 0
        %4478 = vmatpush1.bf16.msra.mxu0 %v4430
        %4479 = vmatprep.mubr.bf16.mxu0 %v4309
        %4480 = vmatmul.mubr.bf16.gmra.mrb[0].mxu0 %v4308
        %v4481 = vpop.f32.mrb[0].mxu0
        %v4482 = vadd.f32 %v4349, %v4481
        %v4483 = vpop.f32.mrb[0].mxu0
        %v4484 = vpop.f32.mrb[0].mxu0
        %v4485 = vadd.f32 %v4349, %v4484
        %v4486 = vpop.f32.mrb[0].mxu0
        %4487 = vmatprep.mubr.bf16.mxu0 %v4311
        %4488 = vmatmul.mubr.bf16.gmra.mrb[0].mxu0 %v4310
        %v4489 = vpop.f32.mrb[0].mxu0
        %v4490 = vadd.f32 %v4349, %v4489
        %v4491 = vpop.f32.mrb[0].mxu0
        %v4492 = vpop.f32.mrb[0].mxu0
        %v4493 = vadd.f32 %v4349, %v4492
        %v4494 = vpop.f32.mrb[0].mxu0
        %4495 = vdwg.mxu0
        %v4496 = vadd.f32 %v4175, %v4482
        %v4497 = vadd.f32 %v4176, %v4485
        %v4498 = vadd.f32 %v4177, %v4490
        %v4499 = vadd.f32 %v4178, %v4493
        %v4500 = vld [vmem:[%s15] sm:$0x1]
        %v4501 = vld [vmem:[%s16] sm:$0x1]
        %v4502 = vsel %vm3057, %v4496, 0.0
        %4503 = vadd.xlane.f32.xlu0 %v4502
        %v4504 = vpop.xlane.xlu0 %4503
        %v4505 = vsel %vm3057, %v4497, 0.0
        %4506 = vadd.xlane.f32.xlu0 %v4505
        %v4507 = vpop.xlane.xlu0 %4506
        %v4508 = vsel %vm3057, %v4498, 0.0
        %4509 = vadd.xlane.f32.xlu0 %v4508
        %v4510 = vpop.xlane.xlu0 %4509
        %v4511 = vsel %vm3057, %v4499, 0.0
        %4512 = vadd.xlane.f32.xlu0 %v4511
        %v4513 = vpop.xlane.xlu0 %4512
        %v4514 = vmul.f32 %v4504, %v4118
        %v4515 = vmul.f32 %v4507, %v4118
        %v4516 = vmul.f32 %v4510, %v4118
        %v4517 = vmul.f32 %v4513, %v4118
        %v4518 = vsub.f32 %v4496, %v4514
        %v4519 = vsub.f32 %v4497, %v4515
        %v4520 = vsub.f32 %v4498, %v4516
        %v4521 = vsub.f32 %v4499, %v4517
        %v4522 = vmul.f32 %v4518, %v4518
        %v4523 = vmul.f32 %v4519, %v4519
        %v4524 = vmul.f32 %v4520, %v4520
        %v4525 = vmul.f32 %v4521, %v4521
        %v4526 = vsel %vm3057, %v4522, 0.0
        %4527 = vadd.xlane.f32.xlu0 %v4526
        %v4528 = vpop.xlane.xlu0 %4527
        %v4529 = vsel %vm3057, %v4523, 0.0
        %4530 = vadd.xlane.f32.xlu0 %v4529
        %v4531 = vpop.xlane.xlu0 %4530
        %v4532 = vsel %vm3057, %v4524, 0.0
        %4533 = vadd.xlane.f32.xlu0 %v4532
        %v4534 = vpop.xlane.xlu0 %4533
        %v4535 = vsel %vm3057, %v4525, 0.0
        %4536 = vadd.xlane.f32.xlu0 %v4535
        %v4537 = vpop.xlane.xlu0 %4536
        %v4538 = vmul.f32 %v4528, %v4118
        %v4539 = vmul.f32 %v4531, %v4118
        %v4540 = vmul.f32 %v4534, %v4118
        %v4541 = vmul.f32 %v4537, %v4118
        %v4542 = vadd.f32 %v4538, 1e-05
        %v4543 = vadd.f32 %v4539, 1e-05
        %v4544 = vadd.f32 %v4540, 1e-05
        %v4545 = vadd.f32 %v4541, 1e-05
        %v4546 = vrsqrt.pop %v4542
        %v4547 = vrsqrt.pop %v4543
        %v4548 = vrsqrt.pop %v4544
        %v4549 = vrsqrt.pop %v4545
        %v4550 = vmul.f32 %v4518, %v4546
        %v4551 = vmul.f32 %v4519, %v4547
        %v4552 = vmul.f32 %v4520, %v4548
        %v4553 = vmul.f32 %v4521, %v4549
        %v4555 = vlaneseq
        %v4556 = vshrl.u32 %v4555, 7
        %v4557 = vsub.s32 0, %v4556
        %v4558 = vrot.slane %v4500, %v4557
        %v4560 = vmul.f32 %v4550, %v4558
        %v4561 = vmul.f32 %v4551, %v4558
        %v4562 = vmul.f32 %v4552, %v4558
        %v4563 = vmul.f32 %v4553, %v4558
        %v4565 = vlaneseq
        %v4566 = vshrl.u32 %v4565, 7
        %v4567 = vsub.s32 0, %v4566
        %v4568 = vrot.slane %v4501, %v4567
        %v4570 = vadd.f32 %v4560, %v4568
        %v4571 = vadd.f32 %v4561, %v4568
        %v4572 = vadd.f32 %v4562, %v4568
        %v4573 = vadd.f32 %v4563, %v4568
        %v4574 = vpack.c.bf16 %v4571, %v4570
        %v4575 = vpack.c.bf16 %v4573, %v4572
        %s4576 = scalar_lea.vmem %s5, 64
        %v4577 = vld [vmem:[%s4576] sm:$0xff]
        %v4578 = vld [vmem:[%s4576 + $0x8] sm:$0xff]
        %v4579 = vld [vmem:[%s4576 + $0x10] sm:$0xff]
        %v4580 = vld [vmem:[%s4576 + $0x18] sm:$0xff]
        %v4581 = vld [vmem:[%s4576 + $0x20] sm:$0xff]
        %v4582 = vld [vmem:[%s4576 + $0x28] sm:$0xff]
        %v4583 = vld [vmem:[%s4576 + $0x30] sm:$0xff]
        %v4584 = vld [vmem:[%s4576 + $0x38] sm:$0xff]
        %s4585 = scalar_lea.vmem %s6, 2
        %v4586 = vld [vmem:[%s4585] sm:$0x3]
        %v4588 = vlaneseq
        %v4589 = vshrl.u32 %v4588, 7
        %v4590 = vsub.s32 0, %v4589
        %v4591 = vrot.slane %v4586, %v4590
        %v4592 = vlaneseq
        %v4593 = vshrl.u32 %v4592, 7
        %v4594 = vsub.s32 1, %v4593
        %v4595 = vrot.slane %v4586, %v4594
        %v4606 = vunpack.c.l.b16 %v4577
        %v4607 = vunpack.c.h.b16 %v4577
        %v4608 = vunpack.c.l.b16 %v4578
        %v4609 = vunpack.c.h.b16 %v4578
        %v4610 = vunpack.c.l.b16 %v4579
        %v4611 = vunpack.c.h.b16 %v4579
        %v4612 = vunpack.c.l.b16 %v4580
        %v4613 = vunpack.c.h.b16 %v4580
        %v4614 = vunpack.c.l.b16 %v4581
        %v4615 = vunpack.c.h.b16 %v4581
        %v4616 = vunpack.c.l.b16 %v4582
        %v4617 = vunpack.c.h.b16 %v4582
        %v4618 = vunpack.c.l.b16 %v4583
        %v4619 = vunpack.c.h.b16 %v4583
        %v4620 = vunpack.c.l.b16 %v4584
        %v4621 = vunpack.c.h.b16 %v4584
        %v4622 = vpack.c.b16 %v4608, %v4606
        %v4623 = vpack.c.b16 %v4609, %v4607
        %v4624 = vpack.c.b16 %v4612, %v4610
        %v4625 = vpack.c.b16 %v4613, %v4611
        %v4626 = vpack.c.b16 %v4616, %v4614
        %v4627 = vpack.c.b16 %v4617, %v4615
        %v4628 = vpack.c.b16 %v4620, %v4618
        %v4629 = vpack.c.b16 %v4621, %v4619
        %v4639 = vsel %vm3057, %v4574, 0
        %v4642 = vsel %vm3057, %v4575, 0
        %4644 = vmatprep.subr.bf16.mxu0 %v4623
        %4645 = vmatpush1.bf16.msra.mxu0 %v4622
        %4646 = vmatprep.subr.bf16.mxu0 %v4625
        %4647 = vmatpush1.bf16.msra.mxu0 %v4624
        %4648 = vmatprep.subr.bf16.mxu0 %v4627
        %4649 = vmatpush1.bf16.msra.mxu0 %v4626
        %4650 = vmatprep.subr.bf16.mxu0 %v4629
        %4651 = vmatpush1.bf16.msra.mxu0 %v4628
        %4652 = vmatprep.subr.bf16.mxu0 0
        %4653 = vmatpush1.bf16.msra.mxu0 0
        %4654 = vmatprep.subr.bf16.mxu0 0
        %4655 = vmatpush1.bf16.msra.mxu0 0
        %4656 = vmatprep.subr.bf16.mxu0 0
        %4657 = vmatpush1.bf16.msra.mxu0 0
        %4658 = vmatprep.subr.bf16.mxu0 0
        %4659 = vmatpush1.bf16.msra.mxu0 0
        %4660 = vmatprep.subr.bf16.mxu0 0
        %4661 = vmatpush1.bf16.msra.mxu0 0
        %4662 = vmatprep.subr.bf16.mxu0 0
        %4663 = vmatpush1.bf16.msra.mxu0 0
        %4664 = vmatprep.subr.bf16.mxu0 0
        %4665 = vmatpush1.bf16.msra.mxu0 0
        %4666 = vmatprep.subr.bf16.mxu0 0
        %4667 = vmatpush1.bf16.msra.mxu0 0
        %4668 = vmatprep.subr.bf16.mxu0 0
        %4669 = vmatpush1.bf16.msra.mxu0 0
        %4670 = vmatprep.subr.bf16.mxu0 0
        %4671 = vmatpush1.bf16.msra.mxu0 0
        %4672 = vmatprep.subr.bf16.mxu0 0
        %4673 = vmatpush1.bf16.msra.mxu0 0
        %4674 = vmatprep.subr.bf16.mxu0 0
        %4675 = vmatpush1.bf16.msra.mxu0 0
        %4676 = vmatprep.mubr.bf16.mxu0 0
        %4677 = vmatmul.mubr.bf16.gmra.mrb[0].mxu0 %v4639
        %v4678 = vpop.f32.mrb[0].mxu0
        %v4679 = vadd.f32 %v4591, %v4678
        %v4680 = vpop.f32.mrb[0].mxu0
        %v4681 = vadd.f32 %v4595, %v4680
        %v4682 = vpop.f32.mrb[0].mxu0
        %v4683 = vadd.f32 %v4591, %v4682
        %v4684 = vpop.f32.mrb[0].mxu0
        %v4685 = vadd.f32 %v4595, %v4684
        %4686 = vmatprep.mubr.bf16.mxu0 0
        %4687 = vmatmul.mubr.bf16.gmra.mrb[0].mxu0 %v4642
        %v4688 = vpop.f32.mrb[0].mxu0
        %v4689 = vadd.f32 %v4591, %v4688
        %v4690 = vpop.f32.mrb[0].mxu0
        %v4691 = vadd.f32 %v4595, %v4690
        %v4692 = vpop.f32.mrb[0].mxu0
        %v4693 = vadd.f32 %v4591, %v4692
        %v4694 = vpop.f32.mrb[0].mxu0
        %v4695 = vadd.f32 %v4595, %v4694
        %4696 = vdwg.mxu0
        %s4697 = scalar_lea.vmem %s7, 32
        %v4698 = vld [vmem:[%s4697] sm:$0xf]
        %v4699 = vld [vmem:[%s4697 + $0x4] sm:$0xf]
        %v4700 = vld [vmem:[%s4697 + $0x8] sm:$0xf]
        %v4701 = vld [vmem:[%s4697 + $0xc] sm:$0xf]
        %v4702 = vld [vmem:[%s4697 + $0x10] sm:$0xf]
        %v4703 = vld [vmem:[%s4697 + $0x14] sm:$0xf]
        %v4704 = vld [vmem:[%s4697 + $0x18] sm:$0xf]
        %v4705 = vld [vmem:[%s4697 + $0x1c] sm:$0xf]
        %v4706 = vpack.c.bf16 %v4683, %v4679
        %v4707 = vpack.c.bf16 %v4693, %v4689
        %v4708 = vpack.c.bf16 %v4685, %v4681
        %v4709 = vpack.c.bf16 %v4695, %v4691
        %4712 = vrot.lane.b32.xlu0 %v4706, 64
        %v4713 = vpop.permute.xlu0 %4712
        %4714 = vrot.lane.b32.xlu0 %v4707, 64
        %v4715 = vpop.permute.xlu0 %4714
        %v4717 = vsel %vm3135, %v4706, 0
        %v4720 = vsel %vm3135, %v4707, 0
        %v4723 = vsel %vm3135, %v4713, 0
        %v4726 = vsel %vm3135, %v4715, 0
        %4728 = vmatprep.subr.bf16.mxu0 0
        %4729 = vmatpush1.bf16.xpose.msra.mxu0 %v4723
        %4730 = vmatprep.subr.bf16.mxu0 0
        %4731 = vmatpush1.bf16.xpose.msra.mxu0 %v4726
        %4732 = vmatprep.subr.bf16.mxu0 0
        %4733 = vmatpush1.bf16.xpose.msra.mxu0 0
        %4734 = vmatprep.subr.bf16.mxu0 0
        %4735 = vmatpush1.bf16.xpose.msra.mxu0 0
        %4736 = vmatprep.subr.bf16.mxu0 0
        %4737 = vmatpush1.bf16.xpose.msra.mxu0 0
        %4738 = vmatprep.subr.bf16.mxu0 0
        %4739 = vmatpush1.bf16.xpose.msra.mxu0 0
        %4740 = vmatprep.subr.bf16.mxu0 0
        %4741 = vmatpush1.bf16.xpose.msra.mxu0 0
        %4742 = vmatprep.subr.bf16.mxu0 0
        %4743 = vmatpush1.bf16.xpose.msra.mxu0 0
        %4744 = vmatprep.subr.bf16.mxu0 0
        %4745 = vmatpush1.bf16.xpose.msra.mxu0 0
        %4746 = vmatprep.subr.bf16.mxu0 0
        %4747 = vmatpush1.bf16.xpose.msra.mxu0 0
        %4748 = vmatprep.subr.bf16.mxu0 0
        %4749 = vmatpush1.bf16.xpose.msra.mxu0 0
        %4750 = vmatprep.subr.bf16.mxu0 0
        %4751 = vmatpush1.bf16.xpose.msra.mxu0 0
        %4752 = vmatprep.subr.bf16.mxu0 0
        %4753 = vmatpush1.bf16.xpose.msra.mxu0 0
        %4754 = vmatprep.subr.bf16.mxu0 0
        %4755 = vmatpush1.bf16.xpose.msra.mxu0 0
        %4756 = vmatprep.subr.bf16.mxu0 0
        %4757 = vmatpush1.bf16.xpose.msra.mxu0 0
        %4758 = vmatprep.subr.bf16.mxu0 0
        %4759 = vmatpush1.bf16.xpose.msra.mxu0 0
        %4760 = vmatprep.mubr.bf16.mxu0 0
        %4761 = vmatmul.mubr.bf16.gmra.mrb[0].mxu0 %v4717
        %v4762 = vpop.f32.mrb[0].mxu0
        %v4763 = vadd.f32 0.0, %v4762
        %v4764 = vpop.f32.mrb[0].mxu0
        %v4765 = vpop.f32.mrb[0].mxu0
        %v4766 = vadd.f32 0.0, %v4765
        %v4767 = vpop.f32.mrb[0].mxu0
        %4768 = vmatprep.mubr.bf16.mxu0 0
        %4769 = vmatmul.mubr.bf16.gmra.mrb[0].mxu0 %v4720
        %v4770 = vpop.f32.mrb[0].mxu0
        %v4771 = vadd.f32 0.0, %v4770
        %v4772 = vpop.f32.mrb[0].mxu0
        %v4773 = vpop.f32.mrb[0].mxu0
        %v4774 = vadd.f32 0.0, %v4773
        %v4775 = vpop.f32.mrb[0].mxu0
        %4776 = vdwg.mxu0
        %v4777 = vsel %vm3197, %v4763, -inf
        %4778 = vmax.xlane.f32.xlu0 %v4777
        %v4779 = vpop.xlane.xlu0 %4778
        %v4780 = vsel %vm3197, %v4766, -inf
        %4781 = vmax.xlane.f32.xlu0 %v4780
        %v4782 = vpop.xlane.xlu0 %4781
        %v4783 = vsel %vm3197, %v4771, -inf
        %4784 = vmax.xlane.f32.xlu0 %v4783
        %v4785 = vpop.xlane.xlu0 %4784
        %v4786 = vsel %vm3197, %v4774, -inf
        %4787 = vmax.xlane.f32.xlu0 %v4786
        %v4788 = vpop.xlane.xlu0 %4787
        %v4789 = vsub.f32 %v4763, %v4779
        %v4790 = vsub.f32 %v4766, %v4782
        %v4791 = vsub.f32 %v4771, %v4785
        %v4792 = vsub.f32 %v4774, %v4788
        %v4793 = vmul.f32 %v4789, 1.442695
        %v4794 = vpow.pop %v4793
        %v4795 = vmul.f32 %v4790, 1.442695
        %v4796 = vpow.pop %v4795
        %v4797 = vmul.f32 %v4791, 1.442695
        %v4798 = vpow.pop %v4797
        %v4799 = vmul.f32 %v4792, 1.442695
        %v4800 = vpow.pop %v4799
        %v4801 = vsel %vm3197, %v4794, 0.0
        %4802 = vadd.xlane.f32.xlu0 %v4801
        %v4803 = vpop.xlane.xlu0 %4802
        %v4804 = vsel %vm3197, %v4796, 0.0
        %4805 = vadd.xlane.f32.xlu0 %v4804
        %v4806 = vpop.xlane.xlu0 %4805
        %v4807 = vsel %vm3197, %v4798, 0.0
        %4808 = vadd.xlane.f32.xlu0 %v4807
        %v4809 = vpop.xlane.xlu0 %4808
        %v4810 = vsel %vm3197, %v4800, 0.0
        %4811 = vadd.xlane.f32.xlu0 %v4810
        %v4812 = vpop.xlane.xlu0 %4811
        %v4813 = vrcp.pop %v4803
        %v4814 = vrcp.pop %v4806
        %v4815 = vrcp.pop %v4809
        %v4816 = vrcp.pop %v4812
        %v4817 = vmul.f32 %v4794, %v4813
        %v4818 = vmul.f32 %v4796, %v4814
        %v4819 = vmul.f32 %v4798, %v4815
        %v4820 = vmul.f32 %v4800, %v4816
        %v4821 = vpack.c.bf16 %v4818, %v4817
        %v4822 = vpack.c.bf16 %v4820, %v4819
        %v4824 = vsel %vm3197, %v4821, 0
        %v4827 = vsel %vm3197, %v4822, 0
        %4829 = vmatprep.subr.bf16.mxu0 0
        %4830 = vmatpush1.bf16.msra.mxu0 %v4708
        %4831 = vmatprep.subr.bf16.mxu0 0
        %4832 = vmatpush1.bf16.msra.mxu0 %v4709
        %4833 = vmatprep.subr.bf16.mxu0 0
        %4834 = vmatpush1.bf16.msra.mxu0 0
        %4835 = vmatprep.subr.bf16.mxu0 0
        %4836 = vmatpush1.bf16.msra.mxu0 0
        %4837 = vmatprep.subr.bf16.mxu0 0
        %4838 = vmatpush1.bf16.msra.mxu0 0
        %4839 = vmatprep.subr.bf16.mxu0 0
        %4840 = vmatpush1.bf16.msra.mxu0 0
        %4841 = vmatprep.subr.bf16.mxu0 0
        %4842 = vmatpush1.bf16.msra.mxu0 0
        %4843 = vmatprep.subr.bf16.mxu0 0
        %4844 = vmatpush1.bf16.msra.mxu0 0
        %4845 = vmatprep.subr.bf16.mxu0 0
        %4846 = vmatpush1.bf16.msra.mxu0 0
        %4847 = vmatprep.subr.bf16.mxu0 0
        %4848 = vmatpush1.bf16.msra.mxu0 0
        %4849 = vmatprep.subr.bf16.mxu0 0
        %4850 = vmatpush1.bf16.msra.mxu0 0
        %4851 = vmatprep.subr.bf16.mxu0 0
        %4852 = vmatpush1.bf16.msra.mxu0 0
        %4853 = vmatprep.subr.bf16.mxu0 0
        %4854 = vmatpush1.bf16.msra.mxu0 0
        %4855 = vmatprep.subr.bf16.mxu0 0
        %4856 = vmatpush1.bf16.msra.mxu0 0
        %4857 = vmatprep.subr.bf16.mxu0 0
        %4858 = vmatpush1.bf16.msra.mxu0 0
        %4859 = vmatprep.subr.bf16.mxu0 0
        %4860 = vmatpush1.bf16.msra.mxu0 0
        %4861 = vmatprep.mubr.bf16.mxu0 0
        %4862 = vmatmul.mubr.bf16.gmra.mrb[0].mxu0 %v4824
        %v4863 = vpop.f32.mrb[0].mxu0
        %v4864 = vadd.f32 0.0, %v4863
        %v4865 = vpop.f32.mrb[0].mxu0
        %v4866 = vpop.f32.mrb[0].mxu0
        %v4867 = vadd.f32 0.0, %v4866
        %v4868 = vpop.f32.mrb[0].mxu0
        %4869 = vmatprep.mubr.bf16.mxu0 0
        %4870 = vmatmul.mubr.bf16.gmra.mrb[0].mxu0 %v4827
        %v4871 = vpop.f32.mrb[0].mxu0
        %v4872 = vadd.f32 0.0, %v4871
        %v4873 = vpop.f32.mrb[0].mxu0
        %v4874 = vpop.f32.mrb[0].mxu0
        %v4875 = vadd.f32 0.0, %v4874
        %v4876 = vpop.f32.mrb[0].mxu0
        %4877 = vdwg.mxu0
        %v4878 = vpack.c.bf16 %v4867, %v4864
        %v4879 = vpack.c.bf16 %v4875, %v4872
        %4880 = vrot.lane.b32.xlu0 %v4706, 112
        %v4881 = vpop.permute.xlu0 %4880
        %4882 = vrot.lane.b32.xlu0 %v4707, 112
        %v4883 = vpop.permute.xlu0 %4882
        %4884 = vrot.lane.b32.xlu0 %v4706, 48
        %v4885 = vpop.permute.xlu0 %4884
        %4886 = vrot.lane.b32.xlu0 %v4707, 48
        %v4887 = vpop.permute.xlu0 %4886
        %v4889 = vsel %vm3135, %v4881, 0
        %v4892 = vsel %vm3135, %v4883, 0
        %v4895 = vsel %vm3135, %v4885, 0
        %v4898 = vsel %vm3135, %v4887, 0
        %4900 = vmatprep.subr.bf16.mxu0 0
        %4901 = vmatpush1.bf16.xpose.msra.mxu0 %v4895
        %4902 = vmatprep.subr.bf16.mxu0 0
        %4903 = vmatpush1.bf16.xpose.msra.mxu0 %v4898
        %4904 = vmatprep.subr.bf16.mxu0 0
        %4905 = vmatpush1.bf16.xpose.msra.mxu0 0
        %4906 = vmatprep.subr.bf16.mxu0 0
        %4907 = vmatpush1.bf16.xpose.msra.mxu0 0
        %4908 = vmatprep.subr.bf16.mxu0 0
        %4909 = vmatpush1.bf16.xpose.msra.mxu0 0
        %4910 = vmatprep.subr.bf16.mxu0 0
        %4911 = vmatpush1.bf16.xpose.msra.mxu0 0
        %4912 = vmatprep.subr.bf16.mxu0 0
        %4913 = vmatpush1.bf16.xpose.msra.mxu0 0
        %4914 = vmatprep.subr.bf16.mxu0 0
        %4915 = vmatpush1.bf16.xpose.msra.mxu0 0
        %4916 = vmatprep.subr.bf16.mxu0 0
        %4917 = vmatpush1.bf16.xpose.msra.mxu0 0
        %4918 = vmatprep.subr.bf16.mxu0 0
        %4919 = vmatpush1.bf16.xpose.msra.mxu0 0
        %4920 = vmatprep.subr.bf16.mxu0 0
        %4921 = vmatpush1.bf16.xpose.msra.mxu0 0
        %4922 = vmatprep.subr.bf16.mxu0 0
        %4923 = vmatpush1.bf16.xpose.msra.mxu0 0
        %4924 = vmatprep.subr.bf16.mxu0 0
        %4925 = vmatpush1.bf16.xpose.msra.mxu0 0
        %4926 = vmatprep.subr.bf16.mxu0 0
        %4927 = vmatpush1.bf16.xpose.msra.mxu0 0
        %4928 = vmatprep.subr.bf16.mxu0 0
        %4929 = vmatpush1.bf16.xpose.msra.mxu0 0
        %4930 = vmatprep.subr.bf16.mxu0 0
        %4931 = vmatpush1.bf16.xpose.msra.mxu0 0
        %4932 = vmatprep.mubr.bf16.mxu0 0
        %4933 = vmatmul.mubr.bf16.gmra.mrb[0].mxu0 %v4889
        %v4934 = vpop.f32.mrb[0].mxu0
        %v4935 = vadd.f32 0.0, %v4934
        %v4936 = vpop.f32.mrb[0].mxu0
        %v4937 = vpop.f32.mrb[0].mxu0
        %v4938 = vadd.f32 0.0, %v4937
        %v4939 = vpop.f32.mrb[0].mxu0
        %4940 = vmatprep.mubr.bf16.mxu0 0
        %4941 = vmatmul.mubr.bf16.gmra.mrb[0].mxu0 %v4892
        %v4942 = vpop.f32.mrb[0].mxu0
        %v4943 = vadd.f32 0.0, %v4942
        %v4944 = vpop.f32.mrb[0].mxu0
        %v4945 = vpop.f32.mrb[0].mxu0
        %v4946 = vadd.f32 0.0, %v4945
        %v4947 = vpop.f32.mrb[0].mxu0
        %4948 = vdwg.mxu0
        %v4949 = vsel %vm3197, %v4935, -inf
        %4950 = vmax.xlane.f32.xlu0 %v4949
        %v4951 = vpop.xlane.xlu0 %4950
        %v4952 = vsel %vm3197, %v4938, -inf
        %4953 = vmax.xlane.f32.xlu0 %v4952
        %v4954 = vpop.xlane.xlu0 %4953
        %v4955 = vsel %vm3197, %v4943, -inf
        %4956 = vmax.xlane.f32.xlu0 %v4955
        %v4957 = vpop.xlane.xlu0 %4956
        %v4958 = vsel %vm3197, %v4946, -inf
        %4959 = vmax.xlane.f32.xlu0 %v4958
        %v4960 = vpop.xlane.xlu0 %4959
        %v4961 = vsub.f32 %v4935, %v4951
        %v4962 = vsub.f32 %v4938, %v4954
        %v4963 = vsub.f32 %v4943, %v4957
        %v4964 = vsub.f32 %v4946, %v4960
        %v4965 = vmul.f32 %v4961, 1.442695
        %v4966 = vpow.pop %v4965
        %v4967 = vmul.f32 %v4962, 1.442695
        %v4968 = vpow.pop %v4967
        %v4969 = vmul.f32 %v4963, 1.442695
        %v4970 = vpow.pop %v4969
        %v4971 = vmul.f32 %v4964, 1.442695
        %v4972 = vpow.pop %v4971
        %v4973 = vsel %vm3197, %v4966, 0.0
        %4974 = vadd.xlane.f32.xlu0 %v4973
        %v4975 = vpop.xlane.xlu0 %4974
        %v4976 = vsel %vm3197, %v4968, 0.0
        %4977 = vadd.xlane.f32.xlu0 %v4976
        %v4978 = vpop.xlane.xlu0 %4977
        %v4979 = vsel %vm3197, %v4970, 0.0
        %4980 = vadd.xlane.f32.xlu0 %v4979
        %v4981 = vpop.xlane.xlu0 %4980
        %v4982 = vsel %vm3197, %v4972, 0.0
        %4983 = vadd.xlane.f32.xlu0 %v4982
        %v4984 = vpop.xlane.xlu0 %4983
        %v4985 = vrcp.pop %v4975
        %v4986 = vrcp.pop %v4978
        %v4987 = vrcp.pop %v4981
        %v4988 = vrcp.pop %v4984
        %v4989 = vmul.f32 %v4966, %v4985
        %v4990 = vmul.f32 %v4968, %v4986
        %v4991 = vmul.f32 %v4970, %v4987
        %v4992 = vmul.f32 %v4972, %v4988
        %v4993 = vpack.c.bf16 %v4990, %v4989
        %v4994 = vpack.c.bf16 %v4992, %v4991
        %4997 = vrot.lane.b32.xlu0 %v4708, 112
        %v4998 = vpop.permute.xlu0 %4997
        %4999 = vrot.lane.b32.xlu0 %v4709, 112
        %v5000 = vpop.permute.xlu0 %4999
        %v5004 = vsel %vm3197, %v4993, 0
        %v5007 = vsel %vm3197, %v4994, 0
        %5009 = vmatprep.subr.bf16.mxu0 0
        %5010 = vmatpush1.bf16.msra.mxu0 %v4998
        %5011 = vmatprep.subr.bf16.mxu0 0
        %5012 = vmatpush1.bf16.msra.mxu0 %v5000
        %5013 = vmatprep.subr.bf16.mxu0 0
        %5014 = vmatpush1.bf16.msra.mxu0 0
        %5015 = vmatprep.subr.bf16.mxu0 0
        %5016 = vmatpush1.bf16.msra.mxu0 0
        %5017 = vmatprep.subr.bf16.mxu0 0
        %5018 = vmatpush1.bf16.msra.mxu0 0
        %5019 = vmatprep.subr.bf16.mxu0 0
        %5020 = vmatpush1.bf16.msra.mxu0 0
        %5021 = vmatprep.subr.bf16.mxu0 0
        %5022 = vmatpush1.bf16.msra.mxu0 0
        %5023 = vmatprep.subr.bf16.mxu0 0
        %5024 = vmatpush1.bf16.msra.mxu0 0
        %5025 = vmatprep.subr.bf16.mxu0 0
        %5026 = vmatpush1.bf16.msra.mxu0 0
        %5027 = vmatprep.subr.bf16.mxu0 0
        %5028 = vmatpush1.bf16.msra.mxu0 0
        %5029 = vmatprep.subr.bf16.mxu0 0
        %5030 = vmatpush1.bf16.msra.mxu0 0
        %5031 = vmatprep.subr.bf16.mxu0 0
        %5032 = vmatpush1.bf16.msra.mxu0 0
        %5033 = vmatprep.subr.bf16.mxu0 0
        %5034 = vmatpush1.bf16.msra.mxu0 0
        %5035 = vmatprep.subr.bf16.mxu0 0
        %5036 = vmatpush1.bf16.msra.mxu0 0
        %5037 = vmatprep.subr.bf16.mxu0 0
        %5038 = vmatpush1.bf16.msra.mxu0 0
        %5039 = vmatprep.subr.bf16.mxu0 0
        %5040 = vmatpush1.bf16.msra.mxu0 0
        %5041 = vmatprep.mubr.bf16.mxu0 0
        %5042 = vmatmul.mubr.bf16.gmra.mrb[0].mxu0 %v5004
        %v5043 = vpop.f32.mrb[0].mxu0
        %v5044 = vadd.f32 0.0, %v5043
        %v5045 = vpop.f32.mrb[0].mxu0
        %v5046 = vpop.f32.mrb[0].mxu0
        %v5047 = vadd.f32 0.0, %v5046
        %v5048 = vpop.f32.mrb[0].mxu0
        %5049 = vmatprep.mubr.bf16.mxu0 0
        %5050 = vmatmul.mubr.bf16.gmra.mrb[0].mxu0 %v5007
        %v5051 = vpop.f32.mrb[0].mxu0
        %v5052 = vadd.f32 0.0, %v5051
        %v5053 = vpop.f32.mrb[0].mxu0
        %v5054 = vpop.f32.mrb[0].mxu0
        %v5055 = vadd.f32 0.0, %v5054
        %v5056 = vpop.f32.mrb[0].mxu0
        %5057 = vdwg.mxu0
        %v5058 = vpack.c.bf16 %v5047, %v5044
        %v5059 = vpack.c.bf16 %v5055, %v5052
        %v5062 = vunpack.c.l.b16 %v4700
        %v5063 = vunpack.c.l.b16 %v4701
        %v5064 = vpack.c.b16 %v5063, %v5062
        %v5067 = vsel %vm3135, %v5058, 0
        %v5070 = vsel %vm3135, %v5059, 0
        %5072 = vmatprep.subr.bf16.mxu0 0
        %5073 = vmatpush1.bf16.msra.mxu0 %v5064
        %5074 = vmatprep.subr.bf16.mxu0 0
        %5075 = vmatpush1.bf16.msra.mxu0 0
        %5076 = vmatprep.subr.bf16.mxu0 0
        %5077 = vmatpush1.bf16.msra.mxu0 0
        %5078 = vmatprep.subr.bf16.mxu0 0
        %5079 = vmatpush1.bf16.msra.mxu0 0
        %5080 = vmatprep.subr.bf16.mxu0 0
        %5081 = vmatpush1.bf16.msra.mxu0 0
        %5082 = vmatprep.subr.bf16.mxu0 0
        %5083 = vmatpush1.bf16.msra.mxu0 0
        %5084 = vmatprep.subr.bf16.mxu0 0
        %5085 = vmatpush1.bf16.msra.mxu0 0
        %5086 = vmatprep.subr.bf16.mxu0 0
        %5087 = vmatpush1.bf16.msra.mxu0 0
        %5088 = vmatprep.subr.bf16.mxu0 0
        %5089 = vmatpush1.bf16.msra.mxu0 0
        %5090 = vmatprep.subr.bf16.mxu0 0
        %5091 = vmatpush1.bf16.msra.mxu0 0
        %5092 = vmatprep.subr.bf16.mxu0 0
        %5093 = vmatpush1.bf16.msra.mxu0 0
        %5094 = vmatprep.subr.bf16.mxu0 0
        %5095 = vmatpush1.bf16.msra.mxu0 0
        %5096 = vmatprep.subr.bf16.mxu0 0
        %5097 = vmatpush1.bf16.msra.mxu0 0
        %5098 = vmatprep.subr.bf16.mxu0 0
        %5099 = vmatpush1.bf16.msra.mxu0 0
        %5100 = vmatprep.subr.bf16.mxu0 0
        %5101 = vmatpush1.bf16.msra.mxu0 0
        %5102 = vmatprep.subr.bf16.mxu0 0
        %5103 = vmatpush1.bf16.msra.mxu0 0
        %5104 = vmatprep.mubr.bf16.mxu0 0
        %5105 = vmatmul.mubr.bf16.gmra.mrb[0].mxu0 %v5067
        %v5106 = vpop.f32.mrb[0].mxu0
        %v5107 = vadd.f32 0.0, %v5106
        %v5108 = vpop.f32.mrb[0].mxu0
        %v5109 = vpop.f32.mrb[0].mxu0
        %v5110 = vadd.f32 0.0, %v5109
        %v5111 = vpop.f32.mrb[0].mxu0
        %5112 = vmatprep.mubr.bf16.mxu0 0
        %5113 = vmatmul.mubr.bf16.gmra.mrb[0].mxu0 %v5070
        %v5114 = vpop.f32.mrb[0].mxu0
        %v5115 = vadd.f32 0.0, %v5114
        %v5116 = vpop.f32.mrb[0].mxu0
        %v5117 = vpop.f32.mrb[0].mxu0
        %v5118 = vadd.f32 0.0, %v5117
        %v5119 = vpop.f32.mrb[0].mxu0
        %5120 = vdwg.mxu0
        %v5123 = vunpack.c.l.b16 %v4698
        %v5124 = vunpack.c.l.b16 %v4699
        %v5125 = vpack.c.b16 %v5124, %v5123
        %v5128 = vsel %vm3135, %v4878, 0
        %v5131 = vsel %vm3135, %v4879, 0
        %5133 = vmatprep.subr.bf16.mxu0 0
        %5134 = vmatpush1.bf16.msra.mxu0 %v5125
        %5135 = vmatprep.subr.bf16.mxu0 0
        %5136 = vmatpush1.bf16.msra.mxu0 0
        %5137 = vmatprep.subr.bf16.mxu0 0
        %5138 = vmatpush1.bf16.msra.mxu0 0
        %5139 = vmatprep.subr.bf16.mxu0 0
        %5140 = vmatpush1.bf16.msra.mxu0 0
        %5141 = vmatprep.subr.bf16.mxu0 0
        %5142 = vmatpush1.bf16.msra.mxu0 0
        %5143 = vmatprep.subr.bf16.mxu0 0
        %5144 = vmatpush1.bf16.msra.mxu0 0
        %5145 = vmatprep.subr.bf16.mxu0 0
        %5146 = vmatpush1.bf16.msra.mxu0 0
        %5147 = vmatprep.subr.bf16.mxu0 0
        %5148 = vmatpush1.bf16.msra.mxu0 0
        %5149 = vmatprep.subr.bf16.mxu0 0
        %5150 = vmatpush1.bf16.msra.mxu0 0
        %5151 = vmatprep.subr.bf16.mxu0 0
        %5152 = vmatpush1.bf16.msra.mxu0 0
        %5153 = vmatprep.subr.bf16.mxu0 0
        %5154 = vmatpush1.bf16.msra.mxu0 0
        %5155 = vmatprep.subr.bf16.mxu0 0
        %5156 = vmatpush1.bf16.msra.mxu0 0
        %5157 = vmatprep.subr.bf16.mxu0 0
        %5158 = vmatpush1.bf16.msra.mxu0 0
        %5159 = vmatprep.subr.bf16.mxu0 0
        %5160 = vmatpush1.bf16.msra.mxu0 0
        %5161 = vmatprep.subr.bf16.mxu0 0
        %5162 = vmatpush1.bf16.msra.mxu0 0
        %5163 = vmatprep.subr.bf16.mxu0 0
        %5164 = vmatpush1.bf16.msra.mxu0 0
        %5165 = vmatprep.mubr.bf16.mxu0 0
        %5166 = vmatmul.mubr.bf16.gmra.mrb[0].mxu0 %v5128
        %v5167 = vpop.f32.mrb[0].mxu0
        %v5168 = vadd.f32 %v5107, %v5167
        %v5169 = vpop.f32.mrb[0].mxu0
        %v5170 = vpop.f32.mrb[0].mxu0
        %v5171 = vadd.f32 %v5110, %v5170
        %v5172 = vpop.f32.mrb[0].mxu0
        %5173 = vmatprep.mubr.bf16.mxu0 0
        %5174 = vmatmul.mubr.bf16.gmra.mrb[0].mxu0 %v5131
        %v5175 = vpop.f32.mrb[0].mxu0
        %v5176 = vadd.f32 %v5115, %v5175
        %v5177 = vpop.f32.mrb[0].mxu0
        %v5178 = vpop.f32.mrb[0].mxu0
        %v5179 = vadd.f32 %v5118, %v5178
        %v5180 = vpop.f32.mrb[0].mxu0
        %5181 = vdwg.mxu0
        %5182 = vrot.lane.b32.xlu0 %v4706, 96
        %v5183 = vpop.permute.xlu0 %5182
        %5184 = vrot.lane.b32.xlu0 %v4707, 96
        %v5185 = vpop.permute.xlu0 %5184
        %5186 = vrot.lane.b32.xlu0 %v4706, 32
        %v5187 = vpop.permute.xlu0 %5186
        %5188 = vrot.lane.b32.xlu0 %v4707, 32
        %v5189 = vpop.permute.xlu0 %5188
        %v5191 = vsel %vm3135, %v5183, 0
        %v5194 = vsel %vm3135, %v5185, 0
        %v5197 = vsel %vm3135, %v5187, 0
        %v5200 = vsel %vm3135, %v5189, 0
        %5202 = vmatprep.subr.bf16.mxu0 0
        %5203 = vmatpush1.bf16.xpose.msra.mxu0 %v5197
        %5204 = vmatprep.subr.bf16.mxu0 0
        %5205 = vmatpush1.bf16.xpose.msra.mxu0 %v5200
        %5206 = vmatprep.subr.bf16.mxu0 0
        %5207 = vmatpush1.bf16.xpose.msra.mxu0 0
        %5208 = vmatprep.subr.bf16.mxu0 0
        %5209 = vmatpush1.bf16.xpose.msra.mxu0 0
        %5210 = vmatprep.subr.bf16.mxu0 0
        %5211 = vmatpush1.bf16.xpose.msra.mxu0 0
        %5212 = vmatprep.subr.bf16.mxu0 0
        %5213 = vmatpush1.bf16.xpose.msra.mxu0 0
        %5214 = vmatprep.subr.bf16.mxu0 0
        %5215 = vmatpush1.bf16.xpose.msra.mxu0 0
        %5216 = vmatprep.subr.bf16.mxu0 0
        %5217 = vmatpush1.bf16.xpose.msra.mxu0 0
        %5218 = vmatprep.subr.bf16.mxu0 0
        %5219 = vmatpush1.bf16.xpose.msra.mxu0 0
        %5220 = vmatprep.subr.bf16.mxu0 0
        %5221 = vmatpush1.bf16.xpose.msra.mxu0 0
        %5222 = vmatprep.subr.bf16.mxu0 0
        %5223 = vmatpush1.bf16.xpose.msra.mxu0 0
        %5224 = vmatprep.subr.bf16.mxu0 0
        %5225 = vmatpush1.bf16.xpose.msra.mxu0 0
        %5226 = vmatprep.subr.bf16.mxu0 0
        %5227 = vmatpush1.bf16.xpose.msra.mxu0 0
        %5228 = vmatprep.subr.bf16.mxu0 0
        %5229 = vmatpush1.bf16.xpose.msra.mxu0 0
        %5230 = vmatprep.subr.bf16.mxu0 0
        %5231 = vmatpush1.bf16.xpose.msra.mxu0 0
        %5232 = vmatprep.subr.bf16.mxu0 0
        %5233 = vmatpush1.bf16.xpose.msra.mxu0 0
        %5234 = vmatprep.mubr.bf16.mxu0 0
        %5235 = vmatmul.mubr.bf16.gmra.mrb[0].mxu0 %v5191
        %v5236 = vpop.f32.mrb[0].mxu0
        %v5237 = vadd.f32 0.0, %v5236
        %v5238 = vpop.f32.mrb[0].mxu0
        %v5239 = vpop.f32.mrb[0].mxu0
        %v5240 = vadd.f32 0.0, %v5239
        %v5241 = vpop.f32.mrb[0].mxu0
        %5242 = vmatprep.mubr.bf16.mxu0 0
        %5243 = vmatmul.mubr.bf16.gmra.mrb[0].mxu0 %v5194
        %v5244 = vpop.f32.mrb[0].mxu0
        %v5245 = vadd.f32 0.0, %v5244
        %v5246 = vpop.f32.mrb[0].mxu0
        %v5247 = vpop.f32.mrb[0].mxu0
        %v5248 = vadd.f32 0.0, %v5247
        %v5249 = vpop.f32.mrb[0].mxu0
        %5250 = vdwg.mxu0
        %v5251 = vsel %vm3197, %v5237, -inf
        %5252 = vmax.xlane.f32.xlu0 %v5251
        %v5253 = vpop.xlane.xlu0 %5252
        %v5254 = vsel %vm3197, %v5240, -inf
        %5255 = vmax.xlane.f32.xlu0 %v5254
        %v5256 = vpop.xlane.xlu0 %5255
        %v5257 = vsel %vm3197, %v5245, -inf
        %5258 = vmax.xlane.f32.xlu0 %v5257
        %v5259 = vpop.xlane.xlu0 %5258
        %v5260 = vsel %vm3197, %v5248, -inf
        %5261 = vmax.xlane.f32.xlu0 %v5260
        %v5262 = vpop.xlane.xlu0 %5261
        %v5263 = vsub.f32 %v5237, %v5253
        %v5264 = vsub.f32 %v5240, %v5256
        %v5265 = vsub.f32 %v5245, %v5259
        %v5266 = vsub.f32 %v5248, %v5262
        %v5267 = vmul.f32 %v5263, 1.442695
        %v5268 = vpow.pop %v5267
        %v5269 = vmul.f32 %v5264, 1.442695
        %v5270 = vpow.pop %v5269
        %v5271 = vmul.f32 %v5265, 1.442695
        %v5272 = vpow.pop %v5271
        %v5273 = vmul.f32 %v5266, 1.442695
        %v5274 = vpow.pop %v5273
        %v5275 = vsel %vm3197, %v5268, 0.0
        %5276 = vadd.xlane.f32.xlu0 %v5275
        %v5277 = vpop.xlane.xlu0 %5276
        %v5278 = vsel %vm3197, %v5270, 0.0
        %5279 = vadd.xlane.f32.xlu0 %v5278
        %v5280 = vpop.xlane.xlu0 %5279
        %v5281 = vsel %vm3197, %v5272, 0.0
        %5282 = vadd.xlane.f32.xlu0 %v5281
        %v5283 = vpop.xlane.xlu0 %5282
        %v5284 = vsel %vm3197, %v5274, 0.0
        %5285 = vadd.xlane.f32.xlu0 %v5284
        %v5286 = vpop.xlane.xlu0 %5285
        %v5287 = vrcp.pop %v5277
        %v5288 = vrcp.pop %v5280
        %v5289 = vrcp.pop %v5283
        %v5290 = vrcp.pop %v5286
        %v5291 = vmul.f32 %v5268, %v5287
        %v5292 = vmul.f32 %v5270, %v5288
        %v5293 = vmul.f32 %v5272, %v5289
        %v5294 = vmul.f32 %v5274, %v5290
        %v5295 = vpack.c.bf16 %v5292, %v5291
        %v5296 = vpack.c.bf16 %v5294, %v5293
        %5297 = vrot.lane.b32.xlu0 %v4708, 96
        %v5298 = vpop.permute.xlu0 %5297
        %5299 = vrot.lane.b32.xlu0 %v4709, 96
        %v5300 = vpop.permute.xlu0 %5299
        %v5304 = vsel %vm3197, %v5295, 0
        %v5307 = vsel %vm3197, %v5296, 0
        %5309 = vmatprep.subr.bf16.mxu0 0
        %5310 = vmatpush1.bf16.msra.mxu0 %v5298
        %5311 = vmatprep.subr.bf16.mxu0 0
        %5312 = vmatpush1.bf16.msra.mxu0 %v5300
        %5313 = vmatprep.subr.bf16.mxu0 0
        %5314 = vmatpush1.bf16.msra.mxu0 0
        %5315 = vmatprep.subr.bf16.mxu0 0
        %5316 = vmatpush1.bf16.msra.mxu0 0
        %5317 = vmatprep.subr.bf16.mxu0 0
        %5318 = vmatpush1.bf16.msra.mxu0 0
        %5319 = vmatprep.subr.bf16.mxu0 0
        %5320 = vmatpush1.bf16.msra.mxu0 0
        %5321 = vmatprep.subr.bf16.mxu0 0
        %5322 = vmatpush1.bf16.msra.mxu0 0
        %5323 = vmatprep.subr.bf16.mxu0 0
        %5324 = vmatpush1.bf16.msra.mxu0 0
        %5325 = vmatprep.subr.bf16.mxu0 0
        %5326 = vmatpush1.bf16.msra.mxu0 0
        %5327 = vmatprep.subr.bf16.mxu0 0
        %5328 = vmatpush1.bf16.msra.mxu0 0
        %5329 = vmatprep.subr.bf16.mxu0 0
        %5330 = vmatpush1.bf16.msra.mxu0 0
        %5331 = vmatprep.subr.bf16.mxu0 0
        %5332 = vmatpush1.bf16.msra.mxu0 0
        %5333 = vmatprep.subr.bf16.mxu0 0
        %5334 = vmatpush1.bf16.msra.mxu0 0
        %5335 = vmatprep.subr.bf16.mxu0 0
        %5336 = vmatpush1.bf16.msra.mxu0 0
        %5337 = vmatprep.subr.bf16.mxu0 0
        %5338 = vmatpush1.bf16.msra.mxu0 0
        %5339 = vmatprep.subr.bf16.mxu0 0
        %5340 = vmatpush1.bf16.msra.mxu0 0
        %5341 = vmatprep.mubr.bf16.mxu0 0
        %5342 = vmatmul.mubr.bf16.gmra.mrb[0].mxu0 %v5304
        %v5343 = vpop.f32.mrb[0].mxu0
        %v5344 = vadd.f32 0.0, %v5343
        %v5345 = vpop.f32.mrb[0].mxu0
        %v5346 = vpop.f32.mrb[0].mxu0
        %v5347 = vadd.f32 0.0, %v5346
        %v5348 = vpop.f32.mrb[0].mxu0
        %5349 = vmatprep.mubr.bf16.mxu0 0
        %5350 = vmatmul.mubr.bf16.gmra.mrb[0].mxu0 %v5307
        %v5351 = vpop.f32.mrb[0].mxu0
        %v5352 = vadd.f32 0.0, %v5351
        %v5353 = vpop.f32.mrb[0].mxu0
        %v5354 = vpop.f32.mrb[0].mxu0
        %v5355 = vadd.f32 0.0, %v5354
        %v5356 = vpop.f32.mrb[0].mxu0
        %5357 = vdwg.mxu0
        %v5358 = vpack.c.bf16 %v5347, %v5344
        %v5359 = vpack.c.bf16 %v5355, %v5352
        %v5362 = vunpack.c.l.b16 %v4702
        %v5363 = vunpack.c.l.b16 %v4703
        %v5364 = vpack.c.b16 %v5363, %v5362
        %v5367 = vsel %vm3135, %v5358, 0
        %v5370 = vsel %vm3135, %v5359, 0
        %5372 = vmatprep.subr.bf16.mxu0 0
        %5373 = vmatpush1.bf16.msra.mxu0 %v5364
        %5374 = vmatprep.subr.bf16.mxu0 0
        %5375 = vmatpush1.bf16.msra.mxu0 0
        %5376 = vmatprep.subr.bf16.mxu0 0
        %5377 = vmatpush1.bf16.msra.mxu0 0
        %5378 = vmatprep.subr.bf16.mxu0 0
        %5379 = vmatpush1.bf16.msra.mxu0 0
        %5380 = vmatprep.subr.bf16.mxu0 0
        %5381 = vmatpush1.bf16.msra.mxu0 0
        %5382 = vmatprep.subr.bf16.mxu0 0
        %5383 = vmatpush1.bf16.msra.mxu0 0
        %5384 = vmatprep.subr.bf16.mxu0 0
        %5385 = vmatpush1.bf16.msra.mxu0 0
        %5386 = vmatprep.subr.bf16.mxu0 0
        %5387 = vmatpush1.bf16.msra.mxu0 0
        %5388 = vmatprep.subr.bf16.mxu0 0
        %5389 = vmatpush1.bf16.msra.mxu0 0
        %5390 = vmatprep.subr.bf16.mxu0 0
        %5391 = vmatpush1.bf16.msra.mxu0 0
        %5392 = vmatprep.subr.bf16.mxu0 0
        %5393 = vmatpush1.bf16.msra.mxu0 0
        %5394 = vmatprep.subr.bf16.mxu0 0
        %5395 = vmatpush1.bf16.msra.mxu0 0
        %5396 = vmatprep.subr.bf16.mxu0 0
        %5397 = vmatpush1.bf16.msra.mxu0 0
        %5398 = vmatprep.subr.bf16.mxu0 0
        %5399 = vmatpush1.bf16.msra.mxu0 0
        %5400 = vmatprep.subr.bf16.mxu0 0
        %5401 = vmatpush1.bf16.msra.mxu0 0
        %5402 = vmatprep.subr.bf16.mxu0 0
        %5403 = vmatpush1.bf16.msra.mxu0 0
        %5404 = vmatprep.mubr.bf16.mxu0 0
        %5405 = vmatmul.mubr.bf16.gmra.mrb[0].mxu0 %v5367
        %v5406 = vpop.f32.mrb[0].mxu0
        %v5407 = vadd.f32 0.0, %v5406
        %v5408 = vpop.f32.mrb[0].mxu0
        %v5409 = vpop.f32.mrb[0].mxu0
        %v5410 = vadd.f32 0.0, %v5409
        %v5411 = vpop.f32.mrb[0].mxu0
        %5412 = vmatprep.mubr.bf16.mxu0 0
        %5413 = vmatmul.mubr.bf16.gmra.mrb[0].mxu0 %v5370
        %v5414 = vpop.f32.mrb[0].mxu0
        %v5415 = vadd.f32 0.0, %v5414
        %v5416 = vpop.f32.mrb[0].mxu0
        %v5417 = vpop.f32.mrb[0].mxu0
        %v5418 = vadd.f32 0.0, %v5417
        %v5419 = vpop.f32.mrb[0].mxu0
        %5420 = vdwg.mxu0
        %v5421 = vadd.f32 %v5168, %v5407
        %v5422 = vadd.f32 %v5171, %v5410
        %v5423 = vadd.f32 %v5176, %v5415
        %v5424 = vadd.f32 %v5179, %v5418
        %5425 = vrot.lane.b32.xlu0 %v4706, 80
        %v5426 = vpop.permute.xlu0 %5425
        %5427 = vrot.lane.b32.xlu0 %v4707, 80
        %v5428 = vpop.permute.xlu0 %5427
        %5429 = vrot.lane.b32.xlu0 %v4706, 16
        %v5430 = vpop.permute.xlu0 %5429
        %5431 = vrot.lane.b32.xlu0 %v4707, 16
        %v5432 = vpop.permute.xlu0 %5431
        %v5434 = vsel %vm3135, %v5426, 0
        %v5437 = vsel %vm3135, %v5428, 0
        %v5440 = vsel %vm3135, %v5430, 0
        %v5443 = vsel %vm3135, %v5432, 0
        %5445 = vmatprep.subr.bf16.mxu0 0
        %5446 = vmatpush1.bf16.xpose.msra.mxu0 %v5440
        %5447 = vmatprep.subr.bf16.mxu0 0
        %5448 = vmatpush1.bf16.xpose.msra.mxu0 %v5443
        %5449 = vmatprep.subr.bf16.mxu0 0
        %5450 = vmatpush1.bf16.xpose.msra.mxu0 0
        %5451 = vmatprep.subr.bf16.mxu0 0
        %5452 = vmatpush1.bf16.xpose.msra.mxu0 0
        %5453 = vmatprep.subr.bf16.mxu0 0
        %5454 = vmatpush1.bf16.xpose.msra.mxu0 0
        %5455 = vmatprep.subr.bf16.mxu0 0
        %5456 = vmatpush1.bf16.xpose.msra.mxu0 0
        %5457 = vmatprep.subr.bf16.mxu0 0
        %5458 = vmatpush1.bf16.xpose.msra.mxu0 0
        %5459 = vmatprep.subr.bf16.mxu0 0
        %5460 = vmatpush1.bf16.xpose.msra.mxu0 0
        %5461 = vmatprep.subr.bf16.mxu0 0
        %5462 = vmatpush1.bf16.xpose.msra.mxu0 0
        %5463 = vmatprep.subr.bf16.mxu0 0
        %5464 = vmatpush1.bf16.xpose.msra.mxu0 0
        %5465 = vmatprep.subr.bf16.mxu0 0
        %5466 = vmatpush1.bf16.xpose.msra.mxu0 0
        %5467 = vmatprep.subr.bf16.mxu0 0
        %5468 = vmatpush1.bf16.xpose.msra.mxu0 0
        %5469 = vmatprep.subr.bf16.mxu0 0
        %5470 = vmatpush1.bf16.xpose.msra.mxu0 0
        %5471 = vmatprep.subr.bf16.mxu0 0
        %5472 = vmatpush1.bf16.xpose.msra.mxu0 0
        %5473 = vmatprep.subr.bf16.mxu0 0
        %5474 = vmatpush1.bf16.xpose.msra.mxu0 0
        %5475 = vmatprep.subr.bf16.mxu0 0
        %5476 = vmatpush1.bf16.xpose.msra.mxu0 0
        %5477 = vmatprep.mubr.bf16.mxu0 0
        %5478 = vmatmul.mubr.bf16.gmra.mrb[0].mxu0 %v5434
        %v5479 = vpop.f32.mrb[0].mxu0
        %v5480 = vadd.f32 0.0, %v5479
        %v5481 = vpop.f32.mrb[0].mxu0
        %v5482 = vpop.f32.mrb[0].mxu0
        %v5483 = vadd.f32 0.0, %v5482
        %v5484 = vpop.f32.mrb[0].mxu0
        %5485 = vmatprep.mubr.bf16.mxu0 0
        %5486 = vmatmul.mubr.bf16.gmra.mrb[0].mxu0 %v5437
        %v5487 = vpop.f32.mrb[0].mxu0
        %v5488 = vadd.f32 0.0, %v5487
        %v5489 = vpop.f32.mrb[0].mxu0
        %v5490 = vpop.f32.mrb[0].mxu0
        %v5491 = vadd.f32 0.0, %v5490
        %v5492 = vpop.f32.mrb[0].mxu0
        %5493 = vdwg.mxu0
        %v5494 = vsel %vm3197, %v5480, -inf
        %5495 = vmax.xlane.f32.xlu0 %v5494
        %v5496 = vpop.xlane.xlu0 %5495
        %v5497 = vsel %vm3197, %v5483, -inf
        %5498 = vmax.xlane.f32.xlu0 %v5497
        %v5499 = vpop.xlane.xlu0 %5498
        %v5500 = vsel %vm3197, %v5488, -inf
        %5501 = vmax.xlane.f32.xlu0 %v5500
        %v5502 = vpop.xlane.xlu0 %5501
        %v5503 = vsel %vm3197, %v5491, -inf
        %5504 = vmax.xlane.f32.xlu0 %v5503
        %v5505 = vpop.xlane.xlu0 %5504
        %v5506 = vsub.f32 %v5480, %v5496
        %v5507 = vsub.f32 %v5483, %v5499
        %v5508 = vsub.f32 %v5488, %v5502
        %v5509 = vsub.f32 %v5491, %v5505
        %v5510 = vmul.f32 %v5506, 1.442695
        %v5511 = vpow.pop %v5510
        %v5512 = vmul.f32 %v5507, 1.442695
        %v5513 = vpow.pop %v5512
        %v5514 = vmul.f32 %v5508, 1.442695
        %v5515 = vpow.pop %v5514
        %v5516 = vmul.f32 %v5509, 1.442695
        %v5517 = vpow.pop %v5516
        %v5518 = vsel %vm3197, %v5511, 0.0
        %5519 = vadd.xlane.f32.xlu0 %v5518
        %v5520 = vpop.xlane.xlu0 %5519
        %v5521 = vsel %vm3197, %v5513, 0.0
        %5522 = vadd.xlane.f32.xlu0 %v5521
        %v5523 = vpop.xlane.xlu0 %5522
        %v5524 = vsel %vm3197, %v5515, 0.0
        %5525 = vadd.xlane.f32.xlu0 %v5524
        %v5526 = vpop.xlane.xlu0 %5525
        %v5527 = vsel %vm3197, %v5517, 0.0
        %5528 = vadd.xlane.f32.xlu0 %v5527
        %v5529 = vpop.xlane.xlu0 %5528
        %v5530 = vrcp.pop %v5520
        %v5531 = vrcp.pop %v5523
        %v5532 = vrcp.pop %v5526
        %v5533 = vrcp.pop %v5529
        %v5534 = vmul.f32 %v5511, %v5530
        %v5535 = vmul.f32 %v5513, %v5531
        %v5536 = vmul.f32 %v5515, %v5532
        %v5537 = vmul.f32 %v5517, %v5533
        %v5538 = vpack.c.bf16 %v5535, %v5534
        %v5539 = vpack.c.bf16 %v5537, %v5536
        %5540 = vrot.lane.b32.xlu0 %v4708, 80
        %v5541 = vpop.permute.xlu0 %5540
        %5542 = vrot.lane.b32.xlu0 %v4709, 80
        %v5543 = vpop.permute.xlu0 %5542
        %v5547 = vsel %vm3197, %v5538, 0
        %v5550 = vsel %vm3197, %v5539, 0
        %5552 = vmatprep.subr.bf16.mxu0 0
        %5553 = vmatpush1.bf16.msra.mxu0 %v5541
        %5554 = vmatprep.subr.bf16.mxu0 0
        %5555 = vmatpush1.bf16.msra.mxu0 %v5543
        %5556 = vmatprep.subr.bf16.mxu0 0
        %5557 = vmatpush1.bf16.msra.mxu0 0
        %5558 = vmatprep.subr.bf16.mxu0 0
        %5559 = vmatpush1.bf16.msra.mxu0 0
        %5560 = vmatprep.subr.bf16.mxu0 0
        %5561 = vmatpush1.bf16.msra.mxu0 0
        %5562 = vmatprep.subr.bf16.mxu0 0
        %5563 = vmatpush1.bf16.msra.mxu0 0
        %5564 = vmatprep.subr.bf16.mxu0 0
        %5565 = vmatpush1.bf16.msra.mxu0 0
        %5566 = vmatprep.subr.bf16.mxu0 0
        %5567 = vmatpush1.bf16.msra.mxu0 0
        %5568 = vmatprep.subr.bf16.mxu0 0
        %5569 = vmatpush1.bf16.msra.mxu0 0
        %5570 = vmatprep.subr.bf16.mxu0 0
        %5571 = vmatpush1.bf16.msra.mxu0 0
        %5572 = vmatprep.subr.bf16.mxu0 0
        %5573 = vmatpush1.bf16.msra.mxu0 0
        %5574 = vmatprep.subr.bf16.mxu0 0
        %5575 = vmatpush1.bf16.msra.mxu0 0
        %5576 = vmatprep.subr.bf16.mxu0 0
        %5577 = vmatpush1.bf16.msra.mxu0 0
        %5578 = vmatprep.subr.bf16.mxu0 0
        %5579 = vmatpush1.bf16.msra.mxu0 0
        %5580 = vmatprep.subr.bf16.mxu0 0
        %5581 = vmatpush1.bf16.msra.mxu0 0
        %5582 = vmatprep.subr.bf16.mxu0 0
        %5583 = vmatpush1.bf16.msra.mxu0 0
        %5584 = vmatprep.mubr.bf16.mxu0 0
        %5585 = vmatmul.mubr.bf16.gmra.mrb[0].mxu0 %v5547
        %v5586 = vpop.f32.mrb[0].mxu0
        %v5587 = vadd.f32 0.0, %v5586
        %v5588 = vpop.f32.mrb[0].mxu0
        %v5589 = vpop.f32.mrb[0].mxu0
        %v5590 = vadd.f32 0.0, %v5589
        %v5591 = vpop.f32.mrb[0].mxu0
        %5592 = vmatprep.mubr.bf16.mxu0 0
        %5593 = vmatmul.mubr.bf16.gmra.mrb[0].mxu0 %v5550
        %v5594 = vpop.f32.mrb[0].mxu0
        %v5595 = vadd.f32 0.0, %v5594
        %v5596 = vpop.f32.mrb[0].mxu0
        %v5597 = vpop.f32.mrb[0].mxu0
        %v5598 = vadd.f32 0.0, %v5597
        %v5599 = vpop.f32.mrb[0].mxu0
        %5600 = vdwg.mxu0
        %v5601 = vpack.c.bf16 %v5590, %v5587
        %v5602 = vpack.c.bf16 %v5598, %v5595
        %v5605 = vunpack.c.l.b16 %v4704
        %v5606 = vunpack.c.l.b16 %v4705
        %v5607 = vpack.c.b16 %v5606, %v5605
        %v5610 = vsel %vm3135, %v5601, 0
        %v5613 = vsel %vm3135, %v5602, 0
        %5615 = vmatprep.subr.bf16.mxu0 0
        %5616 = vmatpush1.bf16.msra.mxu0 %v5607
        %5617 = vmatprep.subr.bf16.mxu0 0
        %5618 = vmatpush1.bf16.msra.mxu0 0
        %5619 = vmatprep.subr.bf16.mxu0 0
        %5620 = vmatpush1.bf16.msra.mxu0 0
        %5621 = vmatprep.subr.bf16.mxu0 0
        %5622 = vmatpush1.bf16.msra.mxu0 0
        %5623 = vmatprep.subr.bf16.mxu0 0
        %5624 = vmatpush1.bf16.msra.mxu0 0
        %5625 = vmatprep.subr.bf16.mxu0 0
        %5626 = vmatpush1.bf16.msra.mxu0 0
        %5627 = vmatprep.subr.bf16.mxu0 0
        %5628 = vmatpush1.bf16.msra.mxu0 0
        %5629 = vmatprep.subr.bf16.mxu0 0
        %5630 = vmatpush1.bf16.msra.mxu0 0
        %5631 = vmatprep.subr.bf16.mxu0 0
        %5632 = vmatpush1.bf16.msra.mxu0 0
        %5633 = vmatprep.subr.bf16.mxu0 0
        %5634 = vmatpush1.bf16.msra.mxu0 0
        %5635 = vmatprep.subr.bf16.mxu0 0
        %5636 = vmatpush1.bf16.msra.mxu0 0
        %5637 = vmatprep.subr.bf16.mxu0 0
        %5638 = vmatpush1.bf16.msra.mxu0 0
        %5639 = vmatprep.subr.bf16.mxu0 0
        %5640 = vmatpush1.bf16.msra.mxu0 0
        %5641 = vmatprep.subr.bf16.mxu0 0
        %5642 = vmatpush1.bf16.msra.mxu0 0
        %5643 = vmatprep.subr.bf16.mxu0 0
        %5644 = vmatpush1.bf16.msra.mxu0 0
        %5645 = vmatprep.subr.bf16.mxu0 0
        %5646 = vmatpush1.bf16.msra.mxu0 0
        %5647 = vmatprep.mubr.bf16.mxu0 0
        %5648 = vmatmul.mubr.bf16.gmra.mrb[0].mxu0 %v5610
        %v5649 = vpop.f32.mrb[0].mxu0
        %v5650 = vadd.f32 0.0, %v5649
        %v5651 = vpop.f32.mrb[0].mxu0
        %v5652 = vpop.f32.mrb[0].mxu0
        %v5653 = vadd.f32 0.0, %v5652
        %v5654 = vpop.f32.mrb[0].mxu0
        %5655 = vmatprep.mubr.bf16.mxu0 0
        %5656 = vmatmul.mubr.bf16.gmra.mrb[0].mxu0 %v5613
        %v5657 = vpop.f32.mrb[0].mxu0
        %v5658 = vadd.f32 0.0, %v5657
        %v5659 = vpop.f32.mrb[0].mxu0
        %v5660 = vpop.f32.mrb[0].mxu0
        %v5661 = vadd.f32 0.0, %v5660
        %v5662 = vpop.f32.mrb[0].mxu0
        %5663 = vdwg.mxu0
        %v5664 = vadd.f32 %v5421, %v5650
        %v5665 = vadd.f32 %v5422, %v5653
        %v5666 = vadd.f32 %v5423, %v5658
        %v5667 = vadd.f32 %v5424, %v5661
        %s5668 = scalar_lea.vmem %s8, 1
        %v5669 = vld [vmem:[%s5668] sm:$0x1]
        %v5671 = vlaneseq
        %v5672 = vshrl.u32 %v5671, 7
        %v5673 = vsub.s32 0, %v5672
        %v5674 = vrot.slane %v5669, %v5673
        %v5676 = vadd.f32 %v5664, %v5674
        %v5677 = vadd.f32 %v5665, %v5674
        %v5678 = vadd.f32 %v5666, %v5674
        %v5679 = vadd.f32 %v5667, %v5674
        %v5680 = vadd.f32 %v4570, %v5676
        %v5681 = vadd.f32 %v4571, %v5677
        %v5682 = vadd.f32 %v4572, %v5678
        %v5683 = vadd.f32 %v4573, %v5679
        %s5684 = scalar_lea.vmem %s13, 1
        %v5685 = vld [vmem:[%s5684] sm:$0x1]
        %s5686 = scalar_lea.vmem %s14, 1
        %v5687 = vld [vmem:[%s5686] sm:$0x1]
        %v5688 = vsel %vm3057, %v5680, 0.0
        %5689 = vadd.xlane.f32.xlu0 %v5688
        %v5690 = vpop.xlane.xlu0 %5689
        %v5691 = vsel %vm3057, %v5681, 0.0
        %5692 = vadd.xlane.f32.xlu0 %v5691
        %v5693 = vpop.xlane.xlu0 %5692
        %v5694 = vsel %vm3057, %v5682, 0.0
        %5695 = vadd.xlane.f32.xlu0 %v5694
        %v5696 = vpop.xlane.xlu0 %5695
        %v5697 = vsel %vm3057, %v5683, 0.0
        %5698 = vadd.xlane.f32.xlu0 %v5697
        %v5699 = vpop.xlane.xlu0 %5698
        %v5700 = vmul.f32 %v5690, %v4118
        %v5701 = vmul.f32 %v5693, %v4118
        %v5702 = vmul.f32 %v5696, %v4118
        %v5703 = vmul.f32 %v5699, %v4118
        %v5704 = vsub.f32 %v5680, %v5700
        %v5705 = vsub.f32 %v5681, %v5701
        %v5706 = vsub.f32 %v5682, %v5702
        %v5707 = vsub.f32 %v5683, %v5703
        %v5708 = vmul.f32 %v5704, %v5704
        %v5709 = vmul.f32 %v5705, %v5705
        %v5710 = vmul.f32 %v5706, %v5706
        %v5711 = vmul.f32 %v5707, %v5707
        %v5712 = vsel %vm3057, %v5708, 0.0
        %5713 = vadd.xlane.f32.xlu0 %v5712
        %v5714 = vpop.xlane.xlu0 %5713
        %v5715 = vsel %vm3057, %v5709, 0.0
        %5716 = vadd.xlane.f32.xlu0 %v5715
        %v5717 = vpop.xlane.xlu0 %5716
        %v5718 = vsel %vm3057, %v5710, 0.0
        %5719 = vadd.xlane.f32.xlu0 %v5718
        %v5720 = vpop.xlane.xlu0 %5719
        %v5721 = vsel %vm3057, %v5711, 0.0
        %5722 = vadd.xlane.f32.xlu0 %v5721
        %v5723 = vpop.xlane.xlu0 %5722
        %v5724 = vmul.f32 %v5714, %v4118
        %v5725 = vmul.f32 %v5717, %v4118
        %v5726 = vmul.f32 %v5720, %v4118
        %v5727 = vmul.f32 %v5723, %v4118
        %v5728 = vadd.f32 %v5724, 1e-05
        %v5729 = vadd.f32 %v5725, 1e-05
        %v5730 = vadd.f32 %v5726, 1e-05
        %v5731 = vadd.f32 %v5727, 1e-05
        %v5732 = vrsqrt.pop %v5728
        %v5733 = vrsqrt.pop %v5729
        %v5734 = vrsqrt.pop %v5730
        %v5735 = vrsqrt.pop %v5731
        %v5736 = vmul.f32 %v5704, %v5732
        %v5737 = vmul.f32 %v5705, %v5733
        %v5738 = vmul.f32 %v5706, %v5734
        %v5739 = vmul.f32 %v5707, %v5735
        %v5741 = vlaneseq
        %v5742 = vshrl.u32 %v5741, 7
        %v5743 = vsub.s32 0, %v5742
        %v5744 = vrot.slane %v5685, %v5743
        %v5746 = vmul.f32 %v5736, %v5744
        %v5747 = vmul.f32 %v5737, %v5744
        %v5748 = vmul.f32 %v5738, %v5744
        %v5749 = vmul.f32 %v5739, %v5744
        %v5751 = vlaneseq
        %v5752 = vshrl.u32 %v5751, 7
        %v5753 = vsub.s32 0, %v5752
        %v5754 = vrot.slane %v5687, %v5753
        %v5756 = vadd.f32 %v5746, %v5754
        %v5757 = vadd.f32 %v5747, %v5754
        %v5758 = vadd.f32 %v5748, %v5754
        %v5759 = vadd.f32 %v5749, %v5754
        %v5760 = vpack.c.bf16 %v5757, %v5756
        %v5761 = vpack.c.bf16 %v5759, %v5758
        %s5762 = scalar_lea.vmem %s9, 64
        %v5763 = vld [vmem:[%s5762] sm:$0xff]
        %v5764 = vld [vmem:[%s5762 + $0x8] sm:$0xff]
        %v5765 = vld [vmem:[%s5762 + $0x10] sm:$0xff]
        %v5766 = vld [vmem:[%s5762 + $0x18] sm:$0xff]
        %v5767 = vld [vmem:[%s5762 + $0x20] sm:$0xff]
        %v5768 = vld [vmem:[%s5762 + $0x28] sm:$0xff]
        %v5769 = vld [vmem:[%s5762 + $0x30] sm:$0xff]
        %v5770 = vld [vmem:[%s5762 + $0x38] sm:$0xff]
        %s5771 = scalar_lea.vmem %s10, 2
        %v5772 = vld [vmem:[%s5771] sm:$0x3]
        %v5774 = vlaneseq
        %v5775 = vshrl.u32 %v5774, 7
        %v5776 = vsub.s32 0, %v5775
        %v5777 = vrot.slane %v5772, %v5776
        %v5778 = vlaneseq
        %v5779 = vshrl.u32 %v5778, 7
        %v5780 = vsub.s32 1, %v5779
        %v5781 = vrot.slane %v5772, %v5780
        %v5792 = vunpack.c.l.b16 %v5763
        %v5793 = vunpack.c.h.b16 %v5763
        %v5794 = vunpack.c.l.b16 %v5764
        %v5795 = vunpack.c.h.b16 %v5764
        %v5796 = vunpack.c.l.b16 %v5765
        %v5797 = vunpack.c.h.b16 %v5765
        %v5798 = vunpack.c.l.b16 %v5766
        %v5799 = vunpack.c.h.b16 %v5766
        %v5800 = vunpack.c.l.b16 %v5767
        %v5801 = vunpack.c.h.b16 %v5767
        %v5802 = vunpack.c.l.b16 %v5768
        %v5803 = vunpack.c.h.b16 %v5768
        %v5804 = vunpack.c.l.b16 %v5769
        %v5805 = vunpack.c.h.b16 %v5769
        %v5806 = vunpack.c.l.b16 %v5770
        %v5807 = vunpack.c.h.b16 %v5770
        %v5808 = vpack.c.b16 %v5794, %v5792
        %v5809 = vpack.c.b16 %v5795, %v5793
        %v5810 = vpack.c.b16 %v5798, %v5796
        %v5811 = vpack.c.b16 %v5799, %v5797
        %v5812 = vpack.c.b16 %v5802, %v5800
        %v5813 = vpack.c.b16 %v5803, %v5801
        %v5814 = vpack.c.b16 %v5806, %v5804
        %v5815 = vpack.c.b16 %v5807, %v5805
        %v5825 = vsel %vm3057, %v5760, 0
        %v5828 = vsel %vm3057, %v5761, 0
        %5830 = vmatprep.subr.bf16.mxu0 %v5809
        %5831 = vmatpush1.bf16.msra.mxu0 %v5808
        %5832 = vmatprep.subr.bf16.mxu0 %v5811
        %5833 = vmatpush1.bf16.msra.mxu0 %v5810
        %5834 = vmatprep.subr.bf16.mxu0 %v5813
        %5835 = vmatpush1.bf16.msra.mxu0 %v5812
        %5836 = vmatprep.subr.bf16.mxu0 %v5815
        %5837 = vmatpush1.bf16.msra.mxu0 %v5814
        %5838 = vmatprep.subr.bf16.mxu0 0
        %5839 = vmatpush1.bf16.msra.mxu0 0
        %5840 = vmatprep.subr.bf16.mxu0 0
        %5841 = vmatpush1.bf16.msra.mxu0 0
        %5842 = vmatprep.subr.bf16.mxu0 0
        %5843 = vmatpush1.bf16.msra.mxu0 0
        %5844 = vmatprep.subr.bf16.mxu0 0
        %5845 = vmatpush1.bf16.msra.mxu0 0
        %5846 = vmatprep.subr.bf16.mxu0 0
        %5847 = vmatpush1.bf16.msra.mxu0 0
        %5848 = vmatprep.subr.bf16.mxu0 0
        %5849 = vmatpush1.bf16.msra.mxu0 0
        %5850 = vmatprep.subr.bf16.mxu0 0
        %5851 = vmatpush1.bf16.msra.mxu0 0
        %5852 = vmatprep.subr.bf16.mxu0 0
        %5853 = vmatpush1.bf16.msra.mxu0 0
        %5854 = vmatprep.subr.bf16.mxu0 0
        %5855 = vmatpush1.bf16.msra.mxu0 0
        %5856 = vmatprep.subr.bf16.mxu0 0
        %5857 = vmatpush1.bf16.msra.mxu0 0
        %5858 = vmatprep.subr.bf16.mxu0 0
        %5859 = vmatpush1.bf16.msra.mxu0 0
        %5860 = vmatprep.subr.bf16.mxu0 0
        %5861 = vmatpush1.bf16.msra.mxu0 0
        %5862 = vmatprep.mubr.bf16.mxu0 0
        %5863 = vmatmul.mubr.bf16.gmra.mrb[0].mxu0 %v5825
        %v5864 = vpop.f32.mrb[0].mxu0
        %v5865 = vadd.f32 %v5777, %v5864
        %v5866 = vpop.f32.mrb[0].mxu0
        %v5867 = vadd.f32 %v5781, %v5866
        %v5868 = vpop.f32.mrb[0].mxu0
        %v5869 = vadd.f32 %v5777, %v5868
        %v5870 = vpop.f32.mrb[0].mxu0
        %v5871 = vadd.f32 %v5781, %v5870
        %5872 = vmatprep.mubr.bf16.mxu0 0
        %5873 = vmatmul.mubr.bf16.gmra.mrb[0].mxu0 %v5828
        %v5874 = vpop.f32.mrb[0].mxu0
        %v5875 = vadd.f32 %v5777, %v5874
        %v5876 = vpop.f32.mrb[0].mxu0
        %v5877 = vadd.f32 %v5781, %v5876
        %v5878 = vpop.f32.mrb[0].mxu0
        %v5879 = vadd.f32 %v5777, %v5878
        %v5880 = vpop.f32.mrb[0].mxu0
        %v5881 = vadd.f32 %v5781, %v5880
        %5882 = vdwg.mxu0
        %v5883 = vmax.f32 %v5865, 0.0
        %v5884 = vmax.f32 %v5867, 0.0
        %v5885 = vmax.f32 %v5869, 0.0
        %v5886 = vmax.f32 %v5871, 0.0
        %v5887 = vmax.f32 %v5875, 0.0
        %v5888 = vmax.f32 %v5877, 0.0
        %v5889 = vmax.f32 %v5879, 0.0
        %v5890 = vmax.f32 %v5881, 0.0
        %v5891 = vpack.c.bf16 %v5885, %v5883
        %v5892 = vpack.c.bf16 %v5886, %v5884
        %v5893 = vpack.c.bf16 %v5889, %v5887
        %v5894 = vpack.c.bf16 %v5890, %v5888
        %s5895 = scalar_lea.vmem %s11, 128
        %v5896 = vld [vmem:[%s5895] sm:$0xf]
        %v5897 = vld [vmem:[%s5895 + $0x4] sm:$0xf]
        %v5898 = vld [vmem:[%s5895 + $0x8] sm:$0xf]
        %v5899 = vld [vmem:[%s5895 + $0xc] sm:$0xf]
        %v5900 = vld [vmem:[%s5895 + $0x10] sm:$0xf]
        %v5901 = vld [vmem:[%s5895 + $0x14] sm:$0xf]
        %v5902 = vld [vmem:[%s5895 + $0x18] sm:$0xf]
        %v5903 = vld [vmem:[%s5895 + $0x1c] sm:$0xf]
        %v5904 = vld [vmem:[%s5895 + $0x20] sm:$0xf]
        %v5905 = vld [vmem:[%s5895 + $0x24] sm:$0xf]
        %v5906 = vld [vmem:[%s5895 + $0x28] sm:$0xf]
        %v5907 = vld [vmem:[%s5895 + $0x2c] sm:$0xf]
        %v5908 = vld [vmem:[%s5895 + $0x30] sm:$0xf]
        %v5909 = vld [vmem:[%s5895 + $0x34] sm:$0xf]
        %v5910 = vld [vmem:[%s5895 + $0x38] sm:$0xf]
        %v5911 = vld [vmem:[%s5895 + $0x3c] sm:$0xf]
        %v5912 = vld [vmem:[%s5895 + $0x40] sm:$0xf]
        %v5913 = vld [vmem:[%s5895 + $0x44] sm:$0xf]
        %v5914 = vld [vmem:[%s5895 + $0x48] sm:$0xf]
        %v5915 = vld [vmem:[%s5895 + $0x4c] sm:$0xf]
        %v5916 = vld [vmem:[%s5895 + $0x50] sm:$0xf]
        %v5917 = vld [vmem:[%s5895 + $0x54] sm:$0xf]
        %v5918 = vld [vmem:[%s5895 + $0x58] sm:$0xf]
        %v5919 = vld [vmem:[%s5895 + $0x5c] sm:$0xf]
        %v5920 = vld [vmem:[%s5895 + $0x60] sm:$0xf]
        %v5921 = vld [vmem:[%s5895 + $0x64] sm:$0xf]
        %v5922 = vld [vmem:[%s5895 + $0x68] sm:$0xf]
        %v5923 = vld [vmem:[%s5895 + $0x6c] sm:$0xf]
        %v5924 = vld [vmem:[%s5895 + $0x70] sm:$0xf]
        %v5925 = vld [vmem:[%s5895 + $0x74] sm:$0xf]
        %v5926 = vld [vmem:[%s5895 + $0x78] sm:$0xf]
        %v5927 = vld [vmem:[%s5895 + $0x7c] sm:$0xf]
        %s5928 = scalar_lea.vmem %s12, 1
        %v5929 = vld [vmem:[%s5928] sm:$0x1]
        %v5931 = vlaneseq
        %v5932 = vshrl.u32 %v5931, 7
        %v5933 = vsub.s32 0, %v5932
        %v5934 = vrot.slane %v5929, %v5933
        %v5968 = vunpack.c.l.b16 %v5896
        %v5969 = vunpack.c.l.b16 %v5897
        %v5970 = vunpack.c.l.b16 %v5898
        %v5971 = vunpack.c.l.b16 %v5899
        %v5972 = vunpack.c.l.b16 %v5900
        %v5973 = vunpack.c.l.b16 %v5901
        %v5974 = vunpack.c.l.b16 %v5902
        %v5975 = vunpack.c.l.b16 %v5903
        %v5976 = vunpack.c.l.b16 %v5904
        %v5977 = vunpack.c.l.b16 %v5905
        %v5978 = vunpack.c.l.b16 %v5906
        %v5979 = vunpack.c.l.b16 %v5907
        %v5980 = vunpack.c.l.b16 %v5908
        %v5981 = vunpack.c.l.b16 %v5909
        %v5982 = vunpack.c.l.b16 %v5910
        %v5983 = vunpack.c.l.b16 %v5911
        %v5984 = vunpack.c.l.b16 %v5912
        %v5985 = vunpack.c.l.b16 %v5913
        %v5986 = vunpack.c.l.b16 %v5914
        %v5987 = vunpack.c.l.b16 %v5915
        %v5988 = vunpack.c.l.b16 %v5916
        %v5989 = vunpack.c.l.b16 %v5917
        %v5990 = vunpack.c.l.b16 %v5918
        %v5991 = vunpack.c.l.b16 %v5919
        %v5992 = vunpack.c.l.b16 %v5920
        %v5993 = vunpack.c.l.b16 %v5921
        %v5994 = vunpack.c.l.b16 %v5922
        %v5995 = vunpack.c.l.b16 %v5923
        %v5996 = vunpack.c.l.b16 %v5924
        %v5997 = vunpack.c.l.b16 %v5925
        %v5998 = vunpack.c.l.b16 %v5926
        %v5999 = vunpack.c.l.b16 %v5927
        %v6000 = vpack.c.b16 %v5969, %v5968
        %v6001 = vpack.c.b16 %v5971, %v5970
        %v6002 = vpack.c.b16 %v5973, %v5972
        %v6003 = vpack.c.b16 %v5975, %v5974
        %v6004 = vpack.c.b16 %v5977, %v5976
        %v6005 = vpack.c.b16 %v5979, %v5978
        %v6006 = vpack.c.b16 %v5981, %v5980
        %v6007 = vpack.c.b16 %v5983, %v5982
        %v6008 = vpack.c.b16 %v5985, %v5984
        %v6009 = vpack.c.b16 %v5987, %v5986
        %v6010 = vpack.c.b16 %v5989, %v5988
        %v6011 = vpack.c.b16 %v5991, %v5990
        %v6012 = vpack.c.b16 %v5993, %v5992
        %v6013 = vpack.c.b16 %v5995, %v5994
        %v6014 = vpack.c.b16 %v5997, %v5996
        %v6015 = vpack.c.b16 %v5999, %v5998
        %6032 = vmatprep.subr.bf16.mxu0 0
        %6033 = vmatpush1.bf16.msra.mxu0 %v6000
        %6034 = vmatprep.subr.bf16.mxu0 0
        %6035 = vmatpush1.bf16.msra.mxu0 %v6001
        %6036 = vmatprep.subr.bf16.mxu0 0
        %6037 = vmatpush1.bf16.msra.mxu0 %v6002
        %6038 = vmatprep.subr.bf16.mxu0 0
        %6039 = vmatpush1.bf16.msra.mxu0 %v6003
        %6040 = vmatprep.subr.bf16.mxu0 0
        %6041 = vmatpush1.bf16.msra.mxu0 %v6004
        %6042 = vmatprep.subr.bf16.mxu0 0
        %6043 = vmatpush1.bf16.msra.mxu0 %v6005
        %6044 = vmatprep.subr.bf16.mxu0 0
        %6045 = vmatpush1.bf16.msra.mxu0 %v6006
        %6046 = vmatprep.subr.bf16.mxu0 0
        %6047 = vmatpush1.bf16.msra.mxu0 %v6007
        %6048 = vmatprep.subr.bf16.mxu0 0
        %6049 = vmatpush1.bf16.msra.mxu0 %v6008
        %6050 = vmatprep.subr.bf16.mxu0 0
        %6051 = vmatpush1.bf16.msra.mxu0 %v6009
        %6052 = vmatprep.subr.bf16.mxu0 0
        %6053 = vmatpush1.bf16.msra.mxu0 %v6010
        %6054 = vmatprep.subr.bf16.mxu0 0
        %6055 = vmatpush1.bf16.msra.mxu0 %v6011
        %6056 = vmatprep.subr.bf16.mxu0 0
        %6057 = vmatpush1.bf16.msra.mxu0 %v6012
        %6058 = vmatprep.subr.bf16.mxu0 0
        %6059 = vmatpush1.bf16.msra.mxu0 %v6013
        %6060 = vmatprep.subr.bf16.mxu0 0
        %6061 = vmatpush1.bf16.msra.mxu0 %v6014
        %6062 = vmatprep.subr.bf16.mxu0 0
        %6063 = vmatpush1.bf16.msra.mxu0 %v6015
        %6064 = vmatprep.mubr.bf16.mxu0 %v5892
        %6065 = vmatmul.mubr.bf16.gmra.mrb[0].mxu0 %v5891
        %v6066 = vpop.f32.mrb[0].mxu0
        %v6067 = vadd.f32 %v5934, %v6066
        %v6068 = vpop.f32.mrb[0].mxu0
        %v6069 = vpop.f32.mrb[0].mxu0
        %v6070 = vadd.f32 %v5934, %v6069
        %v6071 = vpop.f32.mrb[0].mxu0
        %6072 = vmatprep.mubr.bf16.mxu0 %v5894
        %6073 = vmatmul.mubr.bf16.gmra.mrb[0].mxu0 %v5893
        %v6074 = vpop.f32.mrb[0].mxu0
        %v6075 = vadd.f32 %v5934, %v6074
        %v6076 = vpop.f32.mrb[0].mxu0
        %v6077 = vpop.f32.mrb[0].mxu0
        %v6078 = vadd.f32 %v5934, %v6077
        %v6079 = vpop.f32.mrb[0].mxu0
        %6080 = vdwg.mxu0
        %v6081 = vadd.f32 %v5756, %v6067
        %v6082 = vadd.f32 %v5757, %v6070
        %v6083 = vadd.f32 %v5758, %v6075
        %v6084 = vadd.f32 %v5759, %v6078
        %s6085 = scalar_lea.vmem %s15, 1
        %v6086 = vld [vmem:[%s6085] sm:$0x1]
        %s6087 = scalar_lea.vmem %s16, 1
        %v6088 = vld [vmem:[%s6087] sm:$0x1]
        %v6089 = vsel %vm3057, %v6081, 0.0
        %6090 = vadd.xlane.f32.xlu0 %v6089
        %v6091 = vpop.xlane.xlu0 %6090
        %v6092 = vsel %vm3057, %v6082, 0.0
        %6093 = vadd.xlane.f32.xlu0 %v6092
        %v6094 = vpop.xlane.xlu0 %6093
        %v6095 = vsel %vm3057, %v6083, 0.0
        %6096 = vadd.xlane.f32.xlu0 %v6095
        %v6097 = vpop.xlane.xlu0 %6096
        %v6098 = vsel %vm3057, %v6084, 0.0
        %6099 = vadd.xlane.f32.xlu0 %v6098
        %v6100 = vpop.xlane.xlu0 %6099
        %v6101 = vmul.f32 %v6091, %v4118
        %v6102 = vmul.f32 %v6094, %v4118
        %v6103 = vmul.f32 %v6097, %v4118
        %v6104 = vmul.f32 %v6100, %v4118
        %v6105 = vsub.f32 %v6081, %v6101
        %v6106 = vsub.f32 %v6082, %v6102
        %v6107 = vsub.f32 %v6083, %v6103
        %v6108 = vsub.f32 %v6084, %v6104
        %v6109 = vmul.f32 %v6105, %v6105
        %v6110 = vmul.f32 %v6106, %v6106
        %v6111 = vmul.f32 %v6107, %v6107
        %v6112 = vmul.f32 %v6108, %v6108
        %v6113 = vsel %vm3057, %v6109, 0.0
        %6114 = vadd.xlane.f32.xlu0 %v6113
        %v6115 = vpop.xlane.xlu0 %6114
        %v6116 = vsel %vm3057, %v6110, 0.0
        %6117 = vadd.xlane.f32.xlu0 %v6116
        %v6118 = vpop.xlane.xlu0 %6117
        %v6119 = vsel %vm3057, %v6111, 0.0
        %6120 = vadd.xlane.f32.xlu0 %v6119
        %v6121 = vpop.xlane.xlu0 %6120
        %v6122 = vsel %vm3057, %v6112, 0.0
        %6123 = vadd.xlane.f32.xlu0 %v6122
        %v6124 = vpop.xlane.xlu0 %6123
        %v6125 = vmul.f32 %v6115, %v4118
        %v6126 = vmul.f32 %v6118, %v4118
        %v6127 = vmul.f32 %v6121, %v4118
        %v6128 = vmul.f32 %v6124, %v4118
        %v6129 = vadd.f32 %v6125, 1e-05
        %v6130 = vadd.f32 %v6126, 1e-05
        %v6131 = vadd.f32 %v6127, 1e-05
        %v6132 = vadd.f32 %v6128, 1e-05
        %v6133 = vrsqrt.pop %v6129
        %v6134 = vrsqrt.pop %v6130
        %v6135 = vrsqrt.pop %v6131
        %v6136 = vrsqrt.pop %v6132
        %v6137 = vmul.f32 %v6105, %v6133
        %v6138 = vmul.f32 %v6106, %v6134
        %v6139 = vmul.f32 %v6107, %v6135
        %v6140 = vmul.f32 %v6108, %v6136
        %v6142 = vlaneseq
        %v6143 = vshrl.u32 %v6142, 7
        %v6144 = vsub.s32 0, %v6143
        %v6145 = vrot.slane %v6086, %v6144
        %v6147 = vmul.f32 %v6137, %v6145
        %v6148 = vmul.f32 %v6138, %v6145
        %v6149 = vmul.f32 %v6139, %v6145
        %v6150 = vmul.f32 %v6140, %v6145
        %v6152 = vlaneseq
        %v6153 = vshrl.u32 %v6152, 7
        %v6154 = vsub.s32 0, %v6153
        %v6155 = vrot.slane %v6088, %v6154
        %v6157 = vadd.f32 %v6147, %v6155
        %v6158 = vadd.f32 %v6148, %v6155
        %v6159 = vadd.f32 %v6149, %v6155
        %v6160 = vadd.f32 %v6150, %v6155
        %v6161 = vpack.c.bf16 %v6158, %v6157
        %v6162 = vpack.c.bf16 %v6160, %v6159
        %s6163 = scalar_lea.vmem %s5, 128
        %v6164 = vld [vmem:[%s6163] sm:$0xff]
        %v6165 = vld [vmem:[%s6163 + $0x8] sm:$0xff]
        %v6166 = vld [vmem:[%s6163 + $0x10] sm:$0xff]
        %v6167 = vld [vmem:[%s6163 + $0x18] sm:$0xff]
        %v6168 = vld [vmem:[%s6163 + $0x20] sm:$0xff]
        %v6169 = vld [vmem:[%s6163 + $0x28] sm:$0xff]
        %v6170 = vld [vmem:[%s6163 + $0x30] sm:$0xff]
        %v6171 = vld [vmem:[%s6163 + $0x38] sm:$0xff]
        %s6172 = scalar_lea.vmem %s6, 4
        %v6173 = vld [vmem:[%s6172] sm:$0x3]
        %v6175 = vlaneseq
        %v6176 = vshrl.u32 %v6175, 7
        %v6177 = vsub.s32 0, %v6176
        %v6178 = vrot.slane %v6173, %v6177
        %v6179 = vlaneseq
        %v6180 = vshrl.u32 %v6179, 7
        %v6181 = vsub.s32 1, %v6180
        %v6182 = vrot.slane %v6173, %v6181
        %v6193 = vunpack.c.l.b16 %v6164
        %v6194 = vunpack.c.h.b16 %v6164
        %v6195 = vunpack.c.l.b16 %v6165
        %v6196 = vunpack.c.h.b16 %v6165
        %v6197 = vunpack.c.l.b16 %v6166
        %v6198 = vunpack.c.h.b16 %v6166
        %v6199 = vunpack.c.l.b16 %v6167
        %v6200 = vunpack.c.h.b16 %v6167
        %v6201 = vunpack.c.l.b16 %v6168
        %v6202 = vunpack.c.h.b16 %v6168
        %v6203 = vunpack.c.l.b16 %v6169
        %v6204 = vunpack.c.h.b16 %v6169
        %v6205 = vunpack.c.l.b16 %v6170
        %v6206 = vunpack.c.h.b16 %v6170
        %v6207 = vunpack.c.l.b16 %v6171
        %v6208 = vunpack.c.h.b16 %v6171
        %v6209 = vpack.c.b16 %v6195, %v6193
        %v6210 = vpack.c.b16 %v6196, %v6194
        %v6211 = vpack.c.b16 %v6199, %v6197
        %v6212 = vpack.c.b16 %v6200, %v6198
        %v6213 = vpack.c.b16 %v6203, %v6201
        %v6214 = vpack.c.b16 %v6204, %v6202
        %v6215 = vpack.c.b16 %v6207, %v6205
        %v6216 = vpack.c.b16 %v6208, %v6206
        %v6226 = vsel %vm3057, %v6161, 0
        %v6229 = vsel %vm3057, %v6162, 0
        %6231 = vmatprep.subr.bf16.mxu0 %v6210
        %6232 = vmatpush1.bf16.msra.mxu0 %v6209
        %6233 = vmatprep.subr.bf16.mxu0 %v6212
        %6234 = vmatpush1.bf16.msra.mxu0 %v6211
        %6235 = vmatprep.subr.bf16.mxu0 %v6214
        %6236 = vmatpush1.bf16.msra.mxu0 %v6213
        %6237 = vmatprep.subr.bf16.mxu0 %v6216
        %6238 = vmatpush1.bf16.msra.mxu0 %v6215
        %6239 = vmatprep.subr.bf16.mxu0 0
        %6240 = vmatpush1.bf16.msra.mxu0 0
        %6241 = vmatprep.subr.bf16.mxu0 0
        %6242 = vmatpush1.bf16.msra.mxu0 0
        %6243 = vmatprep.subr.bf16.mxu0 0
        %6244 = vmatpush1.bf16.msra.mxu0 0
        %6245 = vmatprep.subr.bf16.mxu0 0
        %6246 = vmatpush1.bf16.msra.mxu0 0
        %6247 = vmatprep.subr.bf16.mxu0 0
        %6248 = vmatpush1.bf16.msra.mxu0 0
        %6249 = vmatprep.subr.bf16.mxu0 0
        %6250 = vmatpush1.bf16.msra.mxu0 0
        %6251 = vmatprep.subr.bf16.mxu0 0
        %6252 = vmatpush1.bf16.msra.mxu0 0
        %6253 = vmatprep.subr.bf16.mxu0 0
        %6254 = vmatpush1.bf16.msra.mxu0 0
        %6255 = vmatprep.subr.bf16.mxu0 0
        %6256 = vmatpush1.bf16.msra.mxu0 0
        %6257 = vmatprep.subr.bf16.mxu0 0
        %6258 = vmatpush1.bf16.msra.mxu0 0
        %6259 = vmatprep.subr.bf16.mxu0 0
        %6260 = vmatpush1.bf16.msra.mxu0 0
        %6261 = vmatprep.subr.bf16.mxu0 0
        %6262 = vmatpush1.bf16.msra.mxu0 0
        %6263 = vmatprep.mubr.bf16.mxu0 0
        %6264 = vmatmul.mubr.bf16.gmra.mrb[0].mxu0 %v6226
        %v6265 = vpop.f32.mrb[0].mxu0
        %v6266 = vadd.f32 %v6178, %v6265
        %v6267 = vpop.f32.mrb[0].mxu0
        %v6268 = vadd.f32 %v6182, %v6267
        %v6269 = vpop.f32.mrb[0].mxu0
        %v6270 = vadd.f32 %v6178, %v6269
        %v6271 = vpop.f32.mrb[0].mxu0
        %v6272 = vadd.f32 %v6182, %v6271
        %6273 = vmatprep.mubr.bf16.mxu0 0
        %6274 = vmatmul.mubr.bf16.gmra.mrb[0].mxu0 %v6229
        %v6275 = vpop.f32.mrb[0].mxu0
        %v6276 = vadd.f32 %v6178, %v6275
        %v6277 = vpop.f32.mrb[0].mxu0
        %v6278 = vadd.f32 %v6182, %v6277
        %v6279 = vpop.f32.mrb[0].mxu0
        %v6280 = vadd.f32 %v6178, %v6279
        %v6281 = vpop.f32.mrb[0].mxu0
        %v6282 = vadd.f32 %v6182, %v6281
        %6283 = vdwg.mxu0
        %s6284 = scalar_lea.vmem %s7, 64
        %v6285 = vld [vmem:[%s6284] sm:$0xf]
        %v6286 = vld [vmem:[%s6284 + $0x4] sm:$0xf]
        %v6287 = vld [vmem:[%s6284 + $0x8] sm:$0xf]
        %v6288 = vld [vmem:[%s6284 + $0xc] sm:$0xf]
        %v6289 = vld [vmem:[%s6284 + $0x10] sm:$0xf]
        %v6290 = vld [vmem:[%s6284 + $0x14] sm:$0xf]
        %v6291 = vld [vmem:[%s6284 + $0x18] sm:$0xf]
        %v6292 = vld [vmem:[%s6284 + $0x1c] sm:$0xf]
        %v6293 = vpack.c.bf16 %v6270, %v6266
        %v6294 = vpack.c.bf16 %v6280, %v6276
        %v6295 = vpack.c.bf16 %v6272, %v6268
        %v6296 = vpack.c.bf16 %v6282, %v6278
        %6299 = vrot.lane.b32.xlu0 %v6293, 64
        %v6300 = vpop.permute.xlu0 %6299
        %6301 = vrot.lane.b32.xlu0 %v6294, 64
        %v6302 = vpop.permute.xlu0 %6301
        %v6304 = vsel %vm3135, %v6293, 0
        %v6307 = vsel %vm3135, %v6294, 0
        %v6310 = vsel %vm3135, %v6300, 0
        %v6313 = vsel %vm3135, %v6302, 0
        %6315 = vmatprep.subr.bf16.mxu0 0
        %6316 = vmatpush1.bf16.xpose.msra.mxu0 %v6310
        %6317 = vmatprep.subr.bf16.mxu0 0
        %6318 = vmatpush1.bf16.xpose.msra.mxu0 %v6313
        %6319 = vmatprep.subr.bf16.mxu0 0
        %6320 = vmatpush1.bf16.xpose.msra.mxu0 0
        %6321 = vmatprep.subr.bf16.mxu0 0
        %6322 = vmatpush1.bf16.xpose.msra.mxu0 0
        %6323 = vmatprep.subr.bf16.mxu0 0
        %6324 = vmatpush1.bf16.xpose.msra.mxu0 0
        %6325 = vmatprep.subr.bf16.mxu0 0
        %6326 = vmatpush1.bf16.xpose.msra.mxu0 0
        %6327 = vmatprep.subr.bf16.mxu0 0
        %6328 = vmatpush1.bf16.xpose.msra.mxu0 0
        %6329 = vmatprep.subr.bf16.mxu0 0
        %6330 = vmatpush1.bf16.xpose.msra.mxu0 0
        %6331 = vmatprep.subr.bf16.mxu0 0
        %6332 = vmatpush1.bf16.xpose.msra.mxu0 0
        %6333 = vmatprep.subr.bf16.mxu0 0
        %6334 = vmatpush1.bf16.xpose.msra.mxu0 0
        %6335 = vmatprep.subr.bf16.mxu0 0
        %6336 = vmatpush1.bf16.xpose.msra.mxu0 0
        %6337 = vmatprep.subr.bf16.mxu0 0
        %6338 = vmatpush1.bf16.xpose.msra.mxu0 0
        %6339 = vmatprep.subr.bf16.mxu0 0
        %6340 = vmatpush1.bf16.xpose.msra.mxu0 0
        %6341 = vmatprep.subr.bf16.mxu0 0
        %6342 = vmatpush1.bf16.xpose.msra.mxu0 0
        %6343 = vmatprep.subr.bf16.mxu0 0
        %6344 = vmatpush1.bf16.xpose.msra.mxu0 0
        %6345 = vmatprep.subr.bf16.mxu0 0
        %6346 = vmatpush1.bf16.xpose.msra.mxu0 0
        %6347 = vmatprep.mubr.bf16.mxu0 0
        %6348 = vmatmul.mubr.bf16.gmra.mrb[0].mxu0 %v6304
        %v6349 = vpop.f32.mrb[0].mxu0
        %v6350 = vadd.f32 0.0, %v6349
        %v6351 = vpop.f32.mrb[0].mxu0
        %v6352 = vpop.f32.mrb[0].mxu0
        %v6353 = vadd.f32 0.0, %v6352
        %v6354 = vpop.f32.mrb[0].mxu0
        %6355 = vmatprep.mubr.bf16.mxu0 0
        %6356 = vmatmul.mubr.bf16.gmra.mrb[0].mxu0 %v6307
        %v6357 = vpop.f32.mrb[0].mxu0
        %v6358 = vadd.f32 0.0, %v6357
        %v6359 = vpop.f32.mrb[0].mxu0
        %v6360 = vpop.f32.mrb[0].mxu0
        %v6361 = vadd.f32 0.0, %v6360
        %v6362 = vpop.f32.mrb[0].mxu0
        %6363 = vdwg.mxu0
        %v6364 = vsel %vm3197, %v6350, -inf
        %6365 = vmax.xlane.f32.xlu0 %v6364
        %v6366 = vpop.xlane.xlu0 %6365
        %v6367 = vsel %vm3197, %v6353, -inf
        %6368 = vmax.xlane.f32.xlu0 %v6367
        %v6369 = vpop.xlane.xlu0 %6368
        %v6370 = vsel %vm3197, %v6358, -inf
        %6371 = vmax.xlane.f32.xlu0 %v6370
        %v6372 = vpop.xlane.xlu0 %6371
        %v6373 = vsel %vm3197, %v6361, -inf
        %6374 = vmax.xlane.f32.xlu0 %v6373
        %v6375 = vpop.xlane.xlu0 %6374
        %v6376 = vsub.f32 %v6350, %v6366
        %v6377 = vsub.f32 %v6353, %v6369
        %v6378 = vsub.f32 %v6358, %v6372
        %v6379 = vsub.f32 %v6361, %v6375
        %v6380 = vmul.f32 %v6376, 1.442695
        %v6381 = vpow.pop %v6380
        %v6382 = vmul.f32 %v6377, 1.442695
        %v6383 = vpow.pop %v6382
        %v6384 = vmul.f32 %v6378, 1.442695
        %v6385 = vpow.pop %v6384
        %v6386 = vmul.f32 %v6379, 1.442695
        %v6387 = vpow.pop %v6386
        %v6388 = vsel %vm3197, %v6381, 0.0
        %6389 = vadd.xlane.f32.xlu0 %v6388
        %v6390 = vpop.xlane.xlu0 %6389
        %v6391 = vsel %vm3197, %v6383, 0.0
        %6392 = vadd.xlane.f32.xlu0 %v6391
        %v6393 = vpop.xlane.xlu0 %6392
        %v6394 = vsel %vm3197, %v6385, 0.0
        %6395 = vadd.xlane.f32.xlu0 %v6394
        %v6396 = vpop.xlane.xlu0 %6395
        %v6397 = vsel %vm3197, %v6387, 0.0
        %6398 = vadd.xlane.f32.xlu0 %v6397
        %v6399 = vpop.xlane.xlu0 %6398
        %v6400 = vrcp.pop %v6390
        %v6401 = vrcp.pop %v6393
        %v6402 = vrcp.pop %v6396
        %v6403 = vrcp.pop %v6399
        %v6404 = vmul.f32 %v6381, %v6400
        %v6405 = vmul.f32 %v6383, %v6401
        %v6406 = vmul.f32 %v6385, %v6402
        %v6407 = vmul.f32 %v6387, %v6403
        %v6408 = vpack.c.bf16 %v6405, %v6404
        %v6409 = vpack.c.bf16 %v6407, %v6406
        %v6411 = vsel %vm3197, %v6408, 0
        %v6414 = vsel %vm3197, %v6409, 0
        %6416 = vmatprep.subr.bf16.mxu0 0
        %6417 = vmatpush1.bf16.msra.mxu0 %v6295
        %6418 = vmatprep.subr.bf16.mxu0 0
        %6419 = vmatpush1.bf16.msra.mxu0 %v6296
        %6420 = vmatprep.subr.bf16.mxu0 0
        %6421 = vmatpush1.bf16.msra.mxu0 0
        %6422 = vmatprep.subr.bf16.mxu0 0
        %6423 = vmatpush1.bf16.msra.mxu0 0
        %6424 = vmatprep.subr.bf16.mxu0 0
        %6425 = vmatpush1.bf16.msra.mxu0 0
        %6426 = vmatprep.subr.bf16.mxu0 0
        %6427 = vmatpush1.bf16.msra.mxu0 0
        %6428 = vmatprep.subr.bf16.mxu0 0
        %6429 = vmatpush1.bf16.msra.mxu0 0
        %6430 = vmatprep.subr.bf16.mxu0 0
        %6431 = vmatpush1.bf16.msra.mxu0 0
        %6432 = vmatprep.subr.bf16.mxu0 0
        %6433 = vmatpush1.bf16.msra.mxu0 0
        %6434 = vmatprep.subr.bf16.mxu0 0
        %6435 = vmatpush1.bf16.msra.mxu0 0
        %6436 = vmatprep.subr.bf16.mxu0 0
        %6437 = vmatpush1.bf16.msra.mxu0 0
        %6438 = vmatprep.subr.bf16.mxu0 0
        %6439 = vmatpush1.bf16.msra.mxu0 0
        %6440 = vmatprep.subr.bf16.mxu0 0
        %6441 = vmatpush1.bf16.msra.mxu0 0
        %6442 = vmatprep.subr.bf16.mxu0 0
        %6443 = vmatpush1.bf16.msra.mxu0 0
        %6444 = vmatprep.subr.bf16.mxu0 0
        %6445 = vmatpush1.bf16.msra.mxu0 0
        %6446 = vmatprep.subr.bf16.mxu0 0
        %6447 = vmatpush1.bf16.msra.mxu0 0
        %6448 = vmatprep.mubr.bf16.mxu0 0
        %6449 = vmatmul.mubr.bf16.gmra.mrb[0].mxu0 %v6411
        %v6450 = vpop.f32.mrb[0].mxu0
        %v6451 = vadd.f32 0.0, %v6450
        %v6452 = vpop.f32.mrb[0].mxu0
        %v6453 = vpop.f32.mrb[0].mxu0
        %v6454 = vadd.f32 0.0, %v6453
        %v6455 = vpop.f32.mrb[0].mxu0
        %6456 = vmatprep.mubr.bf16.mxu0 0
        %6457 = vmatmul.mubr.bf16.gmra.mrb[0].mxu0 %v6414
        %v6458 = vpop.f32.mrb[0].mxu0
        %v6459 = vadd.f32 0.0, %v6458
        %v6460 = vpop.f32.mrb[0].mxu0
        %v6461 = vpop.f32.mrb[0].mxu0
        %v6462 = vadd.f32 0.0, %v6461
        %v6463 = vpop.f32.mrb[0].mxu0
        %6464 = vdwg.mxu0
        %v6465 = vpack.c.bf16 %v6454, %v6451
        %v6466 = vpack.c.bf16 %v6462, %v6459
        %6467 = vrot.lane.b32.xlu0 %v6293, 112
        %v6468 = vpop.permute.xlu0 %6467
        %6469 = vrot.lane.b32.xlu0 %v6294, 112
        %v6470 = vpop.permute.xlu0 %6469
        %6471 = vrot.lane.b32.xlu0 %v6293, 48
        %v6472 = vpop.permute.xlu0 %6471
        %6473 = vrot.lane.b32.xlu0 %v6294, 48
        %v6474 = vpop.permute.xlu0 %6473
        %v6476 = vsel %vm3135, %v6468, 0
        %v6479 = vsel %vm3135, %v6470, 0
        %v6482 = vsel %vm3135, %v6472, 0
        %v6485 = vsel %vm3135, %v6474, 0
        %6487 = vmatprep.subr.bf16.mxu0 0
        %6488 = vmatpush1.bf16.xpose.msra.mxu0 %v6482
        %6489 = vmatprep.subr.bf16.mxu0 0
        %6490 = vmatpush1.bf16.xpose.msra.mxu0 %v6485
        %6491 = vmatprep.subr.bf16.mxu0 0
        %6492 = vmatpush1.bf16.xpose.msra.mxu0 0
        %6493 = vmatprep.subr.bf16.mxu0 0
        %6494 = vmatpush1.bf16.xpose.msra.mxu0 0
        %6495 = vmatprep.subr.bf16.mxu0 0
        %6496 = vmatpush1.bf16.xpose.msra.mxu0 0
        %6497 = vmatprep.subr.bf16.mxu0 0
        %6498 = vmatpush1.bf16.xpose.msra.mxu0 0
        %6499 = vmatprep.subr.bf16.mxu0 0
        %6500 = vmatpush1.bf16.xpose.msra.mxu0 0
        %6501 = vmatprep.subr.bf16.mxu0 0
        %6502 = vmatpush1.bf16.xpose.msra.mxu0 0
        %6503 = vmatprep.subr.bf16.mxu0 0
        %6504 = vmatpush1.bf16.xpose.msra.mxu0 0
        %6505 = vmatprep.subr.bf16.mxu0 0
        %6506 = vmatpush1.bf16.xpose.msra.mxu0 0
        %6507 = vmatprep.subr.bf16.mxu0 0
        %6508 = vmatpush1.bf16.xpose.msra.mxu0 0
        %6509 = vmatprep.subr.bf16.mxu0 0
        %6510 = vmatpush1.bf16.xpose.msra.mxu0 0
        %6511 = vmatprep.subr.bf16.mxu0 0
        %6512 = vmatpush1.bf16.xpose.msra.mxu0 0
        %6513 = vmatprep.subr.bf16.mxu0 0
        %6514 = vmatpush1.bf16.xpose.msra.mxu0 0
        %6515 = vmatprep.subr.bf16.mxu0 0
        %6516 = vmatpush1.bf16.xpose.msra.mxu0 0
        %6517 = vmatprep.subr.bf16.mxu0 0
        %6518 = vmatpush1.bf16.xpose.msra.mxu0 0
        %6519 = vmatprep.mubr.bf16.mxu0 0
        %6520 = vmatmul.mubr.bf16.gmra.mrb[0].mxu0 %v6476
        %v6521 = vpop.f32.mrb[0].mxu0
        %v6522 = vadd.f32 0.0, %v6521
        %v6523 = vpop.f32.mrb[0].mxu0
        %v6524 = vpop.f32.mrb[0].mxu0
        %v6525 = vadd.f32 0.0, %v6524
        %v6526 = vpop.f32.mrb[0].mxu0
        %6527 = vmatprep.mubr.bf16.mxu0 0
        %6528 = vmatmul.mubr.bf16.gmra.mrb[0].mxu0 %v6479
        %v6529 = vpop.f32.mrb[0].mxu0
        %v6530 = vadd.f32 0.0, %v6529
        %v6531 = vpop.f32.mrb[0].mxu0
        %v6532 = vpop.f32.mrb[0].mxu0
        %v6533 = vadd.f32 0.0, %v6532
        %v6534 = vpop.f32.mrb[0].mxu0
        %6535 = vdwg.mxu0
        %v6536 = vsel %vm3197, %v6522, -inf
        %6537 = vmax.xlane.f32.xlu0 %v6536
        %v6538 = vpop.xlane.xlu0 %6537
        %v6539 = vsel %vm3197, %v6525, -inf
        %6540 = vmax.xlane.f32.xlu0 %v6539
        %v6541 = vpop.xlane.xlu0 %6540
        %v6542 = vsel %vm3197, %v6530, -inf
        %6543 = vmax.xlane.f32.xlu0 %v6542
        %v6544 = vpop.xlane.xlu0 %6543
        %v6545 = vsel %vm3197, %v6533, -inf
        %6546 = vmax.xlane.f32.xlu0 %v6545
        %v6547 = vpop.xlane.xlu0 %6546
        %v6548 = vsub.f32 %v6522, %v6538
        %v6549 = vsub.f32 %v6525, %v6541
        %v6550 = vsub.f32 %v6530, %v6544
        %v6551 = vsub.f32 %v6533, %v6547
        %v6552 = vmul.f32 %v6548, 1.442695
        %v6553 = vpow.pop %v6552
        %v6554 = vmul.f32 %v6549, 1.442695
        %v6555 = vpow.pop %v6554
        %v6556 = vmul.f32 %v6550, 1.442695
        %v6557 = vpow.pop %v6556
        %v6558 = vmul.f32 %v6551, 1.442695
        %v6559 = vpow.pop %v6558
        %v6560 = vsel %vm3197, %v6553, 0.0
        %6561 = vadd.xlane.f32.xlu0 %v6560
        %v6562 = vpop.xlane.xlu0 %6561
        %v6563 = vsel %vm3197, %v6555, 0.0
        %6564 = vadd.xlane.f32.xlu0 %v6563
        %v6565 = vpop.xlane.xlu0 %6564
        %v6566 = vsel %vm3197, %v6557, 0.0
        %6567 = vadd.xlane.f32.xlu0 %v6566
        %v6568 = vpop.xlane.xlu0 %6567
        %v6569 = vsel %vm3197, %v6559, 0.0
        %6570 = vadd.xlane.f32.xlu0 %v6569
        %v6571 = vpop.xlane.xlu0 %6570
        %v6572 = vrcp.pop %v6562
        %v6573 = vrcp.pop %v6565
        %v6574 = vrcp.pop %v6568
        %v6575 = vrcp.pop %v6571
        %v6576 = vmul.f32 %v6553, %v6572
        %v6577 = vmul.f32 %v6555, %v6573
        %v6578 = vmul.f32 %v6557, %v6574
        %v6579 = vmul.f32 %v6559, %v6575
        %v6580 = vpack.c.bf16 %v6577, %v6576
        %v6581 = vpack.c.bf16 %v6579, %v6578
        %6584 = vrot.lane.b32.xlu0 %v6295, 112
        %v6585 = vpop.permute.xlu0 %6584
        %6586 = vrot.lane.b32.xlu0 %v6296, 112
        %v6587 = vpop.permute.xlu0 %6586
        %v6591 = vsel %vm3197, %v6580, 0
        %v6594 = vsel %vm3197, %v6581, 0
        %6596 = vmatprep.subr.bf16.mxu0 0
        %6597 = vmatpush1.bf16.msra.mxu0 %v6585
        %6598 = vmatprep.subr.bf16.mxu0 0
        %6599 = vmatpush1.bf16.msra.mxu0 %v6587
        %6600 = vmatprep.subr.bf16.mxu0 0
        %6601 = vmatpush1.bf16.msra.mxu0 0
        %6602 = vmatprep.subr.bf16.mxu0 0
        %6603 = vmatpush1.bf16.msra.mxu0 0
        %6604 = vmatprep.subr.bf16.mxu0 0
        %6605 = vmatpush1.bf16.msra.mxu0 0
        %6606 = vmatprep.subr.bf16.mxu0 0
        %6607 = vmatpush1.bf16.msra.mxu0 0
        %6608 = vmatprep.subr.bf16.mxu0 0
        %6609 = vmatpush1.bf16.msra.mxu0 0
        %6610 = vmatprep.subr.bf16.mxu0 0
        %6611 = vmatpush1.bf16.msra.mxu0 0
        %6612 = vmatprep.subr.bf16.mxu0 0
        %6613 = vmatpush1.bf16.msra.mxu0 0
        %6614 = vmatprep.subr.bf16.mxu0 0
        %6615 = vmatpush1.bf16.msra.mxu0 0
        %6616 = vmatprep.subr.bf16.mxu0 0
        %6617 = vmatpush1.bf16.msra.mxu0 0
        %6618 = vmatprep.subr.bf16.mxu0 0
        %6619 = vmatpush1.bf16.msra.mxu0 0
        %6620 = vmatprep.subr.bf16.mxu0 0
        %6621 = vmatpush1.bf16.msra.mxu0 0
        %6622 = vmatprep.subr.bf16.mxu0 0
        %6623 = vmatpush1.bf16.msra.mxu0 0
        %6624 = vmatprep.subr.bf16.mxu0 0
        %6625 = vmatpush1.bf16.msra.mxu0 0
        %6626 = vmatprep.subr.bf16.mxu0 0
        %6627 = vmatpush1.bf16.msra.mxu0 0
        %6628 = vmatprep.mubr.bf16.mxu0 0
        %6629 = vmatmul.mubr.bf16.gmra.mrb[0].mxu0 %v6591
        %v6630 = vpop.f32.mrb[0].mxu0
        %v6631 = vadd.f32 0.0, %v6630
        %v6632 = vpop.f32.mrb[0].mxu0
        %v6633 = vpop.f32.mrb[0].mxu0
        %v6634 = vadd.f32 0.0, %v6633
        %v6635 = vpop.f32.mrb[0].mxu0
        %6636 = vmatprep.mubr.bf16.mxu0 0
        %6637 = vmatmul.mubr.bf16.gmra.mrb[0].mxu0 %v6594
        %v6638 = vpop.f32.mrb[0].mxu0
        %v6639 = vadd.f32 0.0, %v6638
        %v6640 = vpop.f32.mrb[0].mxu0
        %v6641 = vpop.f32.mrb[0].mxu0
        %v6642 = vadd.f32 0.0, %v6641
        %v6643 = vpop.f32.mrb[0].mxu0
        %6644 = vdwg.mxu0
        %v6645 = vpack.c.bf16 %v6634, %v6631
        %v6646 = vpack.c.bf16 %v6642, %v6639
        %v6649 = vunpack.c.l.b16 %v6287
        %v6650 = vunpack.c.l.b16 %v6288
        %v6651 = vpack.c.b16 %v6650, %v6649
        %v6654 = vsel %vm3135, %v6645, 0
        %v6657 = vsel %vm3135, %v6646, 0
        %6659 = vmatprep.subr.bf16.mxu0 0
        %6660 = vmatpush1.bf16.msra.mxu0 %v6651
        %6661 = vmatprep.subr.bf16.mxu0 0
        %6662 = vmatpush1.bf16.msra.mxu0 0
        %6663 = vmatprep.subr.bf16.mxu0 0
        %6664 = vmatpush1.bf16.msra.mxu0 0
        %6665 = vmatprep.subr.bf16.mxu0 0
        %6666 = vmatpush1.bf16.msra.mxu0 0
        %6667 = vmatprep.subr.bf16.mxu0 0
        %6668 = vmatpush1.bf16.msra.mxu0 0
        %6669 = vmatprep.subr.bf16.mxu0 0
        %6670 = vmatpush1.bf16.msra.mxu0 0
        %6671 = vmatprep.subr.bf16.mxu0 0
        %6672 = vmatpush1.bf16.msra.mxu0 0
        %6673 = vmatprep.subr.bf16.mxu0 0
        %6674 = vmatpush1.bf16.msra.mxu0 0
        %6675 = vmatprep.subr.bf16.mxu0 0
        %6676 = vmatpush1.bf16.msra.mxu0 0
        %6677 = vmatprep.subr.bf16.mxu0 0
        %6678 = vmatpush1.bf16.msra.mxu0 0
        %6679 = vmatprep.subr.bf16.mxu0 0
        %6680 = vmatpush1.bf16.msra.mxu0 0
        %6681 = vmatprep.subr.bf16.mxu0 0
        %6682 = vmatpush1.bf16.msra.mxu0 0
        %6683 = vmatprep.subr.bf16.mxu0 0
        %6684 = vmatpush1.bf16.msra.mxu0 0
        %6685 = vmatprep.subr.bf16.mxu0 0
        %6686 = vmatpush1.bf16.msra.mxu0 0
        %6687 = vmatprep.subr.bf16.mxu0 0
        %6688 = vmatpush1.bf16.msra.mxu0 0
        %6689 = vmatprep.subr.bf16.mxu0 0
        %6690 = vmatpush1.bf16.msra.mxu0 0
        %6691 = vmatprep.mubr.bf16.mxu0 0
        %6692 = vmatmul.mubr.bf16.gmra.mrb[0].mxu0 %v6654
        %v6693 = vpop.f32.mrb[0].mxu0
        %v6694 = vadd.f32 0.0, %v6693
        %v6695 = vpop.f32.mrb[0].mxu0
        %v6696 = vpop.f32.mrb[0].mxu0
        %v6697 = vadd.f32 0.0, %v6696
        %v6698 = vpop.f32.mrb[0].mxu0
        %6699 = vmatprep.mubr.bf16.mxu0 0
        %6700 = vmatmul.mubr.bf16.gmra.mrb[0].mxu0 %v6657
        %v6701 = vpop.f32.mrb[0].mxu0
        %v6702 = vadd.f32 0.0, %v6701
        %v6703 = vpop.f32.mrb[0].mxu0
        %v6704 = vpop.f32.mrb[0].mxu0
        %v6705 = vadd.f32 0.0, %v6704
        %v6706 = vpop.f32.mrb[0].mxu0
        %6707 = vdwg.mxu0
        %v6710 = vunpack.c.l.b16 %v6285
        %v6711 = vunpack.c.l.b16 %v6286
        %v6712 = vpack.c.b16 %v6711, %v6710
        %v6715 = vsel %vm3135, %v6465, 0
        %v6718 = vsel %vm3135, %v6466, 0
        %6720 = vmatprep.subr.bf16.mxu0 0
        %6721 = vmatpush1.bf16.msra.mxu0 %v6712
        %6722 = vmatprep.subr.bf16.mxu0 0
        %6723 = vmatpush1.bf16.msra.mxu0 0
        %6724 = vmatprep.subr.bf16.mxu0 0
        %6725 = vmatpush1.bf16.msra.mxu0 0
        %6726 = vmatprep.subr.bf16.mxu0 0
        %6727 = vmatpush1.bf16.msra.mxu0 0
        %6728 = vmatprep.subr.bf16.mxu0 0
        %6729 = vmatpush1.bf16.msra.mxu0 0
        %6730 = vmatprep.subr.bf16.mxu0 0
        %6731 = vmatpush1.bf16.msra.mxu0 0
        %6732 = vmatprep.subr.bf16.mxu0 0
        %6733 = vmatpush1.bf16.msra.mxu0 0
        %6734 = vmatprep.subr.bf16.mxu0 0
        %6735 = vmatpush1.bf16.msra.mxu0 0
        %6736 = vmatprep.subr.bf16.mxu0 0
        %6737 = vmatpush1.bf16.msra.mxu0 0
        %6738 = vmatprep.subr.bf16.mxu0 0
        %6739 = vmatpush1.bf16.msra.mxu0 0
        %6740 = vmatprep.subr.bf16.mxu0 0
        %6741 = vmatpush1.bf16.msra.mxu0 0
        %6742 = vmatprep.subr.bf16.mxu0 0
        %6743 = vmatpush1.bf16.msra.mxu0 0
        %6744 = vmatprep.subr.bf16.mxu0 0
        %6745 = vmatpush1.bf16.msra.mxu0 0
        %6746 = vmatprep.subr.bf16.mxu0 0
        %6747 = vmatpush1.bf16.msra.mxu0 0
        %6748 = vmatprep.subr.bf16.mxu0 0
        %6749 = vmatpush1.bf16.msra.mxu0 0
        %6750 = vmatprep.subr.bf16.mxu0 0
        %6751 = vmatpush1.bf16.msra.mxu0 0
        %6752 = vmatprep.mubr.bf16.mxu0 0
        %6753 = vmatmul.mubr.bf16.gmra.mrb[0].mxu0 %v6715
        %v6754 = vpop.f32.mrb[0].mxu0
        %v6755 = vadd.f32 %v6694, %v6754
        %v6756 = vpop.f32.mrb[0].mxu0
        %v6757 = vpop.f32.mrb[0].mxu0
        %v6758 = vadd.f32 %v6697, %v6757
        %v6759 = vpop.f32.mrb[0].mxu0
        %6760 = vmatprep.mubr.bf16.mxu0 0
        %6761 = vmatmul.mubr.bf16.gmra.mrb[0].mxu0 %v6718
        %v6762 = vpop.f32.mrb[0].mxu0
        %v6763 = vadd.f32 %v6702, %v6762
        %v6764 = vpop.f32.mrb[0].mxu0
        %v6765 = vpop.f32.mrb[0].mxu0
        %v6766 = vadd.f32 %v6705, %v6765
        %v6767 = vpop.f32.mrb[0].mxu0
        %6768 = vdwg.mxu0
        %6769 = vrot.lane.b32.xlu0 %v6293, 96
        %v6770 = vpop.permute.xlu0 %6769
        %6771 = vrot.lane.b32.xlu0 %v6294, 96
        %v6772 = vpop.permute.xlu0 %6771
        %6773 = vrot.lane.b32.xlu0 %v6293, 32
        %v6774 = vpop.permute.xlu0 %6773
        %6775 = vrot.lane.b32.xlu0 %v6294, 32
        %v6776 = vpop.permute.xlu0 %6775
        %v6778 = vsel %vm3135, %v6770, 0
        %v6781 = vsel %vm3135, %v6772, 0
        %v6784 = vsel %vm3135, %v6774, 0
        %v6787 = vsel %vm3135, %v6776, 0
        %6789 = vmatprep.subr.bf16.mxu0 0
        %6790 = vmatpush1.bf16.xpose.msra.mxu0 %v6784
        %6791 = vmatprep.subr.bf16.mxu0 0
        %6792 = vmatpush1.bf16.xpose.msra.mxu0 %v6787
        %6793 = vmatprep.subr.bf16.mxu0 0
        %6794 = vmatpush1.bf16.xpose.msra.mxu0 0
        %6795 = vmatprep.subr.bf16.mxu0 0
        %6796 = vmatpush1.bf16.xpose.msra.mxu0 0
        %6797 = vmatprep.subr.bf16.mxu0 0
        %6798 = vmatpush1.bf16.xpose.msra.mxu0 0
        %6799 = vmatprep.subr.bf16.mxu0 0
        %6800 = vmatpush1.bf16.xpose.msra.mxu0 0
        %6801 = vmatprep.subr.bf16.mxu0 0
        %6802 = vmatpush1.bf16.xpose.msra.mxu0 0
        %6803 = vmatprep.subr.bf16.mxu0 0
        %6804 = vmatpush1.bf16.xpose.msra.mxu0 0
        %6805 = vmatprep.subr.bf16.mxu0 0
        %6806 = vmatpush1.bf16.xpose.msra.mxu0 0
        %6807 = vmatprep.subr.bf16.mxu0 0
        %6808 = vmatpush1.bf16.xpose.msra.mxu0 0
        %6809 = vmatprep.subr.bf16.mxu0 0
        %6810 = vmatpush1.bf16.xpose.msra.mxu0 0
        %6811 = vmatprep.subr.bf16.mxu0 0
        %6812 = vmatpush1.bf16.xpose.msra.mxu0 0
        %6813 = vmatprep.subr.bf16.mxu0 0
        %6814 = vmatpush1.bf16.xpose.msra.mxu0 0
        %6815 = vmatprep.subr.bf16.mxu0 0
        %6816 = vmatpush1.bf16.xpose.msra.mxu0 0
        %6817 = vmatprep.subr.bf16.mxu0 0
        %6818 = vmatpush1.bf16.xpose.msra.mxu0 0
        %6819 = vmatprep.subr.bf16.mxu0 0
        %6820 = vmatpush1.bf16.xpose.msra.mxu0 0
        %6821 = vmatprep.mubr.bf16.mxu0 0
        %6822 = vmatmul.mubr.bf16.gmra.mrb[0].mxu0 %v6778
        %v6823 = vpop.f32.mrb[0].mxu0
        %v6824 = vadd.f32 0.0, %v6823
        %v6825 = vpop.f32.mrb[0].mxu0
        %v6826 = vpop.f32.mrb[0].mxu0
        %v6827 = vadd.f32 0.0, %v6826
        %v6828 = vpop.f32.mrb[0].mxu0
        %6829 = vmatprep.mubr.bf16.mxu0 0
        %6830 = vmatmul.mubr.bf16.gmra.mrb[0].mxu0 %v6781
        %v6831 = vpop.f32.mrb[0].mxu0
        %v6832 = vadd.f32 0.0, %v6831
        %v6833 = vpop.f32.mrb[0].mxu0
        %v6834 = vpop.f32.mrb[0].mxu0
        %v6835 = vadd.f32 0.0, %v6834
        %v6836 = vpop.f32.mrb[0].mxu0
        %6837 = vdwg.mxu0
        %v6838 = vsel %vm3197, %v6824, -inf
        %6839 = vmax.xlane.f32.xlu0 %v6838
        %v6840 = vpop.xlane.xlu0 %6839
        %v6841 = vsel %vm3197, %v6827, -inf
        %6842 = vmax.xlane.f32.xlu0 %v6841
        %v6843 = vpop.xlane.xlu0 %6842
        %v6844 = vsel %vm3197, %v6832, -inf
        %6845 = vmax.xlane.f32.xlu0 %v6844
        %v6846 = vpop.xlane.xlu0 %6845
        %v6847 = vsel %vm3197, %v6835, -inf
        %6848 = vmax.xlane.f32.xlu0 %v6847
        %v6849 = vpop.xlane.xlu0 %6848
        %v6850 = vsub.f32 %v6824, %v6840
        %v6851 = vsub.f32 %v6827, %v6843
        %v6852 = vsub.f32 %v6832, %v6846
        %v6853 = vsub.f32 %v6835, %v6849
        %v6854 = vmul.f32 %v6850, 1.442695
        %v6855 = vpow.pop %v6854
        %v6856 = vmul.f32 %v6851, 1.442695
        %v6857 = vpow.pop %v6856
        %v6858 = vmul.f32 %v6852, 1.442695
        %v6859 = vpow.pop %v6858
        %v6860 = vmul.f32 %v6853, 1.442695
        %v6861 = vpow.pop %v6860
        %v6862 = vsel %vm3197, %v6855, 0.0
        %6863 = vadd.xlane.f32.xlu0 %v6862
        %v6864 = vpop.xlane.xlu0 %6863
        %v6865 = vsel %vm3197, %v6857, 0.0
        %6866 = vadd.xlane.f32.xlu0 %v6865
        %v6867 = vpop.xlane.xlu0 %6866
        %v6868 = vsel %vm3197, %v6859, 0.0
        %6869 = vadd.xlane.f32.xlu0 %v6868
        %v6870 = vpop.xlane.xlu0 %6869
        %v6871 = vsel %vm3197, %v6861, 0.0
        %6872 = vadd.xlane.f32.xlu0 %v6871
        %v6873 = vpop.xlane.xlu0 %6872
        %v6874 = vrcp.pop %v6864
        %v6875 = vrcp.pop %v6867
        %v6876 = vrcp.pop %v6870
        %v6877 = vrcp.pop %v6873
        %v6878 = vmul.f32 %v6855, %v6874
        %v6879 = vmul.f32 %v6857, %v6875
        %v6880 = vmul.f32 %v6859, %v6876
        %v6881 = vmul.f32 %v6861, %v6877
        %v6882 = vpack.c.bf16 %v6879, %v6878
        %v6883 = vpack.c.bf16 %v6881, %v6880
        %6884 = vrot.lane.b32.xlu0 %v6295, 96
        %v6885 = vpop.permute.xlu0 %6884
        %6886 = vrot.lane.b32.xlu0 %v6296, 96
        %v6887 = vpop.permute.xlu0 %6886
        %v6891 = vsel %vm3197, %v6882, 0
        %v6894 = vsel %vm3197, %v6883, 0
        %6896 = vmatprep.subr.bf16.mxu0 0
        %6897 = vmatpush1.bf16.msra.mxu0 %v6885
        %6898 = vmatprep.subr.bf16.mxu0 0
        %6899 = vmatpush1.bf16.msra.mxu0 %v6887
        %6900 = vmatprep.subr.bf16.mxu0 0
        %6901 = vmatpush1.bf16.msra.mxu0 0
        %6902 = vmatprep.subr.bf16.mxu0 0
        %6903 = vmatpush1.bf16.msra.mxu0 0
        %6904 = vmatprep.subr.bf16.mxu0 0
        %6905 = vmatpush1.bf16.msra.mxu0 0
        %6906 = vmatprep.subr.bf16.mxu0 0
        %6907 = vmatpush1.bf16.msra.mxu0 0
        %6908 = vmatprep.subr.bf16.mxu0 0
        %6909 = vmatpush1.bf16.msra.mxu0 0
        %6910 = vmatprep.subr.bf16.mxu0 0
        %6911 = vmatpush1.bf16.msra.mxu0 0
        %6912 = vmatprep.subr.bf16.mxu0 0
        %6913 = vmatpush1.bf16.msra.mxu0 0
        %6914 = vmatprep.subr.bf16.mxu0 0
        %6915 = vmatpush1.bf16.msra.mxu0 0
        %6916 = vmatprep.subr.bf16.mxu0 0
        %6917 = vmatpush1.bf16.msra.mxu0 0
        %6918 = vmatprep.subr.bf16.mxu0 0
        %6919 = vmatpush1.bf16.msra.mxu0 0
        %6920 = vmatprep.subr.bf16.mxu0 0
        %6921 = vmatpush1.bf16.msra.mxu0 0
        %6922 = vmatprep.subr.bf16.mxu0 0
        %6923 = vmatpush1.bf16.msra.mxu0 0
        %6924 = vmatprep.subr.bf16.mxu0 0
        %6925 = vmatpush1.bf16.msra.mxu0 0
        %6926 = vmatprep.subr.bf16.mxu0 0
        %6927 = vmatpush1.bf16.msra.mxu0 0
        %6928 = vmatprep.mubr.bf16.mxu0 0
        %6929 = vmatmul.mubr.bf16.gmra.mrb[0].mxu0 %v6891
        %v6930 = vpop.f32.mrb[0].mxu0
        %v6931 = vadd.f32 0.0, %v6930
        %v6932 = vpop.f32.mrb[0].mxu0
        %v6933 = vpop.f32.mrb[0].mxu0
        %v6934 = vadd.f32 0.0, %v6933
        %v6935 = vpop.f32.mrb[0].mxu0
        %6936 = vmatprep.mubr.bf16.mxu0 0
        %6937 = vmatmul.mubr.bf16.gmra.mrb[0].mxu0 %v6894
        %v6938 = vpop.f32.mrb[0].mxu0
        %v6939 = vadd.f32 0.0, %v6938
        %v6940 = vpop.f32.mrb[0].mxu0
        %v6941 = vpop.f32.mrb[0].mxu0
        %v6942 = vadd.f32 0.0, %v6941
        %v6943 = vpop.f32.mrb[0].mxu0
        %6944 = vdwg.mxu0
        %v6945 = vpack.c.bf16 %v6934, %v6931
        %v6946 = vpack.c.bf16 %v6942, %v6939
        %v6949 = vunpack.c.l.b16 %v6289
        %v6950 = vunpack.c.l.b16 %v6290
        %v6951 = vpack.c.b16 %v6950, %v6949
        %v6954 = vsel %vm3135, %v6945, 0
        %v6957 = vsel %vm3135, %v6946, 0
        %6959 = vmatprep.subr.bf16.mxu0 0
        %6960 = vmatpush1.bf16.msra.mxu0 %v6951
        %6961 = vmatprep.subr.bf16.mxu0 0
        %6962 = vmatpush1.bf16.msra.mxu0 0
        %6963 = vmatprep.subr.bf16.mxu0 0
        %6964 = vmatpush1.bf16.msra.mxu0 0
        %6965 = vmatprep.subr.bf16.mxu0 0
        %6966 = vmatpush1.bf16.msra.mxu0 0
        %6967 = vmatprep.subr.bf16.mxu0 0
        %6968 = vmatpush1.bf16.msra.mxu0 0
        %6969 = vmatprep.subr.bf16.mxu0 0
        %6970 = vmatpush1.bf16.msra.mxu0 0
        %6971 = vmatprep.subr.bf16.mxu0 0
        %6972 = vmatpush1.bf16.msra.mxu0 0
        %6973 = vmatprep.subr.bf16.mxu0 0
        %6974 = vmatpush1.bf16.msra.mxu0 0
        %6975 = vmatprep.subr.bf16.mxu0 0
        %6976 = vmatpush1.bf16.msra.mxu0 0
        %6977 = vmatprep.subr.bf16.mxu0 0
        %6978 = vmatpush1.bf16.msra.mxu0 0
        %6979 = vmatprep.subr.bf16.mxu0 0
        %6980 = vmatpush1.bf16.msra.mxu0 0
        %6981 = vmatprep.subr.bf16.mxu0 0
        %6982 = vmatpush1.bf16.msra.mxu0 0
        %6983 = vmatprep.subr.bf16.mxu0 0
        %6984 = vmatpush1.bf16.msra.mxu0 0
        %6985 = vmatprep.subr.bf16.mxu0 0
        %6986 = vmatpush1.bf16.msra.mxu0 0
        %6987 = vmatprep.subr.bf16.mxu0 0
        %6988 = vmatpush1.bf16.msra.mxu0 0
        %6989 = vmatprep.subr.bf16.mxu0 0
        %6990 = vmatpush1.bf16.msra.mxu0 0
        %6991 = vmatprep.mubr.bf16.mxu0 0
        %6992 = vmatmul.mubr.bf16.gmra.mrb[0].mxu0 %v6954
        %v6993 = vpop.f32.mrb[0].mxu0
        %v6994 = vadd.f32 0.0, %v6993
        %v6995 = vpop.f32.mrb[0].mxu0
        %v6996 = vpop.f32.mrb[0].mxu0
        %v6997 = vadd.f32 0.0, %v6996
        %v6998 = vpop.f32.mrb[0].mxu0
        %6999 = vmatprep.mubr.bf16.mxu0 0
        %7000 = vmatmul.mubr.bf16.gmra.mrb[0].mxu0 %v6957
        %v7001 = vpop.f32.mrb[0].mxu0
        %v7002 = vadd.f32 0.0, %v7001
        %v7003 = vpop.f32.mrb[0].mxu0
        %v7004 = vpop.f32.mrb[0].mxu0
        %v7005 = vadd.f32 0.0, %v7004
        %v7006 = vpop.f32.mrb[0].mxu0
        %7007 = vdwg.mxu0
        %v7008 = vadd.f32 %v6755, %v6994
        %v7009 = vadd.f32 %v6758, %v6997
        %v7010 = vadd.f32 %v6763, %v7002
        %v7011 = vadd.f32 %v6766, %v7005
        %7012 = vrot.lane.b32.xlu0 %v6293, 80
        %v7013 = vpop.permute.xlu0 %7012
        %7014 = vrot.lane.b32.xlu0 %v6294, 80
        %v7015 = vpop.permute.xlu0 %7014
        %7016 = vrot.lane.b32.xlu0 %v6293, 16
        %v7017 = vpop.permute.xlu0 %7016
        %7018 = vrot.lane.b32.xlu0 %v6294, 16
        %v7019 = vpop.permute.xlu0 %7018
        %v7021 = vsel %vm3135, %v7013, 0
        %v7024 = vsel %vm3135, %v7015, 0
        %v7027 = vsel %vm3135, %v7017, 0
        %v7030 = vsel %vm3135, %v7019, 0
        %7032 = vmatprep.subr.bf16.mxu0 0
        %7033 = vmatpush1.bf16.xpose.msra.mxu0 %v7027
        %7034 = vmatprep.subr.bf16.mxu0 0
        %7035 = vmatpush1.bf16.xpose.msra.mxu0 %v7030
        %7036 = vmatprep.subr.bf16.mxu0 0
        %7037 = vmatpush1.bf16.xpose.msra.mxu0 0
        %7038 = vmatprep.subr.bf16.mxu0 0
        %7039 = vmatpush1.bf16.xpose.msra.mxu0 0
        %7040 = vmatprep.subr.bf16.mxu0 0
        %7041 = vmatpush1.bf16.xpose.msra.mxu0 0
        %7042 = vmatprep.subr.bf16.mxu0 0
        %7043 = vmatpush1.bf16.xpose.msra.mxu0 0
        %7044 = vmatprep.subr.bf16.mxu0 0
        %7045 = vmatpush1.bf16.xpose.msra.mxu0 0
        %7046 = vmatprep.subr.bf16.mxu0 0
        %7047 = vmatpush1.bf16.xpose.msra.mxu0 0
        %7048 = vmatprep.subr.bf16.mxu0 0
        %7049 = vmatpush1.bf16.xpose.msra.mxu0 0
        %7050 = vmatprep.subr.bf16.mxu0 0
        %7051 = vmatpush1.bf16.xpose.msra.mxu0 0
        %7052 = vmatprep.subr.bf16.mxu0 0
        %7053 = vmatpush1.bf16.xpose.msra.mxu0 0
        %7054 = vmatprep.subr.bf16.mxu0 0
        %7055 = vmatpush1.bf16.xpose.msra.mxu0 0
        %7056 = vmatprep.subr.bf16.mxu0 0
        %7057 = vmatpush1.bf16.xpose.msra.mxu0 0
        %7058 = vmatprep.subr.bf16.mxu0 0
        %7059 = vmatpush1.bf16.xpose.msra.mxu0 0
        %7060 = vmatprep.subr.bf16.mxu0 0
        %7061 = vmatpush1.bf16.xpose.msra.mxu0 0
        %7062 = vmatprep.subr.bf16.mxu0 0
        %7063 = vmatpush1.bf16.xpose.msra.mxu0 0
        %7064 = vmatprep.mubr.bf16.mxu0 0
        %7065 = vmatmul.mubr.bf16.gmra.mrb[0].mxu0 %v7021
        %v7066 = vpop.f32.mrb[0].mxu0
        %v7067 = vadd.f32 0.0, %v7066
        %v7068 = vpop.f32.mrb[0].mxu0
        %v7069 = vpop.f32.mrb[0].mxu0
        %v7070 = vadd.f32 0.0, %v7069
        %v7071 = vpop.f32.mrb[0].mxu0
        %7072 = vmatprep.mubr.bf16.mxu0 0
        %7073 = vmatmul.mubr.bf16.gmra.mrb[0].mxu0 %v7024
        %v7074 = vpop.f32.mrb[0].mxu0
        %v7075 = vadd.f32 0.0, %v7074
        %v7076 = vpop.f32.mrb[0].mxu0
        %v7077 = vpop.f32.mrb[0].mxu0
        %v7078 = vadd.f32 0.0, %v7077
        %v7079 = vpop.f32.mrb[0].mxu0
        %7080 = vdwg.mxu0
        %v7081 = vsel %vm3197, %v7067, -inf
        %7082 = vmax.xlane.f32.xlu0 %v7081
        %v7083 = vpop.xlane.xlu0 %7082
        %v7084 = vsel %vm3197, %v7070, -inf
        %7085 = vmax.xlane.f32.xlu0 %v7084
        %v7086 = vpop.xlane.xlu0 %7085
        %v7087 = vsel %vm3197, %v7075, -inf
        %7088 = vmax.xlane.f32.xlu0 %v7087
        %v7089 = vpop.xlane.xlu0 %7088
        %v7090 = vsel %vm3197, %v7078, -inf
        %7091 = vmax.xlane.f32.xlu0 %v7090
        %v7092 = vpop.xlane.xlu0 %7091
        %v7093 = vsub.f32 %v7067, %v7083
        %v7094 = vsub.f32 %v7070, %v7086
        %v7095 = vsub.f32 %v7075, %v7089
        %v7096 = vsub.f32 %v7078, %v7092
        %v7097 = vmul.f32 %v7093, 1.442695
        %v7098 = vpow.pop %v7097
        %v7099 = vmul.f32 %v7094, 1.442695
        %v7100 = vpow.pop %v7099
        %v7101 = vmul.f32 %v7095, 1.442695
        %v7102 = vpow.pop %v7101
        %v7103 = vmul.f32 %v7096, 1.442695
        %v7104 = vpow.pop %v7103
        %v7105 = vsel %vm3197, %v7098, 0.0
        %7106 = vadd.xlane.f32.xlu0 %v7105
        %v7107 = vpop.xlane.xlu0 %7106
        %v7108 = vsel %vm3197, %v7100, 0.0
        %7109 = vadd.xlane.f32.xlu0 %v7108
        %v7110 = vpop.xlane.xlu0 %7109
        %v7111 = vsel %vm3197, %v7102, 0.0
        %7112 = vadd.xlane.f32.xlu0 %v7111
        %v7113 = vpop.xlane.xlu0 %7112
        %v7114 = vsel %vm3197, %v7104, 0.0
        %7115 = vadd.xlane.f32.xlu0 %v7114
        %v7116 = vpop.xlane.xlu0 %7115
        %v7117 = vrcp.pop %v7107
        %v7118 = vrcp.pop %v7110
        %v7119 = vrcp.pop %v7113
        %v7120 = vrcp.pop %v7116
        %v7121 = vmul.f32 %v7098, %v7117
        %v7122 = vmul.f32 %v7100, %v7118
        %v7123 = vmul.f32 %v7102, %v7119
        %v7124 = vmul.f32 %v7104, %v7120
        %v7125 = vpack.c.bf16 %v7122, %v7121
        %v7126 = vpack.c.bf16 %v7124, %v7123
        %7127 = vrot.lane.b32.xlu0 %v6295, 80
        %v7128 = vpop.permute.xlu0 %7127
        %7129 = vrot.lane.b32.xlu0 %v6296, 80
        %v7130 = vpop.permute.xlu0 %7129
        %v7134 = vsel %vm3197, %v7125, 0
        %v7137 = vsel %vm3197, %v7126, 0
        %7139 = vmatprep.subr.bf16.mxu0 0
        %7140 = vmatpush1.bf16.msra.mxu0 %v7128
        %7141 = vmatprep.subr.bf16.mxu0 0
        %7142 = vmatpush1.bf16.msra.mxu0 %v7130
        %7143 = vmatprep.subr.bf16.mxu0 0
        %7144 = vmatpush1.bf16.msra.mxu0 0
        %7145 = vmatprep.subr.bf16.mxu0 0
        %7146 = vmatpush1.bf16.msra.mxu0 0
        %7147 = vmatprep.subr.bf16.mxu0 0
        %7148 = vmatpush1.bf16.msra.mxu0 0
        %7149 = vmatprep.subr.bf16.mxu0 0
        %7150 = vmatpush1.bf16.msra.mxu0 0
        %7151 = vmatprep.subr.bf16.mxu0 0
        %7152 = vmatpush1.bf16.msra.mxu0 0
        %7153 = vmatprep.subr.bf16.mxu0 0
        %7154 = vmatpush1.bf16.msra.mxu0 0
        %7155 = vmatprep.subr.bf16.mxu0 0
        %7156 = vmatpush1.bf16.msra.mxu0 0
        %7157 = vmatprep.subr.bf16.mxu0 0
        %7158 = vmatpush1.bf16.msra.mxu0 0
        %7159 = vmatprep.subr.bf16.mxu0 0
        %7160 = vmatpush1.bf16.msra.mxu0 0
        %7161 = vmatprep.subr.bf16.mxu0 0
        %7162 = vmatpush1.bf16.msra.mxu0 0
        %7163 = vmatprep.subr.bf16.mxu0 0
        %7164 = vmatpush1.bf16.msra.mxu0 0
        %7165 = vmatprep.subr.bf16.mxu0 0
        %7166 = vmatpush1.bf16.msra.mxu0 0
        %7167 = vmatprep.subr.bf16.mxu0 0
        %7168 = vmatpush1.bf16.msra.mxu0 0
        %7169 = vmatprep.subr.bf16.mxu0 0
        %7170 = vmatpush1.bf16.msra.mxu0 0
        %7171 = vmatprep.mubr.bf16.mxu0 0
        %7172 = vmatmul.mubr.bf16.gmra.mrb[0].mxu0 %v7134
        %v7173 = vpop.f32.mrb[0].mxu0
        %v7174 = vadd.f32 0.0, %v7173
        %v7175 = vpop.f32.mrb[0].mxu0
        %v7176 = vpop.f32.mrb[0].mxu0
        %v7177 = vadd.f32 0.0, %v7176
        %v7178 = vpop.f32.mrb[0].mxu0
        %7179 = vmatprep.mubr.bf16.mxu0 0
        %7180 = vmatmul.mubr.bf16.gmra.mrb[0].mxu0 %v7137
        %v7181 = vpop.f32.mrb[0].mxu0
        %v7182 = vadd.f32 0.0, %v7181
        %v7183 = vpop.f32.mrb[0].mxu0
        %v7184 = vpop.f32.mrb[0].mxu0
        %v7185 = vadd.f32 0.0, %v7184
        %v7186 = vpop.f32.mrb[0].mxu0
        %7187 = vdwg.mxu0
        %v7188 = vpack.c.bf16 %v7177, %v7174
        %v7189 = vpack.c.bf16 %v7185, %v7182
        %v7192 = vunpack.c.l.b16 %v6291
        %v7193 = vunpack.c.l.b16 %v6292
        %v7194 = vpack.c.b16 %v7193, %v7192
        %v7197 = vsel %vm3135, %v7188, 0
        %v7200 = vsel %vm3135, %v7189, 0
        %7202 = vmatprep.subr.bf16.mxu0 0
        %7203 = vmatpush1.bf16.msra.mxu0 %v7194
        %7204 = vmatprep.subr.bf16.mxu0 0
        %7205 = vmatpush1.bf16.msra.mxu0 0
        %7206 = vmatprep.subr.bf16.mxu0 0
        %7207 = vmatpush1.bf16.msra.mxu0 0
        %7208 = vmatprep.subr.bf16.mxu0 0
        %7209 = vmatpush1.bf16.msra.mxu0 0
        %7210 = vmatprep.subr.bf16.mxu0 0
        %7211 = vmatpush1.bf16.msra.mxu0 0
        %7212 = vmatprep.subr.bf16.mxu0 0
        %7213 = vmatpush1.bf16.msra.mxu0 0
        %7214 = vmatprep.subr.bf16.mxu0 0
        %7215 = vmatpush1.bf16.msra.mxu0 0
        %7216 = vmatprep.subr.bf16.mxu0 0
        %7217 = vmatpush1.bf16.msra.mxu0 0
        %7218 = vmatprep.subr.bf16.mxu0 0
        %7219 = vmatpush1.bf16.msra.mxu0 0
        %7220 = vmatprep.subr.bf16.mxu0 0
        %7221 = vmatpush1.bf16.msra.mxu0 0
        %7222 = vmatprep.subr.bf16.mxu0 0
        %7223 = vmatpush1.bf16.msra.mxu0 0
        %7224 = vmatprep.subr.bf16.mxu0 0
        %7225 = vmatpush1.bf16.msra.mxu0 0
        %7226 = vmatprep.subr.bf16.mxu0 0
        %7227 = vmatpush1.bf16.msra.mxu0 0
        %7228 = vmatprep.subr.bf16.mxu0 0
        %7229 = vmatpush1.bf16.msra.mxu0 0
        %7230 = vmatprep.subr.bf16.mxu0 0
        %7231 = vmatpush1.bf16.msra.mxu0 0
        %7232 = vmatprep.subr.bf16.mxu0 0
        %7233 = vmatpush1.bf16.msra.mxu0 0
        %7234 = vmatprep.mubr.bf16.mxu0 0
        %7235 = vmatmul.mubr.bf16.gmra.mrb[0].mxu0 %v7197
        %v7236 = vpop.f32.mrb[0].mxu0
        %v7237 = vadd.f32 0.0, %v7236
        %v7238 = vpop.f32.mrb[0].mxu0
        %v7239 = vpop.f32.mrb[0].mxu0
        %v7240 = vadd.f32 0.0, %v7239
        %v7241 = vpop.f32.mrb[0].mxu0
        %7242 = vmatprep.mubr.bf16.mxu0 0
        %7243 = vmatmul.mubr.bf16.gmra.mrb[0].mxu0 %v7200
        %v7244 = vpop.f32.mrb[0].mxu0
        %v7245 = vadd.f32 0.0, %v7244
        %v7246 = vpop.f32.mrb[0].mxu0
        %v7247 = vpop.f32.mrb[0].mxu0
        %v7248 = vadd.f32 0.0, %v7247
        %v7249 = vpop.f32.mrb[0].mxu0
        %7250 = vdwg.mxu0
        %v7251 = vadd.f32 %v7008, %v7237
        %v7252 = vadd.f32 %v7009, %v7240
        %v7253 = vadd.f32 %v7010, %v7245
        %v7254 = vadd.f32 %v7011, %v7248
        %s7255 = scalar_lea.vmem %s8, 2
        %v7256 = vld [vmem:[%s7255] sm:$0x1]
        %v7258 = vlaneseq
        %v7259 = vshrl.u32 %v7258, 7
        %v7260 = vsub.s32 0, %v7259
        %v7261 = vrot.slane %v7256, %v7260
        %v7263 = vadd.f32 %v7251, %v7261
        %v7264 = vadd.f32 %v7252, %v7261
        %v7265 = vadd.f32 %v7253, %v7261
        %v7266 = vadd.f32 %v7254, %v7261
        %v7267 = vadd.f32 %v6157, %v7263
        %v7268 = vadd.f32 %v6158, %v7264
        %v7269 = vadd.f32 %v6159, %v7265
        %v7270 = vadd.f32 %v6160, %v7266
        %s7271 = scalar_lea.vmem %s13, 2
        %v7272 = vld [vmem:[%s7271] sm:$0x1]
        %s7273 = scalar_lea.vmem %s14, 2
        %v7274 = vld [vmem:[%s7273] sm:$0x1]
        %v7275 = vsel %vm3057, %v7267, 0.0
        %7276 = vadd.xlane.f32.xlu0 %v7275
        %v7277 = vpop.xlane.xlu0 %7276
        %v7278 = vsel %vm3057, %v7268, 0.0
        %7279 = vadd.xlane.f32.xlu0 %v7278
        %v7280 = vpop.xlane.xlu0 %7279
        %v7281 = vsel %vm3057, %v7269, 0.0
        %7282 = vadd.xlane.f32.xlu0 %v7281
        %v7283 = vpop.xlane.xlu0 %7282
        %v7284 = vsel %vm3057, %v7270, 0.0
        %7285 = vadd.xlane.f32.xlu0 %v7284
        %v7286 = vpop.xlane.xlu0 %7285
        %v7287 = vmul.f32 %v7277, %v4118
        %v7288 = vmul.f32 %v7280, %v4118
        %v7289 = vmul.f32 %v7283, %v4118
        %v7290 = vmul.f32 %v7286, %v4118
        %v7291 = vsub.f32 %v7267, %v7287
        %v7292 = vsub.f32 %v7268, %v7288
        %v7293 = vsub.f32 %v7269, %v7289
        %v7294 = vsub.f32 %v7270, %v7290
        %v7295 = vmul.f32 %v7291, %v7291
        %v7296 = vmul.f32 %v7292, %v7292
        %v7297 = vmul.f32 %v7293, %v7293
        %v7298 = vmul.f32 %v7294, %v7294
        %v7299 = vsel %vm3057, %v7295, 0.0
        %7300 = vadd.xlane.f32.xlu0 %v7299
        %v7301 = vpop.xlane.xlu0 %7300
        %v7302 = vsel %vm3057, %v7296, 0.0
        %7303 = vadd.xlane.f32.xlu0 %v7302
        %v7304 = vpop.xlane.xlu0 %7303
        %v7305 = vsel %vm3057, %v7297, 0.0
        %7306 = vadd.xlane.f32.xlu0 %v7305
        %v7307 = vpop.xlane.xlu0 %7306
        %v7308 = vsel %vm3057, %v7298, 0.0
        %7309 = vadd.xlane.f32.xlu0 %v7308
        %v7310 = vpop.xlane.xlu0 %7309
        %v7311 = vmul.f32 %v7301, %v4118
        %v7312 = vmul.f32 %v7304, %v4118
        %v7313 = vmul.f32 %v7307, %v4118
        %v7314 = vmul.f32 %v7310, %v4118
        %v7315 = vadd.f32 %v7311, 1e-05
        %v7316 = vadd.f32 %v7312, 1e-05
        %v7317 = vadd.f32 %v7313, 1e-05
        %v7318 = vadd.f32 %v7314, 1e-05
        %v7319 = vrsqrt.pop %v7315
        %v7320 = vrsqrt.pop %v7316
        %v7321 = vrsqrt.pop %v7317
        %v7322 = vrsqrt.pop %v7318
        %v7323 = vmul.f32 %v7291, %v7319
        %v7324 = vmul.f32 %v7292, %v7320
        %v7325 = vmul.f32 %v7293, %v7321
        %v7326 = vmul.f32 %v7294, %v7322
        %v7328 = vlaneseq
        %v7329 = vshrl.u32 %v7328, 7
        %v7330 = vsub.s32 0, %v7329
        %v7331 = vrot.slane %v7272, %v7330
        %v7333 = vmul.f32 %v7323, %v7331
        %v7334 = vmul.f32 %v7324, %v7331
        %v7335 = vmul.f32 %v7325, %v7331
        %v7336 = vmul.f32 %v7326, %v7331
        %v7338 = vlaneseq
        %v7339 = vshrl.u32 %v7338, 7
        %v7340 = vsub.s32 0, %v7339
        %v7341 = vrot.slane %v7274, %v7340
        %v7343 = vadd.f32 %v7333, %v7341
        %v7344 = vadd.f32 %v7334, %v7341
        %v7345 = vadd.f32 %v7335, %v7341
        %v7346 = vadd.f32 %v7336, %v7341
        %v7347 = vpack.c.bf16 %v7344, %v7343
        %v7348 = vpack.c.bf16 %v7346, %v7345
        %s7349 = scalar_lea.vmem %s9, 128
        %v7350 = vld [vmem:[%s7349] sm:$0xff]
        %v7351 = vld [vmem:[%s7349 + $0x8] sm:$0xff]
        %v7352 = vld [vmem:[%s7349 + $0x10] sm:$0xff]
        %v7353 = vld [vmem:[%s7349 + $0x18] sm:$0xff]
        %v7354 = vld [vmem:[%s7349 + $0x20] sm:$0xff]
        %v7355 = vld [vmem:[%s7349 + $0x28] sm:$0xff]
        %v7356 = vld [vmem:[%s7349 + $0x30] sm:$0xff]
        %v7357 = vld [vmem:[%s7349 + $0x38] sm:$0xff]
        %s7358 = scalar_lea.vmem %s10, 4
        %v7359 = vld [vmem:[%s7358] sm:$0x3]
        %v7361 = vlaneseq
        %v7362 = vshrl.u32 %v7361, 7
        %v7363 = vsub.s32 0, %v7362
        %v7364 = vrot.slane %v7359, %v7363
        %v7365 = vlaneseq
        %v7366 = vshrl.u32 %v7365, 7
        %v7367 = vsub.s32 1, %v7366
        %v7368 = vrot.slane %v7359, %v7367
        %v7379 = vunpack.c.l.b16 %v7350
        %v7380 = vunpack.c.h.b16 %v7350
        %v7381 = vunpack.c.l.b16 %v7351
        %v7382 = vunpack.c.h.b16 %v7351
        %v7383 = vunpack.c.l.b16 %v7352
        %v7384 = vunpack.c.h.b16 %v7352
        %v7385 = vunpack.c.l.b16 %v7353
        %v7386 = vunpack.c.h.b16 %v7353
        %v7387 = vunpack.c.l.b16 %v7354
        %v7388 = vunpack.c.h.b16 %v7354
        %v7389 = vunpack.c.l.b16 %v7355
        %v7390 = vunpack.c.h.b16 %v7355
        %v7391 = vunpack.c.l.b16 %v7356
        %v7392 = vunpack.c.h.b16 %v7356
        %v7393 = vunpack.c.l.b16 %v7357
        %v7394 = vunpack.c.h.b16 %v7357
        %v7395 = vpack.c.b16 %v7381, %v7379
        %v7396 = vpack.c.b16 %v7382, %v7380
        %v7397 = vpack.c.b16 %v7385, %v7383
        %v7398 = vpack.c.b16 %v7386, %v7384
        %v7399 = vpack.c.b16 %v7389, %v7387
        %v7400 = vpack.c.b16 %v7390, %v7388
        %v7401 = vpack.c.b16 %v7393, %v7391
        %v7402 = vpack.c.b16 %v7394, %v7392
        %v7412 = vsel %vm3057, %v7347, 0
        %v7415 = vsel %vm3057, %v7348, 0
        %7417 = vmatprep.subr.bf16.mxu0 %v7396
        %7418 = vmatpush1.bf16.msra.mxu0 %v7395
        %7419 = vmatprep.subr.bf16.mxu0 %v7398
        %7420 = vmatpush1.bf16.msra.mxu0 %v7397
        %7421 = vmatprep.subr.bf16.mxu0 %v7400
        %7422 = vmatpush1.bf16.msra.mxu0 %v7399
        %7423 = vmatprep.subr.bf16.mxu0 %v7402
        %7424 = vmatpush1.bf16.msra.mxu0 %v7401
        %7425 = vmatprep.subr.bf16.mxu0 0
        %7426 = vmatpush1.bf16.msra.mxu0 0
        %7427 = vmatprep.subr.bf16.mxu0 0
        %7428 = vmatpush1.bf16.msra.mxu0 0
        %7429 = vmatprep.subr.bf16.mxu0 0
        %7430 = vmatpush1.bf16.msra.mxu0 0
        %7431 = vmatprep.subr.bf16.mxu0 0
        %7432 = vmatpush1.bf16.msra.mxu0 0
        %7433 = vmatprep.subr.bf16.mxu0 0
        %7434 = vmatpush1.bf16.msra.mxu0 0
        %7435 = vmatprep.subr.bf16.mxu0 0
        %7436 = vmatpush1.bf16.msra.mxu0 0
        %7437 = vmatprep.subr.bf16.mxu0 0
        %7438 = vmatpush1.bf16.msra.mxu0 0
        %7439 = vmatprep.subr.bf16.mxu0 0
        %7440 = vmatpush1.bf16.msra.mxu0 0
        %7441 = vmatprep.subr.bf16.mxu0 0
        %7442 = vmatpush1.bf16.msra.mxu0 0
        %7443 = vmatprep.subr.bf16.mxu0 0
        %7444 = vmatpush1.bf16.msra.mxu0 0
        %7445 = vmatprep.subr.bf16.mxu0 0
        %7446 = vmatpush1.bf16.msra.mxu0 0
        %7447 = vmatprep.subr.bf16.mxu0 0
        %7448 = vmatpush1.bf16.msra.mxu0 0
        %7449 = vmatprep.mubr.bf16.mxu0 0
        %7450 = vmatmul.mubr.bf16.gmra.mrb[0].mxu0 %v7412
        %v7451 = vpop.f32.mrb[0].mxu0
        %v7452 = vadd.f32 %v7364, %v7451
        %v7453 = vpop.f32.mrb[0].mxu0
        %v7454 = vadd.f32 %v7368, %v7453
        %v7455 = vpop.f32.mrb[0].mxu0
        %v7456 = vadd.f32 %v7364, %v7455
        %v7457 = vpop.f32.mrb[0].mxu0
        %v7458 = vadd.f32 %v7368, %v7457
        %7459 = vmatprep.mubr.bf16.mxu0 0
        %7460 = vmatmul.mubr.bf16.gmra.mrb[0].mxu0 %v7415
        %v7461 = vpop.f32.mrb[0].mxu0
        %v7462 = vadd.f32 %v7364, %v7461
        %v7463 = vpop.f32.mrb[0].mxu0
        %v7464 = vadd.f32 %v7368, %v7463
        %v7465 = vpop.f32.mrb[0].mxu0
        %v7466 = vadd.f32 %v7364, %v7465
        %v7467 = vpop.f32.mrb[0].mxu0
        %v7468 = vadd.f32 %v7368, %v7467
        %7469 = vdwg.mxu0
        %v7470 = vmax.f32 %v7452, 0.0
        %v7471 = vmax.f32 %v7454, 0.0
        %v7472 = vmax.f32 %v7456, 0.0
        %v7473 = vmax.f32 %v7458, 0.0
        %v7474 = vmax.f32 %v7462, 0.0
        %v7475 = vmax.f32 %v7464, 0.0
        %v7476 = vmax.f32 %v7466, 0.0
        %v7477 = vmax.f32 %v7468, 0.0
        %v7478 = vpack.c.bf16 %v7472, %v7470
        %v7479 = vpack.c.bf16 %v7473, %v7471
        %v7480 = vpack.c.bf16 %v7476, %v7474
        %v7481 = vpack.c.bf16 %v7477, %v7475
        %s7482 = scalar_lea.vmem %s11, 256
        %v7483 = vld [vmem:[%s7482] sm:$0xf]
        %v7484 = vld [vmem:[%s7482 + $0x4] sm:$0xf]
        %v7485 = vld [vmem:[%s7482 + $0x8] sm:$0xf]
        %v7486 = vld [vmem:[%s7482 + $0xc] sm:$0xf]
        %v7487 = vld [vmem:[%s7482 + $0x10] sm:$0xf]
        %v7488 = vld [vmem:[%s7482 + $0x14] sm:$0xf]
        %v7489 = vld [vmem:[%s7482 + $0x18] sm:$0xf]
        %v7490 = vld [vmem:[%s7482 + $0x1c] sm:$0xf]
        %v7491 = vld [vmem:[%s7482 + $0x20] sm:$0xf]
        %v7492 = vld [vmem:[%s7482 + $0x24] sm:$0xf]
        %v7493 = vld [vmem:[%s7482 + $0x28] sm:$0xf]
        %v7494 = vld [vmem:[%s7482 + $0x2c] sm:$0xf]
        %v7495 = vld [vmem:[%s7482 + $0x30] sm:$0xf]
        %v7496 = vld [vmem:[%s7482 + $0x34] sm:$0xf]
        %v7497 = vld [vmem:[%s7482 + $0x38] sm:$0xf]
        %v7498 = vld [vmem:[%s7482 + $0x3c] sm:$0xf]
        %v7499 = vld [vmem:[%s7482 + $0x40] sm:$0xf]
        %v7500 = vld [vmem:[%s7482 + $0x44] sm:$0xf]
        %v7501 = vld [vmem:[%s7482 + $0x48] sm:$0xf]
        %v7502 = vld [vmem:[%s7482 + $0x4c] sm:$0xf]
        %v7503 = vld [vmem:[%s7482 + $0x50] sm:$0xf]
        %v7504 = vld [vmem:[%s7482 + $0x54] sm:$0xf]
        %v7505 = vld [vmem:[%s7482 + $0x58] sm:$0xf]
        %v7506 = vld [vmem:[%s7482 + $0x5c] sm:$0xf]
        %v7507 = vld [vmem:[%s7482 + $0x60] sm:$0xf]
        %v7508 = vld [vmem:[%s7482 + $0x64] sm:$0xf]
        %v7509 = vld [vmem:[%s7482 + $0x68] sm:$0xf]
        %v7510 = vld [vmem:[%s7482 + $0x6c] sm:$0xf]
        %v7511 = vld [vmem:[%s7482 + $0x70] sm:$0xf]
        %v7512 = vld [vmem:[%s7482 + $0x74] sm:$0xf]
        %v7513 = vld [vmem:[%s7482 + $0x78] sm:$0xf]
        %v7514 = vld [vmem:[%s7482 + $0x7c] sm:$0xf]
        %s7515 = scalar_lea.vmem %s12, 2
        %v7516 = vld [vmem:[%s7515] sm:$0x1]
        %v7518 = vlaneseq
        %v7519 = vshrl.u32 %v7518, 7
        %v7520 = vsub.s32 0, %v7519
        %v7521 = vrot.slane %v7516, %v7520
        %v7555 = vunpack.c.l.b16 %v7483
        %v7556 = vunpack.c.l.b16 %v7484
        %v7557 = vunpack.c.l.b16 %v7485
        %v7558 = vunpack.c.l.b16 %v7486
        %v7559 = vunpack.c.l.b16 %v7487
        %v7560 = vunpack.c.l.b16 %v7488
        %v7561 = vunpack.c.l.b16 %v7489
        %v7562 = vunpack.c.l.b16 %v7490
        %v7563 = vunpack.c.l.b16 %v7491
        %v7564 = vunpack.c.l.b16 %v7492
        %v7565 = vunpack.c.l.b16 %v7493
        %v7566 = vunpack.c.l.b16 %v7494
        %v7567 = vunpack.c.l.b16 %v7495
        %v7568 = vunpack.c.l.b16 %v7496
        %v7569 = vunpack.c.l.b16 %v7497
        %v7570 = vunpack.c.l.b16 %v7498
        %v7571 = vunpack.c.l.b16 %v7499
        %v7572 = vunpack.c.l.b16 %v7500
        %v7573 = vunpack.c.l.b16 %v7501
        %v7574 = vunpack.c.l.b16 %v7502
        %v7575 = vunpack.c.l.b16 %v7503
        %v7576 = vunpack.c.l.b16 %v7504
        %v7577 = vunpack.c.l.b16 %v7505
        %v7578 = vunpack.c.l.b16 %v7506
        %v7579 = vunpack.c.l.b16 %v7507
        %v7580 = vunpack.c.l.b16 %v7508
        %v7581 = vunpack.c.l.b16 %v7509
        %v7582 = vunpack.c.l.b16 %v7510
        %v7583 = vunpack.c.l.b16 %v7511
        %v7584 = vunpack.c.l.b16 %v7512
        %v7585 = vunpack.c.l.b16 %v7513
        %v7586 = vunpack.c.l.b16 %v7514
        %v7587 = vpack.c.b16 %v7556, %v7555
        %v7588 = vpack.c.b16 %v7558, %v7557
        %v7589 = vpack.c.b16 %v7560, %v7559
        %v7590 = vpack.c.b16 %v7562, %v7561
        %v7591 = vpack.c.b16 %v7564, %v7563
        %v7592 = vpack.c.b16 %v7566, %v7565
        %v7593 = vpack.c.b16 %v7568, %v7567
        %v7594 = vpack.c.b16 %v7570, %v7569
        %v7595 = vpack.c.b16 %v7572, %v7571
        %v7596 = vpack.c.b16 %v7574, %v7573
        %v7597 = vpack.c.b16 %v7576, %v7575
        %v7598 = vpack.c.b16 %v7578, %v7577
        %v7599 = vpack.c.b16 %v7580, %v7579
        %v7600 = vpack.c.b16 %v7582, %v7581
        %v7601 = vpack.c.b16 %v7584, %v7583
        %v7602 = vpack.c.b16 %v7586, %v7585
        %7619 = vmatprep.subr.bf16.mxu0 0
        %7620 = vmatpush1.bf16.msra.mxu0 %v7587
        %7621 = vmatprep.subr.bf16.mxu0 0
        %7622 = vmatpush1.bf16.msra.mxu0 %v7588
        %7623 = vmatprep.subr.bf16.mxu0 0
        %7624 = vmatpush1.bf16.msra.mxu0 %v7589
        %7625 = vmatprep.subr.bf16.mxu0 0
        %7626 = vmatpush1.bf16.msra.mxu0 %v7590
        %7627 = vmatprep.subr.bf16.mxu0 0
        %7628 = vmatpush1.bf16.msra.mxu0 %v7591
        %7629 = vmatprep.subr.bf16.mxu0 0
        %7630 = vmatpush1.bf16.msra.mxu0 %v7592
        %7631 = vmatprep.subr.bf16.mxu0 0
        %7632 = vmatpush1.bf16.msra.mxu0 %v7593
        %7633 = vmatprep.subr.bf16.mxu0 0
        %7634 = vmatpush1.bf16.msra.mxu0 %v7594
        %7635 = vmatprep.subr.bf16.mxu0 0
        %7636 = vmatpush1.bf16.msra.mxu0 %v7595
        %7637 = vmatprep.subr.bf16.mxu0 0
        %7638 = vmatpush1.bf16.msra.mxu0 %v7596
        %7639 = vmatprep.subr.bf16.mxu0 0
        %7640 = vmatpush1.bf16.msra.mxu0 %v7597
        %7641 = vmatprep.subr.bf16.mxu0 0
        %7642 = vmatpush1.bf16.msra.mxu0 %v7598
        %7643 = vmatprep.subr.bf16.mxu0 0
        %7644 = vmatpush1.bf16.msra.mxu0 %v7599
        %7645 = vmatprep.subr.bf16.mxu0 0
        %7646 = vmatpush1.bf16.msra.mxu0 %v7600
        %7647 = vmatprep.subr.bf16.mxu0 0
        %7648 = vmatpush1.bf16.msra.mxu0 %v7601
        %7649 = vmatprep.subr.bf16.mxu0 0
        %7650 = vmatpush1.bf16.msra.mxu0 %v7602
        %7651 = vmatprep.mubr.bf16.mxu0 %v7479
        %7652 = vmatmul.mubr.bf16.gmra.mrb[0].mxu0 %v7478
        %v7653 = vpop.f32.mrb[0].mxu0
        %v7654 = vadd.f32 %v7521, %v7653
        %v7655 = vpop.f32.mrb[0].mxu0
        %v7656 = vpop.f32.mrb[0].mxu0
        %v7657 = vadd.f32 %v7521, %v7656
        %v7658 = vpop.f32.mrb[0].mxu0
        %7659 = vmatprep.mubr.bf16.mxu0 %v7481
        %7660 = vmatmul.mubr.bf16.gmra.mrb[0].mxu0 %v7480
        %v7661 = vpop.f32.mrb[0].mxu0
        %v7662 = vadd.f32 %v7521, %v7661
        %v7663 = vpop.f32.mrb[0].mxu0
        %v7664 = vpop.f32.mrb[0].mxu0
        %v7665 = vadd.f32 %v7521, %v7664
        %v7666 = vpop.f32.mrb[0].mxu0
        %7667 = vdwg.mxu0
        %v7668 = vadd.f32 %v7343, %v7654
        %v7669 = vadd.f32 %v7344, %v7657
        %v7670 = vadd.f32 %v7345, %v7662
        %v7671 = vadd.f32 %v7346, %v7665
        %s7672 = scalar_lea.vmem %s15, 2
        %v7673 = vld [vmem:[%s7672] sm:$0x1]
        %s7674 = scalar_lea.vmem %s16, 2
        %v7675 = vld [vmem:[%s7674] sm:$0x1]
        %v7676 = vsel %vm3057, %v7668, 0.0
        %7677 = vadd.xlane.f32.xlu0 %v7676
        %v7678 = vpop.xlane.xlu0 %7677
        %v7679 = vsel %vm3057, %v7669, 0.0
        %7680 = vadd.xlane.f32.xlu0 %v7679
        %v7681 = vpop.xlane.xlu0 %7680
        %v7682 = vsel %vm3057, %v7670, 0.0
        %7683 = vadd.xlane.f32.xlu0 %v7682
        %v7684 = vpop.xlane.xlu0 %7683
        %v7685 = vsel %vm3057, %v7671, 0.0
        %7686 = vadd.xlane.f32.xlu0 %v7685
        %v7687 = vpop.xlane.xlu0 %7686
        %v7688 = vmul.f32 %v7678, %v4118
        %v7689 = vmul.f32 %v7681, %v4118
        %v7690 = vmul.f32 %v7684, %v4118
        %v7691 = vmul.f32 %v7687, %v4118
        %v7692 = vsub.f32 %v7668, %v7688
        %v7693 = vsub.f32 %v7669, %v7689
        %v7694 = vsub.f32 %v7670, %v7690
        %v7695 = vsub.f32 %v7671, %v7691
        %v7696 = vmul.f32 %v7692, %v7692
        %v7697 = vmul.f32 %v7693, %v7693
        %v7698 = vmul.f32 %v7694, %v7694
        %v7699 = vmul.f32 %v7695, %v7695
        %v7700 = vsel %vm3057, %v7696, 0.0
        %7701 = vadd.xlane.f32.xlu0 %v7700
        %v7702 = vpop.xlane.xlu0 %7701
        %v7703 = vsel %vm3057, %v7697, 0.0
        %7704 = vadd.xlane.f32.xlu0 %v7703
        %v7705 = vpop.xlane.xlu0 %7704
        %v7706 = vsel %vm3057, %v7698, 0.0
        %7707 = vadd.xlane.f32.xlu0 %v7706
        %v7708 = vpop.xlane.xlu0 %7707
        %v7709 = vsel %vm3057, %v7699, 0.0
        %7710 = vadd.xlane.f32.xlu0 %v7709
        %v7711 = vpop.xlane.xlu0 %7710
        %v7712 = vmul.f32 %v7702, %v4118
        %v7713 = vmul.f32 %v7705, %v4118
        %v7714 = vmul.f32 %v7708, %v4118
        %v7715 = vmul.f32 %v7711, %v4118
        %v7716 = vadd.f32 %v7712, 1e-05
        %v7717 = vadd.f32 %v7713, 1e-05
        %v7718 = vadd.f32 %v7714, 1e-05
        %v7719 = vadd.f32 %v7715, 1e-05
        %v7720 = vrsqrt.pop %v7716
        %v7721 = vrsqrt.pop %v7717
        %v7722 = vrsqrt.pop %v7718
        %v7723 = vrsqrt.pop %v7719
        %v7724 = vmul.f32 %v7692, %v7720
        %v7725 = vmul.f32 %v7693, %v7721
        %v7726 = vmul.f32 %v7694, %v7722
        %v7727 = vmul.f32 %v7695, %v7723
        %v7729 = vlaneseq
        %v7730 = vshrl.u32 %v7729, 7
        %v7731 = vsub.s32 0, %v7730
        %v7732 = vrot.slane %v7673, %v7731
        %v7734 = vmul.f32 %v7724, %v7732
        %v7735 = vmul.f32 %v7725, %v7732
        %v7736 = vmul.f32 %v7726, %v7732
        %v7737 = vmul.f32 %v7727, %v7732
        %v7739 = vlaneseq
        %v7740 = vshrl.u32 %v7739, 7
        %v7741 = vsub.s32 0, %v7740
        %v7742 = vrot.slane %v7675, %v7741
        %v7744 = vadd.f32 %v7734, %v7742
        %v7745 = vadd.f32 %v7735, %v7742
        %v7746 = vadd.f32 %v7736, %v7742
        %v7747 = vadd.f32 %v7737, %v7742
        %v7748 = vpack.c.bf16 %v7745, %v7744
        %v7749 = vpack.c.bf16 %v7747, %v7746
        %s7750 = scalar_lea.vmem %s5, 192
        %v7751 = vld [vmem:[%s7750] sm:$0xff]
        %v7752 = vld [vmem:[%s7750 + $0x8] sm:$0xff]
        %v7753 = vld [vmem:[%s7750 + $0x10] sm:$0xff]
        %v7754 = vld [vmem:[%s7750 + $0x18] sm:$0xff]
        %v7755 = vld [vmem:[%s7750 + $0x20] sm:$0xff]
        %v7756 = vld [vmem:[%s7750 + $0x28] sm:$0xff]
        %v7757 = vld [vmem:[%s7750 + $0x30] sm:$0xff]
        %v7758 = vld [vmem:[%s7750 + $0x38] sm:$0xff]
        %s7759 = scalar_lea.vmem %s6, 6
        %v7760 = vld [vmem:[%s7759] sm:$0x3]
        %v7762 = vlaneseq
        %v7763 = vshrl.u32 %v7762, 7
        %v7764 = vsub.s32 0, %v7763
        %v7765 = vrot.slane %v7760, %v7764
        %v7766 = vlaneseq
        %v7767 = vshrl.u32 %v7766, 7
        %v7768 = vsub.s32 1, %v7767
        %v7769 = vrot.slane %v7760, %v7768
        %v7780 = vunpack.c.l.b16 %v7751
        %v7781 = vunpack.c.h.b16 %v7751
        %v7782 = vunpack.c.l.b16 %v7752
        %v7783 = vunpack.c.h.b16 %v7752
        %v7784 = vunpack.c.l.b16 %v7753
        %v7785 = vunpack.c.h.b16 %v7753
        %v7786 = vunpack.c.l.b16 %v7754
        %v7787 = vunpack.c.h.b16 %v7754
        %v7788 = vunpack.c.l.b16 %v7755
        %v7789 = vunpack.c.h.b16 %v7755
        %v7790 = vunpack.c.l.b16 %v7756
        %v7791 = vunpack.c.h.b16 %v7756
        %v7792 = vunpack.c.l.b16 %v7757
        %v7793 = vunpack.c.h.b16 %v7757
        %v7794 = vunpack.c.l.b16 %v7758
        %v7795 = vunpack.c.h.b16 %v7758
        %v7796 = vpack.c.b16 %v7782, %v7780
        %v7797 = vpack.c.b16 %v7783, %v7781
        %v7798 = vpack.c.b16 %v7786, %v7784
        %v7799 = vpack.c.b16 %v7787, %v7785
        %v7800 = vpack.c.b16 %v7790, %v7788
        %v7801 = vpack.c.b16 %v7791, %v7789
        %v7802 = vpack.c.b16 %v7794, %v7792
        %v7803 = vpack.c.b16 %v7795, %v7793
        %v7813 = vsel %vm3057, %v7748, 0
        %v7816 = vsel %vm3057, %v7749, 0
        %7818 = vmatprep.subr.bf16.mxu0 %v7797
        %7819 = vmatpush1.bf16.msra.mxu0 %v7796
        %7820 = vmatprep.subr.bf16.mxu0 %v7799
        %7821 = vmatpush1.bf16.msra.mxu0 %v7798
        %7822 = vmatprep.subr.bf16.mxu0 %v7801
        %7823 = vmatpush1.bf16.msra.mxu0 %v7800
        %7824 = vmatprep.subr.bf16.mxu0 %v7803
        %7825 = vmatpush1.bf16.msra.mxu0 %v7802
        %7826 = vmatprep.subr.bf16.mxu0 0
        %7827 = vmatpush1.bf16.msra.mxu0 0
        %7828 = vmatprep.subr.bf16.mxu0 0
        %7829 = vmatpush1.bf16.msra.mxu0 0
        %7830 = vmatprep.subr.bf16.mxu0 0
        %7831 = vmatpush1.bf16.msra.mxu0 0
        %7832 = vmatprep.subr.bf16.mxu0 0
        %7833 = vmatpush1.bf16.msra.mxu0 0
        %7834 = vmatprep.subr.bf16.mxu0 0
        %7835 = vmatpush1.bf16.msra.mxu0 0
        %7836 = vmatprep.subr.bf16.mxu0 0
        %7837 = vmatpush1.bf16.msra.mxu0 0
        %7838 = vmatprep.subr.bf16.mxu0 0
        %7839 = vmatpush1.bf16.msra.mxu0 0
        %7840 = vmatprep.subr.bf16.mxu0 0
        %7841 = vmatpush1.bf16.msra.mxu0 0
        %7842 = vmatprep.subr.bf16.mxu0 0
        %7843 = vmatpush1.bf16.msra.mxu0 0
        %7844 = vmatprep.subr.bf16.mxu0 0
        %7845 = vmatpush1.bf16.msra.mxu0 0
        %7846 = vmatprep.subr.bf16.mxu0 0
        %7847 = vmatpush1.bf16.msra.mxu0 0
        %7848 = vmatprep.subr.bf16.mxu0 0
        %7849 = vmatpush1.bf16.msra.mxu0 0
        %7850 = vmatprep.mubr.bf16.mxu0 0
        %7851 = vmatmul.mubr.bf16.gmra.mrb[0].mxu0 %v7813
        %v7852 = vpop.f32.mrb[0].mxu0
        %v7853 = vadd.f32 %v7765, %v7852
        %v7854 = vpop.f32.mrb[0].mxu0
        %v7855 = vadd.f32 %v7769, %v7854
        %v7856 = vpop.f32.mrb[0].mxu0
        %v7857 = vadd.f32 %v7765, %v7856
        %v7858 = vpop.f32.mrb[0].mxu0
        %v7859 = vadd.f32 %v7769, %v7858
        %7860 = vmatprep.mubr.bf16.mxu0 0
        %7861 = vmatmul.mubr.bf16.gmra.mrb[0].mxu0 %v7816
        %v7862 = vpop.f32.mrb[0].mxu0
        %v7863 = vadd.f32 %v7765, %v7862
        %v7864 = vpop.f32.mrb[0].mxu0
        %v7865 = vadd.f32 %v7769, %v7864
        %v7866 = vpop.f32.mrb[0].mxu0
        %v7867 = vadd.f32 %v7765, %v7866
        %v7868 = vpop.f32.mrb[0].mxu0
        %v7869 = vadd.f32 %v7769, %v7868
        %7870 = vdwg.mxu0
        %s7871 = scalar_lea.vmem %s7, 96
        %v7872 = vld [vmem:[%s7871] sm:$0xf]
        %v7873 = vld [vmem:[%s7871 + $0x4] sm:$0xf]
        %v7874 = vld [vmem:[%s7871 + $0x8] sm:$0xf]
        %v7875 = vld [vmem:[%s7871 + $0xc] sm:$0xf]
        %v7876 = vld [vmem:[%s7871 + $0x10] sm:$0xf]
        %v7877 = vld [vmem:[%s7871 + $0x14] sm:$0xf]
        %v7878 = vld [vmem:[%s7871 + $0x18] sm:$0xf]
        %v7879 = vld [vmem:[%s7871 + $0x1c] sm:$0xf]
        %v7880 = vpack.c.bf16 %v7857, %v7853
        %v7881 = vpack.c.bf16 %v7867, %v7863
        %v7882 = vpack.c.bf16 %v7859, %v7855
        %v7883 = vpack.c.bf16 %v7869, %v7865
        %7886 = vrot.lane.b32.xlu0 %v7880, 64
        %v7887 = vpop.permute.xlu0 %7886
        %7888 = vrot.lane.b32.xlu0 %v7881, 64
        %v7889 = vpop.permute.xlu0 %7888
        %v7891 = vsel %vm3135, %v7880, 0
        %v7894 = vsel %vm3135, %v7881, 0
        %v7897 = vsel %vm3135, %v7887, 0
        %v7900 = vsel %vm3135, %v7889, 0
        %7902 = vmatprep.subr.bf16.mxu0 0
        %7903 = vmatpush1.bf16.xpose.msra.mxu0 %v7897
        %7904 = vmatprep.subr.bf16.mxu0 0
        %7905 = vmatpush1.bf16.xpose.msra.mxu0 %v7900
        %7906 = vmatprep.subr.bf16.mxu0 0
        %7907 = vmatpush1.bf16.xpose.msra.mxu0 0
        %7908 = vmatprep.subr.bf16.mxu0 0
        %7909 = vmatpush1.bf16.xpose.msra.mxu0 0
        %7910 = vmatprep.subr.bf16.mxu0 0
        %7911 = vmatpush1.bf16.xpose.msra.mxu0 0
        %7912 = vmatprep.subr.bf16.mxu0 0
        %7913 = vmatpush1.bf16.xpose.msra.mxu0 0
        %7914 = vmatprep.subr.bf16.mxu0 0
        %7915 = vmatpush1.bf16.xpose.msra.mxu0 0
        %7916 = vmatprep.subr.bf16.mxu0 0
        %7917 = vmatpush1.bf16.xpose.msra.mxu0 0
        %7918 = vmatprep.subr.bf16.mxu0 0
        %7919 = vmatpush1.bf16.xpose.msra.mxu0 0
        %7920 = vmatprep.subr.bf16.mxu0 0
        %7921 = vmatpush1.bf16.xpose.msra.mxu0 0
        %7922 = vmatprep.subr.bf16.mxu0 0
        %7923 = vmatpush1.bf16.xpose.msra.mxu0 0
        %7924 = vmatprep.subr.bf16.mxu0 0
        %7925 = vmatpush1.bf16.xpose.msra.mxu0 0
        %7926 = vmatprep.subr.bf16.mxu0 0
        %7927 = vmatpush1.bf16.xpose.msra.mxu0 0
        %7928 = vmatprep.subr.bf16.mxu0 0
        %7929 = vmatpush1.bf16.xpose.msra.mxu0 0
        %7930 = vmatprep.subr.bf16.mxu0 0
        %7931 = vmatpush1.bf16.xpose.msra.mxu0 0
        %7932 = vmatprep.subr.bf16.mxu0 0
        %7933 = vmatpush1.bf16.xpose.msra.mxu0 0
        %7934 = vmatprep.mubr.bf16.mxu0 0
        %7935 = vmatmul.mubr.bf16.gmra.mrb[0].mxu0 %v7891
        %v7936 = vpop.f32.mrb[0].mxu0
        %v7937 = vadd.f32 0.0, %v7936
        %v7938 = vpop.f32.mrb[0].mxu0
        %v7939 = vpop.f32.mrb[0].mxu0
        %v7940 = vadd.f32 0.0, %v7939
        %v7941 = vpop.f32.mrb[0].mxu0
        %7942 = vmatprep.mubr.bf16.mxu0 0
        %7943 = vmatmul.mubr.bf16.gmra.mrb[0].mxu0 %v7894
        %v7944 = vpop.f32.mrb[0].mxu0
        %v7945 = vadd.f32 0.0, %v7944
        %v7946 = vpop.f32.mrb[0].mxu0
        %v7947 = vpop.f32.mrb[0].mxu0
        %v7948 = vadd.f32 0.0, %v7947
        %v7949 = vpop.f32.mrb[0].mxu0
        %7950 = vdwg.mxu0
        %v7951 = vsel %vm3197, %v7937, -inf
        %7952 = vmax.xlane.f32.xlu0 %v7951
        %v7953 = vpop.xlane.xlu0 %7952
        %v7954 = vsel %vm3197, %v7940, -inf
        %7955 = vmax.xlane.f32.xlu0 %v7954
        %v7956 = vpop.xlane.xlu0 %7955
        %v7957 = vsel %vm3197, %v7945, -inf
        %7958 = vmax.xlane.f32.xlu0 %v7957
        %v7959 = vpop.xlane.xlu0 %7958
        %v7960 = vsel %vm3197, %v7948, -inf
        %7961 = vmax.xlane.f32.xlu0 %v7960
        %v7962 = vpop.xlane.xlu0 %7961
        %v7963 = vsub.f32 %v7937, %v7953
        %v7964 = vsub.f32 %v7940, %v7956
        %v7965 = vsub.f32 %v7945, %v7959
        %v7966 = vsub.f32 %v7948, %v7962
        %v7967 = vmul.f32 %v7963, 1.442695
        %v7968 = vpow.pop %v7967
        %v7969 = vmul.f32 %v7964, 1.442695
        %v7970 = vpow.pop %v7969
        %v7971 = vmul.f32 %v7965, 1.442695
        %v7972 = vpow.pop %v7971
        %v7973 = vmul.f32 %v7966, 1.442695
        %v7974 = vpow.pop %v7973
        %v7975 = vsel %vm3197, %v7968, 0.0
        %7976 = vadd.xlane.f32.xlu0 %v7975
        %v7977 = vpop.xlane.xlu0 %7976
        %v7978 = vsel %vm3197, %v7970, 0.0
        %7979 = vadd.xlane.f32.xlu0 %v7978
        %v7980 = vpop.xlane.xlu0 %7979
        %v7981 = vsel %vm3197, %v7972, 0.0
        %7982 = vadd.xlane.f32.xlu0 %v7981
        %v7983 = vpop.xlane.xlu0 %7982
        %v7984 = vsel %vm3197, %v7974, 0.0
        %7985 = vadd.xlane.f32.xlu0 %v7984
        %v7986 = vpop.xlane.xlu0 %7985
        %v7987 = vrcp.pop %v7977
        %v7988 = vrcp.pop %v7980
        %v7989 = vrcp.pop %v7983
        %v7990 = vrcp.pop %v7986
        %v7991 = vmul.f32 %v7968, %v7987
        %v7992 = vmul.f32 %v7970, %v7988
        %v7993 = vmul.f32 %v7972, %v7989
        %v7994 = vmul.f32 %v7974, %v7990
        %v7995 = vpack.c.bf16 %v7992, %v7991
        %v7996 = vpack.c.bf16 %v7994, %v7993
        %v7998 = vsel %vm3197, %v7995, 0
        %v8001 = vsel %vm3197, %v7996, 0
        %8003 = vmatprep.subr.bf16.mxu0 0
        %8004 = vmatpush1.bf16.msra.mxu0 %v7882
        %8005 = vmatprep.subr.bf16.mxu0 0
        %8006 = vmatpush1.bf16.msra.mxu0 %v7883
        %8007 = vmatprep.subr.bf16.mxu0 0
        %8008 = vmatpush1.bf16.msra.mxu0 0
        %8009 = vmatprep.subr.bf16.mxu0 0
        %8010 = vmatpush1.bf16.msra.mxu0 0
        %8011 = vmatprep.subr.bf16.mxu0 0
        %8012 = vmatpush1.bf16.msra.mxu0 0
        %8013 = vmatprep.subr.bf16.mxu0 0
        %8014 = vmatpush1.bf16.msra.mxu0 0
        %8015 = vmatprep.subr.bf16.mxu0 0
        %8016 = vmatpush1.bf16.msra.mxu0 0
        %8017 = vmatprep.subr.bf16.mxu0 0
        %8018 = vmatpush1.bf16.msra.mxu0 0
        %8019 = vmatprep.subr.bf16.mxu0 0
        %8020 = vmatpush1.bf16.msra.mxu0 0
        %8021 = vmatprep.subr.bf16.mxu0 0
        %8022 = vmatpush1.bf16.msra.mxu0 0
        %8023 = vmatprep.subr.bf16.mxu0 0
        %8024 = vmatpush1.bf16.msra.mxu0 0
        %8025 = vmatprep.subr.bf16.mxu0 0
        %8026 = vmatpush1.bf16.msra.mxu0 0
        %8027 = vmatprep.subr.bf16.mxu0 0
        %8028 = vmatpush1.bf16.msra.mxu0 0
        %8029 = vmatprep.subr.bf16.mxu0 0
        %8030 = vmatpush1.bf16.msra.mxu0 0
        %8031 = vmatprep.subr.bf16.mxu0 0
        %8032 = vmatpush1.bf16.msra.mxu0 0
        %8033 = vmatprep.subr.bf16.mxu0 0
        %8034 = vmatpush1.bf16.msra.mxu0 0
        %8035 = vmatprep.mubr.bf16.mxu0 0
        %8036 = vmatmul.mubr.bf16.gmra.mrb[0].mxu0 %v7998
        %v8037 = vpop.f32.mrb[0].mxu0
        %v8038 = vadd.f32 0.0, %v8037
        %v8039 = vpop.f32.mrb[0].mxu0
        %v8040 = vpop.f32.mrb[0].mxu0
        %v8041 = vadd.f32 0.0, %v8040
        %v8042 = vpop.f32.mrb[0].mxu0
        %8043 = vmatprep.mubr.bf16.mxu0 0
        %8044 = vmatmul.mubr.bf16.gmra.mrb[0].mxu0 %v8001
        %v8045 = vpop.f32.mrb[0].mxu0
        %v8046 = vadd.f32 0.0, %v8045
        %v8047 = vpop.f32.mrb[0].mxu0
        %v8048 = vpop.f32.mrb[0].mxu0
        %v8049 = vadd.f32 0.0, %v8048
        %v8050 = vpop.f32.mrb[0].mxu0
        %8051 = vdwg.mxu0
        %v8052 = vpack.c.bf16 %v8041, %v8038
        %v8053 = vpack.c.bf16 %v8049, %v8046
        %8054 = vrot.lane.b32.xlu0 %v7880, 112
        %v8055 = vpop.permute.xlu0 %8054
        %8056 = vrot.lane.b32.xlu0 %v7881, 112
        %v8057 = vpop.permute.xlu0 %8056
        %8058 = vrot.lane.b32.xlu0 %v7880, 48
        %v8059 = vpop.permute.xlu0 %8058
        %8060 = vrot.lane.b32.xlu0 %v7881, 48
        %v8061 = vpop.permute.xlu0 %8060
        %v8063 = vsel %vm3135, %v8055, 0
        %v8066 = vsel %vm3135, %v8057, 0
        %v8069 = vsel %vm3135, %v8059, 0
        %v8072 = vsel %vm3135, %v8061, 0
        %8074 = vmatprep.subr.bf16.mxu0 0
        %8075 = vmatpush1.bf16.xpose.msra.mxu0 %v8069
        %8076 = vmatprep.subr.bf16.mxu0 0
        %8077 = vmatpush1.bf16.xpose.msra.mxu0 %v8072
        %8078 = vmatprep.subr.bf16.mxu0 0
        %8079 = vmatpush1.bf16.xpose.msra.mxu0 0
        %8080 = vmatprep.subr.bf16.mxu0 0
        %8081 = vmatpush1.bf16.xpose.msra.mxu0 0
        %8082 = vmatprep.subr.bf16.mxu0 0
        %8083 = vmatpush1.bf16.xpose.msra.mxu0 0
        %8084 = vmatprep.subr.bf16.mxu0 0
        %8085 = vmatpush1.bf16.xpose.msra.mxu0 0
        %8086 = vmatprep.subr.bf16.mxu0 0
        %8087 = vmatpush1.bf16.xpose.msra.mxu0 0
        %8088 = vmatprep.subr.bf16.mxu0 0
        %8089 = vmatpush1.bf16.xpose.msra.mxu0 0
        %8090 = vmatprep.subr.bf16.mxu0 0
        %8091 = vmatpush1.bf16.xpose.msra.mxu0 0
        %8092 = vmatprep.subr.bf16.mxu0 0
        %8093 = vmatpush1.bf16.xpose.msra.mxu0 0
        %8094 = vmatprep.subr.bf16.mxu0 0
        %8095 = vmatpush1.bf16.xpose.msra.mxu0 0
        %8096 = vmatprep.subr.bf16.mxu0 0
        %8097 = vmatpush1.bf16.xpose.msra.mxu0 0
        %8098 = vmatprep.subr.bf16.mxu0 0
        %8099 = vmatpush1.bf16.xpose.msra.mxu0 0
        %8100 = vmatprep.subr.bf16.mxu0 0
        %8101 = vmatpush1.bf16.xpose.msra.mxu0 0
        %8102 = vmatprep.subr.bf16.mxu0 0
        %8103 = vmatpush1.bf16.xpose.msra.mxu0 0
        %8104 = vmatprep.subr.bf16.mxu0 0
        %8105 = vmatpush1.bf16.xpose.msra.mxu0 0
        %8106 = vmatprep.mubr.bf16.mxu0 0
        %8107 = vmatmul.mubr.bf16.gmra.mrb[0].mxu0 %v8063
        %v8108 = vpop.f32.mrb[0].mxu0
        %v8109 = vadd.f32 0.0, %v8108
        %v8110 = vpop.f32.mrb[0].mxu0
        %v8111 = vpop.f32.mrb[0].mxu0
        %v8112 = vadd.f32 0.0, %v8111
        %v8113 = vpop.f32.mrb[0].mxu0
        %8114 = vmatprep.mubr.bf16.mxu0 0
        %8115 = vmatmul.mubr.bf16.gmra.mrb[0].mxu0 %v8066
        %v8116 = vpop.f32.mrb[0].mxu0
        %v8117 = vadd.f32 0.0, %v8116
        %v8118 = vpop.f32.mrb[0].mxu0
        %v8119 = vpop.f32.mrb[0].mxu0
        %v8120 = vadd.f32 0.0, %v8119
        %v8121 = vpop.f32.mrb[0].mxu0
        %8122 = vdwg.mxu0
        %v8123 = vsel %vm3197, %v8109, -inf
        %8124 = vmax.xlane.f32.xlu0 %v8123
        %v8125 = vpop.xlane.xlu0 %8124
        %v8126 = vsel %vm3197, %v8112, -inf
        %8127 = vmax.xlane.f32.xlu0 %v8126
        %v8128 = vpop.xlane.xlu0 %8127
        %v8129 = vsel %vm3197, %v8117, -inf
        %8130 = vmax.xlane.f32.xlu0 %v8129
        %v8131 = vpop.xlane.xlu0 %8130
        %v8132 = vsel %vm3197, %v8120, -inf
        %8133 = vmax.xlane.f32.xlu0 %v8132
        %v8134 = vpop.xlane.xlu0 %8133
        %v8135 = vsub.f32 %v8109, %v8125
        %v8136 = vsub.f32 %v8112, %v8128
        %v8137 = vsub.f32 %v8117, %v8131
        %v8138 = vsub.f32 %v8120, %v8134
        %v8139 = vmul.f32 %v8135, 1.442695
        %v8140 = vpow.pop %v8139
        %v8141 = vmul.f32 %v8136, 1.442695
        %v8142 = vpow.pop %v8141
        %v8143 = vmul.f32 %v8137, 1.442695
        %v8144 = vpow.pop %v8143
        %v8145 = vmul.f32 %v8138, 1.442695
        %v8146 = vpow.pop %v8145
        %v8147 = vsel %vm3197, %v8140, 0.0
        %8148 = vadd.xlane.f32.xlu0 %v8147
        %v8149 = vpop.xlane.xlu0 %8148
        %v8150 = vsel %vm3197, %v8142, 0.0
        %8151 = vadd.xlane.f32.xlu0 %v8150
        %v8152 = vpop.xlane.xlu0 %8151
        %v8153 = vsel %vm3197, %v8144, 0.0
        %8154 = vadd.xlane.f32.xlu0 %v8153
        %v8155 = vpop.xlane.xlu0 %8154
        %v8156 = vsel %vm3197, %v8146, 0.0
        %8157 = vadd.xlane.f32.xlu0 %v8156
        %v8158 = vpop.xlane.xlu0 %8157
        %v8159 = vrcp.pop %v8149
        %v8160 = vrcp.pop %v8152
        %v8161 = vrcp.pop %v8155
        %v8162 = vrcp.pop %v8158
        %v8163 = vmul.f32 %v8140, %v8159
        %v8164 = vmul.f32 %v8142, %v8160
        %v8165 = vmul.f32 %v8144, %v8161
        %v8166 = vmul.f32 %v8146, %v8162
        %v8167 = vpack.c.bf16 %v8164, %v8163
        %v8168 = vpack.c.bf16 %v8166, %v8165
        %8171 = vrot.lane.b32.xlu0 %v7882, 112
        %v8172 = vpop.permute.xlu0 %8171
        %8173 = vrot.lane.b32.xlu0 %v7883, 112
        %v8174 = vpop.permute.xlu0 %8173
        %v8178 = vsel %vm3197, %v8167, 0
        %v8181 = vsel %vm3197, %v8168, 0
        %8183 = vmatprep.subr.bf16.mxu0 0
        %8184 = vmatpush1.bf16.msra.mxu0 %v8172
        %8185 = vmatprep.subr.bf16.mxu0 0
        %8186 = vmatpush1.bf16.msra.mxu0 %v8174
        %8187 = vmatprep.subr.bf16.mxu0 0
        %8188 = vmatpush1.bf16.msra.mxu0 0
        %8189 = vmatprep.subr.bf16.mxu0 0
        %8190 = vmatpush1.bf16.msra.mxu0 0
        %8191 = vmatprep.subr.bf16.mxu0 0
        %8192 = vmatpush1.bf16.msra.mxu0 0
        %8193 = vmatprep.subr.bf16.mxu0 0
        %8194 = vmatpush1.bf16.msra.mxu0 0
        %8195 = vmatprep.subr.bf16.mxu0 0
        %8196 = vmatpush1.bf16.msra.mxu0 0
        %8197 = vmatprep.subr.bf16.mxu0 0
        %8198 = vmatpush1.bf16.msra.mxu0 0
        %8199 = vmatprep.subr.bf16.mxu0 0
        %8200 = vmatpush1.bf16.msra.mxu0 0
        %8201 = vmatprep.subr.bf16.mxu0 0
        %8202 = vmatpush1.bf16.msra.mxu0 0
        %8203 = vmatprep.subr.bf16.mxu0 0
        %8204 = vmatpush1.bf16.msra.mxu0 0
        %8205 = vmatprep.subr.bf16.mxu0 0
        %8206 = vmatpush1.bf16.msra.mxu0 0
        %8207 = vmatprep.subr.bf16.mxu0 0
        %8208 = vmatpush1.bf16.msra.mxu0 0
        %8209 = vmatprep.subr.bf16.mxu0 0
        %8210 = vmatpush1.bf16.msra.mxu0 0
        %8211 = vmatprep.subr.bf16.mxu0 0
        %8212 = vmatpush1.bf16.msra.mxu0 0
        %8213 = vmatprep.subr.bf16.mxu0 0
        %8214 = vmatpush1.bf16.msra.mxu0 0
        %8215 = vmatprep.mubr.bf16.mxu0 0
        %8216 = vmatmul.mubr.bf16.gmra.mrb[0].mxu0 %v8178
        %v8217 = vpop.f32.mrb[0].mxu0
        %v8218 = vadd.f32 0.0, %v8217
        %v8219 = vpop.f32.mrb[0].mxu0
        %v8220 = vpop.f32.mrb[0].mxu0
        %v8221 = vadd.f32 0.0, %v8220
        %v8222 = vpop.f32.mrb[0].mxu0
        %8223 = vmatprep.mubr.bf16.mxu0 0
        %8224 = vmatmul.mubr.bf16.gmra.mrb[0].mxu0 %v8181
        %v8225 = vpop.f32.mrb[0].mxu0
        %v8226 = vadd.f32 0.0, %v8225
        %v8227 = vpop.f32.mrb[0].mxu0
        %v8228 = vpop.f32.mrb[0].mxu0
        %v8229 = vadd.f32 0.0, %v8228
        %v8230 = vpop.f32.mrb[0].mxu0
        %8231 = vdwg.mxu0
        %v8232 = vpack.c.bf16 %v8221, %v8218
        %v8233 = vpack.c.bf16 %v8229, %v8226
        %v8236 = vunpack.c.l.b16 %v7874
        %v8237 = vunpack.c.l.b16 %v7875
        %v8238 = vpack.c.b16 %v8237, %v8236
        %v8241 = vsel %vm3135, %v8232, 0
        %v8244 = vsel %vm3135, %v8233, 0
        %8246 = vmatprep.subr.bf16.mxu0 0
        %8247 = vmatpush1.bf16.msra.mxu0 %v8238
        %8248 = vmatprep.subr.bf16.mxu0 0
        %8249 = vmatpush1.bf16.msra.mxu0 0
        %8250 = vmatprep.subr.bf16.mxu0 0
        %8251 = vmatpush1.bf16.msra.mxu0 0
        %8252 = vmatprep.subr.bf16.mxu0 0
        %8253 = vmatpush1.bf16.msra.mxu0 0
        %8254 = vmatprep.subr.bf16.mxu0 0
        %8255 = vmatpush1.bf16.msra.mxu0 0
        %8256 = vmatprep.subr.bf16.mxu0 0
        %8257 = vmatpush1.bf16.msra.mxu0 0
        %8258 = vmatprep.subr.bf16.mxu0 0
        %8259 = vmatpush1.bf16.msra.mxu0 0
        %8260 = vmatprep.subr.bf16.mxu0 0
        %8261 = vmatpush1.bf16.msra.mxu0 0
        %8262 = vmatprep.subr.bf16.mxu0 0
        %8263 = vmatpush1.bf16.msra.mxu0 0
        %8264 = vmatprep.subr.bf16.mxu0 0
        %8265 = vmatpush1.bf16.msra.mxu0 0
        %8266 = vmatprep.subr.bf16.mxu0 0
        %8267 = vmatpush1.bf16.msra.mxu0 0
        %8268 = vmatprep.subr.bf16.mxu0 0
        %8269 = vmatpush1.bf16.msra.mxu0 0
        %8270 = vmatprep.subr.bf16.mxu0 0
        %8271 = vmatpush1.bf16.msra.mxu0 0
        %8272 = vmatprep.subr.bf16.mxu0 0
        %8273 = vmatpush1.bf16.msra.mxu0 0
        %8274 = vmatprep.subr.bf16.mxu0 0
        %8275 = vmatpush1.bf16.msra.mxu0 0
        %8276 = vmatprep.subr.bf16.mxu0 0
        %8277 = vmatpush1.bf16.msra.mxu0 0
        %8278 = vmatprep.mubr.bf16.mxu0 0
        %8279 = vmatmul.mubr.bf16.gmra.mrb[0].mxu0 %v8241
        %v8280 = vpop.f32.mrb[0].mxu0
        %v8281 = vadd.f32 0.0, %v8280
        %v8282 = vpop.f32.mrb[0].mxu0
        %v8283 = vpop.f32.mrb[0].mxu0
        %v8284 = vadd.f32 0.0, %v8283
        %v8285 = vpop.f32.mrb[0].mxu0
        %8286 = vmatprep.mubr.bf16.mxu0 0
        %8287 = vmatmul.mubr.bf16.gmra.mrb[0].mxu0 %v8244
        %v8288 = vpop.f32.mrb[0].mxu0
        %v8289 = vadd.f32 0.0, %v8288
        %v8290 = vpop.f32.mrb[0].mxu0
        %v8291 = vpop.f32.mrb[0].mxu0
        %v8292 = vadd.f32 0.0, %v8291
        %v8293 = vpop.f32.mrb[0].mxu0
        %8294 = vdwg.mxu0
        %v8297 = vunpack.c.l.b16 %v7872
        %v8298 = vunpack.c.l.b16 %v7873
        %v8299 = vpack.c.b16 %v8298, %v8297
        %v8302 = vsel %vm3135, %v8052, 0
        %v8305 = vsel %vm3135, %v8053, 0
        %8307 = vmatprep.subr.bf16.mxu0 0
        %8308 = vmatpush1.bf16.msra.mxu0 %v8299
        %8309 = vmatprep.subr.bf16.mxu0 0
        %8310 = vmatpush1.bf16.msra.mxu0 0
        %8311 = vmatprep.subr.bf16.mxu0 0
        %8312 = vmatpush1.bf16.msra.mxu0 0
        %8313 = vmatprep.subr.bf16.mxu0 0
        %8314 = vmatpush1.bf16.msra.mxu0 0
        %8315 = vmatprep.subr.bf16.mxu0 0
        %8316 = vmatpush1.bf16.msra.mxu0 0
        %8317 = vmatprep.subr.bf16.mxu0 0
        %8318 = vmatpush1.bf16.msra.mxu0 0
        %8319 = vmatprep.subr.bf16.mxu0 0
        %8320 = vmatpush1.bf16.msra.mxu0 0
        %8321 = vmatprep.subr.bf16.mxu0 0
        %8322 = vmatpush1.bf16.msra.mxu0 0
        %8323 = vmatprep.subr.bf16.mxu0 0
        %8324 = vmatpush1.bf16.msra.mxu0 0
        %8325 = vmatprep.subr.bf16.mxu0 0
        %8326 = vmatpush1.bf16.msra.mxu0 0
        %8327 = vmatprep.subr.bf16.mxu0 0
        %8328 = vmatpush1.bf16.msra.mxu0 0
        %8329 = vmatprep.subr.bf16.mxu0 0
        %8330 = vmatpush1.bf16.msra.mxu0 0
        %8331 = vmatprep.subr.bf16.mxu0 0
        %8332 = vmatpush1.bf16.msra.mxu0 0
        %8333 = vmatprep.subr.bf16.mxu0 0
        %8334 = vmatpush1.bf16.msra.mxu0 0
        %8335 = vmatprep.subr.bf16.mxu0 0
        %8336 = vmatpush1.bf16.msra.mxu0 0
        %8337 = vmatprep.subr.bf16.mxu0 0
        %8338 = vmatpush1.bf16.msra.mxu0 0
        %8339 = vmatprep.mubr.bf16.mxu0 0
        %8340 = vmatmul.mubr.bf16.gmra.mrb[0].mxu0 %v8302
        %v8341 = vpop.f32.mrb[0].mxu0
        %v8342 = vadd.f32 %v8281, %v8341
        %v8343 = vpop.f32.mrb[0].mxu0
        %v8344 = vpop.f32.mrb[0].mxu0
        %v8345 = vadd.f32 %v8284, %v8344
        %v8346 = vpop.f32.mrb[0].mxu0
        %8347 = vmatprep.mubr.bf16.mxu0 0
        %8348 = vmatmul.mubr.bf16.gmra.mrb[0].mxu0 %v8305
        %v8349 = vpop.f32.mrb[0].mxu0
        %v8350 = vadd.f32 %v8289, %v8349
        %v8351 = vpop.f32.mrb[0].mxu0
        %v8352 = vpop.f32.mrb[0].mxu0
        %v8353 = vadd.f32 %v8292, %v8352
        %v8354 = vpop.f32.mrb[0].mxu0
        %8355 = vdwg.mxu0
        %8356 = vrot.lane.b32.xlu0 %v7880, 96
        %v8357 = vpop.permute.xlu0 %8356
        %8358 = vrot.lane.b32.xlu0 %v7881, 96
        %v8359 = vpop.permute.xlu0 %8358
        %8360 = vrot.lane.b32.xlu0 %v7880, 32
        %v8361 = vpop.permute.xlu0 %8360
        %8362 = vrot.lane.b32.xlu0 %v7881, 32
        %v8363 = vpop.permute.xlu0 %8362
        %v8365 = vsel %vm3135, %v8357, 0
        %v8368 = vsel %vm3135, %v8359, 0
        %v8371 = vsel %vm3135, %v8361, 0
        %v8374 = vsel %vm3135, %v8363, 0
        %8376 = vmatprep.subr.bf16.mxu0 0
        %8377 = vmatpush1.bf16.xpose.msra.mxu0 %v8371
        %8378 = vmatprep.subr.bf16.mxu0 0
        %8379 = vmatpush1.bf16.xpose.msra.mxu0 %v8374
        %8380 = vmatprep.subr.bf16.mxu0 0
        %8381 = vmatpush1.bf16.xpose.msra.mxu0 0
        %8382 = vmatprep.subr.bf16.mxu0 0
        %8383 = vmatpush1.bf16.xpose.msra.mxu0 0
        %8384 = vmatprep.subr.bf16.mxu0 0
        %8385 = vmatpush1.bf16.xpose.msra.mxu0 0
        %8386 = vmatprep.subr.bf16.mxu0 0
        %8387 = vmatpush1.bf16.xpose.msra.mxu0 0
        %8388 = vmatprep.subr.bf16.mxu0 0
        %8389 = vmatpush1.bf16.xpose.msra.mxu0 0
        %8390 = vmatprep.subr.bf16.mxu0 0
        %8391 = vmatpush1.bf16.xpose.msra.mxu0 0
        %8392 = vmatprep.subr.bf16.mxu0 0
        %8393 = vmatpush1.bf16.xpose.msra.mxu0 0
        %8394 = vmatprep.subr.bf16.mxu0 0
        %8395 = vmatpush1.bf16.xpose.msra.mxu0 0
        %8396 = vmatprep.subr.bf16.mxu0 0
        %8397 = vmatpush1.bf16.xpose.msra.mxu0 0
        %8398 = vmatprep.subr.bf16.mxu0 0
        %8399 = vmatpush1.bf16.xpose.msra.mxu0 0
        %8400 = vmatprep.subr.bf16.mxu0 0
        %8401 = vmatpush1.bf16.xpose.msra.mxu0 0
        %8402 = vmatprep.subr.bf16.mxu0 0
        %8403 = vmatpush1.bf16.xpose.msra.mxu0 0
        %8404 = vmatprep.subr.bf16.mxu0 0
        %8405 = vmatpush1.bf16.xpose.msra.mxu0 0
        %8406 = vmatprep.subr.bf16.mxu0 0
        %8407 = vmatpush1.bf16.xpose.msra.mxu0 0
        %8408 = vmatprep.mubr.bf16.mxu0 0
        %8409 = vmatmul.mubr.bf16.gmra.mrb[0].mxu0 %v8365
        %v8410 = vpop.f32.mrb[0].mxu0
        %v8411 = vadd.f32 0.0, %v8410
        %v8412 = vpop.f32.mrb[0].mxu0
        %v8413 = vpop.f32.mrb[0].mxu0
        %v8414 = vadd.f32 0.0, %v8413
        %v8415 = vpop.f32.mrb[0].mxu0
        %8416 = vmatprep.mubr.bf16.mxu0 0
        %8417 = vmatmul.mubr.bf16.gmra.mrb[0].mxu0 %v8368
        %v8418 = vpop.f32.mrb[0].mxu0
        %v8419 = vadd.f32 0.0, %v8418
        %v8420 = vpop.f32.mrb[0].mxu0
        %v8421 = vpop.f32.mrb[0].mxu0
        %v8422 = vadd.f32 0.0, %v8421
        %v8423 = vpop.f32.mrb[0].mxu0
        %8424 = vdwg.mxu0
        %v8425 = vsel %vm3197, %v8411, -inf
        %8426 = vmax.xlane.f32.xlu0 %v8425
        %v8427 = vpop.xlane.xlu0 %8426
        %v8428 = vsel %vm3197, %v8414, -inf
        %8429 = vmax.xlane.f32.xlu0 %v8428
        %v8430 = vpop.xlane.xlu0 %8429
        %v8431 = vsel %vm3197, %v8419, -inf
        %8432 = vmax.xlane.f32.xlu0 %v8431
        %v8433 = vpop.xlane.xlu0 %8432
        %v8434 = vsel %vm3197, %v8422, -inf
        %8435 = vmax.xlane.f32.xlu0 %v8434
        %v8436 = vpop.xlane.xlu0 %8435
        %v8437 = vsub.f32 %v8411, %v8427
        %v8438 = vsub.f32 %v8414, %v8430
        %v8439 = vsub.f32 %v8419, %v8433
        %v8440 = vsub.f32 %v8422, %v8436
        %v8441 = vmul.f32 %v8437, 1.442695
        %v8442 = vpow.pop %v8441
        %v8443 = vmul.f32 %v8438, 1.442695
        %v8444 = vpow.pop %v8443
        %v8445 = vmul.f32 %v8439, 1.442695
        %v8446 = vpow.pop %v8445
        %v8447 = vmul.f32 %v8440, 1.442695
        %v8448 = vpow.pop %v8447
        %v8449 = vsel %vm3197, %v8442, 0.0
        %8450 = vadd.xlane.f32.xlu0 %v8449
        %v8451 = vpop.xlane.xlu0 %8450
        %v8452 = vsel %vm3197, %v8444, 0.0
        %8453 = vadd.xlane.f32.xlu0 %v8452
        %v8454 = vpop.xlane.xlu0 %8453
        %v8455 = vsel %vm3197, %v8446, 0.0
        %8456 = vadd.xlane.f32.xlu0 %v8455
        %v8457 = vpop.xlane.xlu0 %8456
        %v8458 = vsel %vm3197, %v8448, 0.0
        %8459 = vadd.xlane.f32.xlu0 %v8458
        %v8460 = vpop.xlane.xlu0 %8459
        %v8461 = vrcp.pop %v8451
        %v8462 = vrcp.pop %v8454
        %v8463 = vrcp.pop %v8457
        %v8464 = vrcp.pop %v8460
        %v8465 = vmul.f32 %v8442, %v8461
        %v8466 = vmul.f32 %v8444, %v8462
        %v8467 = vmul.f32 %v8446, %v8463
        %v8468 = vmul.f32 %v8448, %v8464
        %v8469 = vpack.c.bf16 %v8466, %v8465
        %v8470 = vpack.c.bf16 %v8468, %v8467
        %8471 = vrot.lane.b32.xlu0 %v7882, 96
        %v8472 = vpop.permute.xlu0 %8471
        %8473 = vrot.lane.b32.xlu0 %v7883, 96
        %v8474 = vpop.permute.xlu0 %8473
        %v8478 = vsel %vm3197, %v8469, 0
        %v8481 = vsel %vm3197, %v8470, 0
        %8483 = vmatprep.subr.bf16.mxu0 0
        %8484 = vmatpush1.bf16.msra.mxu0 %v8472
        %8485 = vmatprep.subr.bf16.mxu0 0
        %8486 = vmatpush1.bf16.msra.mxu0 %v8474
        %8487 = vmatprep.subr.bf16.mxu0 0
        %8488 = vmatpush1.bf16.msra.mxu0 0
        %8489 = vmatprep.subr.bf16.mxu0 0
        %8490 = vmatpush1.bf16.msra.mxu0 0
        %8491 = vmatprep.subr.bf16.mxu0 0
        %8492 = vmatpush1.bf16.msra.mxu0 0
        %8493 = vmatprep.subr.bf16.mxu0 0
        %8494 = vmatpush1.bf16.msra.mxu0 0
        %8495 = vmatprep.subr.bf16.mxu0 0
        %8496 = vmatpush1.bf16.msra.mxu0 0
        %8497 = vmatprep.subr.bf16.mxu0 0
        %8498 = vmatpush1.bf16.msra.mxu0 0
        %8499 = vmatprep.subr.bf16.mxu0 0
        %8500 = vmatpush1.bf16.msra.mxu0 0
        %8501 = vmatprep.subr.bf16.mxu0 0
        %8502 = vmatpush1.bf16.msra.mxu0 0
        %8503 = vmatprep.subr.bf16.mxu0 0
        %8504 = vmatpush1.bf16.msra.mxu0 0
        %8505 = vmatprep.subr.bf16.mxu0 0
        %8506 = vmatpush1.bf16.msra.mxu0 0
        %8507 = vmatprep.subr.bf16.mxu0 0
        %8508 = vmatpush1.bf16.msra.mxu0 0
        %8509 = vmatprep.subr.bf16.mxu0 0
        %8510 = vmatpush1.bf16.msra.mxu0 0
        %8511 = vmatprep.subr.bf16.mxu0 0
        %8512 = vmatpush1.bf16.msra.mxu0 0
        %8513 = vmatprep.subr.bf16.mxu0 0
        %8514 = vmatpush1.bf16.msra.mxu0 0
        %8515 = vmatprep.mubr.bf16.mxu0 0
        %8516 = vmatmul.mubr.bf16.gmra.mrb[0].mxu0 %v8478
        %v8517 = vpop.f32.mrb[0].mxu0
        %v8518 = vadd.f32 0.0, %v8517
        %v8519 = vpop.f32.mrb[0].mxu0
        %v8520 = vpop.f32.mrb[0].mxu0
        %v8521 = vadd.f32 0.0, %v8520
        %v8522 = vpop.f32.mrb[0].mxu0
        %8523 = vmatprep.mubr.bf16.mxu0 0
        %8524 = vmatmul.mubr.bf16.gmra.mrb[0].mxu0 %v8481
        %v8525 = vpop.f32.mrb[0].mxu0
        %v8526 = vadd.f32 0.0, %v8525
        %v8527 = vpop.f32.mrb[0].mxu0
        %v8528 = vpop.f32.mrb[0].mxu0
        %v8529 = vadd.f32 0.0, %v8528
        %v8530 = vpop.f32.mrb[0].mxu0
        %8531 = vdwg.mxu0
        %v8532 = vpack.c.bf16 %v8521, %v8518
        %v8533 = vpack.c.bf16 %v8529, %v8526
        %v8536 = vunpack.c.l.b16 %v7876
        %v8537 = vunpack.c.l.b16 %v7877
        %v8538 = vpack.c.b16 %v8537, %v8536
        %v8541 = vsel %vm3135, %v8532, 0
        %v8544 = vsel %vm3135, %v8533, 0
        %8546 = vmatprep.subr.bf16.mxu0 0
        %8547 = vmatpush1.bf16.msra.mxu0 %v8538
        %8548 = vmatprep.subr.bf16.mxu0 0
        %8549 = vmatpush1.bf16.msra.mxu0 0
        %8550 = vmatprep.subr.bf16.mxu0 0
        %8551 = vmatpush1.bf16.msra.mxu0 0
        %8552 = vmatprep.subr.bf16.mxu0 0
        %8553 = vmatpush1.bf16.msra.mxu0 0
        %8554 = vmatprep.subr.bf16.mxu0 0
        %8555 = vmatpush1.bf16.msra.mxu0 0
        %8556 = vmatprep.subr.bf16.mxu0 0
        %8557 = vmatpush1.bf16.msra.mxu0 0
        %8558 = vmatprep.subr.bf16.mxu0 0
        %8559 = vmatpush1.bf16.msra.mxu0 0
        %8560 = vmatprep.subr.bf16.mxu0 0
        %8561 = vmatpush1.bf16.msra.mxu0 0
        %8562 = vmatprep.subr.bf16.mxu0 0
        %8563 = vmatpush1.bf16.msra.mxu0 0
        %8564 = vmatprep.subr.bf16.mxu0 0
        %8565 = vmatpush1.bf16.msra.mxu0 0
        %8566 = vmatprep.subr.bf16.mxu0 0
        %8567 = vmatpush1.bf16.msra.mxu0 0
        %8568 = vmatprep.subr.bf16.mxu0 0
        %8569 = vmatpush1.bf16.msra.mxu0 0
        %8570 = vmatprep.subr.bf16.mxu0 0
        %8571 = vmatpush1.bf16.msra.mxu0 0
        %8572 = vmatprep.subr.bf16.mxu0 0
        %8573 = vmatpush1.bf16.msra.mxu0 0
        %8574 = vmatprep.subr.bf16.mxu0 0
        %8575 = vmatpush1.bf16.msra.mxu0 0
        %8576 = vmatprep.subr.bf16.mxu0 0
        %8577 = vmatpush1.bf16.msra.mxu0 0
        %8578 = vmatprep.mubr.bf16.mxu0 0
        %8579 = vmatmul.mubr.bf16.gmra.mrb[0].mxu0 %v8541
        %v8580 = vpop.f32.mrb[0].mxu0
        %v8581 = vadd.f32 0.0, %v8580
        %v8582 = vpop.f32.mrb[0].mxu0
        %v8583 = vpop.f32.mrb[0].mxu0
        %v8584 = vadd.f32 0.0, %v8583
        %v8585 = vpop.f32.mrb[0].mxu0
        %8586 = vmatprep.mubr.bf16.mxu0 0
        %8587 = vmatmul.mubr.bf16.gmra.mrb[0].mxu0 %v8544
        %v8588 = vpop.f32.mrb[0].mxu0
        %v8589 = vadd.f32 0.0, %v8588
        %v8590 = vpop.f32.mrb[0].mxu0
        %v8591 = vpop.f32.mrb[0].mxu0
        %v8592 = vadd.f32 0.0, %v8591
        %v8593 = vpop.f32.mrb[0].mxu0
        %8594 = vdwg.mxu0
        %v8595 = vadd.f32 %v8342, %v8581
        %v8596 = vadd.f32 %v8345, %v8584
        %v8597 = vadd.f32 %v8350, %v8589
        %v8598 = vadd.f32 %v8353, %v8592
        %8599 = vrot.lane.b32.xlu0 %v7880, 80
        %v8600 = vpop.permute.xlu0 %8599
        %8601 = vrot.lane.b32.xlu0 %v7881, 80
        %v8602 = vpop.permute.xlu0 %8601
        %8603 = vrot.lane.b32.xlu0 %v7880, 16
        %v8604 = vpop.permute.xlu0 %8603
        %8605 = vrot.lane.b32.xlu0 %v7881, 16
        %v8606 = vpop.permute.xlu0 %8605
        %v8608 = vsel %vm3135, %v8600, 0
        %v8611 = vsel %vm3135, %v8602, 0
        %v8614 = vsel %vm3135, %v8604, 0
        %v8617 = vsel %vm3135, %v8606, 0
        %8619 = vmatprep.subr.bf16.mxu0 0
        %8620 = vmatpush1.bf16.xpose.msra.mxu0 %v8614
        %8621 = vmatprep.subr.bf16.mxu0 0
        %8622 = vmatpush1.bf16.xpose.msra.mxu0 %v8617
        %8623 = vmatprep.subr.bf16.mxu0 0
        %8624 = vmatpush1.bf16.xpose.msra.mxu0 0
        %8625 = vmatprep.subr.bf16.mxu0 0
        %8626 = vmatpush1.bf16.xpose.msra.mxu0 0
        %8627 = vmatprep.subr.bf16.mxu0 0
        %8628 = vmatpush1.bf16.xpose.msra.mxu0 0
        %8629 = vmatprep.subr.bf16.mxu0 0
        %8630 = vmatpush1.bf16.xpose.msra.mxu0 0
        %8631 = vmatprep.subr.bf16.mxu0 0
        %8632 = vmatpush1.bf16.xpose.msra.mxu0 0
        %8633 = vmatprep.subr.bf16.mxu0 0
        %8634 = vmatpush1.bf16.xpose.msra.mxu0 0
        %8635 = vmatprep.subr.bf16.mxu0 0
        %8636 = vmatpush1.bf16.xpose.msra.mxu0 0
        %8637 = vmatprep.subr.bf16.mxu0 0
        %8638 = vmatpush1.bf16.xpose.msra.mxu0 0
        %8639 = vmatprep.subr.bf16.mxu0 0
        %8640 = vmatpush1.bf16.xpose.msra.mxu0 0
        %8641 = vmatprep.subr.bf16.mxu0 0
        %8642 = vmatpush1.bf16.xpose.msra.mxu0 0
        %8643 = vmatprep.subr.bf16.mxu0 0
        %8644 = vmatpush1.bf16.xpose.msra.mxu0 0
        %8645 = vmatprep.subr.bf16.mxu0 0
        %8646 = vmatpush1.bf16.xpose.msra.mxu0 0
        %8647 = vmatprep.subr.bf16.mxu0 0
        %8648 = vmatpush1.bf16.xpose.msra.mxu0 0
        %8649 = vmatprep.subr.bf16.mxu0 0
        %8650 = vmatpush1.bf16.xpose.msra.mxu0 0
        %8651 = vmatprep.mubr.bf16.mxu0 0
        %8652 = vmatmul.mubr.bf16.gmra.mrb[0].mxu0 %v8608
        %v8653 = vpop.f32.mrb[0].mxu0
        %v8654 = vadd.f32 0.0, %v8653
        %v8655 = vpop.f32.mrb[0].mxu0
        %v8656 = vpop.f32.mrb[0].mxu0
        %v8657 = vadd.f32 0.0, %v8656
        %v8658 = vpop.f32.mrb[0].mxu0
        %8659 = vmatprep.mubr.bf16.mxu0 0
        %8660 = vmatmul.mubr.bf16.gmra.mrb[0].mxu0 %v8611
        %v8661 = vpop.f32.mrb[0].mxu0
        %v8662 = vadd.f32 0.0, %v8661
        %v8663 = vpop.f32.mrb[0].mxu0
        %v8664 = vpop.f32.mrb[0].mxu0
        %v8665 = vadd.f32 0.0, %v8664
        %v8666 = vpop.f32.mrb[0].mxu0
        %8667 = vdwg.mxu0
        %v8668 = vsel %vm3197, %v8654, -inf
        %8669 = vmax.xlane.f32.xlu0 %v8668
        %v8670 = vpop.xlane.xlu0 %8669
        %v8671 = vsel %vm3197, %v8657, -inf
        %8672 = vmax.xlane.f32.xlu0 %v8671
        %v8673 = vpop.xlane.xlu0 %8672
        %v8674 = vsel %vm3197, %v8662, -inf
        %8675 = vmax.xlane.f32.xlu0 %v8674
        %v8676 = vpop.xlane.xlu0 %8675
        %v8677 = vsel %vm3197, %v8665, -inf
        %8678 = vmax.xlane.f32.xlu0 %v8677
        %v8679 = vpop.xlane.xlu0 %8678
        %v8680 = vsub.f32 %v8654, %v8670
        %v8681 = vsub.f32 %v8657, %v8673
        %v8682 = vsub.f32 %v8662, %v8676
        %v8683 = vsub.f32 %v8665, %v8679
        %v8684 = vmul.f32 %v8680, 1.442695
        %v8685 = vpow.pop %v8684
        %v8686 = vmul.f32 %v8681, 1.442695
        %v8687 = vpow.pop %v8686
        %v8688 = vmul.f32 %v8682, 1.442695
        %v8689 = vpow.pop %v8688
        %v8690 = vmul.f32 %v8683, 1.442695
        %v8691 = vpow.pop %v8690
        %v8692 = vsel %vm3197, %v8685, 0.0
        %8693 = vadd.xlane.f32.xlu0 %v8692
        %v8694 = vpop.xlane.xlu0 %8693
        %v8695 = vsel %vm3197, %v8687, 0.0
        %8696 = vadd.xlane.f32.xlu0 %v8695
        %v8697 = vpop.xlane.xlu0 %8696
        %v8698 = vsel %vm3197, %v8689, 0.0
        %8699 = vadd.xlane.f32.xlu0 %v8698
        %v8700 = vpop.xlane.xlu0 %8699
        %v8701 = vsel %vm3197, %v8691, 0.0
        %8702 = vadd.xlane.f32.xlu0 %v8701
        %v8703 = vpop.xlane.xlu0 %8702
        %v8704 = vrcp.pop %v8694
        %v8705 = vrcp.pop %v8697
        %v8706 = vrcp.pop %v8700
        %v8707 = vrcp.pop %v8703
        %v8708 = vmul.f32 %v8685, %v8704
        %v8709 = vmul.f32 %v8687, %v8705
        %v8710 = vmul.f32 %v8689, %v8706
        %v8711 = vmul.f32 %v8691, %v8707
        %v8712 = vpack.c.bf16 %v8709, %v8708
        %v8713 = vpack.c.bf16 %v8711, %v8710
        %8714 = vrot.lane.b32.xlu0 %v7882, 80
        %v8715 = vpop.permute.xlu0 %8714
        %8716 = vrot.lane.b32.xlu0 %v7883, 80
        %v8717 = vpop.permute.xlu0 %8716
        %v8721 = vsel %vm3197, %v8712, 0
        %v8724 = vsel %vm3197, %v8713, 0
        %8726 = vmatprep.subr.bf16.mxu0 0
        %8727 = vmatpush1.bf16.msra.mxu0 %v8715
        %8728 = vmatprep.subr.bf16.mxu0 0
        %8729 = vmatpush1.bf16.msra.mxu0 %v8717
        %8730 = vmatprep.subr.bf16.mxu0 0
        %8731 = vmatpush1.bf16.msra.mxu0 0
        %8732 = vmatprep.subr.bf16.mxu0 0
        %8733 = vmatpush1.bf16.msra.mxu0 0
        %8734 = vmatprep.subr.bf16.mxu0 0
        %8735 = vmatpush1.bf16.msra.mxu0 0
        %8736 = vmatprep.subr.bf16.mxu0 0
        %8737 = vmatpush1.bf16.msra.mxu0 0
        %8738 = vmatprep.subr.bf16.mxu0 0
        %8739 = vmatpush1.bf16.msra.mxu0 0
        %8740 = vmatprep.subr.bf16.mxu0 0
        %8741 = vmatpush1.bf16.msra.mxu0 0
        %8742 = vmatprep.subr.bf16.mxu0 0
        %8743 = vmatpush1.bf16.msra.mxu0 0
        %8744 = vmatprep.subr.bf16.mxu0 0
        %8745 = vmatpush1.bf16.msra.mxu0 0
        %8746 = vmatprep.subr.bf16.mxu0 0
        %8747 = vmatpush1.bf16.msra.mxu0 0
        %8748 = vmatprep.subr.bf16.mxu0 0
        %8749 = vmatpush1.bf16.msra.mxu0 0
        %8750 = vmatprep.subr.bf16.mxu0 0
        %8751 = vmatpush1.bf16.msra.mxu0 0
        %8752 = vmatprep.subr.bf16.mxu0 0
        %8753 = vmatpush1.bf16.msra.mxu0 0
        %8754 = vmatprep.subr.bf16.mxu0 0
        %8755 = vmatpush1.bf16.msra.mxu0 0
        %8756 = vmatprep.subr.bf16.mxu0 0
        %8757 = vmatpush1.bf16.msra.mxu0 0
        %8758 = vmatprep.mubr.bf16.mxu0 0
        %8759 = vmatmul.mubr.bf16.gmra.mrb[0].mxu0 %v8721
        %v8760 = vpop.f32.mrb[0].mxu0
        %v8761 = vadd.f32 0.0, %v8760
        %v8762 = vpop.f32.mrb[0].mxu0
        %v8763 = vpop.f32.mrb[0].mxu0
        %v8764 = vadd.f32 0.0, %v8763
        %v8765 = vpop.f32.mrb[0].mxu0
        %8766 = vmatprep.mubr.bf16.mxu0 0
        %8767 = vmatmul.mubr.bf16.gmra.mrb[0].mxu0 %v8724
        %v8768 = vpop.f32.mrb[0].mxu0
        %v8769 = vadd.f32 0.0, %v8768
        %v8770 = vpop.f32.mrb[0].mxu0
        %v8771 = vpop.f32.mrb[0].mxu0
        %v8772 = vadd.f32 0.0, %v8771
        %v8773 = vpop.f32.mrb[0].mxu0
        %8774 = vdwg.mxu0
        %v8775 = vpack.c.bf16 %v8764, %v8761
        %v8776 = vpack.c.bf16 %v8772, %v8769
        %v8779 = vunpack.c.l.b16 %v7878
        %v8780 = vunpack.c.l.b16 %v7879
        %v8781 = vpack.c.b16 %v8780, %v8779
        %v8784 = vsel %vm3135, %v8775, 0
        %v8787 = vsel %vm3135, %v8776, 0
        %8789 = vmatprep.subr.bf16.mxu0 0
        %8790 = vmatpush1.bf16.msra.mxu0 %v8781
        %8791 = vmatprep.subr.bf16.mxu0 0
        %8792 = vmatpush1.bf16.msra.mxu0 0
        %8793 = vmatprep.subr.bf16.mxu0 0
        %8794 = vmatpush1.bf16.msra.mxu0 0
        %8795 = vmatprep.subr.bf16.mxu0 0
        %8796 = vmatpush1.bf16.msra.mxu0 0
        %8797 = vmatprep.subr.bf16.mxu0 0
        %8798 = vmatpush1.bf16.msra.mxu0 0
        %8799 = vmatprep.subr.bf16.mxu0 0
        %8800 = vmatpush1.bf16.msra.mxu0 0
        %8801 = vmatprep.subr.bf16.mxu0 0
        %8802 = vmatpush1.bf16.msra.mxu0 0
        %8803 = vmatprep.subr.bf16.mxu0 0
        %8804 = vmatpush1.bf16.msra.mxu0 0
        %8805 = vmatprep.subr.bf16.mxu0 0
        %8806 = vmatpush1.bf16.msra.mxu0 0
        %8807 = vmatprep.subr.bf16.mxu0 0
        %8808 = vmatpush1.bf16.msra.mxu0 0
        %8809 = vmatprep.subr.bf16.mxu0 0
        %8810 = vmatpush1.bf16.msra.mxu0 0
        %8811 = vmatprep.subr.bf16.mxu0 0
        %8812 = vmatpush1.bf16.msra.mxu0 0
        %8813 = vmatprep.subr.bf16.mxu0 0
        %8814 = vmatpush1.bf16.msra.mxu0 0
        %8815 = vmatprep.subr.bf16.mxu0 0
        %8816 = vmatpush1.bf16.msra.mxu0 0
        %8817 = vmatprep.subr.bf16.mxu0 0
        %8818 = vmatpush1.bf16.msra.mxu0 0
        %8819 = vmatprep.subr.bf16.mxu0 0
        %8820 = vmatpush1.bf16.msra.mxu0 0
        %8821 = vmatprep.mubr.bf16.mxu0 0
        %8822 = vmatmul.mubr.bf16.gmra.mrb[0].mxu0 %v8784
        %v8823 = vpop.f32.mrb[0].mxu0
        %v8824 = vadd.f32 0.0, %v8823
        %v8825 = vpop.f32.mrb[0].mxu0
        %v8826 = vpop.f32.mrb[0].mxu0
        %v8827 = vadd.f32 0.0, %v8826
        %v8828 = vpop.f32.mrb[0].mxu0
        %8829 = vmatprep.mubr.bf16.mxu0 0
        %8830 = vmatmul.mubr.bf16.gmra.mrb[0].mxu0 %v8787
        %v8831 = vpop.f32.mrb[0].mxu0
        %v8832 = vadd.f32 0.0, %v8831
        %v8833 = vpop.f32.mrb[0].mxu0
        %v8834 = vpop.f32.mrb[0].mxu0
        %v8835 = vadd.f32 0.0, %v8834
        %v8836 = vpop.f32.mrb[0].mxu0
        %8837 = vdwg.mxu0
        %v8838 = vadd.f32 %v8595, %v8824
        %v8839 = vadd.f32 %v8596, %v8827
        %v8840 = vadd.f32 %v8597, %v8832
        %v8841 = vadd.f32 %v8598, %v8835
        %s8842 = scalar_lea.vmem %s8, 3
        %v8843 = vld [vmem:[%s8842] sm:$0x1]
        %v8845 = vlaneseq
        %v8846 = vshrl.u32 %v8845, 7
        %v8847 = vsub.s32 0, %v8846
        %v8848 = vrot.slane %v8843, %v8847
        %v8850 = vadd.f32 %v8838, %v8848
        %v8851 = vadd.f32 %v8839, %v8848
        %v8852 = vadd.f32 %v8840, %v8848
        %v8853 = vadd.f32 %v8841, %v8848
        %v8854 = vadd.f32 %v7744, %v8850
        %v8855 = vadd.f32 %v7745, %v8851
        %v8856 = vadd.f32 %v7746, %v8852
        %v8857 = vadd.f32 %v7747, %v8853
        %s8858 = scalar_lea.vmem %s13, 3
        %v8859 = vld [vmem:[%s8858] sm:$0x1]
        %s8860 = scalar_lea.vmem %s14, 3
        %v8861 = vld [vmem:[%s8860] sm:$0x1]
        %v8862 = vsel %vm3057, %v8854, 0.0
        %8863 = vadd.xlane.f32.xlu0 %v8862
        %v8864 = vpop.xlane.xlu0 %8863
        %v8865 = vsel %vm3057, %v8855, 0.0
        %8866 = vadd.xlane.f32.xlu0 %v8865
        %v8867 = vpop.xlane.xlu0 %8866
        %v8868 = vsel %vm3057, %v8856, 0.0
        %8869 = vadd.xlane.f32.xlu0 %v8868
        %v8870 = vpop.xlane.xlu0 %8869
        %v8871 = vsel %vm3057, %v8857, 0.0
        %8872 = vadd.xlane.f32.xlu0 %v8871
        %v8873 = vpop.xlane.xlu0 %8872
        %v8874 = vmul.f32 %v8864, %v4118
        %v8875 = vmul.f32 %v8867, %v4118
        %v8876 = vmul.f32 %v8870, %v4118
        %v8877 = vmul.f32 %v8873, %v4118
        %v8878 = vsub.f32 %v8854, %v8874
        %v8879 = vsub.f32 %v8855, %v8875
        %v8880 = vsub.f32 %v8856, %v8876
        %v8881 = vsub.f32 %v8857, %v8877
        %v8882 = vmul.f32 %v8878, %v8878
        %v8883 = vmul.f32 %v8879, %v8879
        %v8884 = vmul.f32 %v8880, %v8880
        %v8885 = vmul.f32 %v8881, %v8881
        %v8886 = vsel %vm3057, %v8882, 0.0
        %8887 = vadd.xlane.f32.xlu0 %v8886
        %v8888 = vpop.xlane.xlu0 %8887
        %v8889 = vsel %vm3057, %v8883, 0.0
        %8890 = vadd.xlane.f32.xlu0 %v8889
        %v8891 = vpop.xlane.xlu0 %8890
        %v8892 = vsel %vm3057, %v8884, 0.0
        %8893 = vadd.xlane.f32.xlu0 %v8892
        %v8894 = vpop.xlane.xlu0 %8893
        %v8895 = vsel %vm3057, %v8885, 0.0
        %8896 = vadd.xlane.f32.xlu0 %v8895
        %v8897 = vpop.xlane.xlu0 %8896
        %v8898 = vmul.f32 %v8888, %v4118
        %v8899 = vmul.f32 %v8891, %v4118
        %v8900 = vmul.f32 %v8894, %v4118
        %v8901 = vmul.f32 %v8897, %v4118
        %v8902 = vadd.f32 %v8898, 1e-05
        %v8903 = vadd.f32 %v8899, 1e-05
        %v8904 = vadd.f32 %v8900, 1e-05
        %v8905 = vadd.f32 %v8901, 1e-05
        %v8906 = vrsqrt.pop %v8902
        %v8907 = vrsqrt.pop %v8903
        %v8908 = vrsqrt.pop %v8904
        %v8909 = vrsqrt.pop %v8905
        %v8910 = vmul.f32 %v8878, %v8906
        %v8911 = vmul.f32 %v8879, %v8907
        %v8912 = vmul.f32 %v8880, %v8908
        %v8913 = vmul.f32 %v8881, %v8909
        %v8915 = vlaneseq
        %v8916 = vshrl.u32 %v8915, 7
        %v8917 = vsub.s32 0, %v8916
        %v8918 = vrot.slane %v8859, %v8917
        %v8920 = vmul.f32 %v8910, %v8918
        %v8921 = vmul.f32 %v8911, %v8918
        %v8922 = vmul.f32 %v8912, %v8918
        %v8923 = vmul.f32 %v8913, %v8918
        %v8925 = vlaneseq
        %v8926 = vshrl.u32 %v8925, 7
        %v8927 = vsub.s32 0, %v8926
        %v8928 = vrot.slane %v8861, %v8927
        %v8930 = vadd.f32 %v8920, %v8928
        %v8931 = vadd.f32 %v8921, %v8928
        %v8932 = vadd.f32 %v8922, %v8928
        %v8933 = vadd.f32 %v8923, %v8928
        %v8934 = vpack.c.bf16 %v8931, %v8930
        %v8935 = vpack.c.bf16 %v8933, %v8932
        %s8936 = scalar_lea.vmem %s9, 192
        %v8937 = vld [vmem:[%s8936] sm:$0xff]
        %v8938 = vld [vmem:[%s8936 + $0x8] sm:$0xff]
        %v8939 = vld [vmem:[%s8936 + $0x10] sm:$0xff]
        %v8940 = vld [vmem:[%s8936 + $0x18] sm:$0xff]
        %v8941 = vld [vmem:[%s8936 + $0x20] sm:$0xff]
        %v8942 = vld [vmem:[%s8936 + $0x28] sm:$0xff]
        %v8943 = vld [vmem:[%s8936 + $0x30] sm:$0xff]
        %v8944 = vld [vmem:[%s8936 + $0x38] sm:$0xff]
        %s8945 = scalar_lea.vmem %s10, 6
        %v8946 = vld [vmem:[%s8945] sm:$0x3]
        %v8948 = vlaneseq
        %v8949 = vshrl.u32 %v8948, 7
        %v8950 = vsub.s32 0, %v8949
        %v8951 = vrot.slane %v8946, %v8950
        %v8952 = vlaneseq
        %v8953 = vshrl.u32 %v8952, 7
        %v8954 = vsub.s32 1, %v8953
        %v8955 = vrot.slane %v8946, %v8954
        %v8966 = vunpack.c.l.b16 %v8937
        %v8967 = vunpack.c.h.b16 %v8937
        %v8968 = vunpack.c.l.b16 %v8938
        %v8969 = vunpack.c.h.b16 %v8938
        %v8970 = vunpack.c.l.b16 %v8939
        %v8971 = vunpack.c.h.b16 %v8939
        %v8972 = vunpack.c.l.b16 %v8940
        %v8973 = vunpack.c.h.b16 %v8940
        %v8974 = vunpack.c.l.b16 %v8941
        %v8975 = vunpack.c.h.b16 %v8941
        %v8976 = vunpack.c.l.b16 %v8942
        %v8977 = vunpack.c.h.b16 %v8942
        %v8978 = vunpack.c.l.b16 %v8943
        %v8979 = vunpack.c.h.b16 %v8943
        %v8980 = vunpack.c.l.b16 %v8944
        %v8981 = vunpack.c.h.b16 %v8944
        %v8982 = vpack.c.b16 %v8968, %v8966
        %v8983 = vpack.c.b16 %v8969, %v8967
        %v8984 = vpack.c.b16 %v8972, %v8970
        %v8985 = vpack.c.b16 %v8973, %v8971
        %v8986 = vpack.c.b16 %v8976, %v8974
        %v8987 = vpack.c.b16 %v8977, %v8975
        %v8988 = vpack.c.b16 %v8980, %v8978
        %v8989 = vpack.c.b16 %v8981, %v8979
        %v8999 = vsel %vm3057, %v8934, 0
        %v9002 = vsel %vm3057, %v8935, 0
        %9004 = vmatprep.subr.bf16.mxu0 %v8983
        %9005 = vmatpush1.bf16.msra.mxu0 %v8982
        %9006 = vmatprep.subr.bf16.mxu0 %v8985
        %9007 = vmatpush1.bf16.msra.mxu0 %v8984
        %9008 = vmatprep.subr.bf16.mxu0 %v8987
        %9009 = vmatpush1.bf16.msra.mxu0 %v8986
        %9010 = vmatprep.subr.bf16.mxu0 %v8989
        %9011 = vmatpush1.bf16.msra.mxu0 %v8988
        %9012 = vmatprep.subr.bf16.mxu0 0
        %9013 = vmatpush1.bf16.msra.mxu0 0
        %9014 = vmatprep.subr.bf16.mxu0 0
        %9015 = vmatpush1.bf16.msra.mxu0 0
        %9016 = vmatprep.subr.bf16.mxu0 0
        %9017 = vmatpush1.bf16.msra.mxu0 0
        %9018 = vmatprep.subr.bf16.mxu0 0
        %9019 = vmatpush1.bf16.msra.mxu0 0
        %9020 = vmatprep.subr.bf16.mxu0 0
        %9021 = vmatpush1.bf16.msra.mxu0 0
        %9022 = vmatprep.subr.bf16.mxu0 0
        %9023 = vmatpush1.bf16.msra.mxu0 0
        %9024 = vmatprep.subr.bf16.mxu0 0
        %9025 = vmatpush1.bf16.msra.mxu0 0
        %9026 = vmatprep.subr.bf16.mxu0 0
        %9027 = vmatpush1.bf16.msra.mxu0 0
        %9028 = vmatprep.subr.bf16.mxu0 0
        %9029 = vmatpush1.bf16.msra.mxu0 0
        %9030 = vmatprep.subr.bf16.mxu0 0
        %9031 = vmatpush1.bf16.msra.mxu0 0
        %9032 = vmatprep.subr.bf16.mxu0 0
        %9033 = vmatpush1.bf16.msra.mxu0 0
        %9034 = vmatprep.subr.bf16.mxu0 0
        %9035 = vmatpush1.bf16.msra.mxu0 0
        %9036 = vmatprep.mubr.bf16.mxu0 0
        %9037 = vmatmul.mubr.bf16.gmra.mrb[0].mxu0 %v8999
        %v9038 = vpop.f32.mrb[0].mxu0
        %v9039 = vadd.f32 %v8951, %v9038
        %v9040 = vpop.f32.mrb[0].mxu0
        %v9041 = vadd.f32 %v8955, %v9040
        %v9042 = vpop.f32.mrb[0].mxu0
        %v9043 = vadd.f32 %v8951, %v9042
        %v9044 = vpop.f32.mrb[0].mxu0
        %v9045 = vadd.f32 %v8955, %v9044
        %9046 = vmatprep.mubr.bf16.mxu0 0
        %9047 = vmatmul.mubr.bf16.gmra.mrb[0].mxu0 %v9002
        %v9048 = vpop.f32.mrb[0].mxu0
        %v9049 = vadd.f32 %v8951, %v9048
        %v9050 = vpop.f32.mrb[0].mxu0
        %v9051 = vadd.f32 %v8955, %v9050
        %v9052 = vpop.f32.mrb[0].mxu0
        %v9053 = vadd.f32 %v8951, %v9052
        %v9054 = vpop.f32.mrb[0].mxu0
        %v9055 = vadd.f32 %v8955, %v9054
        %9056 = vdwg.mxu0
        %v9057 = vmax.f32 %v9039, 0.0
        %v9058 = vmax.f32 %v9041, 0.0
        %v9059 = vmax.f32 %v9043, 0.0
        %v9060 = vmax.f32 %v9045, 0.0
        %v9061 = vmax.f32 %v9049, 0.0
        %v9062 = vmax.f32 %v9051, 0.0
        %v9063 = vmax.f32 %v9053, 0.0
        %v9064 = vmax.f32 %v9055, 0.0
        %v9065 = vpack.c.bf16 %v9059, %v9057
        %v9066 = vpack.c.bf16 %v9060, %v9058
        %v9067 = vpack.c.bf16 %v9063, %v9061
        %v9068 = vpack.c.bf16 %v9064, %v9062
        %s9069 = scalar_lea.vmem %s11, 384
        %v9070 = vld [vmem:[%s9069] sm:$0xf]
        %v9071 = vld [vmem:[%s9069 + $0x4] sm:$0xf]
        %v9072 = vld [vmem:[%s9069 + $0x8] sm:$0xf]
        %v9073 = vld [vmem:[%s9069 + $0xc] sm:$0xf]
        %v9074 = vld [vmem:[%s9069 + $0x10] sm:$0xf]
        %v9075 = vld [vmem:[%s9069 + $0x14] sm:$0xf]
        %v9076 = vld [vmem:[%s9069 + $0x18] sm:$0xf]
        %v9077 = vld [vmem:[%s9069 + $0x1c] sm:$0xf]
        %v9078 = vld [vmem:[%s9069 + $0x20] sm:$0xf]
        %v9079 = vld [vmem:[%s9069 + $0x24] sm:$0xf]
        %v9080 = vld [vmem:[%s9069 + $0x28] sm:$0xf]
        %v9081 = vld [vmem:[%s9069 + $0x2c] sm:$0xf]
        %v9082 = vld [vmem:[%s9069 + $0x30] sm:$0xf]
        %v9083 = vld [vmem:[%s9069 + $0x34] sm:$0xf]
        %v9084 = vld [vmem:[%s9069 + $0x38] sm:$0xf]
        %v9085 = vld [vmem:[%s9069 + $0x3c] sm:$0xf]
        %v9086 = vld [vmem:[%s9069 + $0x40] sm:$0xf]
        %v9087 = vld [vmem:[%s9069 + $0x44] sm:$0xf]
        %v9088 = vld [vmem:[%s9069 + $0x48] sm:$0xf]
        %v9089 = vld [vmem:[%s9069 + $0x4c] sm:$0xf]
        %v9090 = vld [vmem:[%s9069 + $0x50] sm:$0xf]
        %v9091 = vld [vmem:[%s9069 + $0x54] sm:$0xf]
        %v9092 = vld [vmem:[%s9069 + $0x58] sm:$0xf]
        %v9093 = vld [vmem:[%s9069 + $0x5c] sm:$0xf]
        %v9094 = vld [vmem:[%s9069 + $0x60] sm:$0xf]
        %v9095 = vld [vmem:[%s9069 + $0x64] sm:$0xf]
        %v9096 = vld [vmem:[%s9069 + $0x68] sm:$0xf]
        %v9097 = vld [vmem:[%s9069 + $0x6c] sm:$0xf]
        %v9098 = vld [vmem:[%s9069 + $0x70] sm:$0xf]
        %v9099 = vld [vmem:[%s9069 + $0x74] sm:$0xf]
        %v9100 = vld [vmem:[%s9069 + $0x78] sm:$0xf]
        %v9101 = vld [vmem:[%s9069 + $0x7c] sm:$0xf]
        %s9102 = scalar_lea.vmem %s12, 3
        %v9103 = vld [vmem:[%s9102] sm:$0x1]
        %v9105 = vlaneseq
        %v9106 = vshrl.u32 %v9105, 7
        %v9107 = vsub.s32 0, %v9106
        %v9108 = vrot.slane %v9103, %v9107
        %v9142 = vunpack.c.l.b16 %v9070
        %v9143 = vunpack.c.l.b16 %v9071
        %v9144 = vunpack.c.l.b16 %v9072
        %v9145 = vunpack.c.l.b16 %v9073
        %v9146 = vunpack.c.l.b16 %v9074
        %v9147 = vunpack.c.l.b16 %v9075
        %v9148 = vunpack.c.l.b16 %v9076
        %v9149 = vunpack.c.l.b16 %v9077
        %v9150 = vunpack.c.l.b16 %v9078
        %v9151 = vunpack.c.l.b16 %v9079
        %v9152 = vunpack.c.l.b16 %v9080
        %v9153 = vunpack.c.l.b16 %v9081
        %v9154 = vunpack.c.l.b16 %v9082
        %v9155 = vunpack.c.l.b16 %v9083
        %v9156 = vunpack.c.l.b16 %v9084
        %v9157 = vunpack.c.l.b16 %v9085
        %v9158 = vunpack.c.l.b16 %v9086
        %v9159 = vunpack.c.l.b16 %v9087
        %v9160 = vunpack.c.l.b16 %v9088
        %v9161 = vunpack.c.l.b16 %v9089
        %v9162 = vunpack.c.l.b16 %v9090
        %v9163 = vunpack.c.l.b16 %v9091
        %v9164 = vunpack.c.l.b16 %v9092
        %v9165 = vunpack.c.l.b16 %v9093
        %v9166 = vunpack.c.l.b16 %v9094
        %v9167 = vunpack.c.l.b16 %v9095
        %v9168 = vunpack.c.l.b16 %v9096
        %v9169 = vunpack.c.l.b16 %v9097
        %v9170 = vunpack.c.l.b16 %v9098
        %v9171 = vunpack.c.l.b16 %v9099
        %v9172 = vunpack.c.l.b16 %v9100
        %v9173 = vunpack.c.l.b16 %v9101
        %v9174 = vpack.c.b16 %v9143, %v9142
        %v9175 = vpack.c.b16 %v9145, %v9144
        %v9176 = vpack.c.b16 %v9147, %v9146
        %v9177 = vpack.c.b16 %v9149, %v9148
        %v9178 = vpack.c.b16 %v9151, %v9150
        %v9179 = vpack.c.b16 %v9153, %v9152
        %v9180 = vpack.c.b16 %v9155, %v9154
        %v9181 = vpack.c.b16 %v9157, %v9156
        %v9182 = vpack.c.b16 %v9159, %v9158
        %v9183 = vpack.c.b16 %v9161, %v9160
        %v9184 = vpack.c.b16 %v9163, %v9162
        %v9185 = vpack.c.b16 %v9165, %v9164
        %v9186 = vpack.c.b16 %v9167, %v9166
        %v9187 = vpack.c.b16 %v9169, %v9168
        %v9188 = vpack.c.b16 %v9171, %v9170
        %v9189 = vpack.c.b16 %v9173, %v9172
        %9206 = vmatprep.subr.bf16.mxu0 0
        %9207 = vmatpush1.bf16.msra.mxu0 %v9174
        %9208 = vmatprep.subr.bf16.mxu0 0
        %9209 = vmatpush1.bf16.msra.mxu0 %v9175
        %9210 = vmatprep.subr.bf16.mxu0 0
        %9211 = vmatpush1.bf16.msra.mxu0 %v9176
        %9212 = vmatprep.subr.bf16.mxu0 0
        %9213 = vmatpush1.bf16.msra.mxu0 %v9177
        %9214 = vmatprep.subr.bf16.mxu0 0
        %9215 = vmatpush1.bf16.msra.mxu0 %v9178
        %9216 = vmatprep.subr.bf16.mxu0 0
        %9217 = vmatpush1.bf16.msra.mxu0 %v9179
        %9218 = vmatprep.subr.bf16.mxu0 0
        %9219 = vmatpush1.bf16.msra.mxu0 %v9180
        %9220 = vmatprep.subr.bf16.mxu0 0
        %9221 = vmatpush1.bf16.msra.mxu0 %v9181
        %9222 = vmatprep.subr.bf16.mxu0 0
        %9223 = vmatpush1.bf16.msra.mxu0 %v9182
        %9224 = vmatprep.subr.bf16.mxu0 0
        %9225 = vmatpush1.bf16.msra.mxu0 %v9183
        %9226 = vmatprep.subr.bf16.mxu0 0
        %9227 = vmatpush1.bf16.msra.mxu0 %v9184
        %9228 = vmatprep.subr.bf16.mxu0 0
        %9229 = vmatpush1.bf16.msra.mxu0 %v9185
        %9230 = vmatprep.subr.bf16.mxu0 0
        %9231 = vmatpush1.bf16.msra.mxu0 %v9186
        %9232 = vmatprep.subr.bf16.mxu0 0
        %9233 = vmatpush1.bf16.msra.mxu0 %v9187
        %9234 = vmatprep.subr.bf16.mxu0 0
        %9235 = vmatpush1.bf16.msra.mxu0 %v9188
        %9236 = vmatprep.subr.bf16.mxu0 0
        %9237 = vmatpush1.bf16.msra.mxu0 %v9189
        %9238 = vmatprep.mubr.bf16.mxu0 %v9066
        %9239 = vmatmul.mubr.bf16.gmra.mrb[0].mxu0 %v9065
        %v9240 = vpop.f32.mrb[0].mxu0
        %v9241 = vadd.f32 %v9108, %v9240
        %v9242 = vpop.f32.mrb[0].mxu0
        %v9243 = vpop.f32.mrb[0].mxu0
        %v9244 = vadd.f32 %v9108, %v9243
        %v9245 = vpop.f32.mrb[0].mxu0
        %9246 = vmatprep.mubr.bf16.mxu0 %v9068
        %9247 = vmatmul.mubr.bf16.gmra.mrb[0].mxu0 %v9067
        %v9248 = vpop.f32.mrb[0].mxu0
        %v9249 = vadd.f32 %v9108, %v9248
        %v9250 = vpop.f32.mrb[0].mxu0
        %v9251 = vpop.f32.mrb[0].mxu0
        %v9252 = vadd.f32 %v9108, %v9251
        %v9253 = vpop.f32.mrb[0].mxu0
        %9254 = vdwg.mxu0
        %v9255 = vadd.f32 %v8930, %v9241
        %v9256 = vadd.f32 %v8931, %v9244
        %v9257 = vadd.f32 %v8932, %v9249
        %v9258 = vadd.f32 %v8933, %v9252
        %s9259 = scalar_lea.vmem %s15, 3
        %v9260 = vld [vmem:[%s9259] sm:$0x1]
        %s9261 = scalar_lea.vmem %s16, 3
        %v9262 = vld [vmem:[%s9261] sm:$0x1]
        %v9263 = vsel %vm3057, %v9255, 0.0
        %9264 = vadd.xlane.f32.xlu0 %v9263
        %v9265 = vpop.xlane.xlu0 %9264
        %v9266 = vsel %vm3057, %v9256, 0.0
        %9267 = vadd.xlane.f32.xlu0 %v9266
        %v9268 = vpop.xlane.xlu0 %9267
        %v9269 = vsel %vm3057, %v9257, 0.0
        %9270 = vadd.xlane.f32.xlu0 %v9269
        %v9271 = vpop.xlane.xlu0 %9270
        %v9272 = vsel %vm3057, %v9258, 0.0
        %9273 = vadd.xlane.f32.xlu0 %v9272
        %v9274 = vpop.xlane.xlu0 %9273
        %v9275 = vmul.f32 %v9265, %v4118
        %v9276 = vmul.f32 %v9268, %v4118
        %v9277 = vmul.f32 %v9271, %v4118
        %v9278 = vmul.f32 %v9274, %v4118
        %v9279 = vsub.f32 %v9255, %v9275
        %v9280 = vsub.f32 %v9256, %v9276
        %v9281 = vsub.f32 %v9257, %v9277
        %v9282 = vsub.f32 %v9258, %v9278
        %v9283 = vmul.f32 %v9279, %v9279
        %v9284 = vmul.f32 %v9280, %v9280
        %v9285 = vmul.f32 %v9281, %v9281
        %v9286 = vmul.f32 %v9282, %v9282
        %v9287 = vsel %vm3057, %v9283, 0.0
        %9288 = vadd.xlane.f32.xlu0 %v9287
        %v9289 = vpop.xlane.xlu0 %9288
        %v9290 = vsel %vm3057, %v9284, 0.0
        %9291 = vadd.xlane.f32.xlu0 %v9290
        %v9292 = vpop.xlane.xlu0 %9291
        %v9293 = vsel %vm3057, %v9285, 0.0
        %9294 = vadd.xlane.f32.xlu0 %v9293
        %v9295 = vpop.xlane.xlu0 %9294
        %v9296 = vsel %vm3057, %v9286, 0.0
        %9297 = vadd.xlane.f32.xlu0 %v9296
        %v9298 = vpop.xlane.xlu0 %9297
        %v9299 = vmul.f32 %v9289, %v4118
        %v9300 = vmul.f32 %v9292, %v4118
        %v9301 = vmul.f32 %v9295, %v4118
        %v9302 = vmul.f32 %v9298, %v4118
        %v9303 = vadd.f32 %v9299, 1e-05
        %v9304 = vadd.f32 %v9300, 1e-05
        %v9305 = vadd.f32 %v9301, 1e-05
        %v9306 = vadd.f32 %v9302, 1e-05
        %v9307 = vrsqrt.pop %v9303
        %v9308 = vrsqrt.pop %v9304
        %v9309 = vrsqrt.pop %v9305
        %v9310 = vrsqrt.pop %v9306
        %v9311 = vmul.f32 %v9279, %v9307
        %v9312 = vmul.f32 %v9280, %v9308
        %v9313 = vmul.f32 %v9281, %v9309
        %v9314 = vmul.f32 %v9282, %v9310
        %v9316 = vlaneseq
        %v9317 = vshrl.u32 %v9316, 7
        %v9318 = vsub.s32 0, %v9317
        %v9319 = vrot.slane %v9260, %v9318
        %v9321 = vmul.f32 %v9311, %v9319
        %v9322 = vmul.f32 %v9312, %v9319
        %v9323 = vmul.f32 %v9313, %v9319
        %v9324 = vmul.f32 %v9314, %v9319
        %v9326 = vlaneseq
        %v9327 = vshrl.u32 %v9326, 7
        %v9328 = vsub.s32 0, %v9327
        %v9329 = vrot.slane %v9262, %v9328
        %v9331 = vadd.f32 %v9321, %v9329
        %v9332 = vadd.f32 %v9322, %v9329
        %v9333 = vadd.f32 %v9323, %v9329
        %v9334 = vadd.f32 %v9324, %v9329
        %9335 = vst.msk [vmem:[%s541] sm:$0xff] %vm3057, %v9331
        %9336 = vst.msk [vmem:[%s541 + $0x8] sm:$0xff] %vm3057, %v9332
        %9337 = vst.msk [vmem:[%s541 + $0x10] sm:$0xff] %vm3057, %v9333
        %9338 = vst.msk [vmem:[%s541 + $0x18] sm:$0xff] %vm3057, %v9334
        %s9339 = sand.u32 %s401, 1
        %s9340 = scalar_lea.sflag [#allocation3], %s9339
        %s9341 = sand.u32 %s401, 1
        %s9342 = smul.addr %s9341, 32
        %s9343 = scalar_lea.vmem [#allocation2], %s9342
        // Predicated region
        $region89: #{encoder_branch_forward.1} parent=87 // pred_check
          %p9344 = pneg %p411
        $region90: #{encoder_branch_forward.1} parent=87 // pred_check_branch
          %9346 = sbr.rel (%p9344) target = $region92
        $region91: #{encoder_branch_forward.1} parent=87 // pred_region
          %s9348 = ssub.s32 512, 512
          %9349 = vsyncadd %s9340, %s9348
          %s9350 = smul.addr %s31, 4
          %s9351 = smul.addr %s9350, 128
          %s9352 = scalar_lea.hbm %s17, %s9351
          %s9353 = sshll.u32 %s9343, 4
          %s9354 = int_to_ptr.vmem [resolvable:$true] %s9353
          %9359 = dma.vmem_to_hbm [thread:$0]  %s9354, 512, %s9352, %s9340, 128, 128, 8
        $region92: #{encoder_branch_forward.1} parent=87 // pred_fallthru
          _
      $region88: #{encoder_branch_forward.1} parent=5 // pred_fallthru
        _
      %p9360 = scmp.le.s32.totalorder 2, %s26
      // Predicated region
      $region93: #{encoder_branch_forward.1} parent=5 // pred_check
        %p9361 = pneg %p9360
      $region94: #{encoder_branch_forward.1} parent=5 // pred_check_branch
        %9363 = sbr.rel (%p9361) target = $region96
      $region95: #{encoder_branch_forward.1} parent=5 // pred_region
        %s9364 = ssub.s32 %s26, 2
        // Predicated region
        $region97: #{encoder_branch_forward.1} parent=95 // pred_check
          %p9365 = pneg %p417
        $region98: #{encoder_branch_forward.1} parent=95 // pred_check_branch
          %9367 = sbr.rel (%p9365) target = $region100
        $region99: #{encoder_branch_forward.1} parent=95 // pred_region
          %s9368 = sand.u32 %s402, 1
          %s9369 = scalar_lea.sflag [#allocation3], %s9368
          %s9370 = sand.u32 %s402, 1
          %s9371 = smul.addr %s9370, 32
          %s9372 = scalar_lea.vmem [#allocation2], %s9371
          %9373 = dma.done %s9369, 512
        $region100: #{encoder_branch_forward.1} parent=95 // pred_fallthru
          _
      $region96: #{encoder_branch_forward.1} parent=5 // pred_fallthru
        _
    $region6: #{encoder_branch_forward.1} parent=1 // loop_footer
      %s30 = sadd.s32 1, %s26
    $region7: #{encoder_branch_forward.1} parent=1 // loop_footer_branch
      %25 = sbr.rel target = $region3
    $region8: #{encoder_branch_forward.1} parent=1 // loop_exit
      _
    %9374 = vsyncpa [#allocation3], 1
    %s9375 = scalar_lea.sflag [#allocation3], 1
    %9376 = vsyncpa %s9375, 1

</llo_original>
